<compile_context>
chip_gen: v7x
topology: tpu7x:2x2x1
jax: 0.10.0
libtpu: 0.0.40
codegen_flags: <defaults>
</compile_context>

<pallas_src>
import functools

import jax
import jax.numpy as jnp
from jax import lax
from jax.experimental import pallas as pl
from jax.experimental.pallas import tpu as pltpu


def _round_up(x, m):
    return (x + m - 1) // m * m


# ----------------------------------------------------------------------------
# Kernel: one chunk of timesteps, BOTH directions fused (interleaved).
# grid = (num_chunks,) executed sequentially; forward walks chunks 0..nc-1,
# backward walks chunks nc-1..0 via reversed index_maps (and timesteps in
# reverse inside its chunk).  Hidden states carried across chunks in scratch.
# ----------------------------------------------------------------------------
def gru_bidir_kernel(gi_f_ref, gi_b_ref, whh_ref, bhn_ref, len_ref,
                     out_f_ref, out_b_ref, h_scr, *, hidden_pad, chunk, unroll):
    """
    gi_f_ref : (chunk, Bp, 3Hp)  hoisted input projection, fwd chunk c
    gi_b_ref : (chunk, Bp, 3Hp)  hoisted input projection, bwd chunk nc-1-c
    whh_ref  : (2, Hp, 3Hp)      hidden->gate weights, both dirs (VMEM resident)
    bhn_ref  : (2, 1, Hp)        n-gate hidden bias (r/z hidden bias folded in gi)
    len_ref  : (Bp, 1) int32     sequence lengths
    out_f_ref: (chunk, Bp, Hp)   fwd hidden outputs for chunk c
    out_b_ref: (chunk, Bp, Hp)   bwd hidden outputs for chunk nc-1-c
    h_scr    : (2, Bp, Hp) f32   fwd/bwd hidden state carried across chunks
    """
    Hp = hidden_pad
    Bp = h_scr.shape[1]
    c = pl.program_id(0)
    nc = pl.num_programs(0)

    @pl.when(c == 0)
    def _():
        h_scr[...] = jnp.zeros_like(h_scr)

    # Loop-invariant hoists (unrolled body is replicated and JAX does not CSE
    # broadcasts, so do them once per chunk).
    whh_f = whh_ref[0]                                   # (Hp, 3Hp)
    whh_b = whh_ref[1]
    bhn_f = jnp.broadcast_to(bhn_ref[0], (Bp, Hp))
    bhn_b = jnp.broadcast_to(bhn_ref[1], (Bp, Hp))
    lens = len_ref[...]                                  # (Bp, 1) int32
    base_f = c * chunk                                   # first t of fwd chunk
    base_b = (nc - 1 - c) * chunk                        # first t of bwd chunk

    def cell(gi, h_prev, whh, bhn):
        # PyTorch GRU, gate order [r, z, n]; f32 gate math / f32 accumulation.
        gh = jnp.dot(h_prev.astype(whh.dtype), whh,
                     preferred_element_type=jnp.float32)           # (Bp, 3Hp)
        gi = gi.astype(jnp.float32)
        r = jax.nn.sigmoid(gi[:, :Hp] + gh[:, :Hp])
        z = jax.nn.sigmoid(gi[:, Hp:2 * Hp] + gh[:, Hp:2 * Hp])
        n = jnp.tanh(gi[:, 2 * Hp:] + r * (gh[:, 2 * Hp:] + bhn))
        return (1.0 - z) * n + z * h_prev

    def step(i, carry):
        h_f, h_b = carry
        ir = chunk - 1 - i
        # -- forward recurrence: timestep base_f + i --
        hf_new = cell(gi_f_ref[i], h_f, whh_f, bhn_f)
        m_f = ((base_f + i) < lens).astype(jnp.float32)             # (Bp, 1)
        h_f = m_f * hf_new + (1.0 - m_f) * h_f                      # freeze on pad
        out_f_ref[i] = (m_f * h_f).astype(out_f_ref.dtype)          # zero on pad
        # -- backward recurrence: timestep base_b + ir (chunk walked reversed) --
        hb_new = cell(gi_b_ref[ir], h_b, whh_b, bhn_b)
        m_b = ((base_b + ir) < lens).astype(jnp.float32)
        h_b = m_b * hb_new + (1.0 - m_b) * h_b
        out_b_ref[ir] = (m_b * h_b).astype(out_b_ref.dtype)
        return (h_f, h_b)

    h_f, h_b = lax.fori_loop(0, chunk, step, (h_scr[0], h_scr[1]), unroll=unroll)
    h_scr[0] = h_f
    h_scr[1] = h_b


# ----------------------------------------------------------------------------
# One bidirectional layer (Pallas call).
# ----------------------------------------------------------------------------
def bi_gru_layer(gi, w_hh, bhn, lens_col, *, hidden_pad, chunk, unroll):
    _, T_pad, Bp, Gp = gi.shape
    Hp = hidden_pad
    nc = T_pad // chunk

    kernel = functools.partial(gru_bidir_kernel, hidden_pad=Hp, chunk=chunk,
                               unroll=unroll)
    out_sds = jax.ShapeDtypeStruct((T_pad, Bp, Hp), jnp.float32)
    return pl.pallas_call(
        kernel,
        out_shape=(out_sds, out_sds),
        grid=(nc,),
        in_specs=[
            # fwd direction reads chunks in time order 0..nc-1
            pl.BlockSpec((None, chunk, Bp, Gp), lambda c: (0, c, 0, 0)),
            # bwd direction reads chunks in reverse time order nc-1..0
            pl.BlockSpec((None, chunk, Bp, Gp), lambda c: (1, nc - 1 - c, 0, 0)),
            pl.BlockSpec((2, Hp, Gp), lambda c: (0, 0, 0)),   # W_hh (resident)
            pl.BlockSpec((2, 1, Hp), lambda c: (0, 0, 0)),    # b_hh (n gate)
            pl.BlockSpec((Bp, 1), lambda c: (0, 0)),          # lengths
        ],
        out_specs=(
            pl.BlockSpec((chunk, Bp, Hp), lambda c: (c, 0, 0)),
            pl.BlockSpec((chunk, Bp, Hp), lambda c: (nc - 1 - c, 0, 0)),
        ),
        scratch_shapes=[pltpu.VMEM((2, Bp, Hp), jnp.float32)],
        compiler_params=pltpu.CompilerParams(
            # Single sequential time axis: the hidden-state carry in scratch
            # requires chunks to execute in order 0..nc-1.
            dimension_semantics=("arbitrary",)),
    )(gi, gi, w_hh, bhn, lens_col)


# ----------------------------------------------------------------------------
# Parameter preparation: gate-wise padding H -> Hp (lane alignment), bias
# folding, and next-layer input-slab splitting of W_ih.
# ----------------------------------------------------------------------------
def _pad_gate_cols(w, H, Hp):
    """(..., 3H) -> (..., 3*Hp), zero-padding each gate segment separately."""
    if Hp == H:
        return w
    pads = [(0, 0)] * (w.ndim - 1) + [(0, Hp - H)]
    return jnp.concatenate(
        [jnp.pad(w[..., g * H:(g + 1) * H], pads) for g in range(3)], axis=-1)


def _prepare_layer(p, H, Hp, *, first_layer, weight_dtype):
    # Hidden->gate weights: (H, 3H) -> (2, Hp, 3Hp), MXU operand dtype optional.
    whh_f = jnp.pad(_pad_gate_cols(p["w_hh_f"], H, Hp), ((0, Hp - H), (0, 0)))
    whh_b = jnp.pad(_pad_gate_cols(p["w_hh_b"], H, Hp), ((0, Hp - H), (0, 0)))
    w_hh = jnp.stack([whh_f, whh_b]).astype(weight_dtype)

    # Biases: fold b_ih and the r/z segments of b_hh into the hoisted gi bias;
    # the n-gate hidden bias must stay inside r*(h@W_hn + b_hn).
    def prep_bias(d):
        b_ih = _pad_gate_cols(p[f"b_ih_{d}"], H, Hp)       # (3Hp,)
        b_hh = _pad_gate_cols(p[f"b_hh_{d}"], H, Hp)       # (3Hp,)
        gi_bias = b_ih.at[:2 * Hp].add(b_hh[:2 * Hp])
        return gi_bias, b_hh[2 * Hp:]
    gi_bias_f, bhn_f = prep_bias("f")
    gi_bias_b, bhn_b = prep_bias("b")
    gi_bias = jnp.stack([gi_bias_f, gi_bias_b])            # (2, 3Hp)
    bhn = jnp.stack([bhn_f, bhn_b])[:, None, :]            # (2, 1, Hp)

    # Input->gate weights, split to match the layer-input slabs.
    wf = _pad_gate_cols(p["w_ih_f"], H, Hp)                # (D, 3Hp)
    wb = _pad_gate_cols(p["w_ih_b"], H, Hp)
    if first_layer:
        w_ih_parts = [jnp.stack([wf, wb])]                 # [(2, D, 3Hp)]
    else:
        # Input is the previous layer's two Hp-wide halves (fwd | bwd); split
        # the 2H real rows and zero-pad each half's rows H -> Hp.  Requires
        # input_size == 2 * hidden_size, as MyStackedRNN stacking implies.
        def split_rows(w):
            return (jnp.pad(w[:H], ((0, Hp - H), (0, 0))),
                    jnp.pad(w[H:2 * H], ((0, Hp - H), (0, 0))))
        wf0, wf1 = split_rows(wf)
        wb0, wb1 = split_rows(wb)
        w_ih_parts = [jnp.stack([wf0, wb0]), jnp.stack([wf1, wb1])]
    return w_ih_parts, w_hh, gi_bias, bhn


# ----------------------------------------------------------------------------
# MyStackedRNN.forward
# ----------------------------------------------------------------------------
def stacked_rnn_forward(v, lengths, layers_params, hidden_size, *,
                        chunk=64, unroll=8,
                        gi_dtype=jnp.bfloat16, weight_dtype=jnp.float32):
    """Returns (output (T,B,2H), last_state (B,2H)).

    dropout_p = 0 and enable_layer_norm = False (the exercised configuration).
    Assumes lengths >= 1 (length-0 rows would otherwise gather the last step).
    """
    T, B, _ = v.shape
    H = hidden_size
    Hp = _round_up(H, 128)                     # lane-dense hidden / gates
    Bp = _round_up(B, 8)                       # sublane-aligned batch
    chunk = min(chunk, _round_up(T, 8))        # don't pad tiny T up to a huge chunk
    T_pad = _round_up(T, chunk)
    unroll = True if chunk <= 32 else int(unroll)   # bound code size for big chunks

    lens_col = jnp.pad(lengths.astype(jnp.int32), (0, Bp - B))[:, None]  # (Bp,1)

    # Layer-0 input: one slab of width D (time/batch zero-padded).
    x_parts = [jnp.pad(v.astype(jnp.float32),
                       ((0, T_pad - T), (0, Bp - B), (0, 0)))]

    out_f = out_b = None
    for li, p in enumerate(layers_params):
        w_ih_parts, w_hh, gi_bias, bhn = _prepare_layer(
            p, H, Hp, first_layer=(li == 0), weight_dtype=weight_dtype)
        # Hoisted input projection: one big matmul per input slab over all
        # timesteps and both directions; only h @ W_hh stays in the kernel.
        gi = gi_bias[:, None, None, :]
        for xp, wp in zip(x_parts, w_ih_parts):
            gi = gi + jnp.einsum('tbd,kdg->ktbg', xp, wp,
                                 preferred_element_type=jnp.float32)
        gi = gi.astype(gi_dtype)                                 # (2,Tp,Bp,3Hp)

        out_f, out_b = bi_gru_layer(gi, w_hh, bhn, lens_col,
                                    hidden_pad=Hp, chunk=chunk, unroll=unroll)
        # Feed the next layer the two Hp-wide halves as-is (no slice/concat HBM
        # round trip): padded hidden columns are exactly zero and the next
        # layer's W_ih rows are zero-padded to match.
        x_parts = [out_f, out_b]

    out = jnp.concatenate([out_f[:T, :B, :H], out_b[:T, :B, :H]], axis=-1)
    last = out[jnp.maximum(lengths, 1) - 1, jnp.arange(B), :]    # (B, 2H)
    return out, last


# ----------------------------------------------------------------------------
# Pure-JAX reference (identical packed-sequence semantics) for validation.
# ----------------------------------------------------------------------------
def reference_forward(v, lengths, layers_params, hidden_size):
    H = hidden_size
    T, B, _ = v.shape
    mask = (jnp.arange(T)[:, None] < lengths[None, :]).astype(jnp.float32)[..., None]

    def gru_dir(x, w_ih, w_hh, b_ih, b_hh, reverse):
        def cell(h, inp):
            x_t, m_t = inp
            gi = x_t @ w_ih + b_ih
            gh = h @ w_hh + b_hh
            r = jax.nn.sigmoid(gi[:, :H] + gh[:, :H])
            z = jax.nn.sigmoid(gi[:, H:2 * H] + gh[:, H:2 * H])
            n = jnp.tanh(gi[:, 2 * H:] + r * gh[:, 2 * H:])
            h_new = (1.0 - z) * n + z * h
            h = m_t * h_new + (1.0 - m_t) * h
            return h, m_t * h
        h0 = jnp.zeros((B, H), jnp.float32)
        _, ys = lax.scan(cell, h0, (x, mask), reverse=reverse)
        return ys

    x = v
    for p in layers_params:
        of = gru_dir(x, p["w_ih_f"], p["w_hh_f"], p["b_ih_f"], p["b_hh_f"], False)
        ob = gru_dir(x, p["w_ih_b"], p["w_hh_b"], p["b_ih_b"], p["b_hh_b"], True)
        x = jnp.concatenate([of, ob], axis=-1)
    last = x[jnp.maximum(lengths, 1) - 1, jnp.arange(B), :]
    return x, last


def init_layer_params(key, input_size, hidden_size):
    """Keras-style init: xavier_uniform W_ih, orthogonal W_hh, zero bias."""
    H, D = hidden_size, input_size
    xavier = jax.nn.initializers.glorot_uniform()
    orth = jax.nn.initializers.orthogonal()
    k0, k1, k2, k3 = jax.random.split(key, 4)
    return {
        # PyTorch stores weight_ih as (3H, D); we keep the transposed copy.
        "w_ih_f": xavier(k0, (3 * H, D), jnp.float32).T,
        "w_hh_f": orth(k1, (3 * H, H), jnp.float32).T,
        "w_ih_b": xavier(k2, (3 * H, D), jnp.float32).T,
        "w_hh_b": orth(k3, (3 * H, H), jnp.float32).T,
        "b_ih_f": jnp.zeros((3 * H,), jnp.float32),
        "b_hh_f": jnp.zeros((3 * H,), jnp.float32),
        "b_ih_b": jnp.zeros((3 * H,), jnp.float32),
        "b_hh_b": jnp.zeros((3 * H,), jnp.float32),
    }


if __name__ == "__main__":
    T, B = 8, 2
    hidden_size = 32
    num_layers = 2
    # MyStackedRNN gives every layer the same input_size, so stacking
    # bidirectional layers requires input_size == 2 * hidden_size.
    input_size = 2 * hidden_size

    key = jax.random.PRNGKey(0)
    k_in, *layer_keys = jax.random.split(key, 1 + num_layers)
    v = jax.random.normal(k_in, (T, B, input_size), jnp.float32)
    lengths = jnp.array([T, 5], dtype=jnp.int32)     # right-padded sequences

    params = [init_layer_params(k, input_size, hidden_size) for k in layer_keys]

    ref_out, ref_last = reference_forward(v, lengths, params, hidden_size)

    # 1) exact path (f32 gi / f32 W_hh) — validated against the JAX reference.
    fwd_exact = jax.jit(lambda vv, ll: stacked_rnn_forward(
        vv, ll, params, hidden_size, chunk=64,
        gi_dtype=jnp.float32, weight_dtype=jnp.float32))
    out, last = fwd_exact(v, lengths)
    jax.block_until_ready((out, last))
    assert out.shape == (T, B, 2 * hidden_size)
    assert last.shape == (B, 2 * hidden_size)
    assert bool(jnp.all(out[int(lengths[1]):, 1, :] == 0.0))      # pad -> zero
    assert bool(jnp.allclose(out, ref_out, atol=1e-2, rtol=1e-2))
    assert bool(jnp.allclose(last, ref_last, atol=1e-2, rtol=1e-2))

    # 2) perf path (bf16 gi intermediate, default config).
    fwd_perf = jax.jit(lambda vv, ll: stacked_rnn_forward(
        vv, ll, params, hidden_size))
    out_p, last_p = fwd_perf(v, lengths)
    jax.block_until_ready((out_p, last_p))
    assert bool(jnp.all(out_p[int(lengths[1]):, 1, :] == 0.0))
    assert bool(jnp.all(jnp.isfinite(out_p))) and bool(jnp.all(jnp.isfinite(last_p)))
    assert bool(jnp.allclose(out_p, ref_out, atol=6e-2, rtol=6e-2))

    print("KERNEL_OK")
</pallas_src>

<mosaic_0001>
module attributes {stable_mosaic.version = 11 : i64} {
  func.func @gru_bidir_kernel(%arg0: i32, %arg1: memref<1x8x8x384xf32, #tpu.memory_space<vmem>>, %arg2: memref<1x8x8x384xf32, #tpu.memory_space<vmem>>, %arg3: memref<2x128x384xf32, #tpu.memory_space<vmem>>, %arg4: memref<2x1x128xf32, #tpu.memory_space<vmem>>, %arg5: memref<8x1xi32, #tpu.memory_space<vmem>>, %arg6: memref<8x8x128xf32, #tpu.memory_space<vmem>>, %arg7: memref<8x8x128xf32, #tpu.memory_space<vmem>>, %arg8: memref<2x8x128xf32, #tpu.memory_space<vmem>>) attributes {dimension_semantics = [#tpu.dimension_semantics<arbitrary>], iteration_bounds = array<i64: 1>, scalar_prefetch = 0 : i64, scratch_operands = 1 : i64, tpu.core_type = #tpu.core_type<tc>, window_params = [{transform_indices = @transform_0, window_bounds = array<i64: 1, 8, 8, 384>}, {transform_indices = @transform_1, window_bounds = array<i64: 1, 8, 8, 384>}, {pipeline_mode = #tpu.pipeline_mode<synchronous>, transform_indices = @transform_2, window_bounds = array<i64: 2, 128, 384>}, {pipeline_mode = #tpu.pipeline_mode<synchronous>, transform_indices = @transform_3, window_bounds = array<i64: 2, 1, 128>}, {pipeline_mode = #tpu.pipeline_mode<synchronous>, transform_indices = @transform_4, window_bounds = array<i64: 8, 1>}, {transform_indices = @transform_5, window_bounds = array<i64: 8, 8, 128>}, {transform_indices = @transform_6, window_bounds = array<i64: 8, 8, 128>}]} {
    %c0_i32 = arith.constant 0 : i32
    %0 = arith.cmpi eq, %arg0, %c0_i32 : i32
    %1 = arith.extui %0 : i1 to i32
    %c0_i32_0 = arith.constant 0 : i32
    %2 = arith.cmpi ne, %1, %c0_i32_0 : i32
    scf.if %2 {
      %cst_196 = arith.constant 0.000000e+00 : f32
      %821 = vector.broadcast %cst_196 : f32 to vector<2x8x128xf32>
      %c0_197 = arith.constant 0 : index
      %c0_198 = arith.constant 0 : index
      %c0_199 = arith.constant 0 : index
      %822 = vector.load %arg8[%c0_197, %c0_198, %c0_199] : memref<2x8x128xf32, #tpu.memory_space<vmem>>, vector<2x8x128xf32>
      tpu.vector_store %arg8[%c0_197, %c0_198, %c0_199], %821 {strides = array<i32>} : memref<2x8x128xf32, #tpu.memory_space<vmem>>, vector<2x8x128xf32>,
    } else {
    }
    %c0 = arith.constant 0 : index
    %c0_1 = arith.constant 0 : index
    %c0_2 = arith.constant 0 : index
    %3 = vector.load %arg3[%c0, %c0_1, %c0_2] : memref<2x128x384xf32, #tpu.memory_space<vmem>>, vector<1x128x384xf32>
    %4 = vector.shape_cast %3 : vector<1x128x384xf32> to vector<128x384xf32>
    %c1 = arith.constant 1 : index
    %c0_3 = arith.constant 0 : index
    %c0_4 = arith.constant 0 : index
    %5 = vector.load %arg3[%c1, %c0_3, %c0_4] : memref<2x128x384xf32, #tpu.memory_space<vmem>>, vector<1x128x384xf32>
    %6 = vector.shape_cast %5 : vector<1x128x384xf32> to vector<128x384xf32>
    %c0_5 = arith.constant 0 : index
    %c0_6 = arith.constant 0 : index
    %c0_7 = arith.constant 0 : index
    %7 = vector.load %arg4[%c0_5, %c0_6, %c0_7] : memref<2x1x128xf32, #tpu.memory_space<vmem>>, vector<1x1x128xf32>
    %8 = vector.shape_cast %7 : vector<1x1x128xf32> to vector<1x128xf32>
    %9 = vector.shape_cast %8 : vector<1x128xf32> to vector<1x128xf32>
    %10 = vector.broadcast %9 : vector<1x128xf32> to vector<8x128xf32>
    %c1_8 = arith.constant 1 : index
    %c0_9 = arith.constant 0 : index
    %c0_10 = arith.constant 0 : index
    %11 = vector.load %arg4[%c1_8, %c0_9, %c0_10] : memref<2x1x128xf32, #tpu.memory_space<vmem>>, vector<1x1x128xf32>
    %12 = vector.shape_cast %11 : vector<1x1x128xf32> to vector<1x128xf32>
    %13 = vector.shape_cast %12 : vector<1x128xf32> to vector<1x128xf32>
    %14 = vector.broadcast %13 : vector<1x128xf32> to vector<8x128xf32>
    %c0_11 = arith.constant 0 : index
    %c0_12 = arith.constant 0 : index
    %15 = vector.load %arg5[%c0_11, %c0_12] : memref<8x1xi32, #tpu.memory_space<vmem>>, vector<8x1xi32>
    %c8_i32 = arith.constant 8 : i32
    %16 = arith.muli %arg0, %c8_i32 : i32
    %c0_i32_13 = arith.constant 0 : i32
    %17 = arith.subi %c0_i32_13, %arg0 : i32
    %c8_i32_14 = arith.constant 8 : i32
    %18 = arith.muli %17, %c8_i32_14 : i32
    %c0_15 = arith.constant 0 : index
    %c0_16 = arith.constant 0 : index
    %c0_17 = arith.constant 0 : index
    %19 = vector.load %arg8[%c0_15, %c0_16, %c0_17] : memref<2x8x128xf32, #tpu.memory_space<vmem>>, vector<1x8x128xf32>
    %20 = vector.shape_cast %19 : vector<1x8x128xf32> to vector<8x128xf32>
    %c1_18 = arith.constant 1 : index
    %c0_19 = arith.constant 0 : index
    %c0_20 = arith.constant 0 : index
    %21 = vector.load %arg8[%c1_18, %c0_19, %c0_20] : memref<2x8x128xf32, #tpu.memory_space<vmem>>, vector<1x8x128xf32>
    %22 = vector.shape_cast %21 : vector<1x8x128xf32> to vector<8x128xf32>
    %c0_i32_21 = arith.constant 0 : i32
    %c7_i32 = arith.constant 7 : i32
    %23 = arith.subi %c7_i32, %c0_i32_21 : i32
    %c0_22 = arith.constant 0 : index
    %24 = arith.index_cast %c0_i32_21 : i32 to index
    %c0_23 = arith.constant 0 : index
    %c0_24 = arith.constant 0 : index
    %25 = vector.load %arg1[%c0_22, %24, %c0_23, %c0_24] : memref<1x8x8x384xf32, #tpu.memory_space<vmem>>, vector<1x1x8x384xf32>
    %26 = vector.shape_cast %25 : vector<1x1x8x384xf32> to vector<8x384xf32>
    %cst = arith.constant dense<0.000000e+00> : vector<8x384xf32>
    %27 = tpu.matmul %20, %4, %cst {dimension_numbers = #tpu.dot_dimension_numbers<[1], [0], [0], [1], [0, 0, 1, 1], [], []>} : vector<8x128xf32>, vector<128x384xf32>, vector<8x384xf32> -> vector<8x384xf32>
    %28 = vector.extract_strided_slice %26 {offsets = [0, 0], sizes = [8, 128], strides = [1, 1]} : vector<8x384xf32> to vector<8x128xf32>
    %29 = vector.extract_strided_slice %27 {offsets = [0, 0], sizes = [8, 128], strides = [1, 1]} : vector<8x384xf32> to vector<8x128xf32>
    %30 = arith.addf %28, %29 : vector<8x128xf32>
    %31 = arith.negf %30 : vector<8x128xf32>
    %32 = math.exp %31 : vector<8x128xf32>
    %cst_25 = arith.constant 1.000000e+00 : f32
    %33 = vector.broadcast %cst_25 : f32 to vector<8x128xf32>
    %34 = arith.addf %33, %32 : vector<8x128xf32>
    %35 = arith.divf %33, %34 : vector<8x128xf32>
    %36 = vector.extract_strided_slice %26 {offsets = [0, 128], sizes = [8, 128], strides = [1, 1]} : vector<8x384xf32> to vector<8x128xf32>
    %37 = vector.extract_strided_slice %27 {offsets = [0, 128], sizes = [8, 128], strides = [1, 1]} : vector<8x384xf32> to vector<8x128xf32>
    %38 = arith.addf %36, %37 : vector<8x128xf32>
    %39 = arith.negf %38 : vector<8x128xf32>
    %40 = math.exp %39 : vector<8x128xf32>
    %cst_26 = arith.constant 1.000000e+00 : f32
    %41 = vector.broadcast %cst_26 : f32 to vector<8x128xf32>
    %42 = arith.addf %41, %40 : vector<8x128xf32>
    %43 = arith.divf %41, %42 : vector<8x128xf32>
    %44 = vector.extract_strided_slice %26 {offsets = [0, 256], sizes = [8, 128], strides = [1, 1]} : vector<8x384xf32> to vector<8x128xf32>
    %45 = vector.extract_strided_slice %27 {offsets = [0, 256], sizes = [8, 128], strides = [1, 1]} : vector<8x384xf32> to vector<8x128xf32>
    %46 = arith.addf %45, %10 : vector<8x128xf32>
    %47 = arith.mulf %35, %46 : vector<8x128xf32>
    %48 = arith.addf %44, %47 : vector<8x128xf32>
    %49 = math.tanh %48 : vector<8x128xf32>
    %cst_27 = arith.constant 1.000000e+00 : f32
    %50 = vector.broadcast %cst_27 : f32 to vector<8x128xf32>
    %51 = arith.subf %50, %43 : vector<8x128xf32>
    %52 = arith.mulf %51, %49 : vector<8x128xf32>
    %53 = arith.mulf %43, %20 : vector<8x128xf32>
    %54 = arith.addf %52, %53 : vector<8x128xf32>
    %55 = arith.addi %16, %c0_i32_21 : i32
    %56 = vector.broadcast %55 : i32 to vector<8x1xi32>
    %57 = arith.cmpi slt, %56, %15 : vector<8x1xi32>
    %58 = arith.extui %57 : vector<8x1xi1> to vector<8x1xi32>
    %59 = arith.sitofp %58 : vector<8x1xi32> to vector<8x1xf32>
    %60 = vector.broadcast %59 : vector<8x1xf32> to vector<8x128xf32>
    %61 = arith.mulf %60, %54 : vector<8x128xf32>
    %cst_28 = arith.constant 1.000000e+00 : f32
    %62 = vector.broadcast %cst_28 : f32 to vector<8x1xf32>
    %63 = arith.subf %62, %59 : vector<8x1xf32>
    %64 = vector.broadcast %63 : vector<8x1xf32> to vector<8x128xf32>
    %65 = arith.mulf %64, %20 : vector<8x128xf32>
    %66 = arith.addf %61, %65 : vector<8x128xf32>
    %67 = vector.broadcast %59 : vector<8x1xf32> to vector<8x128xf32>
    %68 = arith.mulf %67, %66 : vector<8x128xf32>
    %69 = arith.index_cast %c0_i32_21 : i32 to index
    %c0_29 = arith.constant 0 : index
    %c0_30 = arith.constant 0 : index
    %70 = vector.load %arg6[%69, %c0_29, %c0_30] : memref<8x8x128xf32, #tpu.memory_space<vmem>>, vector<1x8x128xf32>
    %71 = vector.shape_cast %70 : vector<1x8x128xf32> to vector<8x128xf32>
    %72 = vector.shape_cast %68 : vector<8x128xf32> to vector<1x8x128xf32>
    tpu.vector_store %arg6[%69, %c0_29, %c0_30], %72 {strides = array<i32>} : memref<8x8x128xf32, #tpu.memory_space<vmem>>, vector<1x8x128xf32>,
    %c0_31 = arith.constant 0 : index
    %73 = arith.index_cast %23 : i32 to index
    %c0_32 = arith.constant 0 : index
    %c0_33 = arith.constant 0 : index
    %74 = vector.load %arg2[%c0_31, %73, %c0_32, %c0_33] : memref<1x8x8x384xf32, #tpu.memory_space<vmem>>, vector<1x1x8x384xf32>
    %75 = vector.shape_cast %74 : vector<1x1x8x384xf32> to vector<8x384xf32>
    %cst_34 = arith.constant dense<0.000000e+00> : vector<8x384xf32>
    %76 = tpu.matmul %22, %6, %cst_34 {dimension_numbers = #tpu.dot_dimension_numbers<[1], [0], [0], [1], [0, 0, 1, 1], [], []>} : vector<8x128xf32>, vector<128x384xf32>, vector<8x384xf32> -> vector<8x384xf32>
    %77 = vector.extract_strided_slice %75 {offsets = [0, 0], sizes = [8, 128], strides = [1, 1]} : vector<8x384xf32> to vector<8x128xf32>
    %78 = vector.extract_strided_slice %76 {offsets = [0, 0], sizes = [8, 128], strides = [1, 1]} : vector<8x384xf32> to vector<8x128xf32>
    %79 = arith.addf %77, %78 : vector<8x128xf32>
    %80 = arith.negf %79 : vector<8x128xf32>
    %81 = math.exp %80 : vector<8x128xf32>
    %cst_35 = arith.constant 1.000000e+00 : f32
    %82 = vector.broadcast %cst_35 : f32 to vector<8x128xf32>
    %83 = arith.addf %82, %81 : vector<8x128xf32>
    %84 = arith.divf %82, %83 : vector<8x128xf32>
    %85 = vector.extract_strided_slice %75 {offsets = [0, 128], sizes = [8, 128], strides = [1, 1]} : vector<8x384xf32> to vector<8x128xf32>
    %86 = vector.extract_strided_slice %76 {offsets = [0, 128], sizes = [8, 128], strides = [1, 1]} : vector<8x384xf32> to vector<8x128xf32>
    %87 = arith.addf %85, %86 : vector<8x128xf32>
    %88 = arith.negf %87 : vector<8x128xf32>
    %89 = math.exp %88 : vector<8x128xf32>
    %cst_36 = arith.constant 1.000000e+00 : f32
    %90 = vector.broadcast %cst_36 : f32 to vector<8x128xf32>
    %91 = arith.addf %90, %89 : vector<8x128xf32>
    %92 = arith.divf %90, %91 : vector<8x128xf32>
    %93 = vector.extract_strided_slice %75 {offsets = [0, 256], sizes = [8, 128], strides = [1, 1]} : vector<8x384xf32> to vector<8x128xf32>
    %94 = vector.extract_strided_slice %76 {offsets = [0, 256], sizes = [8, 128], strides = [1, 1]} : vector<8x384xf32> to vector<8x128xf32>
    %95 = arith.addf %94, %14 : vector<8x128xf32>
    %96 = arith.mulf %84, %95 : vector<8x128xf32>
    %97 = arith.addf %93, %96 : vector<8x128xf32>
    %98 = math.tanh %97 : vector<8x128xf32>
    %cst_37 = arith.constant 1.000000e+00 : f32
    %99 = vector.broadcast %cst_37 : f32 to vector<8x128xf32>
    %100 = arith.subf %99, %92 : vector<8x128xf32>
    %101 = arith.mulf %100, %98 : vector<8x128xf32>
    %102 = arith.mulf %92, %22 : vector<8x128xf32>
    %103 = arith.addf %101, %102 : vector<8x128xf32>
    %104 = arith.addi %18, %23 : i32
    %105 = vector.broadcast %104 : i32 to vector<8x1xi32>
    %106 = arith.cmpi slt, %105, %15 : vector<8x1xi32>
    %107 = arith.extui %106 : vector<8x1xi1> to vector<8x1xi32>
    %108 = arith.sitofp %107 : vector<8x1xi32> to vector<8x1xf32>
    %109 = vector.broadcast %108 : vector<8x1xf32> to vector<8x128xf32>
    %110 = arith.mulf %109, %103 : vector<8x128xf32>
    %cst_38 = arith.constant 1.000000e+00 : f32
    %111 = vector.broadcast %cst_38 : f32 to vector<8x1xf32>
    %112 = arith.subf %111, %108 : vector<8x1xf32>
    %113 = vector.broadcast %112 : vector<8x1xf32> to vector<8x128xf32>
    %114 = arith.mulf %113, %22 : vector<8x128xf32>
    %115 = arith.addf %110, %114 : vector<8x128xf32>
    %116 = vector.broadcast %108 : vector<8x1xf32> to vector<8x128xf32>
    %117 = arith.mulf %116, %115 : vector<8x128xf32>
    %118 = arith.index_cast %23 : i32 to index
    %c0_39 = arith.constant 0 : index
    %c0_40 = arith.constant 0 : index
    %119 = vector.load %arg7[%118, %c0_39, %c0_40] : memref<8x8x128xf32, #tpu.memory_space<vmem>>, vector<1x8x128xf32>
    %120 = vector.shape_cast %119 : vector<1x8x128xf32> to vector<8x128xf32>
    %121 = vector.shape_cast %117 : vector<8x128xf32> to vector<1x8x128xf32>
    tpu.vector_store %arg7[%118, %c0_39, %c0_40], %121 {strides = array<i32>} : memref<8x8x128xf32, #tpu.memory_space<vmem>>, vector<1x8x128xf32>,
    %c1_i32 = arith.constant 1 : i32
    %c7_i32_41 = arith.constant 7 : i32
    %122 = arith.subi %c7_i32_41, %c1_i32 : i32
    %c0_42 = arith.constant 0 : index
    %123 = arith.index_cast %c1_i32 : i32 to index
    %c0_43 = arith.constant 0 : index
    %c0_44 = arith.constant 0 : index
    %124 = vector.load %arg1[%c0_42, %123, %c0_43, %c0_44] : memref<1x8x8x384xf32, #tpu.memory_space<vmem>>, vector<1x1x8x384xf32>
    %125 = vector.shape_cast %124 : vector<1x1x8x384xf32> to vector<8x384xf32>
    %cst_45 = arith.constant dense<0.000000e+00> : vector<8x384xf32>
    %126 = tpu.matmul %66, %4, %cst_45 {dimension_numbers = #tpu.dot_dimension_numbers<[1], [0], [0], [1], [0, 0, 1, 1], [], []>} : vector<8x128xf32>, vector<128x384xf32>, vector<8x384xf32> -> vector<8x384xf32>
    %127 = vector.extract_strided_slice %125 {offsets = [0, 0], sizes = [8, 128], strides = [1, 1]} : vector<8x384xf32> to vector<8x128xf32>
    %128 = vector.extract_strided_slice %126 {offsets = [0, 0], sizes = [8, 128], strides = [1, 1]} : vector<8x384xf32> to vector<8x128xf32>
    %129 = arith.addf %127, %128 : vector<8x128xf32>
    %130 = arith.negf %129 : vector<8x128xf32>
    %131 = math.exp %130 : vector<8x128xf32>
    %cst_46 = arith.constant 1.000000e+00 : f32
    %132 = vector.broadcast %cst_46 : f32 to vector<8x128xf32>
    %133 = arith.addf %132, %131 : vector<8x128xf32>
    %134 = arith.divf %132, %133 : vector<8x128xf32>
    %135 = vector.extract_strided_slice %125 {offsets = [0, 128], sizes = [8, 128], strides = [1, 1]} : vector<8x384xf32> to vector<8x128xf32>
    %136 = vector.extract_strided_slice %126 {offsets = [0, 128], sizes = [8, 128], strides = [1, 1]} : vector<8x384xf32> to vector<8x128xf32>
    %137 = arith.addf %135, %136 : vector<8x128xf32>
    %138 = arith.negf %137 : vector<8x128xf32>
    %139 = math.exp %138 : vector<8x128xf32>
    %cst_47 = arith.constant 1.000000e+00 : f32
    %140 = vector.broadcast %cst_47 : f32 to vector<8x128xf32>
    %141 = arith.addf %140, %139 : vector<8x128xf32>
    %142 = arith.divf %140, %141 : vector<8x128xf32>
    %143 = vector.extract_strided_slice %125 {offsets = [0, 256], sizes = [8, 128], strides = [1, 1]} : vector<8x384xf32> to vector<8x128xf32>
    %144 = vector.extract_strided_slice %126 {offsets = [0, 256], sizes = [8, 128], strides = [1, 1]} : vector<8x384xf32> to vector<8x128xf32>
    %145 = arith.addf %144, %10 : vector<8x128xf32>
    %146 = arith.mulf %134, %145 : vector<8x128xf32>
    %147 = arith.addf %143, %146 : vector<8x128xf32>
    %148 = math.tanh %147 : vector<8x128xf32>
    %cst_48 = arith.constant 1.000000e+00 : f32
    %149 = vector.broadcast %cst_48 : f32 to vector<8x128xf32>
    %150 = arith.subf %149, %142 : vector<8x128xf32>
    %151 = arith.mulf %150, %148 : vector<8x128xf32>
    %152 = arith.mulf %142, %66 : vector<8x128xf32>
    %153 = arith.addf %151, %152 : vector<8x128xf32>
    %154 = arith.addi %16, %c1_i32 : i32
    %155 = vector.broadcast %154 : i32 to vector<8x1xi32>
    %156 = arith.cmpi slt, %155, %15 : vector<8x1xi32>
    %157 = arith.extui %156 : vector<8x1xi1> to vector<8x1xi32>
    %158 = arith.sitofp %157 : vector<8x1xi32> to vector<8x1xf32>
    %159 = vector.broadcast %158 : vector<8x1xf32> to vector<8x128xf32>
    %160 = arith.mulf %159, %153 : vector<8x128xf32>
    %cst_49 = arith.constant 1.000000e+00 : f32
    %161 = vector.broadcast %cst_49 : f32 to vector<8x1xf32>
    %162 = arith.subf %161, %158 : vector<8x1xf32>
    %163 = vector.broadcast %162 : vector<8x1xf32> to vector<8x128xf32>
    %164 = arith.mulf %163, %66 : vector<8x128xf32>
    %165 = arith.addf %160, %164 : vector<8x128xf32>
    %166 = vector.broadcast %158 : vector<8x1xf32> to vector<8x128xf32>
    %167 = arith.mulf %166, %165 : vector<8x128xf32>
    %168 = arith.index_cast %c1_i32 : i32 to index
    %c0_50 = arith.constant 0 : index
    %c0_51 = arith.constant 0 : index
    %169 = vector.load %arg6[%168, %c0_50, %c0_51] : memref<8x8x128xf32, #tpu.memory_space<vmem>>, vector<1x8x128xf32>
    %170 = vector.shape_cast %169 : vector<1x8x128xf32> to vector<8x128xf32>
    %171 = vector.shape_cast %167 : vector<8x128xf32> to vector<1x8x128xf32>
    tpu.vector_store %arg6[%168, %c0_50, %c0_51], %171 {strides = array<i32>} : memref<8x8x128xf32, #tpu.memory_space<vmem>>, vector<1x8x128xf32>,
    %c0_52 = arith.constant 0 : index
    %172 = arith.index_cast %122 : i32 to index
    %c0_53 = arith.constant 0 : index
    %c0_54 = arith.constant 0 : index
    %173 = vector.load %arg2[%c0_52, %172, %c0_53, %c0_54] : memref<1x8x8x384xf32, #tpu.memory_space<vmem>>, vector<1x1x8x384xf32>
    %174 = vector.shape_cast %173 : vector<1x1x8x384xf32> to vector<8x384xf32>
    %cst_55 = arith.constant dense<0.000000e+00> : vector<8x384xf32>
    %175 = tpu.matmul %115, %6, %cst_55 {dimension_numbers = #tpu.dot_dimension_numbers<[1], [0], [0], [1], [0, 0, 1, 1], [], []>} : vector<8x128xf32>, vector<128x384xf32>, vector<8x384xf32> -> vector<8x384xf32>
    %176 = vector.extract_strided_slice %174 {offsets = [0, 0], sizes = [8, 128], strides = [1, 1]} : vector<8x384xf32> to vector<8x128xf32>
    %177 = vector.extract_strided_slice %175 {offsets = [0, 0], sizes = [8, 128], strides = [1, 1]} : vector<8x384xf32> to vector<8x128xf32>
    %178 = arith.addf %176, %177 : vector<8x128xf32>
    %179 = arith.negf %178 : vector<8x128xf32>
    %180 = math.exp %179 : vector<8x128xf32>
    %cst_56 = arith.constant 1.000000e+00 : f32
    %181 = vector.broadcast %cst_56 : f32 to vector<8x128xf32>
    %182 = arith.addf %181, %180 : vector<8x128xf32>
    %183 = arith.divf %181, %182 : vector<8x128xf32>
    %184 = vector.extract_strided_slice %174 {offsets = [0, 128], sizes = [8, 128], strides = [1, 1]} : vector<8x384xf32> to vector<8x128xf32>
    %185 = vector.extract_strided_slice %175 {offsets = [0, 128], sizes = [8, 128], strides = [1, 1]} : vector<8x384xf32> to vector<8x128xf32>
    %186 = arith.addf %184, %185 : vector<8x128xf32>
    %187 = arith.negf %186 : vector<8x128xf32>
    %188 = math.exp %187 : vector<8x128xf32>
    %cst_57 = arith.constant 1.000000e+00 : f32
    %189 = vector.broadcast %cst_57 : f32 to vector<8x128xf32>
    %190 = arith.addf %189, %188 : vector<8x128xf32>
    %191 = arith.divf %189, %190 : vector<8x128xf32>
    %192 = vector.extract_strided_slice %174 {offsets = [0, 256], sizes = [8, 128], strides = [1, 1]} : vector<8x384xf32> to vector<8x128xf32>
    %193 = vector.extract_strided_slice %175 {offsets = [0, 256], sizes = [8, 128], strides = [1, 1]} : vector<8x384xf32> to vector<8x128xf32>
    %194 = arith.addf %193, %14 : vector<8x128xf32>
    %195 = arith.mulf %183, %194 : vector<8x128xf32>
    %196 = arith.addf %192, %195 : vector<8x128xf32>
    %197 = math.tanh %196 : vector<8x128xf32>
    %cst_58 = arith.constant 1.000000e+00 : f32
    %198 = vector.broadcast %cst_58 : f32 to vector<8x128xf32>
    %199 = arith.subf %198, %191 : vector<8x128xf32>
    %200 = arith.mulf %199, %197 : vector<8x128xf32>
    %201 = arith.mulf %191, %115 : vector<8x128xf32>
    %202 = arith.addf %200, %201 : vector<8x128xf32>
    %203 = arith.addi %18, %122 : i32
    %204 = vector.broadcast %203 : i32 to vector<8x1xi32>
    %205 = arith.cmpi slt, %204, %15 : vector<8x1xi32>
    %206 = arith.extui %205 : vector<8x1xi1> to vector<8x1xi32>
    %207 = arith.sitofp %206 : vector<8x1xi32> to vector<8x1xf32>
    %208 = vector.broadcast %207 : vector<8x1xf32> to vector<8x128xf32>
    %209 = arith.mulf %208, %202 : vector<8x128xf32>
    %cst_59 = arith.constant 1.000000e+00 : f32
    %210 = vector.broadcast %cst_59 : f32 to vector<8x1xf32>
    %211 = arith.subf %210, %207 : vector<8x1xf32>
    %212 = vector.broadcast %211 : vector<8x1xf32> to vector<8x128xf32>
    %213 = arith.mulf %212, %115 : vector<8x128xf32>
    %214 = arith.addf %209, %213 : vector<8x128xf32>
    %215 = vector.broadcast %207 : vector<8x1xf32> to vector<8x128xf32>
    %216 = arith.mulf %215, %214 : vector<8x128xf32>
    %217 = arith.index_cast %122 : i32 to index
    %c0_60 = arith.constant 0 : index
    %c0_61 = arith.constant 0 : index
    %218 = vector.load %arg7[%217, %c0_60, %c0_61] : memref<8x8x128xf32, #tpu.memory_space<vmem>>, vector<1x8x128xf32>
    %219 = vector.shape_cast %218 : vector<1x8x128xf32> to vector<8x128xf32>
    %220 = vector.shape_cast %216 : vector<8x128xf32> to vector<1x8x128xf32>
    tpu.vector_store %arg7[%217, %c0_60, %c0_61], %220 {strides = array<i32>} : memref<8x8x128xf32, #tpu.memory_space<vmem>>, vector<1x8x128xf32>,
    %c2_i32 = arith.constant 2 : i32
    %c7_i32_62 = arith.constant 7 : i32
    %221 = arith.subi %c7_i32_62, %c2_i32 : i32
    %c0_63 = arith.constant 0 : index
    %222 = arith.index_cast %c2_i32 : i32 to index
    %c0_64 = arith.constant 0 : index
    %c0_65 = arith.constant 0 : index
    %223 = vector.load %arg1[%c0_63, %222, %c0_64, %c0_65] : memref<1x8x8x384xf32, #tpu.memory_space<vmem>>, vector<1x1x8x384xf32>
    %224 = vector.shape_cast %223 : vector<1x1x8x384xf32> to vector<8x384xf32>
    %cst_66 = arith.constant dense<0.000000e+00> : vector<8x384xf32>
    %225 = tpu.matmul %165, %4, %cst_66 {dimension_numbers = #tpu.dot_dimension_numbers<[1], [0], [0], [1], [0, 0, 1, 1], [], []>} : vector<8x128xf32>, vector<128x384xf32>, vector<8x384xf32> -> vector<8x384xf32>
    %226 = vector.extract_strided_slice %224 {offsets = [0, 0], sizes = [8, 128], strides = [1, 1]} : vector<8x384xf32> to vector<8x128xf32>
    %227 = vector.extract_strided_slice %225 {offsets = [0, 0], sizes = [8, 128], strides = [1, 1]} : vector<8x384xf32> to vector<8x128xf32>
    %228 = arith.addf %226, %227 : vector<8x128xf32>
    %229 = arith.negf %228 : vector<8x128xf32>
    %230 = math.exp %229 : vector<8x128xf32>
    %cst_67 = arith.constant 1.000000e+00 : f32
    %231 = vector.broadcast %cst_67 : f32 to vector<8x128xf32>
    %232 = arith.addf %231, %230 : vector<8x128xf32>
    %233 = arith.divf %231, %232 : vector<8x128xf32>
    %234 = vector.extract_strided_slice %224 {offsets = [0, 128], sizes = [8, 128], strides = [1, 1]} : vector<8x384xf32> to vector<8x128xf32>
    %235 = vector.extract_strided_slice %225 {offsets = [0, 128], sizes = [8, 128], strides = [1, 1]} : vector<8x384xf32> to vector<8x128xf32>
    %236 = arith.addf %234, %235 : vector<8x128xf32>
    %237 = arith.negf %236 : vector<8x128xf32>
    %238 = math.exp %237 : vector<8x128xf32>
    %cst_68 = arith.constant 1.000000e+00 : f32
    %239 = vector.broadcast %cst_68 : f32 to vector<8x128xf32>
    %240 = arith.addf %239, %238 : vector<8x128xf32>
    %241 = arith.divf %239, %240 : vector<8x128xf32>
    %242 = vector.extract_strided_slice %224 {offsets = [0, 256], sizes = [8, 128], strides = [1, 1]} : vector<8x384xf32> to vector<8x128xf32>
    %243 = vector.extract_strided_slice %225 {offsets = [0, 256], sizes = [8, 128], strides = [1, 1]} : vector<8x384xf32> to vector<8x128xf32>
    %244 = arith.addf %243, %10 : vector<8x128xf32>
    %245 = arith.mulf %233, %244 : vector<8x128xf32>
    %246 = arith.addf %242, %245 : vector<8x128xf32>
    %247 = math.tanh %246 : vector<8x128xf32>
    %cst_69 = arith.constant 1.000000e+00 : f32
    %248 = vector.broadcast %cst_69 : f32 to vector<8x128xf32>
    %249 = arith.subf %248, %241 : vector<8x128xf32>
    %250 = arith.mulf %249, %247 : vector<8x128xf32>
    %251 = arith.mulf %241, %165 : vector<8x128xf32>
    %252 = arith.addf %250, %251 : vector<8x128xf32>
    %253 = arith.addi %16, %c2_i32 : i32
    %254 = vector.broadcast %253 : i32 to vector<8x1xi32>
    %255 = arith.cmpi slt, %254, %15 : vector<8x1xi32>
    %256 = arith.extui %255 : vector<8x1xi1> to vector<8x1xi32>
    %257 = arith.sitofp %256 : vector<8x1xi32> to vector<8x1xf32>
    %258 = vector.broadcast %257 : vector<8x1xf32> to vector<8x128xf32>
    %259 = arith.mulf %258, %252 : vector<8x128xf32>
    %cst_70 = arith.constant 1.000000e+00 : f32
    %260 = vector.broadcast %cst_70 : f32 to vector<8x1xf32>
    %261 = arith.subf %260, %257 : vector<8x1xf32>
    %262 = vector.broadcast %261 : vector<8x1xf32> to vector<8x128xf32>
    %263 = arith.mulf %262, %165 : vector<8x128xf32>
    %264 = arith.addf %259, %263 : vector<8x128xf32>
    %265 = vector.broadcast %257 : vector<8x1xf32> to vector<8x128xf32>
    %266 = arith.mulf %265, %264 : vector<8x128xf32>
    %267 = arith.index_cast %c2_i32 : i32 to index
    %c0_71 = arith.constant 0 : index
    %c0_72 = arith.constant 0 : index
    %268 = vector.load %arg6[%267, %c0_71, %c0_72] : memref<8x8x128xf32, #tpu.memory_space<vmem>>, vector<1x8x128xf32>
    %269 = vector.shape_cast %268 : vector<1x8x128xf32> to vector<8x128xf32>
    %270 = vector.shape_cast %266 : vector<8x128xf32> to vector<1x8x128xf32>
    tpu.vector_store %arg6[%267, %c0_71, %c0_72], %270 {strides = array<i32>} : memref<8x8x128xf32, #tpu.memory_space<vmem>>, vector<1x8x128xf32>,
    %c0_73 = arith.constant 0 : index
    %271 = arith.index_cast %221 : i32 to index
    %c0_74 = arith.constant 0 : index
    %c0_75 = arith.constant 0 : index
    %272 = vector.load %arg2[%c0_73, %271, %c0_74, %c0_75] : memref<1x8x8x384xf32, #tpu.memory_space<vmem>>, vector<1x1x8x384xf32>
    %273 = vector.shape_cast %272 : vector<1x1x8x384xf32> to vector<8x384xf32>
    %cst_76 = arith.constant dense<0.000000e+00> : vector<8x384xf32>
    %274 = tpu.matmul %214, %6, %cst_76 {dimension_numbers = #tpu.dot_dimension_numbers<[1], [0], [0], [1], [0, 0, 1, 1], [], []>} : vector<8x128xf32>, vector<128x384xf32>, vector<8x384xf32> -> vector<8x384xf32>
    %275 = vector.extract_strided_slice %273 {offsets = [0, 0], sizes = [8, 128], strides = [1, 1]} : vector<8x384xf32> to vector<8x128xf32>
    %276 = vector.extract_strided_slice %274 {offsets = [0, 0], sizes = [8, 128], strides = [1, 1]} : vector<8x384xf32> to vector<8x128xf32>
    %277 = arith.addf %275, %276 : vector<8x128xf32>
    %278 = arith.negf %277 : vector<8x128xf32>
    %279 = math.exp %278 : vector<8x128xf32>
    %cst_77 = arith.constant 1.000000e+00 : f32
    %280 = vector.broadcast %cst_77 : f32 to vector<8x128xf32>
    %281 = arith.addf %280, %279 : vector<8x128xf32>
    %282 = arith.divf %280, %281 : vector<8x128xf32>
    %283 = vector.extract_strided_slice %273 {offsets = [0, 128], sizes = [8, 128], strides = [1, 1]} : vector<8x384xf32> to vector<8x128xf32>
    %284 = vector.extract_strided_slice %274 {offsets = [0, 128], sizes = [8, 128], strides = [1, 1]} : vector<8x384xf32> to vector<8x128xf32>
    %285 = arith.addf %283, %284 : vector<8x128xf32>
    %286 = arith.negf %285 : vector<8x128xf32>
    %287 = math.exp %286 : vector<8x128xf32>
    %cst_78 = arith.constant 1.000000e+00 : f32
    %288 = vector.broadcast %cst_78 : f32 to vector<8x128xf32>
    %289 = arith.addf %288, %287 : vector<8x128xf32>
    %290 = arith.divf %288, %289 : vector<8x128xf32>
    %291 = vector.extract_strided_slice %273 {offsets = [0, 256], sizes = [8, 128], strides = [1, 1]} : vector<8x384xf32> to vector<8x128xf32>
    %292 = vector.extract_strided_slice %274 {offsets = [0, 256], sizes = [8, 128], strides = [1, 1]} : vector<8x384xf32> to vector<8x128xf32>
    %293 = arith.addf %292, %14 : vector<8x128xf32>
    %294 = arith.mulf %282, %293 : vector<8x128xf32>
    %295 = arith.addf %291, %294 : vector<8x128xf32>
    %296 = math.tanh %295 : vector<8x128xf32>
    %cst_79 = arith.constant 1.000000e+00 : f32
    %297 = vector.broadcast %cst_79 : f32 to vector<8x128xf32>
    %298 = arith.subf %297, %290 : vector<8x128xf32>
    %299 = arith.mulf %298, %296 : vector<8x128xf32>
    %300 = arith.mulf %290, %214 : vector<8x128xf32>
    %301 = arith.addf %299, %300 : vector<8x128xf32>
    %302 = arith.addi %18, %221 : i32
    %303 = vector.broadcast %302 : i32 to vector<8x1xi32>
    %304 = arith.cmpi slt, %303, %15 : vector<8x1xi32>
    %305 = arith.extui %304 : vector<8x1xi1> to vector<8x1xi32>
    %306 = arith.sitofp %305 : vector<8x1xi32> to vector<8x1xf32>
    %307 = vector.broadcast %306 : vector<8x1xf32> to vector<8x128xf32>
    %308 = arith.mulf %307, %301 : vector<8x128xf32>
    %cst_80 = arith.constant 1.000000e+00 : f32
    %309 = vector.broadcast %cst_80 : f32 to vector<8x1xf32>
    %310 = arith.subf %309, %306 : vector<8x1xf32>
    %311 = vector.broadcast %310 : vector<8x1xf32> to vector<8x128xf32>
    %312 = arith.mulf %311, %214 : vector<8x128xf32>
    %313 = arith.addf %308, %312 : vector<8x128xf32>
    %314 = vector.broadcast %306 : vector<8x1xf32> to vector<8x128xf32>
    %315 = arith.mulf %314, %313 : vector<8x128xf32>
    %316 = arith.index_cast %221 : i32 to index
    %c0_81 = arith.constant 0 : index
    %c0_82 = arith.constant 0 : index
    %317 = vector.load %arg7[%316, %c0_81, %c0_82] : memref<8x8x128xf32, #tpu.memory_space<vmem>>, vector<1x8x128xf32>
    %318 = vector.shape_cast %317 : vector<1x8x128xf32> to vector<8x128xf32>
    %319 = vector.shape_cast %315 : vector<8x128xf32> to vector<1x8x128xf32>
    tpu.vector_store %arg7[%316, %c0_81, %c0_82], %319 {strides = array<i32>} : memref<8x8x128xf32, #tpu.memory_space<vmem>>, vector<1x8x128xf32>,
    %c3_i32 = arith.constant 3 : i32
    %c7_i32_83 = arith.constant 7 : i32
    %320 = arith.subi %c7_i32_83, %c3_i32 : i32
    %c0_84 = arith.constant 0 : index
    %321 = arith.index_cast %c3_i32 : i32 to index
    %c0_85 = arith.constant 0 : index
    %c0_86 = arith.constant 0 : index
    %322 = vector.load %arg1[%c0_84, %321, %c0_85, %c0_86] : memref<1x8x8x384xf32, #tpu.memory_space<vmem>>, vector<1x1x8x384xf32>
    %323 = vector.shape_cast %322 : vector<1x1x8x384xf32> to vector<8x384xf32>
    %cst_87 = arith.constant dense<0.000000e+00> : vector<8x384xf32>
    %324 = tpu.matmul %264, %4, %cst_87 {dimension_numbers = #tpu.dot_dimension_numbers<[1], [0], [0], [1], [0, 0, 1, 1], [], []>} : vector<8x128xf32>, vector<128x384xf32>, vector<8x384xf32> -> vector<8x384xf32>
    %325 = vector.extract_strided_slice %323 {offsets = [0, 0], sizes = [8, 128], strides = [1, 1]} : vector<8x384xf32> to vector<8x128xf32>
    %326 = vector.extract_strided_slice %324 {offsets = [0, 0], sizes = [8, 128], strides = [1, 1]} : vector<8x384xf32> to vector<8x128xf32>
    %327 = arith.addf %325, %326 : vector<8x128xf32>
    %328 = arith.negf %327 : vector<8x128xf32>
    %329 = math.exp %328 : vector<8x128xf32>
    %cst_88 = arith.constant 1.000000e+00 : f32
    %330 = vector.broadcast %cst_88 : f32 to vector<8x128xf32>
    %331 = arith.addf %330, %329 : vector<8x128xf32>
    %332 = arith.divf %330, %331 : vector<8x128xf32>
    %333 = vector.extract_strided_slice %323 {offsets = [0, 128], sizes = [8, 128], strides = [1, 1]} : vector<8x384xf32> to vector<8x128xf32>
    %334 = vector.extract_strided_slice %324 {offsets = [0, 128], sizes = [8, 128], strides = [1, 1]} : vector<8x384xf32> to vector<8x128xf32>
    %335 = arith.addf %333, %334 : vector<8x128xf32>
    %336 = arith.negf %335 : vector<8x128xf32>
    %337 = math.exp %336 : vector<8x128xf32>
    %cst_89 = arith.constant 1.000000e+00 : f32
    %338 = vector.broadcast %cst_89 : f32 to vector<8x128xf32>
    %339 = arith.addf %338, %337 : vector<8x128xf32>
    %340 = arith.divf %338, %339 : vector<8x128xf32>
    %341 = vector.extract_strided_slice %323 {offsets = [0, 256], sizes = [8, 128], strides = [1, 1]} : vector<8x384xf32> to vector<8x128xf32>
    %342 = vector.extract_strided_slice %324 {offsets = [0, 256], sizes = [8, 128], strides = [1, 1]} : vector<8x384xf32> to vector<8x128xf32>
    %343 = arith.addf %342, %10 : vector<8x128xf32>
    %344 = arith.mulf %332, %343 : vector<8x128xf32>
    %345 = arith.addf %341, %344 : vector<8x128xf32>
    %346 = math.tanh %345 : vector<8x128xf32>
    %cst_90 = arith.constant 1.000000e+00 : f32
    %347 = vector.broadcast %cst_90 : f32 to vector<8x128xf32>
    %348 = arith.subf %347, %340 : vector<8x128xf32>
    %349 = arith.mulf %348, %346 : vector<8x128xf32>
    %350 = arith.mulf %340, %264 : vector<8x128xf32>
    %351 = arith.addf %349, %350 : vector<8x128xf32>
    %352 = arith.addi %16, %c3_i32 : i32
    %353 = vector.broadcast %352 : i32 to vector<8x1xi32>
    %354 = arith.cmpi slt, %353, %15 : vector<8x1xi32>
    %355 = arith.extui %354 : vector<8x1xi1> to vector<8x1xi32>
    %356 = arith.sitofp %355 : vector<8x1xi32> to vector<8x1xf32>
    %357 = vector.broadcast %356 : vector<8x1xf32> to vector<8x128xf32>
    %358 = arith.mulf %357, %351 : vector<8x128xf32>
    %cst_91 = arith.constant 1.000000e+00 : f32
    %359 = vector.broadcast %cst_91 : f32 to vector<8x1xf32>
    %360 = arith.subf %359, %356 : vector<8x1xf32>
    %361 = vector.broadcast %360 : vector<8x1xf32> to vector<8x128xf32>
    %362 = arith.mulf %361, %264 : vector<8x128xf32>
    %363 = arith.addf %358, %362 : vector<8x128xf32>
    %364 = vector.broadcast %356 : vector<8x1xf32> to vector<8x128xf32>
    %365 = arith.mulf %364, %363 : vector<8x128xf32>
    %366 = arith.index_cast %c3_i32 : i32 to index
    %c0_92 = arith.constant 0 : index
    %c0_93 = arith.constant 0 : index
    %367 = vector.load %arg6[%366, %c0_92, %c0_93] : memref<8x8x128xf32, #tpu.memory_space<vmem>>, vector<1x8x128xf32>
    %368 = vector.shape_cast %367 : vector<1x8x128xf32> to vector<8x128xf32>
    %369 = vector.shape_cast %365 : vector<8x128xf32> to vector<1x8x128xf32>
    tpu.vector_store %arg6[%366, %c0_92, %c0_93], %369 {strides = array<i32>} : memref<8x8x128xf32, #tpu.memory_space<vmem>>, vector<1x8x128xf32>,
    %c0_94 = arith.constant 0 : index
    %370 = arith.index_cast %320 : i32 to index
    %c0_95 = arith.constant 0 : index
    %c0_96 = arith.constant 0 : index
    %371 = vector.load %arg2[%c0_94, %370, %c0_95, %c0_96] : memref<1x8x8x384xf32, #tpu.memory_space<vmem>>, vector<1x1x8x384xf32>
    %372 = vector.shape_cast %371 : vector<1x1x8x384xf32> to vector<8x384xf32>
    %cst_97 = arith.constant dense<0.000000e+00> : vector<8x384xf32>
    %373 = tpu.matmul %313, %6, %cst_97 {dimension_numbers = #tpu.dot_dimension_numbers<[1], [0], [0], [1], [0, 0, 1, 1], [], []>} : vector<8x128xf32>, vector<128x384xf32>, vector<8x384xf32> -> vector<8x384xf32>
    %374 = vector.extract_strided_slice %372 {offsets = [0, 0], sizes = [8, 128], strides = [1, 1]} : vector<8x384xf32> to vector<8x128xf32>
    %375 = vector.extract_strided_slice %373 {offsets = [0, 0], sizes = [8, 128], strides = [1, 1]} : vector<8x384xf32> to vector<8x128xf32>
    %376 = arith.addf %374, %375 : vector<8x128xf32>
    %377 = arith.negf %376 : vector<8x128xf32>
    %378 = math.exp %377 : vector<8x128xf32>
    %cst_98 = arith.constant 1.000000e+00 : f32
    %379 = vector.broadcast %cst_98 : f32 to vector<8x128xf32>
    %380 = arith.addf %379, %378 : vector<8x128xf32>
    %381 = arith.divf %379, %380 : vector<8x128xf32>
    %382 = vector.extract_strided_slice %372 {offsets = [0, 128], sizes = [8, 128], strides = [1, 1]} : vector<8x384xf32> to vector<8x128xf32>
    %383 = vector.extract_strided_slice %373 {offsets = [0, 128], sizes = [8, 128], strides = [1, 1]} : vector<8x384xf32> to vector<8x128xf32>
    %384 = arith.addf %382, %383 : vector<8x128xf32>
    %385 = arith.negf %384 : vector<8x128xf32>
    %386 = math.exp %385 : vector<8x128xf32>
    %cst_99 = arith.constant 1.000000e+00 : f32
    %387 = vector.broadcast %cst_99 : f32 to vector<8x128xf32>
    %388 = arith.addf %387, %386 : vector<8x128xf32>
    %389 = arith.divf %387, %388 : vector<8x128xf32>
    %390 = vector.extract_strided_slice %372 {offsets = [0, 256], sizes = [8, 128], strides = [1, 1]} : vector<8x384xf32> to vector<8x128xf32>
    %391 = vector.extract_strided_slice %373 {offsets = [0, 256], sizes = [8, 128], strides = [1, 1]} : vector<8x384xf32> to vector<8x128xf32>
    %392 = arith.addf %391, %14 : vector<8x128xf32>
    %393 = arith.mulf %381, %392 : vector<8x128xf32>
    %394 = arith.addf %390, %393 : vector<8x128xf32>
    %395 = math.tanh %394 : vector<8x128xf32>
    %cst_100 = arith.constant 1.000000e+00 : f32
    %396 = vector.broadcast %cst_100 : f32 to vector<8x128xf32>
    %397 = arith.subf %396, %389 : vector<8x128xf32>
    %398 = arith.mulf %397, %395 : vector<8x128xf32>
    %399 = arith.mulf %389, %313 : vector<8x128xf32>
    %400 = arith.addf %398, %399 : vector<8x128xf32>
    %401 = arith.addi %18, %320 : i32
    %402 = vector.broadcast %401 : i32 to vector<8x1xi32>
    %403 = arith.cmpi slt, %402, %15 : vector<8x1xi32>
    %404 = arith.extui %403 : vector<8x1xi1> to vector<8x1xi32>
    %405 = arith.sitofp %404 : vector<8x1xi32> to vector<8x1xf32>
    %406 = vector.broadcast %405 : vector<8x1xf32> to vector<8x128xf32>
    %407 = arith.mulf %406, %400 : vector<8x128xf32>
    %cst_101 = arith.constant 1.000000e+00 : f32
    %408 = vector.broadcast %cst_101 : f32 to vector<8x1xf32>
    %409 = arith.subf %408, %405 : vector<8x1xf32>
    %410 = vector.broadcast %409 : vector<8x1xf32> to vector<8x128xf32>
    %411 = arith.mulf %410, %313 : vector<8x128xf32>
    %412 = arith.addf %407, %411 : vector<8x128xf32>
    %413 = vector.broadcast %405 : vector<8x1xf32> to vector<8x128xf32>
    %414 = arith.mulf %413, %412 : vector<8x128xf32>
    %415 = arith.index_cast %320 : i32 to index
    %c0_102 = arith.constant 0 : index
    %c0_103 = arith.constant 0 : index
    %416 = vector.load %arg7[%415, %c0_102, %c0_103] : memref<8x8x128xf32, #tpu.memory_space<vmem>>, vector<1x8x128xf32>
    %417 = vector.shape_cast %416 : vector<1x8x128xf32> to vector<8x128xf32>
    %418 = vector.shape_cast %414 : vector<8x128xf32> to vector<1x8x128xf32>
    tpu.vector_store %arg7[%415, %c0_102, %c0_103], %418 {strides = array<i32>} : memref<8x8x128xf32, #tpu.memory_space<vmem>>, vector<1x8x128xf32>,
    %c4_i32 = arith.constant 4 : i32
    %c7_i32_104 = arith.constant 7 : i32
    %419 = arith.subi %c7_i32_104, %c4_i32 : i32
    %c0_105 = arith.constant 0 : index
    %420 = arith.index_cast %c4_i32 : i32 to index
    %c0_106 = arith.constant 0 : index
    %c0_107 = arith.constant 0 : index
    %421 = vector.load %arg1[%c0_105, %420, %c0_106, %c0_107] : memref<1x8x8x384xf32, #tpu.memory_space<vmem>>, vector<1x1x8x384xf32>
    %422 = vector.shape_cast %421 : vector<1x1x8x384xf32> to vector<8x384xf32>
    %cst_108 = arith.constant dense<0.000000e+00> : vector<8x384xf32>
    %423 = tpu.matmul %363, %4, %cst_108 {dimension_numbers = #tpu.dot_dimension_numbers<[1], [0], [0], [1], [0, 0, 1, 1], [], []>} : vector<8x128xf32>, vector<128x384xf32>, vector<8x384xf32> -> vector<8x384xf32>
    %424 = vector.extract_strided_slice %422 {offsets = [0, 0], sizes = [8, 128], strides = [1, 1]} : vector<8x384xf32> to vector<8x128xf32>
    %425 = vector.extract_strided_slice %423 {offsets = [0, 0], sizes = [8, 128], strides = [1, 1]} : vector<8x384xf32> to vector<8x128xf32>
    %426 = arith.addf %424, %425 : vector<8x128xf32>
    %427 = arith.negf %426 : vector<8x128xf32>
    %428 = math.exp %427 : vector<8x128xf32>
    %cst_109 = arith.constant 1.000000e+00 : f32
    %429 = vector.broadcast %cst_109 : f32 to vector<8x128xf32>
    %430 = arith.addf %429, %428 : vector<8x128xf32>
    %431 = arith.divf %429, %430 : vector<8x128xf32>
    %432 = vector.extract_strided_slice %422 {offsets = [0, 128], sizes = [8, 128], strides = [1, 1]} : vector<8x384xf32> to vector<8x128xf32>
    %433 = vector.extract_strided_slice %423 {offsets = [0, 128], sizes = [8, 128], strides = [1, 1]} : vector<8x384xf32> to vector<8x128xf32>
    %434 = arith.addf %432, %433 : vector<8x128xf32>
    %435 = arith.negf %434 : vector<8x128xf32>
    %436 = math.exp %435 : vector<8x128xf32>
    %cst_110 = arith.constant 1.000000e+00 : f32
    %437 = vector.broadcast %cst_110 : f32 to vector<8x128xf32>
    %438 = arith.addf %437, %436 : vector<8x128xf32>
    %439 = arith.divf %437, %438 : vector<8x128xf32>
    %440 = vector.extract_strided_slice %422 {offsets = [0, 256], sizes = [8, 128], strides = [1, 1]} : vector<8x384xf32> to vector<8x128xf32>
    %441 = vector.extract_strided_slice %423 {offsets = [0, 256], sizes = [8, 128], strides = [1, 1]} : vector<8x384xf32> to vector<8x128xf32>
    %442 = arith.addf %441, %10 : vector<8x128xf32>
    %443 = arith.mulf %431, %442 : vector<8x128xf32>
    %444 = arith.addf %440, %443 : vector<8x128xf32>
    %445 = math.tanh %444 : vector<8x128xf32>
    %cst_111 = arith.constant 1.000000e+00 : f32
    %446 = vector.broadcast %cst_111 : f32 to vector<8x128xf32>
    %447 = arith.subf %446, %439 : vector<8x128xf32>
    %448 = arith.mulf %447, %445 : vector<8x128xf32>
    %449 = arith.mulf %439, %363 : vector<8x128xf32>
    %450 = arith.addf %448, %449 : vector<8x128xf32>
    %451 = arith.addi %16, %c4_i32 : i32
    %452 = vector.broadcast %451 : i32 to vector<8x1xi32>
    %453 = arith.cmpi slt, %452, %15 : vector<8x1xi32>
    %454 = arith.extui %453 : vector<8x1xi1> to vector<8x1xi32>
    %455 = arith.sitofp %454 : vector<8x1xi32> to vector<8x1xf32>
    %456 = vector.broadcast %455 : vector<8x1xf32> to vector<8x128xf32>
    %457 = arith.mulf %456, %450 : vector<8x128xf32>
    %cst_112 = arith.constant 1.000000e+00 : f32
    %458 = vector.broadcast %cst_112 : f32 to vector<8x1xf32>
    %459 = arith.subf %458, %455 : vector<8x1xf32>
    %460 = vector.broadcast %459 : vector<8x1xf32> to vector<8x128xf32>
    %461 = arith.mulf %460, %363 : vector<8x128xf32>
    %462 = arith.addf %457, %461 : vector<8x128xf32>
    %463 = vector.broadcast %455 : vector<8x1xf32> to vector<8x128xf32>
    %464 = arith.mulf %463, %462 : vector<8x128xf32>
    %465 = arith.index_cast %c4_i32 : i32 to index
    %c0_113 = arith.constant 0 : index
    %c0_114 = arith.constant 0 : index
    %466 = vector.load %arg6[%465, %c0_113, %c0_114] : memref<8x8x128xf32, #tpu.memory_space<vmem>>, vector<1x8x128xf32>
    %467 = vector.shape_cast %466 : vector<1x8x128xf32> to vector<8x128xf32>
    %468 = vector.shape_cast %464 : vector<8x128xf32> to vector<1x8x128xf32>
    tpu.vector_store %arg6[%465, %c0_113, %c0_114], %468 {strides = array<i32>} : memref<8x8x128xf32, #tpu.memory_space<vmem>>, vector<1x8x128xf32>,
    %c0_115 = arith.constant 0 : index
    %469 = arith.index_cast %419 : i32 to index
    %c0_116 = arith.constant 0 : index
    %c0_117 = arith.constant 0 : index
    %470 = vector.load %arg2[%c0_115, %469, %c0_116, %c0_117] : memref<1x8x8x384xf32, #tpu.memory_space<vmem>>, vector<1x1x8x384xf32>
    %471 = vector.shape_cast %470 : vector<1x1x8x384xf32> to vector<8x384xf32>
    %cst_118 = arith.constant dense<0.000000e+00> : vector<8x384xf32>
    %472 = tpu.matmul %412, %6, %cst_118 {dimension_numbers = #tpu.dot_dimension_numbers<[1], [0], [0], [1], [0, 0, 1, 1], [], []>} : vector<8x128xf32>, vector<128x384xf32>, vector<8x384xf32> -> vector<8x384xf32>
    %473 = vector.extract_strided_slice %471 {offsets = [0, 0], sizes = [8, 128], strides = [1, 1]} : vector<8x384xf32> to vector<8x128xf32>
    %474 = vector.extract_strided_slice %472 {offsets = [0, 0], sizes = [8, 128], strides = [1, 1]} : vector<8x384xf32> to vector<8x128xf32>
    %475 = arith.addf %473, %474 : vector<8x128xf32>
    %476 = arith.negf %475 : vector<8x128xf32>
    %477 = math.exp %476 : vector<8x128xf32>
    %cst_119 = arith.constant 1.000000e+00 : f32
    %478 = vector.broadcast %cst_119 : f32 to vector<8x128xf32>
    %479 = arith.addf %478, %477 : vector<8x128xf32>
    %480 = arith.divf %478, %479 : vector<8x128xf32>
    %481 = vector.extract_strided_slice %471 {offsets = [0, 128], sizes = [8, 128], strides = [1, 1]} : vector<8x384xf32> to vector<8x128xf32>
    %482 = vector.extract_strided_slice %472 {offsets = [0, 128], sizes = [8, 128], strides = [1, 1]} : vector<8x384xf32> to vector<8x128xf32>
    %483 = arith.addf %481, %482 : vector<8x128xf32>
    %484 = arith.negf %483 : vector<8x128xf32>
    %485 = math.exp %484 : vector<8x128xf32>
    %cst_120 = arith.constant 1.000000e+00 : f32
    %486 = vector.broadcast %cst_120 : f32 to vector<8x128xf32>
    %487 = arith.addf %486, %485 : vector<8x128xf32>
    %488 = arith.divf %486, %487 : vector<8x128xf32>
    %489 = vector.extract_strided_slice %471 {offsets = [0, 256], sizes = [8, 128], strides = [1, 1]} : vector<8x384xf32> to vector<8x128xf32>
    %490 = vector.extract_strided_slice %472 {offsets = [0, 256], sizes = [8, 128], strides = [1, 1]} : vector<8x384xf32> to vector<8x128xf32>
    %491 = arith.addf %490, %14 : vector<8x128xf32>
    %492 = arith.mulf %480, %491 : vector<8x128xf32>
    %493 = arith.addf %489, %492 : vector<8x128xf32>
    %494 = math.tanh %493 : vector<8x128xf32>
    %cst_121 = arith.constant 1.000000e+00 : f32
    %495 = vector.broadcast %cst_121 : f32 to vector<8x128xf32>
    %496 = arith.subf %495, %488 : vector<8x128xf32>
    %497 = arith.mulf %496, %494 : vector<8x128xf32>
    %498 = arith.mulf %488, %412 : vector<8x128xf32>
    %499 = arith.addf %497, %498 : vector<8x128xf32>
    %500 = arith.addi %18, %419 : i32
    %501 = vector.broadcast %500 : i32 to vector<8x1xi32>
    %502 = arith.cmpi slt, %501, %15 : vector<8x1xi32>
    %503 = arith.extui %502 : vector<8x1xi1> to vector<8x1xi32>
    %504 = arith.sitofp %503 : vector<8x1xi32> to vector<8x1xf32>
    %505 = vector.broadcast %504 : vector<8x1xf32> to vector<8x128xf32>
    %506 = arith.mulf %505, %499 : vector<8x128xf32>
    %cst_122 = arith.constant 1.000000e+00 : f32
    %507 = vector.broadcast %cst_122 : f32 to vector<8x1xf32>
    %508 = arith.subf %507, %504 : vector<8x1xf32>
    %509 = vector.broadcast %508 : vector<8x1xf32> to vector<8x128xf32>
    %510 = arith.mulf %509, %412 : vector<8x128xf32>
    %511 = arith.addf %506, %510 : vector<8x128xf32>
    %512 = vector.broadcast %504 : vector<8x1xf32> to vector<8x128xf32>
    %513 = arith.mulf %512, %511 : vector<8x128xf32>
    %514 = arith.index_cast %419 : i32 to index
    %c0_123 = arith.constant 0 : index
    %c0_124 = arith.constant 0 : index
    %515 = vector.load %arg7[%514, %c0_123, %c0_124] : memref<8x8x128xf32, #tpu.memory_space<vmem>>, vector<1x8x128xf32>
    %516 = vector.shape_cast %515 : vector<1x8x128xf32> to vector<8x128xf32>
    %517 = vector.shape_cast %513 : vector<8x128xf32> to vector<1x8x128xf32>
    tpu.vector_store %arg7[%514, %c0_123, %c0_124], %517 {strides = array<i32>} : memref<8x8x128xf32, #tpu.memory_space<vmem>>, vector<1x8x128xf32>,
    %c5_i32 = arith.constant 5 : i32
    %c7_i32_125 = arith.constant 7 : i32
    %518 = arith.subi %c7_i32_125, %c5_i32 : i32
    %c0_126 = arith.constant 0 : index
    %519 = arith.index_cast %c5_i32 : i32 to index
    %c0_127 = arith.constant 0 : index
    %c0_128 = arith.constant 0 : index
    %520 = vector.load %arg1[%c0_126, %519, %c0_127, %c0_128] : memref<1x8x8x384xf32, #tpu.memory_space<vmem>>, vector<1x1x8x384xf32>
    %521 = vector.shape_cast %520 : vector<1x1x8x384xf32> to vector<8x384xf32>
    %cst_129 = arith.constant dense<0.000000e+00> : vector<8x384xf32>
    %522 = tpu.matmul %462, %4, %cst_129 {dimension_numbers = #tpu.dot_dimension_numbers<[1], [0], [0], [1], [0, 0, 1, 1], [], []>} : vector<8x128xf32>, vector<128x384xf32>, vector<8x384xf32> -> vector<8x384xf32>
    %523 = vector.extract_strided_slice %521 {offsets = [0, 0], sizes = [8, 128], strides = [1, 1]} : vector<8x384xf32> to vector<8x128xf32>
    %524 = vector.extract_strided_slice %522 {offsets = [0, 0], sizes = [8, 128], strides = [1, 1]} : vector<8x384xf32> to vector<8x128xf32>
    %525 = arith.addf %523, %524 : vector<8x128xf32>
    %526 = arith.negf %525 : vector<8x128xf32>
    %527 = math.exp %526 : vector<8x128xf32>
    %cst_130 = arith.constant 1.000000e+00 : f32
    %528 = vector.broadcast %cst_130 : f32 to vector<8x128xf32>
    %529 = arith.addf %528, %527 : vector<8x128xf32>
    %530 = arith.divf %528, %529 : vector<8x128xf32>
    %531 = vector.extract_strided_slice %521 {offsets = [0, 128], sizes = [8, 128], strides = [1, 1]} : vector<8x384xf32> to vector<8x128xf32>
    %532 = vector.extract_strided_slice %522 {offsets = [0, 128], sizes = [8, 128], strides = [1, 1]} : vector<8x384xf32> to vector<8x128xf32>
    %533 = arith.addf %531, %532 : vector<8x128xf32>
    %534 = arith.negf %533 : vector<8x128xf32>
    %535 = math.exp %534 : vector<8x128xf32>
    %cst_131 = arith.constant 1.000000e+00 : f32
    %536 = vector.broadcast %cst_131 : f32 to vector<8x128xf32>
    %537 = arith.addf %536, %535 : vector<8x128xf32>
    %538 = arith.divf %536, %537 : vector<8x128xf32>
    %539 = vector.extract_strided_slice %521 {offsets = [0, 256], sizes = [8, 128], strides = [1, 1]} : vector<8x384xf32> to vector<8x128xf32>
    %540 = vector.extract_strided_slice %522 {offsets = [0, 256], sizes = [8, 128], strides = [1, 1]} : vector<8x384xf32> to vector<8x128xf32>
    %541 = arith.addf %540, %10 : vector<8x128xf32>
    %542 = arith.mulf %530, %541 : vector<8x128xf32>
    %543 = arith.addf %539, %542 : vector<8x128xf32>
    %544 = math.tanh %543 : vector<8x128xf32>
    %cst_132 = arith.constant 1.000000e+00 : f32
    %545 = vector.broadcast %cst_132 : f32 to vector<8x128xf32>
    %546 = arith.subf %545, %538 : vector<8x128xf32>
    %547 = arith.mulf %546, %544 : vector<8x128xf32>
    %548 = arith.mulf %538, %462 : vector<8x128xf32>
    %549 = arith.addf %547, %548 : vector<8x128xf32>
    %550 = arith.addi %16, %c5_i32 : i32
    %551 = vector.broadcast %550 : i32 to vector<8x1xi32>
    %552 = arith.cmpi slt, %551, %15 : vector<8x1xi32>
    %553 = arith.extui %552 : vector<8x1xi1> to vector<8x1xi32>
    %554 = arith.sitofp %553 : vector<8x1xi32> to vector<8x1xf32>
    %555 = vector.broadcast %554 : vector<8x1xf32> to vector<8x128xf32>
    %556 = arith.mulf %555, %549 : vector<8x128xf32>
    %cst_133 = arith.constant 1.000000e+00 : f32
    %557 = vector.broadcast %cst_133 : f32 to vector<8x1xf32>
    %558 = arith.subf %557, %554 : vector<8x1xf32>
    %559 = vector.broadcast %558 : vector<8x1xf32> to vector<8x128xf32>
    %560 = arith.mulf %559, %462 : vector<8x128xf32>
    %561 = arith.addf %556, %560 : vector<8x128xf32>
    %562 = vector.broadcast %554 : vector<8x1xf32> to vector<8x128xf32>
    %563 = arith.mulf %562, %561 : vector<8x128xf32>
    %564 = arith.index_cast %c5_i32 : i32 to index
    %c0_134 = arith.constant 0 : index
    %c0_135 = arith.constant 0 : index
    %565 = vector.load %arg6[%564, %c0_134, %c0_135] : memref<8x8x128xf32, #tpu.memory_space<vmem>>, vector<1x8x128xf32>
    %566 = vector.shape_cast %565 : vector<1x8x128xf32> to vector<8x128xf32>
    %567 = vector.shape_cast %563 : vector<8x128xf32> to vector<1x8x128xf32>
    tpu.vector_store %arg6[%564, %c0_134, %c0_135], %567 {strides = array<i32>} : memref<8x8x128xf32, #tpu.memory_space<vmem>>, vector<1x8x128xf32>,
    %c0_136 = arith.constant 0 : index
    %568 = arith.index_cast %518 : i32 to index
    %c0_137 = arith.constant 0 : index
    %c0_138 = arith.constant 0 : index
    %569 = vector.load %arg2[%c0_136, %568, %c0_137, %c0_138] : memref<1x8x8x384xf32, #tpu.memory_space<vmem>>, vector<1x1x8x384xf32>
    %570 = vector.shape_cast %569 : vector<1x1x8x384xf32> to vector<8x384xf32>
    %cst_139 = arith.constant dense<0.000000e+00> : vector<8x384xf32>
    %571 = tpu.matmul %511, %6, %cst_139 {dimension_numbers = #tpu.dot_dimension_numbers<[1], [0], [0], [1], [0, 0, 1, 1], [], []>} : vector<8x128xf32>, vector<128x384xf32>, vector<8x384xf32> -> vector<8x384xf32>
    %572 = vector.extract_strided_slice %570 {offsets = [0, 0], sizes = [8, 128], strides = [1, 1]} : vector<8x384xf32> to vector<8x128xf32>
    %573 = vector.extract_strided_slice %571 {offsets = [0, 0], sizes = [8, 128], strides = [1, 1]} : vector<8x384xf32> to vector<8x128xf32>
    %574 = arith.addf %572, %573 : vector<8x128xf32>
    %575 = arith.negf %574 : vector<8x128xf32>
    %576 = math.exp %575 : vector<8x128xf32>
    %cst_140 = arith.constant 1.000000e+00 : f32
    %577 = vector.broadcast %cst_140 : f32 to vector<8x128xf32>
    %578 = arith.addf %577, %576 : vector<8x128xf32>
    %579 = arith.divf %577, %578 : vector<8x128xf32>
    %580 = vector.extract_strided_slice %570 {offsets = [0, 128], sizes = [8, 128], strides = [1, 1]} : vector<8x384xf32> to vector<8x128xf32>
    %581 = vector.extract_strided_slice %571 {offsets = [0, 128], sizes = [8, 128], strides = [1, 1]} : vector<8x384xf32> to vector<8x128xf32>
    %582 = arith.addf %580, %581 : vector<8x128xf32>
    %583 = arith.negf %582 : vector<8x128xf32>
    %584 = math.exp %583 : vector<8x128xf32>
    %cst_141 = arith.constant 1.000000e+00 : f32
    %585 = vector.broadcast %cst_141 : f32 to vector<8x128xf32>
    %586 = arith.addf %585, %584 : vector<8x128xf32>
    %587 = arith.divf %585, %586 : vector<8x128xf32>
    %588 = vector.extract_strided_slice %570 {offsets = [0, 256], sizes = [8, 128], strides = [1, 1]} : vector<8x384xf32> to vector<8x128xf32>
    %589 = vector.extract_strided_slice %571 {offsets = [0, 256], sizes = [8, 128], strides = [1, 1]} : vector<8x384xf32> to vector<8x128xf32>
    %590 = arith.addf %589, %14 : vector<8x128xf32>
    %591 = arith.mulf %579, %590 : vector<8x128xf32>
    %592 = arith.addf %588, %591 : vector<8x128xf32>
    %593 = math.tanh %592 : vector<8x128xf32>
    %cst_142 = arith.constant 1.000000e+00 : f32
    %594 = vector.broadcast %cst_142 : f32 to vector<8x128xf32>
    %595 = arith.subf %594, %587 : vector<8x128xf32>
    %596 = arith.mulf %595, %593 : vector<8x128xf32>
    %597 = arith.mulf %587, %511 : vector<8x128xf32>
    %598 = arith.addf %596, %597 : vector<8x128xf32>
    %599 = arith.addi %18, %518 : i32
    %600 = vector.broadcast %599 : i32 to vector<8x1xi32>
    %601 = arith.cmpi slt, %600, %15 : vector<8x1xi32>
    %602 = arith.extui %601 : vector<8x1xi1> to vector<8x1xi32>
    %603 = arith.sitofp %602 : vector<8x1xi32> to vector<8x1xf32>
    %604 = vector.broadcast %603 : vector<8x1xf32> to vector<8x128xf32>
    %605 = arith.mulf %604, %598 : vector<8x128xf32>
    %cst_143 = arith.constant 1.000000e+00 : f32
    %606 = vector.broadcast %cst_143 : f32 to vector<8x1xf32>
    %607 = arith.subf %606, %603 : vector<8x1xf32>
    %608 = vector.broadcast %607 : vector<8x1xf32> to vector<8x128xf32>
    %609 = arith.mulf %608, %511 : vector<8x128xf32>
    %610 = arith.addf %605, %609 : vector<8x128xf32>
    %611 = vector.broadcast %603 : vector<8x1xf32> to vector<8x128xf32>
    %612 = arith.mulf %611, %610 : vector<8x128xf32>
    %613 = arith.index_cast %518 : i32 to index
    %c0_144 = arith.constant 0 : index
    %c0_145 = arith.constant 0 : index
    %614 = vector.load %arg7[%613, %c0_144, %c0_145] : memref<8x8x128xf32, #tpu.memory_space<vmem>>, vector<1x8x128xf32>
    %615 = vector.shape_cast %614 : vector<1x8x128xf32> to vector<8x128xf32>
    %616 = vector.shape_cast %612 : vector<8x128xf32> to vector<1x8x128xf32>
    tpu.vector_store %arg7[%613, %c0_144, %c0_145], %616 {strides = array<i32>} : memref<8x8x128xf32, #tpu.memory_space<vmem>>, vector<1x8x128xf32>,
    %c6_i32 = arith.constant 6 : i32
    %c7_i32_146 = arith.constant 7 : i32
    %617 = arith.subi %c7_i32_146, %c6_i32 : i32
    %c0_147 = arith.constant 0 : index
    %618 = arith.index_cast %c6_i32 : i32 to index
    %c0_148 = arith.constant 0 : index
    %c0_149 = arith.constant 0 : index
    %619 = vector.load %arg1[%c0_147, %618, %c0_148, %c0_149] : memref<1x8x8x384xf32, #tpu.memory_space<vmem>>, vector<1x1x8x384xf32>
    %620 = vector.shape_cast %619 : vector<1x1x8x384xf32> to vector<8x384xf32>
    %cst_150 = arith.constant dense<0.000000e+00> : vector<8x384xf32>
    %621 = tpu.matmul %561, %4, %cst_150 {dimension_numbers = #tpu.dot_dimension_numbers<[1], [0], [0], [1], [0, 0, 1, 1], [], []>} : vector<8x128xf32>, vector<128x384xf32>, vector<8x384xf32> -> vector<8x384xf32>
    %622 = vector.extract_strided_slice %620 {offsets = [0, 0], sizes = [8, 128], strides = [1, 1]} : vector<8x384xf32> to vector<8x128xf32>
    %623 = vector.extract_strided_slice %621 {offsets = [0, 0], sizes = [8, 128], strides = [1, 1]} : vector<8x384xf32> to vector<8x128xf32>
    %624 = arith.addf %622, %623 : vector<8x128xf32>
    %625 = arith.negf %624 : vector<8x128xf32>
    %626 = math.exp %625 : vector<8x128xf32>
    %cst_151 = arith.constant 1.000000e+00 : f32
    %627 = vector.broadcast %cst_151 : f32 to vector<8x128xf32>
    %628 = arith.addf %627, %626 : vector<8x128xf32>
    %629 = arith.divf %627, %628 : vector<8x128xf32>
    %630 = vector.extract_strided_slice %620 {offsets = [0, 128], sizes = [8, 128], strides = [1, 1]} : vector<8x384xf32> to vector<8x128xf32>
    %631 = vector.extract_strided_slice %621 {offsets = [0, 128], sizes = [8, 128], strides = [1, 1]} : vector<8x384xf32> to vector<8x128xf32>
    %632 = arith.addf %630, %631 : vector<8x128xf32>
    %633 = arith.negf %632 : vector<8x128xf32>
    %634 = math.exp %633 : vector<8x128xf32>
    %cst_152 = arith.constant 1.000000e+00 : f32
    %635 = vector.broadcast %cst_152 : f32 to vector<8x128xf32>
    %636 = arith.addf %635, %634 : vector<8x128xf32>
    %637 = arith.divf %635, %636 : vector<8x128xf32>
    %638 = vector.extract_strided_slice %620 {offsets = [0, 256], sizes = [8, 128], strides = [1, 1]} : vector<8x384xf32> to vector<8x128xf32>
    %639 = vector.extract_strided_slice %621 {offsets = [0, 256], sizes = [8, 128], strides = [1, 1]} : vector<8x384xf32> to vector<8x128xf32>
    %640 = arith.addf %639, %10 : vector<8x128xf32>
    %641 = arith.mulf %629, %640 : vector<8x128xf32>
    %642 = arith.addf %638, %641 : vector<8x128xf32>
    %643 = math.tanh %642 : vector<8x128xf32>
    %cst_153 = arith.constant 1.000000e+00 : f32
    %644 = vector.broadcast %cst_153 : f32 to vector<8x128xf32>
    %645 = arith.subf %644, %637 : vector<8x128xf32>
    %646 = arith.mulf %645, %643 : vector<8x128xf32>
    %647 = arith.mulf %637, %561 : vector<8x128xf32>
    %648 = arith.addf %646, %647 : vector<8x128xf32>
    %649 = arith.addi %16, %c6_i32 : i32
    %650 = vector.broadcast %649 : i32 to vector<8x1xi32>
    %651 = arith.cmpi slt, %650, %15 : vector<8x1xi32>
    %652 = arith.extui %651 : vector<8x1xi1> to vector<8x1xi32>
    %653 = arith.sitofp %652 : vector<8x1xi32> to vector<8x1xf32>
    %654 = vector.broadcast %653 : vector<8x1xf32> to vector<8x128xf32>
    %655 = arith.mulf %654, %648 : vector<8x128xf32>
    %cst_154 = arith.constant 1.000000e+00 : f32
    %656 = vector.broadcast %cst_154 : f32 to vector<8x1xf32>
    %657 = arith.subf %656, %653 : vector<8x1xf32>
    %658 = vector.broadcast %657 : vector<8x1xf32> to vector<8x128xf32>
    %659 = arith.mulf %658, %561 : vector<8x128xf32>
    %660 = arith.addf %655, %659 : vector<8x128xf32>
    %661 = vector.broadcast %653 : vector<8x1xf32> to vector<8x128xf32>
    %662 = arith.mulf %661, %660 : vector<8x128xf32>
    %663 = arith.index_cast %c6_i32 : i32 to index
    %c0_155 = arith.constant 0 : index
    %c0_156 = arith.constant 0 : index
    %664 = vector.load %arg6[%663, %c0_155, %c0_156] : memref<8x8x128xf32, #tpu.memory_space<vmem>>, vector<1x8x128xf32>
    %665 = vector.shape_cast %664 : vector<1x8x128xf32> to vector<8x128xf32>
    %666 = vector.shape_cast %662 : vector<8x128xf32> to vector<1x8x128xf32>
    tpu.vector_store %arg6[%663, %c0_155, %c0_156], %666 {strides = array<i32>} : memref<8x8x128xf32, #tpu.memory_space<vmem>>, vector<1x8x128xf32>,
    %c0_157 = arith.constant 0 : index
    %667 = arith.index_cast %617 : i32 to index
    %c0_158 = arith.constant 0 : index
    %c0_159 = arith.constant 0 : index
    %668 = vector.load %arg2[%c0_157, %667, %c0_158, %c0_159] : memref<1x8x8x384xf32, #tpu.memory_space<vmem>>, vector<1x1x8x384xf32>
    %669 = vector.shape_cast %668 : vector<1x1x8x384xf32> to vector<8x384xf32>
    %cst_160 = arith.constant dense<0.000000e+00> : vector<8x384xf32>
    %670 = tpu.matmul %610, %6, %cst_160 {dimension_numbers = #tpu.dot_dimension_numbers<[1], [0], [0], [1], [0, 0, 1, 1], [], []>} : vector<8x128xf32>, vector<128x384xf32>, vector<8x384xf32> -> vector<8x384xf32>
    %671 = vector.extract_strided_slice %669 {offsets = [0, 0], sizes = [8, 128], strides = [1, 1]} : vector<8x384xf32> to vector<8x128xf32>
    %672 = vector.extract_strided_slice %670 {offsets = [0, 0], sizes = [8, 128], strides = [1, 1]} : vector<8x384xf32> to vector<8x128xf32>
    %673 = arith.addf %671, %672 : vector<8x128xf32>
    %674 = arith.negf %673 : vector<8x128xf32>
    %675 = math.exp %674 : vector<8x128xf32>
    %cst_161 = arith.constant 1.000000e+00 : f32
    %676 = vector.broadcast %cst_161 : f32 to vector<8x128xf32>
    %677 = arith.addf %676, %675 : vector<8x128xf32>
    %678 = arith.divf %676, %677 : vector<8x128xf32>
    %679 = vector.extract_strided_slice %669 {offsets = [0, 128], sizes = [8, 128], strides = [1, 1]} : vector<8x384xf32> to vector<8x128xf32>
    %680 = vector.extract_strided_slice %670 {offsets = [0, 128], sizes = [8, 128], strides = [1, 1]} : vector<8x384xf32> to vector<8x128xf32>
    %681 = arith.addf %679, %680 : vector<8x128xf32>
    %682 = arith.negf %681 : vector<8x128xf32>
    %683 = math.exp %682 : vector<8x128xf32>
    %cst_162 = arith.constant 1.000000e+00 : f32
    %684 = vector.broadcast %cst_162 : f32 to vector<8x128xf32>
    %685 = arith.addf %684, %683 : vector<8x128xf32>
    %686 = arith.divf %684, %685 : vector<8x128xf32>
    %687 = vector.extract_strided_slice %669 {offsets = [0, 256], sizes = [8, 128], strides = [1, 1]} : vector<8x384xf32> to vector<8x128xf32>
    %688 = vector.extract_strided_slice %670 {offsets = [0, 256], sizes = [8, 128], strides = [1, 1]} : vector<8x384xf32> to vector<8x128xf32>
    %689 = arith.addf %688, %14 : vector<8x128xf32>
    %690 = arith.mulf %678, %689 : vector<8x128xf32>
    %691 = arith.addf %687, %690 : vector<8x128xf32>
    %692 = math.tanh %691 : vector<8x128xf32>
    %cst_163 = arith.constant 1.000000e+00 : f32
    %693 = vector.broadcast %cst_163 : f32 to vector<8x128xf32>
    %694 = arith.subf %693, %686 : vector<8x128xf32>
    %695 = arith.mulf %694, %692 : vector<8x128xf32>
    %696 = arith.mulf %686, %610 : vector<8x128xf32>
    %697 = arith.addf %695, %696 : vector<8x128xf32>
    %698 = arith.addi %18, %617 : i32
    %699 = vector.broadcast %698 : i32 to vector<8x1xi32>
    %700 = arith.cmpi slt, %699, %15 : vector<8x1xi32>
    %701 = arith.extui %700 : vector<8x1xi1> to vector<8x1xi32>
    %702 = arith.sitofp %701 : vector<8x1xi32> to vector<8x1xf32>
    %703 = vector.broadcast %702 : vector<8x1xf32> to vector<8x128xf32>
    %704 = arith.mulf %703, %697 : vector<8x128xf32>
    %cst_164 = arith.constant 1.000000e+00 : f32
    %705 = vector.broadcast %cst_164 : f32 to vector<8x1xf32>
    %706 = arith.subf %705, %702 : vector<8x1xf32>
    %707 = vector.broadcast %706 : vector<8x1xf32> to vector<8x128xf32>
    %708 = arith.mulf %707, %610 : vector<8x128xf32>
    %709 = arith.addf %704, %708 : vector<8x128xf32>
    %710 = vector.broadcast %702 : vector<8x1xf32> to vector<8x128xf32>
    %711 = arith.mulf %710, %709 : vector<8x128xf32>
    %712 = arith.index_cast %617 : i32 to index
    %c0_165 = arith.constant 0 : index
    %c0_166 = arith.constant 0 : index
    %713 = vector.load %arg7[%712, %c0_165, %c0_166] : memref<8x8x128xf32, #tpu.memory_space<vmem>>, vector<1x8x128xf32>
    %714 = vector.shape_cast %713 : vector<1x8x128xf32> to vector<8x128xf32>
    %715 = vector.shape_cast %711 : vector<8x128xf32> to vector<1x8x128xf32>
    tpu.vector_store %arg7[%712, %c0_165, %c0_166], %715 {strides = array<i32>} : memref<8x8x128xf32, #tpu.memory_space<vmem>>, vector<1x8x128xf32>,
    %c7_i32_167 = arith.constant 7 : i32
    %c7_i32_168 = arith.constant 7 : i32
    %716 = arith.subi %c7_i32_168, %c7_i32_167 : i32
    %c0_169 = arith.constant 0 : index
    %717 = arith.index_cast %c7_i32_167 : i32 to index
    %c0_170 = arith.constant 0 : index
    %c0_171 = arith.constant 0 : index
    %718 = vector.load %arg1[%c0_169, %717, %c0_170, %c0_171] : memref<1x8x8x384xf32, #tpu.memory_space<vmem>>, vector<1x1x8x384xf32>
    %719 = vector.shape_cast %718 : vector<1x1x8x384xf32> to vector<8x384xf32>
    %cst_172 = arith.constant dense<0.000000e+00> : vector<8x384xf32>
    %720 = tpu.matmul %660, %4, %cst_172 {dimension_numbers = #tpu.dot_dimension_numbers<[1], [0], [0], [1], [0, 0, 1, 1], [], []>} : vector<8x128xf32>, vector<128x384xf32>, vector<8x384xf32> -> vector<8x384xf32>
    %721 = vector.extract_strided_slice %719 {offsets = [0, 0], sizes = [8, 128], strides = [1, 1]} : vector<8x384xf32> to vector<8x128xf32>
    %722 = vector.extract_strided_slice %720 {offsets = [0, 0], sizes = [8, 128], strides = [1, 1]} : vector<8x384xf32> to vector<8x128xf32>
    %723 = arith.addf %721, %722 : vector<8x128xf32>
    %724 = arith.negf %723 : vector<8x128xf32>
    %725 = math.exp %724 : vector<8x128xf32>
    %cst_173 = arith.constant 1.000000e+00 : f32
    %726 = vector.broadcast %cst_173 : f32 to vector<8x128xf32>
    %727 = arith.addf %726, %725 : vector<8x128xf32>
    %728 = arith.divf %726, %727 : vector<8x128xf32>
    %729 = vector.extract_strided_slice %719 {offsets = [0, 128], sizes = [8, 128], strides = [1, 1]} : vector<8x384xf32> to vector<8x128xf32>
    %730 = vector.extract_strided_slice %720 {offsets = [0, 128], sizes = [8, 128], strides = [1, 1]} : vector<8x384xf32> to vector<8x128xf32>
    %731 = arith.addf %729, %730 : vector<8x128xf32>
    %732 = arith.negf %731 : vector<8x128xf32>
    %733 = math.exp %732 : vector<8x128xf32>
    %cst_174 = arith.constant 1.000000e+00 : f32
    %734 = vector.broadcast %cst_174 : f32 to vector<8x128xf32>
    %735 = arith.addf %734, %733 : vector<8x128xf32>
    %736 = arith.divf %734, %735 : vector<8x128xf32>
    %737 = vector.extract_strided_slice %719 {offsets = [0, 256], sizes = [8, 128], strides = [1, 1]} : vector<8x384xf32> to vector<8x128xf32>
    %738 = vector.extract_strided_slice %720 {offsets = [0, 256], sizes = [8, 128], strides = [1, 1]} : vector<8x384xf32> to vector<8x128xf32>
    %739 = arith.addf %738, %10 : vector<8x128xf32>
    %740 = arith.mulf %728, %739 : vector<8x128xf32>
    %741 = arith.addf %737, %740 : vector<8x128xf32>
    %742 = math.tanh %741 : vector<8x128xf32>
    %cst_175 = arith.constant 1.000000e+00 : f32
    %743 = vector.broadcast %cst_175 : f32 to vector<8x128xf32>
    %744 = arith.subf %743, %736 : vector<8x128xf32>
    %745 = arith.mulf %744, %742 : vector<8x128xf32>
    %746 = arith.mulf %736, %660 : vector<8x128xf32>
    %747 = arith.addf %745, %746 : vector<8x128xf32>
    %748 = arith.addi %16, %c7_i32_167 : i32
    %749 = vector.broadcast %748 : i32 to vector<8x1xi32>
    %750 = arith.cmpi slt, %749, %15 : vector<8x1xi32>
    %751 = arith.extui %750 : vector<8x1xi1> to vector<8x1xi32>
    %752 = arith.sitofp %751 : vector<8x1xi32> to vector<8x1xf32>
    %753 = vector.broadcast %752 : vector<8x1xf32> to vector<8x128xf32>
    %754 = arith.mulf %753, %747 : vector<8x128xf32>
    %cst_176 = arith.constant 1.000000e+00 : f32
    %755 = vector.broadcast %cst_176 : f32 to vector<8x1xf32>
    %756 = arith.subf %755, %752 : vector<8x1xf32>
    %757 = vector.broadcast %756 : vector<8x1xf32> to vector<8x128xf32>
    %758 = arith.mulf %757, %660 : vector<8x128xf32>
    %759 = arith.addf %754, %758 : vector<8x128xf32>
    %760 = vector.broadcast %752 : vector<8x1xf32> to vector<8x128xf32>
    %761 = arith.mulf %760, %759 : vector<8x128xf32>
    %762 = arith.index_cast %c7_i32_167 : i32 to index
    %c0_177 = arith.constant 0 : index
    %c0_178 = arith.constant 0 : index
    %763 = vector.load %arg6[%762, %c0_177, %c0_178] : memref<8x8x128xf32, #tpu.memory_space<vmem>>, vector<1x8x128xf32>
    %764 = vector.shape_cast %763 : vector<1x8x128xf32> to vector<8x128xf32>
    %765 = vector.shape_cast %761 : vector<8x128xf32> to vector<1x8x128xf32>
    tpu.vector_store %arg6[%762, %c0_177, %c0_178], %765 {strides = array<i32>} : memref<8x8x128xf32, #tpu.memory_space<vmem>>, vector<1x8x128xf32>,
    %c0_179 = arith.constant 0 : index
    %766 = arith.index_cast %716 : i32 to index
    %c0_180 = arith.constant 0 : index
    %c0_181 = arith.constant 0 : index
    %767 = vector.load %arg2[%c0_179, %766, %c0_180, %c0_181] : memref<1x8x8x384xf32, #tpu.memory_space<vmem>>, vector<1x1x8x384xf32>
    %768 = vector.shape_cast %767 : vector<1x1x8x384xf32> to vector<8x384xf32>
    %cst_182 = arith.constant dense<0.000000e+00> : vector<8x384xf32>
    %769 = tpu.matmul %709, %6, %cst_182 {dimension_numbers = #tpu.dot_dimension_numbers<[1], [0], [0], [1], [0, 0, 1, 1], [], []>} : vector<8x128xf32>, vector<128x384xf32>, vector<8x384xf32> -> vector<8x384xf32>
    %770 = vector.extract_strided_slice %768 {offsets = [0, 0], sizes = [8, 128], strides = [1, 1]} : vector<8x384xf32> to vector<8x128xf32>
    %771 = vector.extract_strided_slice %769 {offsets = [0, 0], sizes = [8, 128], strides = [1, 1]} : vector<8x384xf32> to vector<8x128xf32>
    %772 = arith.addf %770, %771 : vector<8x128xf32>
    %773 = arith.negf %772 : vector<8x128xf32>
    %774 = math.exp %773 : vector<8x128xf32>
    %cst_183 = arith.constant 1.000000e+00 : f32
    %775 = vector.broadcast %cst_183 : f32 to vector<8x128xf32>
    %776 = arith.addf %775, %774 : vector<8x128xf32>
    %777 = arith.divf %775, %776 : vector<8x128xf32>
    %778 = vector.extract_strided_slice %768 {offsets = [0, 128], sizes = [8, 128], strides = [1, 1]} : vector<8x384xf32> to vector<8x128xf32>
    %779 = vector.extract_strided_slice %769 {offsets = [0, 128], sizes = [8, 128], strides = [1, 1]} : vector<8x384xf32> to vector<8x128xf32>
    %780 = arith.addf %778, %779 : vector<8x128xf32>
    %781 = arith.negf %780 : vector<8x128xf32>
    %782 = math.exp %781 : vector<8x128xf32>
    %cst_184 = arith.constant 1.000000e+00 : f32
    %783 = vector.broadcast %cst_184 : f32 to vector<8x128xf32>
    %784 = arith.addf %783, %782 : vector<8x128xf32>
    %785 = arith.divf %783, %784 : vector<8x128xf32>
    %786 = vector.extract_strided_slice %768 {offsets = [0, 256], sizes = [8, 128], strides = [1, 1]} : vector<8x384xf32> to vector<8x128xf32>
    %787 = vector.extract_strided_slice %769 {offsets = [0, 256], sizes = [8, 128], strides = [1, 1]} : vector<8x384xf32> to vector<8x128xf32>
    %788 = arith.addf %787, %14 : vector<8x128xf32>
    %789 = arith.mulf %777, %788 : vector<8x128xf32>
    %790 = arith.addf %786, %789 : vector<8x128xf32>
    %791 = math.tanh %790 : vector<8x128xf32>
    %cst_185 = arith.constant 1.000000e+00 : f32
    %792 = vector.broadcast %cst_185 : f32 to vector<8x128xf32>
    %793 = arith.subf %792, %785 : vector<8x128xf32>
    %794 = arith.mulf %793, %791 : vector<8x128xf32>
    %795 = arith.mulf %785, %709 : vector<8x128xf32>
    %796 = arith.addf %794, %795 : vector<8x128xf32>
    %797 = arith.addi %18, %716 : i32
    %798 = vector.broadcast %797 : i32 to vector<8x1xi32>
    %799 = arith.cmpi slt, %798, %15 : vector<8x1xi32>
    %800 = arith.extui %799 : vector<8x1xi1> to vector<8x1xi32>
    %801 = arith.sitofp %800 : vector<8x1xi32> to vector<8x1xf32>
    %802 = vector.broadcast %801 : vector<8x1xf32> to vector<8x128xf32>
    %803 = arith.mulf %802, %796 : vector<8x128xf32>
    %cst_186 = arith.constant 1.000000e+00 : f32
    %804 = vector.broadcast %cst_186 : f32 to vector<8x1xf32>
    %805 = arith.subf %804, %801 : vector<8x1xf32>
    %806 = vector.broadcast %805 : vector<8x1xf32> to vector<8x128xf32>
    %807 = arith.mulf %806, %709 : vector<8x128xf32>
    %808 = arith.addf %803, %807 : vector<8x128xf32>
    %809 = vector.broadcast %801 : vector<8x1xf32> to vector<8x128xf32>
    %810 = arith.mulf %809, %808 : vector<8x128xf32>
    %811 = arith.index_cast %716 : i32 to index
    %c0_187 = arith.constant 0 : index
    %c0_188 = arith.constant 0 : index
    %812 = vector.load %arg7[%811, %c0_187, %c0_188] : memref<8x8x128xf32, #tpu.memory_space<vmem>>, vector<1x8x128xf32>
    %813 = vector.shape_cast %812 : vector<1x8x128xf32> to vector<8x128xf32>
    %814 = vector.shape_cast %810 : vector<8x128xf32> to vector<1x8x128xf32>
    tpu.vector_store %arg7[%811, %c0_187, %c0_188], %814 {strides = array<i32>} : memref<8x8x128xf32, #tpu.memory_space<vmem>>, vector<1x8x128xf32>,
    %c8_i32_189 = arith.constant 8 : i32
    %c0_190 = arith.constant 0 : index
    %c0_191 = arith.constant 0 : index
    %c0_192 = arith.constant 0 : index
    %815 = vector.load %arg8[%c0_190, %c0_191, %c0_192] : memref<2x8x128xf32, #tpu.memory_space<vmem>>, vector<1x8x128xf32>
    %816 = vector.shape_cast %815 : vector<1x8x128xf32> to vector<8x128xf32>
    %817 = vector.shape_cast %759 : vector<8x128xf32> to vector<1x8x128xf32>
    tpu.vector_store %arg8[%c0_190, %c0_191, %c0_192], %817 {strides = array<i32>} : memref<2x8x128xf32, #tpu.memory_space<vmem>>, vector<1x8x128xf32>,
    %c1_193 = arith.constant 1 : index
    %c0_194 = arith.constant 0 : index
    %c0_195 = arith.constant 0 : index
    %818 = vector.load %arg8[%c1_193, %c0_194, %c0_195] : memref<2x8x128xf32, #tpu.memory_space<vmem>>, vector<1x8x128xf32>
    %819 = vector.shape_cast %818 : vector<1x8x128xf32> to vector<8x128xf32>
    %820 = vector.shape_cast %808 : vector<8x128xf32> to vector<1x8x128xf32>
    tpu.vector_store %arg8[%c1_193, %c0_194, %c0_195], %820 {strides = array<i32>} : memref<2x8x128xf32, #tpu.memory_space<vmem>>, vector<1x8x128xf32>,
    return
  }
  func.func @transform_0(%arg0: i32) -> (i32, i32, i32, i32) {
    %c0_i32 = arith.constant 0 : i32
    %c0_i32_0 = arith.constant 0 : i32
    %c0_i32_1 = arith.constant 0 : i32
    %c0_i32_2 = arith.constant 0 : i32
    return %c0_i32, %arg0, %c0_i32_0, %c0_i32_1 : i32, i32, i32, i32
  }
  func.func @transform_1(%arg0: i32) -> (i32, i32, i32, i32) {
    %c0_i32 = arith.constant 0 : i32
    %0 = arith.subi %c0_i32, %arg0 : i32
    %c1_i32 = arith.constant 1 : i32
    %c0_i32_0 = arith.constant 0 : i32
    %c0_i32_1 = arith.constant 0 : i32
    %c0_i32_2 = arith.constant 0 : i32
    return %c1_i32, %0, %c0_i32_0, %c0_i32_1 : i32, i32, i32, i32
  }
  func.func @transform_2(%arg0: i32) -> (i32, i32, i32) {
    %c0_i32 = arith.constant 0 : i32
    %c0_i32_0 = arith.constant 0 : i32
    %c0_i32_1 = arith.constant 0 : i32
    %c0_i32_2 = arith.constant 0 : i32
    return %c0_i32, %c0_i32_0, %c0_i32_1 : i32, i32, i32
  }
  func.func @transform_3(%arg0: i32) -> (i32, i32, i32) {
    %c0_i32 = arith.constant 0 : i32
    %c0_i32_0 = arith.constant 0 : i32
    %c0_i32_1 = arith.constant 0 : i32
    %c0_i32_2 = arith.constant 0 : i32
    return %c0_i32, %c0_i32_0, %c0_i32_1 : i32, i32, i32
  }
  func.func @transform_4(%arg0: i32) -> (i32, i32) {
    %c0_i32 = arith.constant 0 : i32
    %c0_i32_0 = arith.constant 0 : i32
    %c0_i32_1 = arith.constant 0 : i32
    return %c0_i32, %c0_i32_0 : i32, i32
  }
  func.func @transform_5(%arg0: i32) -> (i32, i32, i32) {
    %c0_i32 = arith.constant 0 : i32
    %c0_i32_0 = arith.constant 0 : i32
    %c0_i32_1 = arith.constant 0 : i32
    return %arg0, %c0_i32, %c0_i32_0 : i32, i32, i32
  }
  func.func @transform_6(%arg0: i32) -> (i32, i32, i32) {
    %c0_i32 = arith.constant 0 : i32
    %0 = arith.subi %c0_i32, %arg0 : i32
    %c0_i32_0 = arith.constant 0 : i32
    %c0_i32_1 = arith.constant 0 : i32
    %c0_i32_2 = arith.constant 0 : i32
    return %0, %c0_i32_0, %c0_i32_1 : i32, i32, i32
  }
}

module attributes {stable_mosaic.version = 11 : i64} {
  func.func @gru_bidir_kernel(%arg0: i32, %arg1: memref<1x8x8x384xf32, #tpu.memory_space<vmem>>, %arg2: memref<1x8x8x384xf32, #tpu.memory_space<vmem>>, %arg3: memref<2x128x384xf32, #tpu.memory_space<vmem>>, %arg4: memref<2x1x128xf32, #tpu.memory_space<vmem>>, %arg5: memref<8x1xi32, #tpu.memory_space<vmem>>, %arg6: memref<8x8x128xf32, #tpu.memory_space<vmem>>, %arg7: memref<8x8x128xf32, #tpu.memory_space<vmem>>, %arg8: memref<2x8x128xf32, #tpu.memory_space<vmem>>) attributes {dimension_semantics = [#tpu.dimension_semantics<arbitrary>], iteration_bounds = array<i64: 1>, scalar_prefetch = 0 : i64, scratch_operands = 1 : i64, tpu.core_type = #tpu.core_type<tc>, window_params = [{transform_indices = @transform_0, window_bounds = array<i64: 1, 8, 8, 384>}, {transform_indices = @transform_1, window_bounds = array<i64: 1, 8, 8, 384>}, {pipeline_mode = #tpu.pipeline_mode<synchronous>, transform_indices = @transform_2, window_bounds = array<i64: 2, 128, 384>}, {pipeline_mode = #tpu.pipeline_mode<synchronous>, transform_indices = @transform_3, window_bounds = array<i64: 2, 1, 128>}, {pipeline_mode = #tpu.pipeline_mode<synchronous>, transform_indices = @transform_4, window_bounds = array<i64: 8, 1>}, {transform_indices = @transform_5, window_bounds = array<i64: 8, 8, 128>}, {transform_indices = @transform_6, window_bounds = array<i64: 8, 8, 128>}]} {
    %c0_i32 = arith.constant 0 : i32
    %0 = arith.cmpi eq, %arg0, %c0_i32 : i32
    %1 = arith.extui %0 : i1 to i32
    %c0_i32_0 = arith.constant 0 : i32
    %2 = arith.cmpi ne, %1, %c0_i32_0 : i32
    scf.if %2 {
      %cst_196 = arith.constant 0.000000e+00 : f32
      %821 = vector.broadcast %cst_196 : f32 to vector<2x8x128xf32>
      %c0_197 = arith.constant 0 : index
      %c0_198 = arith.constant 0 : index
      %c0_199 = arith.constant 0 : index
      %822 = vector.load %arg8[%c0_197, %c0_198, %c0_199] : memref<2x8x128xf32, #tpu.memory_space<vmem>>, vector<2x8x128xf32>
      tpu.vector_store %arg8[%c0_197, %c0_198, %c0_199], %821 {strides = array<i32>} : memref<2x8x128xf32, #tpu.memory_space<vmem>>, vector<2x8x128xf32>,
    } else {
    }
    %c0 = arith.constant 0 : index
    %c0_1 = arith.constant 0 : index
    %c0_2 = arith.constant 0 : index
    %3 = vector.load %arg3[%c0, %c0_1, %c0_2] : memref<2x128x384xf32, #tpu.memory_space<vmem>>, vector<1x128x384xf32>
    %4 = vector.shape_cast %3 : vector<1x128x384xf32> to vector<128x384xf32>
    %c1 = arith.constant 1 : index
    %c0_3 = arith.constant 0 : index
    %c0_4 = arith.constant 0 : index
    %5 = vector.load %arg3[%c1, %c0_3, %c0_4] : memref<2x128x384xf32, #tpu.memory_space<vmem>>, vector<1x128x384xf32>
    %6 = vector.shape_cast %5 : vector<1x128x384xf32> to vector<128x384xf32>
    %c0_5 = arith.constant 0 : index
    %c0_6 = arith.constant 0 : index
    %c0_7 = arith.constant 0 : index
    %7 = vector.load %arg4[%c0_5, %c0_6, %c0_7] : memref<2x1x128xf32, #tpu.memory_space<vmem>>, vector<1x1x128xf32>
    %8 = vector.shape_cast %7 : vector<1x1x128xf32> to vector<1x128xf32>
    %9 = vector.shape_cast %8 : vector<1x128xf32> to vector<1x128xf32>
    %10 = vector.broadcast %9 : vector<1x128xf32> to vector<8x128xf32>
    %c1_8 = arith.constant 1 : index
    %c0_9 = arith.constant 0 : index
    %c0_10 = arith.constant 0 : index
    %11 = vector.load %arg4[%c1_8, %c0_9, %c0_10] : memref<2x1x128xf32, #tpu.memory_space<vmem>>, vector<1x1x128xf32>
    %12 = vector.shape_cast %11 : vector<1x1x128xf32> to vector<1x128xf32>
    %13 = vector.shape_cast %12 : vector<1x128xf32> to vector<1x128xf32>
    %14 = vector.broadcast %13 : vector<1x128xf32> to vector<8x128xf32>
    %c0_11 = arith.constant 0 : index
    %c0_12 = arith.constant 0 : index
    %15 = vector.load %arg5[%c0_11, %c0_12] : memref<8x1xi32, #tpu.memory_space<vmem>>, vector<8x1xi32>
    %c8_i32 = arith.constant 8 : i32
    %16 = arith.muli %arg0, %c8_i32 : i32
    %c0_i32_13 = arith.constant 0 : i32
    %17 = arith.subi %c0_i32_13, %arg0 : i32
    %c8_i32_14 = arith.constant 8 : i32
    %18 = arith.muli %17, %c8_i32_14 : i32
    %c0_15 = arith.constant 0 : index
    %c0_16 = arith.constant 0 : index
    %c0_17 = arith.constant 0 : index
    %19 = vector.load %arg8[%c0_15, %c0_16, %c0_17] : memref<2x8x128xf32, #tpu.memory_space<vmem>>, vector<1x8x128xf32>
    %20 = vector.shape_cast %19 : vector<1x8x128xf32> to vector<8x128xf32>
    %c1_18 = arith.constant 1 : index
    %c0_19 = arith.constant 0 : index
    %c0_20 = arith.constant 0 : index
    %21 = vector.load %arg8[%c1_18, %c0_19, %c0_20] : memref<2x8x128xf32, #tpu.memory_space<vmem>>, vector<1x8x128xf32>
    %22 = vector.shape_cast %21 : vector<1x8x128xf32> to vector<8x128xf32>
    %c0_i32_21 = arith.constant 0 : i32
    %c7_i32 = arith.constant 7 : i32
    %23 = arith.subi %c7_i32, %c0_i32_21 : i32
    %c0_22 = arith.constant 0 : index
    %24 = arith.index_cast %c0_i32_21 : i32 to index
    %c0_23 = arith.constant 0 : index
    %c0_24 = arith.constant 0 : index
    %25 = vector.load %arg1[%c0_22, %24, %c0_23, %c0_24] : memref<1x8x8x384xf32, #tpu.memory_space<vmem>>, vector<1x1x8x384xf32>
    %26 = vector.shape_cast %25 : vector<1x1x8x384xf32> to vector<8x384xf32>
    %cst = arith.constant dense<0.000000e+00> : vector<8x384xf32>
    %27 = tpu.matmul %20, %4, %cst {dimension_numbers = #tpu.dot_dimension_numbers<[1], [0], [0], [1], [0, 0, 1, 1], [], []>} : vector<8x128xf32>, vector<128x384xf32>, vector<8x384xf32> -> vector<8x384xf32>
    %28 = vector.extract_strided_slice %26 {offsets = [0, 0], sizes = [8, 128], strides = [1, 1]} : vector<8x384xf32> to vector<8x128xf32>
    %29 = vector.extract_strided_slice %27 {offsets = [0, 0], sizes = [8, 128], strides = [1, 1]} : vector<8x384xf32> to vector<8x128xf32>
    %30 = arith.addf %28, %29 : vector<8x128xf32>
    %31 = arith.negf %30 : vector<8x128xf32>
    %32 = math.exp %31 : vector<8x128xf32>
    %cst_25 = arith.constant 1.000000e+00 : f32
    %33 = vector.broadcast %cst_25 : f32 to vector<8x128xf32>
    %34 = arith.addf %33, %32 : vector<8x128xf32>
    %35 = arith.divf %33, %34 : vector<8x128xf32>
    %36 = vector.extract_strided_slice %26 {offsets = [0, 128], sizes = [8, 128], strides = [1, 1]} : vector<8x384xf32> to vector<8x128xf32>
    %37 = vector.extract_strided_slice %27 {offsets = [0, 128], sizes = [8, 128], strides = [1, 1]} : vector<8x384xf32> to vector<8x128xf32>
    %38 = arith.addf %36, %37 : vector<8x128xf32>
    %39 = arith.negf %38 : vector<8x128xf32>
    %40 = math.exp %39 : vector<8x128xf32>
    %cst_26 = arith.constant 1.000000e+00 : f32
    %41 = vector.broadcast %cst_26 : f32 to vector<8x128xf32>
    %42 = arith.addf %41, %40 : vector<8x128xf32>
    %43 = arith.divf %41, %42 : vector<8x128xf32>
    %44 = vector.extract_strided_slice %26 {offsets = [0, 256], sizes = [8, 128], strides = [1, 1]} : vector<8x384xf32> to vector<8x128xf32>
    %45 = vector.extract_strided_slice %27 {offsets = [0, 256], sizes = [8, 128], strides = [1, 1]} : vector<8x384xf32> to vector<8x128xf32>
    %46 = arith.addf %45, %10 : vector<8x128xf32>
    %47 = arith.mulf %35, %46 : vector<8x128xf32>
    %48 = arith.addf %44, %47 : vector<8x128xf32>
    %49 = math.tanh %48 : vector<8x128xf32>
    %cst_27 = arith.constant 1.000000e+00 : f32
    %50 = vector.broadcast %cst_27 : f32 to vector<8x128xf32>
    %51 = arith.subf %50, %43 : vector<8x128xf32>
    %52 = arith.mulf %51, %49 : vector<8x128xf32>
    %53 = arith.mulf %43, %20 : vector<8x128xf32>
    %54 = arith.addf %52, %53 : vector<8x128xf32>
    %55 = arith.addi %16, %c0_i32_21 : i32
    %56 = vector.broadcast %55 : i32 to vector<8x1xi32>
    %57 = arith.cmpi slt, %56, %15 : vector<8x1xi32>
    %58 = arith.extui %57 : vector<8x1xi1> to vector<8x1xi32>
    %59 = arith.sitofp %58 : vector<8x1xi32> to vector<8x1xf32>
    %60 = vector.broadcast %59 : vector<8x1xf32> to vector<8x128xf32>
    %61 = arith.mulf %60, %54 : vector<8x128xf32>
    %cst_28 = arith.constant 1.000000e+00 : f32
    %62 = vector.broadcast %cst_28 : f32 to vector<8x1xf32>
    %63 = arith.subf %62, %59 : vector<8x1xf32>
    %64 = vector.broadcast %63 : vector<8x1xf32> to vector<8x128xf32>
    %65 = arith.mulf %64, %20 : vector<8x128xf32>
    %66 = arith.addf %61, %65 : vector<8x128xf32>
    %67 = vector.broadcast %59 : vector<8x1xf32> to vector<8x128xf32>
    %68 = arith.mulf %67, %66 : vector<8x128xf32>
    %69 = arith.index_cast %c0_i32_21 : i32 to index
    %c0_29 = arith.constant 0 : index
    %c0_30 = arith.constant 0 : index
    %70 = vector.load %arg6[%69, %c0_29, %c0_30] : memref<8x8x128xf32, #tpu.memory_space<vmem>>, vector<1x8x128xf32>
    %71 = vector.shape_cast %70 : vector<1x8x128xf32> to vector<8x128xf32>
    %72 = vector.shape_cast %68 : vector<8x128xf32> to vector<1x8x128xf32>
    tpu.vector_store %arg6[%69, %c0_29, %c0_30], %72 {strides = array<i32>} : memref<8x8x128xf32, #tpu.memory_space<vmem>>, vector<1x8x128xf32>,
    %c0_31 = arith.constant 0 : index
    %73 = arith.index_cast %23 : i32 to index
    %c0_32 = arith.constant 0 : index
    %c0_33 = arith.constant 0 : index
    %74 = vector.load %arg2[%c0_31, %73, %c0_32, %c0_33] : memref<1x8x8x384xf32, #tpu.memory_space<vmem>>, vector<1x1x8x384xf32>
    %75 = vector.shape_cast %74 : vector<1x1x8x384xf32> to vector<8x384xf32>
    %cst_34 = arith.constant dense<0.000000e+00> : vector<8x384xf32>
    %76 = tpu.matmul %22, %6, %cst_34 {dimension_numbers = #tpu.dot_dimension_numbers<[1], [0], [0], [1], [0, 0, 1, 1], [], []>} : vector<8x128xf32>, vector<128x384xf32>, vector<8x384xf32> -> vector<8x384xf32>
    %77 = vector.extract_strided_slice %75 {offsets = [0, 0], sizes = [8, 128], strides = [1, 1]} : vector<8x384xf32> to vector<8x128xf32>
    %78 = vector.extract_strided_slice %76 {offsets = [0, 0], sizes = [8, 128], strides = [1, 1]} : vector<8x384xf32> to vector<8x128xf32>
    %79 = arith.addf %77, %78 : vector<8x128xf32>
    %80 = arith.negf %79 : vector<8x128xf32>
    %81 = math.exp %80 : vector<8x128xf32>
    %cst_35 = arith.constant 1.000000e+00 : f32
    %82 = vector.broadcast %cst_35 : f32 to vector<8x128xf32>
    %83 = arith.addf %82, %81 : vector<8x128xf32>
    %84 = arith.divf %82, %83 : vector<8x128xf32>
    %85 = vector.extract_strided_slice %75 {offsets = [0, 128], sizes = [8, 128], strides = [1, 1]} : vector<8x384xf32> to vector<8x128xf32>
    %86 = vector.extract_strided_slice %76 {offsets = [0, 128], sizes = [8, 128], strides = [1, 1]} : vector<8x384xf32> to vector<8x128xf32>
    %87 = arith.addf %85, %86 : vector<8x128xf32>
    %88 = arith.negf %87 : vector<8x128xf32>
    %89 = math.exp %88 : vector<8x128xf32>
    %cst_36 = arith.constant 1.000000e+00 : f32
    %90 = vector.broadcast %cst_36 : f32 to vector<8x128xf32>
    %91 = arith.addf %90, %89 : vector<8x128xf32>
    %92 = arith.divf %90, %91 : vector<8x128xf32>
    %93 = vector.extract_strided_slice %75 {offsets = [0, 256], sizes = [8, 128], strides = [1, 1]} : vector<8x384xf32> to vector<8x128xf32>
    %94 = vector.extract_strided_slice %76 {offsets = [0, 256], sizes = [8, 128], strides = [1, 1]} : vector<8x384xf32> to vector<8x128xf32>
    %95 = arith.addf %94, %14 : vector<8x128xf32>
    %96 = arith.mulf %84, %95 : vector<8x128xf32>
    %97 = arith.addf %93, %96 : vector<8x128xf32>
    %98 = math.tanh %97 : vector<8x128xf32>
    %cst_37 = arith.constant 1.000000e+00 : f32
    %99 = vector.broadcast %cst_37 : f32 to vector<8x128xf32>
    %100 = arith.subf %99, %92 : vector<8x128xf32>
    %101 = arith.mulf %100, %98 : vector<8x128xf32>
    %102 = arith.mulf %92, %22 : vector<8x128xf32>
    %103 = arith.addf %101, %102 : vector<8x128xf32>
    %104 = arith.addi %18, %23 : i32
    %105 = vector.broadcast %104 : i32 to vector<8x1xi32>
    %106 = arith.cmpi slt, %105, %15 : vector<8x1xi32>
    %107 = arith.extui %106 : vector<8x1xi1> to vector<8x1xi32>
    %108 = arith.sitofp %107 : vector<8x1xi32> to vector<8x1xf32>
    %109 = vector.broadcast %108 : vector<8x1xf32> to vector<8x128xf32>
    %110 = arith.mulf %109, %103 : vector<8x128xf32>
    %cst_38 = arith.constant 1.000000e+00 : f32
    %111 = vector.broadcast %cst_38 : f32 to vector<8x1xf32>
    %112 = arith.subf %111, %108 : vector<8x1xf32>
    %113 = vector.broadcast %112 : vector<8x1xf32> to vector<8x128xf32>
    %114 = arith.mulf %113, %22 : vector<8x128xf32>
    %115 = arith.addf %110, %114 : vector<8x128xf32>
    %116 = vector.broadcast %108 : vector<8x1xf32> to vector<8x128xf32>
    %117 = arith.mulf %116, %115 : vector<8x128xf32>
    %118 = arith.index_cast %23 : i32 to index
    %c0_39 = arith.constant 0 : index
    %c0_40 = arith.constant 0 : index
    %119 = vector.load %arg7[%118, %c0_39, %c0_40] : memref<8x8x128xf32, #tpu.memory_space<vmem>>, vector<1x8x128xf32>
    %120 = vector.shape_cast %119 : vector<1x8x128xf32> to vector<8x128xf32>
    %121 = vector.shape_cast %117 : vector<8x128xf32> to vector<1x8x128xf32>
    tpu.vector_store %arg7[%118, %c0_39, %c0_40], %121 {strides = array<i32>} : memref<8x8x128xf32, #tpu.memory_space<vmem>>, vector<1x8x128xf32>,
    %c1_i32 = arith.constant 1 : i32
    %c7_i32_41 = arith.constant 7 : i32
    %122 = arith.subi %c7_i32_41, %c1_i32 : i32
    %c0_42 = arith.constant 0 : index
    %123 = arith.index_cast %c1_i32 : i32 to index
    %c0_43 = arith.constant 0 : index
    %c0_44 = arith.constant 0 : index
    %124 = vector.load %arg1[%c0_42, %123, %c0_43, %c0_44] : memref<1x8x8x384xf32, #tpu.memory_space<vmem>>, vector<1x1x8x384xf32>
    %125 = vector.shape_cast %124 : vector<1x1x8x384xf32> to vector<8x384xf32>
    %cst_45 = arith.constant dense<0.000000e+00> : vector<8x384xf32>
    %126 = tpu.matmul %66, %4, %cst_45 {dimension_numbers = #tpu.dot_dimension_numbers<[1], [0], [0], [1], [0, 0, 1, 1], [], []>} : vector<8x128xf32>, vector<128x384xf32>, vector<8x384xf32> -> vector<8x384xf32>
    %127 = vector.extract_strided_slice %125 {offsets = [0, 0], sizes = [8, 128], strides = [1, 1]} : vector<8x384xf32> to vector<8x128xf32>
    %128 = vector.extract_strided_slice %126 {offsets = [0, 0], sizes = [8, 128], strides = [1, 1]} : vector<8x384xf32> to vector<8x128xf32>
    %129 = arith.addf %127, %128 : vector<8x128xf32>
    %130 = arith.negf %129 : vector<8x128xf32>
    %131 = math.exp %130 : vector<8x128xf32>
    %cst_46 = arith.constant 1.000000e+00 : f32
    %132 = vector.broadcast %cst_46 : f32 to vector<8x128xf32>
    %133 = arith.addf %132, %131 : vector<8x128xf32>
    %134 = arith.divf %132, %133 : vector<8x128xf32>
    %135 = vector.extract_strided_slice %125 {offsets = [0, 128], sizes = [8, 128], strides = [1, 1]} : vector<8x384xf32> to vector<8x128xf32>
    %136 = vector.extract_strided_slice %126 {offsets = [0, 128], sizes = [8, 128], strides = [1, 1]} : vector<8x384xf32> to vector<8x128xf32>
    %137 = arith.addf %135, %136 : vector<8x128xf32>
    %138 = arith.negf %137 : vector<8x128xf32>
    %139 = math.exp %138 : vector<8x128xf32>
    %cst_47 = arith.constant 1.000000e+00 : f32
    %140 = vector.broadcast %cst_47 : f32 to vector<8x128xf32>
    %141 = arith.addf %140, %139 : vector<8x128xf32>
    %142 = arith.divf %140, %141 : vector<8x128xf32>
    %143 = vector.extract_strided_slice %125 {offsets = [0, 256], sizes = [8, 128], strides = [1, 1]} : vector<8x384xf32> to vector<8x128xf32>
    %144 = vector.extract_strided_slice %126 {offsets = [0, 256], sizes = [8, 128], strides = [1, 1]} : vector<8x384xf32> to vector<8x128xf32>
    %145 = arith.addf %144, %10 : vector<8x128xf32>
    %146 = arith.mulf %134, %145 : vector<8x128xf32>
    %147 = arith.addf %143, %146 : vector<8x128xf32>
    %148 = math.tanh %147 : vector<8x128xf32>
    %cst_48 = arith.constant 1.000000e+00 : f32
    %149 = vector.broadcast %cst_48 : f32 to vector<8x128xf32>
    %150 = arith.subf %149, %142 : vector<8x128xf32>
    %151 = arith.mulf %150, %148 : vector<8x128xf32>
    %152 = arith.mulf %142, %66 : vector<8x128xf32>
    %153 = arith.addf %151, %152 : vector<8x128xf32>
    %154 = arith.addi %16, %c1_i32 : i32
    %155 = vector.broadcast %154 : i32 to vector<8x1xi32>
    %156 = arith.cmpi slt, %155, %15 : vector<8x1xi32>
    %157 = arith.extui %156 : vector<8x1xi1> to vector<8x1xi32>
    %158 = arith.sitofp %157 : vector<8x1xi32> to vector<8x1xf32>
    %159 = vector.broadcast %158 : vector<8x1xf32> to vector<8x128xf32>
    %160 = arith.mulf %159, %153 : vector<8x128xf32>
    %cst_49 = arith.constant 1.000000e+00 : f32
    %161 = vector.broadcast %cst_49 : f32 to vector<8x1xf32>
    %162 = arith.subf %161, %158 : vector<8x1xf32>
    %163 = vector.broadcast %162 : vector<8x1xf32> to vector<8x128xf32>
    %164 = arith.mulf %163, %66 : vector<8x128xf32>
    %165 = arith.addf %160, %164 : vector<8x128xf32>
    %166 = vector.broadcast %158 : vector<8x1xf32> to vector<8x128xf32>
    %167 = arith.mulf %166, %165 : vector<8x128xf32>
    %168 = arith.index_cast %c1_i32 : i32 to index
    %c0_50 = arith.constant 0 : index
    %c0_51 = arith.constant 0 : index
    %169 = vector.load %arg6[%168, %c0_50, %c0_51] : memref<8x8x128xf32, #tpu.memory_space<vmem>>, vector<1x8x128xf32>
    %170 = vector.shape_cast %169 : vector<1x8x128xf32> to vector<8x128xf32>
    %171 = vector.shape_cast %167 : vector<8x128xf32> to vector<1x8x128xf32>
    tpu.vector_store %arg6[%168, %c0_50, %c0_51], %171 {strides = array<i32>} : memref<8x8x128xf32, #tpu.memory_space<vmem>>, vector<1x8x128xf32>,
    %c0_52 = arith.constant 0 : index
    %172 = arith.index_cast %122 : i32 to index
    %c0_53 = arith.constant 0 : index
    %c0_54 = arith.constant 0 : index
    %173 = vector.load %arg2[%c0_52, %172, %c0_53, %c0_54] : memref<1x8x8x384xf32, #tpu.memory_space<vmem>>, vector<1x1x8x384xf32>
    %174 = vector.shape_cast %173 : vector<1x1x8x384xf32> to vector<8x384xf32>
    %cst_55 = arith.constant dense<0.000000e+00> : vector<8x384xf32>
    %175 = tpu.matmul %115, %6, %cst_55 {dimension_numbers = #tpu.dot_dimension_numbers<[1], [0], [0], [1], [0, 0, 1, 1], [], []>} : vector<8x128xf32>, vector<128x384xf32>, vector<8x384xf32> -> vector<8x384xf32>
    %176 = vector.extract_strided_slice %174 {offsets = [0, 0], sizes = [8, 128], strides = [1, 1]} : vector<8x384xf32> to vector<8x128xf32>
    %177 = vector.extract_strided_slice %175 {offsets = [0, 0], sizes = [8, 128], strides = [1, 1]} : vector<8x384xf32> to vector<8x128xf32>
    %178 = arith.addf %176, %177 : vector<8x128xf32>
    %179 = arith.negf %178 : vector<8x128xf32>
    %180 = math.exp %179 : vector<8x128xf32>
    %cst_56 = arith.constant 1.000000e+00 : f32
    %181 = vector.broadcast %cst_56 : f32 to vector<8x128xf32>
    %182 = arith.addf %181, %180 : vector<8x128xf32>
    %183 = arith.divf %181, %182 : vector<8x128xf32>
    %184 = vector.extract_strided_slice %174 {offsets = [0, 128], sizes = [8, 128], strides = [1, 1]} : vector<8x384xf32> to vector<8x128xf32>
    %185 = vector.extract_strided_slice %175 {offsets = [0, 128], sizes = [8, 128], strides = [1, 1]} : vector<8x384xf32> to vector<8x128xf32>
    %186 = arith.addf %184, %185 : vector<8x128xf32>
    %187 = arith.negf %186 : vector<8x128xf32>
    %188 = math.exp %187 : vector<8x128xf32>
    %cst_57 = arith.constant 1.000000e+00 : f32
    %189 = vector.broadcast %cst_57 : f32 to vector<8x128xf32>
    %190 = arith.addf %189, %188 : vector<8x128xf32>
    %191 = arith.divf %189, %190 : vector<8x128xf32>
    %192 = vector.extract_strided_slice %174 {offsets = [0, 256], sizes = [8, 128], strides = [1, 1]} : vector<8x384xf32> to vector<8x128xf32>
    %193 = vector.extract_strided_slice %175 {offsets = [0, 256], sizes = [8, 128], strides = [1, 1]} : vector<8x384xf32> to vector<8x128xf32>
    %194 = arith.addf %193, %14 : vector<8x128xf32>
    %195 = arith.mulf %183, %194 : vector<8x128xf32>
    %196 = arith.addf %192, %195 : vector<8x128xf32>
    %197 = math.tanh %196 : vector<8x128xf32>
    %cst_58 = arith.constant 1.000000e+00 : f32
    %198 = vector.broadcast %cst_58 : f32 to vector<8x128xf32>
    %199 = arith.subf %198, %191 : vector<8x128xf32>
    %200 = arith.mulf %199, %197 : vector<8x128xf32>
    %201 = arith.mulf %191, %115 : vector<8x128xf32>
    %202 = arith.addf %200, %201 : vector<8x128xf32>
    %203 = arith.addi %18, %122 : i32
    %204 = vector.broadcast %203 : i32 to vector<8x1xi32>
    %205 = arith.cmpi slt, %204, %15 : vector<8x1xi32>
    %206 = arith.extui %205 : vector<8x1xi1> to vector<8x1xi32>
    %207 = arith.sitofp %206 : vector<8x1xi32> to vector<8x1xf32>
    %208 = vector.broadcast %207 : vector<8x1xf32> to vector<8x128xf32>
    %209 = arith.mulf %208, %202 : vector<8x128xf32>
    %cst_59 = arith.constant 1.000000e+00 : f32
    %210 = vector.broadcast %cst_59 : f32 to vector<8x1xf32>
    %211 = arith.subf %210, %207 : vector<8x1xf32>
    %212 = vector.broadcast %211 : vector<8x1xf32> to vector<8x128xf32>
    %213 = arith.mulf %212, %115 : vector<8x128xf32>
    %214 = arith.addf %209, %213 : vector<8x128xf32>
    %215 = vector.broadcast %207 : vector<8x1xf32> to vector<8x128xf32>
    %216 = arith.mulf %215, %214 : vector<8x128xf32>
    %217 = arith.index_cast %122 : i32 to index
    %c0_60 = arith.constant 0 : index
    %c0_61 = arith.constant 0 : index
    %218 = vector.load %arg7[%217, %c0_60, %c0_61] : memref<8x8x128xf32, #tpu.memory_space<vmem>>, vector<1x8x128xf32>
    %219 = vector.shape_cast %218 : vector<1x8x128xf32> to vector<8x128xf32>
    %220 = vector.shape_cast %216 : vector<8x128xf32> to vector<1x8x128xf32>
    tpu.vector_store %arg7[%217, %c0_60, %c0_61], %220 {strides = array<i32>} : memref<8x8x128xf32, #tpu.memory_space<vmem>>, vector<1x8x128xf32>,
    %c2_i32 = arith.constant 2 : i32
    %c7_i32_62 = arith.constant 7 : i32
    %221 = arith.subi %c7_i32_62, %c2_i32 : i32
    %c0_63 = arith.constant 0 : index
    %222 = arith.index_cast %c2_i32 : i32 to index
    %c0_64 = arith.constant 0 : index
    %c0_65 = arith.constant 0 : index
    %223 = vector.load %arg1[%c0_63, %222, %c0_64, %c0_65] : memref<1x8x8x384xf32, #tpu.memory_space<vmem>>, vector<1x1x8x384xf32>
    %224 = vector.shape_cast %223 : vector<1x1x8x384xf32> to vector<8x384xf32>
    %cst_66 = arith.constant dense<0.000000e+00> : vector<8x384xf32>
    %225 = tpu.matmul %165, %4, %cst_66 {dimension_numbers = #tpu.dot_dimension_numbers<[1], [0], [0], [1], [0, 0, 1, 1], [], []>} : vector<8x128xf32>, vector<128x384xf32>, vector<8x384xf32> -> vector<8x384xf32>
    %226 = vector.extract_strided_slice %224 {offsets = [0, 0], sizes = [8, 128], strides = [1, 1]} : vector<8x384xf32> to vector<8x128xf32>
    %227 = vector.extract_strided_slice %225 {offsets = [0, 0], sizes = [8, 128], strides = [1, 1]} : vector<8x384xf32> to vector<8x128xf32>
    %228 = arith.addf %226, %227 : vector<8x128xf32>
    %229 = arith.negf %228 : vector<8x128xf32>
    %230 = math.exp %229 : vector<8x128xf32>
    %cst_67 = arith.constant 1.000000e+00 : f32
    %231 = vector.broadcast %cst_67 : f32 to vector<8x128xf32>
    %232 = arith.addf %231, %230 : vector<8x128xf32>
    %233 = arith.divf %231, %232 : vector<8x128xf32>
    %234 = vector.extract_strided_slice %224 {offsets = [0, 128], sizes = [8, 128], strides = [1, 1]} : vector<8x384xf32> to vector<8x128xf32>
    %235 = vector.extract_strided_slice %225 {offsets = [0, 128], sizes = [8, 128], strides = [1, 1]} : vector<8x384xf32> to vector<8x128xf32>
    %236 = arith.addf %234, %235 : vector<8x128xf32>
    %237 = arith.negf %236 : vector<8x128xf32>
    %238 = math.exp %237 : vector<8x128xf32>
    %cst_68 = arith.constant 1.000000e+00 : f32
    %239 = vector.broadcast %cst_68 : f32 to vector<8x128xf32>
    %240 = arith.addf %239, %238 : vector<8x128xf32>
    %241 = arith.divf %239, %240 : vector<8x128xf32>
    %242 = vector.extract_strided_slice %224 {offsets = [0, 256], sizes = [8, 128], strides = [1, 1]} : vector<8x384xf32> to vector<8x128xf32>
    %243 = vector.extract_strided_slice %225 {offsets = [0, 256], sizes = [8, 128], strides = [1, 1]} : vector<8x384xf32> to vector<8x128xf32>
    %244 = arith.addf %243, %10 : vector<8x128xf32>
    %245 = arith.mulf %233, %244 : vector<8x128xf32>
    %246 = arith.addf %242, %245 : vector<8x128xf32>
    %247 = math.tanh %246 : vector<8x128xf32>
    %cst_69 = arith.constant 1.000000e+00 : f32
    %248 = vector.broadcast %cst_69 : f32 to vector<8x128xf32>
    %249 = arith.subf %248, %241 : vector<8x128xf32>
    %250 = arith.mulf %249, %247 : vector<8x128xf32>
    %251 = arith.mulf %241, %165 : vector<8x128xf32>
    %252 = arith.addf %250, %251 : vector<8x128xf32>
    %253 = arith.addi %16, %c2_i32 : i32
    %254 = vector.broadcast %253 : i32 to vector<8x1xi32>
    %255 = arith.cmpi slt, %254, %15 : vector<8x1xi32>
    %256 = arith.extui %255 : vector<8x1xi1> to vector<8x1xi32>
    %257 = arith.sitofp %256 : vector<8x1xi32> to vector<8x1xf32>
    %258 = vector.broadcast %257 : vector<8x1xf32> to vector<8x128xf32>
    %259 = arith.mulf %258, %252 : vector<8x128xf32>
    %cst_70 = arith.constant 1.000000e+00 : f32
    %260 = vector.broadcast %cst_70 : f32 to vector<8x1xf32>
    %261 = arith.subf %260, %257 : vector<8x1xf32>
    %262 = vector.broadcast %261 : vector<8x1xf32> to vector<8x128xf32>
    %263 = arith.mulf %262, %165 : vector<8x128xf32>
    %264 = arith.addf %259, %263 : vector<8x128xf32>
    %265 = vector.broadcast %257 : vector<8x1xf32> to vector<8x128xf32>
    %266 = arith.mulf %265, %264 : vector<8x128xf32>
    %267 = arith.index_cast %c2_i32 : i32 to index
    %c0_71 = arith.constant 0 : index
    %c0_72 = arith.constant 0 : index
    %268 = vector.load %arg6[%267, %c0_71, %c0_72] : memref<8x8x128xf32, #tpu.memory_space<vmem>>, vector<1x8x128xf32>
    %269 = vector.shape_cast %268 : vector<1x8x128xf32> to vector<8x128xf32>
    %270 = vector.shape_cast %266 : vector<8x128xf32> to vector<1x8x128xf32>
    tpu.vector_store %arg6[%267, %c0_71, %c0_72], %270 {strides = array<i32>} : memref<8x8x128xf32, #tpu.memory_space<vmem>>, vector<1x8x128xf32>,
    %c0_73 = arith.constant 0 : index
    %271 = arith.index_cast %221 : i32 to index
    %c0_74 = arith.constant 0 : index
    %c0_75 = arith.constant 0 : index
    %272 = vector.load %arg2[%c0_73, %271, %c0_74, %c0_75] : memref<1x8x8x384xf32, #tpu.memory_space<vmem>>, vector<1x1x8x384xf32>
    %273 = vector.shape_cast %272 : vector<1x1x8x384xf32> to vector<8x384xf32>
    %cst_76 = arith.constant dense<0.000000e+00> : vector<8x384xf32>
    %274 = tpu.matmul %214, %6, %cst_76 {dimension_numbers = #tpu.dot_dimension_numbers<[1], [0], [0], [1], [0, 0, 1, 1], [], []>} : vector<8x128xf32>, vector<128x384xf32>, vector<8x384xf32> -> vector<8x384xf32>
    %275 = vector.extract_strided_slice %273 {offsets = [0, 0], sizes = [8, 128], strides = [1, 1]} : vector<8x384xf32> to vector<8x128xf32>
    %276 = vector.extract_strided_slice %274 {offsets = [0, 0], sizes = [8, 128], strides = [1, 1]} : vector<8x384xf32> to vector<8x128xf32>
    %277 = arith.addf %275, %276 : vector<8x128xf32>
    %278 = arith.negf %277 : vector<8x128xf32>
    %279 = math.exp %278 : vector<8x128xf32>
    %cst_77 = arith.constant 1.000000e+00 : f32
    %280 = vector.broadcast %cst_77 : f32 to vector<8x128xf32>
    %281 = arith.addf %280, %279 : vector<8x128xf32>
    %282 = arith.divf %280, %281 : vector<8x128xf32>
    %283 = vector.extract_strided_slice %273 {offsets = [0, 128], sizes = [8, 128], strides = [1, 1]} : vector<8x384xf32> to vector<8x128xf32>
    %284 = vector.extract_strided_slice %274 {offsets = [0, 128], sizes = [8, 128], strides = [1, 1]} : vector<8x384xf32> to vector<8x128xf32>
    %285 = arith.addf %283, %284 : vector<8x128xf32>
    %286 = arith.negf %285 : vector<8x128xf32>
    %287 = math.exp %286 : vector<8x128xf32>
    %cst_78 = arith.constant 1.000000e+00 : f32
    %288 = vector.broadcast %cst_78 : f32 to vector<8x128xf32>
    %289 = arith.addf %288, %287 : vector<8x128xf32>
    %290 = arith.divf %288, %289 : vector<8x128xf32>
    %291 = vector.extract_strided_slice %273 {offsets = [0, 256], sizes = [8, 128], strides = [1, 1]} : vector<8x384xf32> to vector<8x128xf32>
    %292 = vector.extract_strided_slice %274 {offsets = [0, 256], sizes = [8, 128], strides = [1, 1]} : vector<8x384xf32> to vector<8x128xf32>
    %293 = arith.addf %292, %14 : vector<8x128xf32>
    %294 = arith.mulf %282, %293 : vector<8x128xf32>
    %295 = arith.addf %291, %294 : vector<8x128xf32>
    %296 = math.tanh %295 : vector<8x128xf32>
    %cst_79 = arith.constant 1.000000e+00 : f32
    %297 = vector.broadcast %cst_79 : f32 to vector<8x128xf32>
    %298 = arith.subf %297, %290 : vector<8x128xf32>
    %299 = arith.mulf %298, %296 : vector<8x128xf32>
    %300 = arith.mulf %290, %214 : vector<8x128xf32>
    %301 = arith.addf %299, %300 : vector<8x128xf32>
    %302 = arith.addi %18, %221 : i32
    %303 = vector.broadcast %302 : i32 to vector<8x1xi32>
    %304 = arith.cmpi slt, %303, %15 : vector<8x1xi32>
    %305 = arith.extui %304 : vector<8x1xi1> to vector<8x1xi32>
    %306 = arith.sitofp %305 : vector<8x1xi32> to vector<8x1xf32>
    %307 = vector.broadcast %306 : vector<8x1xf32> to vector<8x128xf32>
    %308 = arith.mulf %307, %301 : vector<8x128xf32>
    %cst_80 = arith.constant 1.000000e+00 : f32
    %309 = vector.broadcast %cst_80 : f32 to vector<8x1xf32>
    %310 = arith.subf %309, %306 : vector<8x1xf32>
    %311 = vector.broadcast %310 : vector<8x1xf32> to vector<8x128xf32>
    %312 = arith.mulf %311, %214 : vector<8x128xf32>
    %313 = arith.addf %308, %312 : vector<8x128xf32>
    %314 = vector.broadcast %306 : vector<8x1xf32> to vector<8x128xf32>
    %315 = arith.mulf %314, %313 : vector<8x128xf32>
    %316 = arith.index_cast %221 : i32 to index
    %c0_81 = arith.constant 0 : index
    %c0_82 = arith.constant 0 : index
    %317 = vector.load %arg7[%316, %c0_81, %c0_82] : memref<8x8x128xf32, #tpu.memory_space<vmem>>, vector<1x8x128xf32>
    %318 = vector.shape_cast %317 : vector<1x8x128xf32> to vector<8x128xf32>
    %319 = vector.shape_cast %315 : vector<8x128xf32> to vector<1x8x128xf32>
    tpu.vector_store %arg7[%316, %c0_81, %c0_82], %319 {strides = array<i32>} : memref<8x8x128xf32, #tpu.memory_space<vmem>>, vector<1x8x128xf32>,
    %c3_i32 = arith.constant 3 : i32
    %c7_i32_83 = arith.constant 7 : i32
    %320 = arith.subi %c7_i32_83, %c3_i32 : i32
    %c0_84 = arith.constant 0 : index
    %321 = arith.index_cast %c3_i32 : i32 to index
    %c0_85 = arith.constant 0 : index
    %c0_86 = arith.constant 0 : index
    %322 = vector.load %arg1[%c0_84, %321, %c0_85, %c0_86] : memref<1x8x8x384xf32, #tpu.memory_space<vmem>>, vector<1x1x8x384xf32>
    %323 = vector.shape_cast %322 : vector<1x1x8x384xf32> to vector<8x384xf32>
    %cst_87 = arith.constant dense<0.000000e+00> : vector<8x384xf32>
    %324 = tpu.matmul %264, %4, %cst_87 {dimension_numbers = #tpu.dot_dimension_numbers<[1], [0], [0], [1], [0, 0, 1, 1], [], []>} : vector<8x128xf32>, vector<128x384xf32>, vector<8x384xf32> -> vector<8x384xf32>
    %325 = vector.extract_strided_slice %323 {offsets = [0, 0], sizes = [8, 128], strides = [1, 1]} : vector<8x384xf32> to vector<8x128xf32>
    %326 = vector.extract_strided_slice %324 {offsets = [0, 0], sizes = [8, 128], strides = [1, 1]} : vector<8x384xf32> to vector<8x128xf32>
    %327 = arith.addf %325, %326 : vector<8x128xf32>
    %328 = arith.negf %327 : vector<8x128xf32>
    %329 = math.exp %328 : vector<8x128xf32>
    %cst_88 = arith.constant 1.000000e+00 : f32
    %330 = vector.broadcast %cst_88 : f32 to vector<8x128xf32>
    %331 = arith.addf %330, %329 : vector<8x128xf32>
    %332 = arith.divf %330, %331 : vector<8x128xf32>
    %333 = vector.extract_strided_slice %323 {offsets = [0, 128], sizes = [8, 128], strides = [1, 1]} : vector<8x384xf32> to vector<8x128xf32>
    %334 = vector.extract_strided_slice %324 {offsets = [0, 128], sizes = [8, 128], strides = [1, 1]} : vector<8x384xf32> to vector<8x128xf32>
    %335 = arith.addf %333, %334 : vector<8x128xf32>
    %336 = arith.negf %335 : vector<8x128xf32>
    %337 = math.exp %336 : vector<8x128xf32>
    %cst_89 = arith.constant 1.000000e+00 : f32
    %338 = vector.broadcast %cst_89 : f32 to vector<8x128xf32>
    %339 = arith.addf %338, %337 : vector<8x128xf32>
    %340 = arith.divf %338, %339 : vector<8x128xf32>
    %341 = vector.extract_strided_slice %323 {offsets = [0, 256], sizes = [8, 128], strides = [1, 1]} : vector<8x384xf32> to vector<8x128xf32>
    %342 = vector.extract_strided_slice %324 {offsets = [0, 256], sizes = [8, 128], strides = [1, 1]} : vector<8x384xf32> to vector<8x128xf32>
    %343 = arith.addf %342, %10 : vector<8x128xf32>
    %344 = arith.mulf %332, %343 : vector<8x128xf32>
    %345 = arith.addf %341, %344 : vector<8x128xf32>
    %346 = math.tanh %345 : vector<8x128xf32>
    %cst_90 = arith.constant 1.000000e+00 : f32
    %347 = vector.broadcast %cst_90 : f32 to vector<8x128xf32>
    %348 = arith.subf %347, %340 : vector<8x128xf32>
    %349 = arith.mulf %348, %346 : vector<8x128xf32>
    %350 = arith.mulf %340, %264 : vector<8x128xf32>
    %351 = arith.addf %349, %350 : vector<8x128xf32>
    %352 = arith.addi %16, %c3_i32 : i32
    %353 = vector.broadcast %352 : i32 to vector<8x1xi32>
    %354 = arith.cmpi slt, %353, %15 : vector<8x1xi32>
    %355 = arith.extui %354 : vector<8x1xi1> to vector<8x1xi32>
    %356 = arith.sitofp %355 : vector<8x1xi32> to vector<8x1xf32>
    %357 = vector.broadcast %356 : vector<8x1xf32> to vector<8x128xf32>
    %358 = arith.mulf %357, %351 : vector<8x128xf32>
    %cst_91 = arith.constant 1.000000e+00 : f32
    %359 = vector.broadcast %cst_91 : f32 to vector<8x1xf32>
    %360 = arith.subf %359, %356 : vector<8x1xf32>
    %361 = vector.broadcast %360 : vector<8x1xf32> to vector<8x128xf32>
    %362 = arith.mulf %361, %264 : vector<8x128xf32>
    %363 = arith.addf %358, %362 : vector<8x128xf32>
    %364 = vector.broadcast %356 : vector<8x1xf32> to vector<8x128xf32>
    %365 = arith.mulf %364, %363 : vector<8x128xf32>
    %366 = arith.index_cast %c3_i32 : i32 to index
    %c0_92 = arith.constant 0 : index
    %c0_93 = arith.constant 0 : index
    %367 = vector.load %arg6[%366, %c0_92, %c0_93] : memref<8x8x128xf32, #tpu.memory_space<vmem>>, vector<1x8x128xf32>
    %368 = vector.shape_cast %367 : vector<1x8x128xf32> to vector<8x128xf32>
    %369 = vector.shape_cast %365 : vector<8x128xf32> to vector<1x8x128xf32>
    tpu.vector_store %arg6[%366, %c0_92, %c0_93], %369 {strides = array<i32>} : memref<8x8x128xf32, #tpu.memory_space<vmem>>, vector<1x8x128xf32>,
    %c0_94 = arith.constant 0 : index
    %370 = arith.index_cast %320 : i32 to index
    %c0_95 = arith.constant 0 : index
    %c0_96 = arith.constant 0 : index
    %371 = vector.load %arg2[%c0_94, %370, %c0_95, %c0_96] : memref<1x8x8x384xf32, #tpu.memory_space<vmem>>, vector<1x1x8x384xf32>
    %372 = vector.shape_cast %371 : vector<1x1x8x384xf32> to vector<8x384xf32>
    %cst_97 = arith.constant dense<0.000000e+00> : vector<8x384xf32>
    %373 = tpu.matmul %313, %6, %cst_97 {dimension_numbers = #tpu.dot_dimension_numbers<[1], [0], [0], [1], [0, 0, 1, 1], [], []>} : vector<8x128xf32>, vector<128x384xf32>, vector<8x384xf32> -> vector<8x384xf32>
    %374 = vector.extract_strided_slice %372 {offsets = [0, 0], sizes = [8, 128], strides = [1, 1]} : vector<8x384xf32> to vector<8x128xf32>
    %375 = vector.extract_strided_slice %373 {offsets = [0, 0], sizes = [8, 128], strides = [1, 1]} : vector<8x384xf32> to vector<8x128xf32>
    %376 = arith.addf %374, %375 : vector<8x128xf32>
    %377 = arith.negf %376 : vector<8x128xf32>
    %378 = math.exp %377 : vector<8x128xf32>
    %cst_98 = arith.constant 1.000000e+00 : f32
    %379 = vector.broadcast %cst_98 : f32 to vector<8x128xf32>
    %380 = arith.addf %379, %378 : vector<8x128xf32>
    %381 = arith.divf %379, %380 : vector<8x128xf32>
    %382 = vector.extract_strided_slice %372 {offsets = [0, 128], sizes = [8, 128], strides = [1, 1]} : vector<8x384xf32> to vector<8x128xf32>
    %383 = vector.extract_strided_slice %373 {offsets = [0, 128], sizes = [8, 128], strides = [1, 1]} : vector<8x384xf32> to vector<8x128xf32>
    %384 = arith.addf %382, %383 : vector<8x128xf32>
    %385 = arith.negf %384 : vector<8x128xf32>
    %386 = math.exp %385 : vector<8x128xf32>
    %cst_99 = arith.constant 1.000000e+00 : f32
    %387 = vector.broadcast %cst_99 : f32 to vector<8x128xf32>
    %388 = arith.addf %387, %386 : vector<8x128xf32>
    %389 = arith.divf %387, %388 : vector<8x128xf32>
    %390 = vector.extract_strided_slice %372 {offsets = [0, 256], sizes = [8, 128], strides = [1, 1]} : vector<8x384xf32> to vector<8x128xf32>
    %391 = vector.extract_strided_slice %373 {offsets = [0, 256], sizes = [8, 128], strides = [1, 1]} : vector<8x384xf32> to vector<8x128xf32>
    %392 = arith.addf %391, %14 : vector<8x128xf32>
    %393 = arith.mulf %381, %392 : vector<8x128xf32>
    %394 = arith.addf %390, %393 : vector<8x128xf32>
    %395 = math.tanh %394 : vector<8x128xf32>
    %cst_100 = arith.constant 1.000000e+00 : f32
    %396 = vector.broadcast %cst_100 : f32 to vector<8x128xf32>
    %397 = arith.subf %396, %389 : vector<8x128xf32>
    %398 = arith.mulf %397, %395 : vector<8x128xf32>
    %399 = arith.mulf %389, %313 : vector<8x128xf32>
    %400 = arith.addf %398, %399 : vector<8x128xf32>
    %401 = arith.addi %18, %320 : i32
    %402 = vector.broadcast %401 : i32 to vector<8x1xi32>
    %403 = arith.cmpi slt, %402, %15 : vector<8x1xi32>
    %404 = arith.extui %403 : vector<8x1xi1> to vector<8x1xi32>
    %405 = arith.sitofp %404 : vector<8x1xi32> to vector<8x1xf32>
    %406 = vector.broadcast %405 : vector<8x1xf32> to vector<8x128xf32>
    %407 = arith.mulf %406, %400 : vector<8x128xf32>
    %cst_101 = arith.constant 1.000000e+00 : f32
    %408 = vector.broadcast %cst_101 : f32 to vector<8x1xf32>
    %409 = arith.subf %408, %405 : vector<8x1xf32>
    %410 = vector.broadcast %409 : vector<8x1xf32> to vector<8x128xf32>
    %411 = arith.mulf %410, %313 : vector<8x128xf32>
    %412 = arith.addf %407, %411 : vector<8x128xf32>
    %413 = vector.broadcast %405 : vector<8x1xf32> to vector<8x128xf32>
    %414 = arith.mulf %413, %412 : vector<8x128xf32>
    %415 = arith.index_cast %320 : i32 to index
    %c0_102 = arith.constant 0 : index
    %c0_103 = arith.constant 0 : index
    %416 = vector.load %arg7[%415, %c0_102, %c0_103] : memref<8x8x128xf32, #tpu.memory_space<vmem>>, vector<1x8x128xf32>
    %417 = vector.shape_cast %416 : vector<1x8x128xf32> to vector<8x128xf32>
    %418 = vector.shape_cast %414 : vector<8x128xf32> to vector<1x8x128xf32>
    tpu.vector_store %arg7[%415, %c0_102, %c0_103], %418 {strides = array<i32>} : memref<8x8x128xf32, #tpu.memory_space<vmem>>, vector<1x8x128xf32>,
    %c4_i32 = arith.constant 4 : i32
    %c7_i32_104 = arith.constant 7 : i32
    %419 = arith.subi %c7_i32_104, %c4_i32 : i32
    %c0_105 = arith.constant 0 : index
    %420 = arith.index_cast %c4_i32 : i32 to index
    %c0_106 = arith.constant 0 : index
    %c0_107 = arith.constant 0 : index
    %421 = vector.load %arg1[%c0_105, %420, %c0_106, %c0_107] : memref<1x8x8x384xf32, #tpu.memory_space<vmem>>, vector<1x1x8x384xf32>
    %422 = vector.shape_cast %421 : vector<1x1x8x384xf32> to vector<8x384xf32>
    %cst_108 = arith.constant dense<0.000000e+00> : vector<8x384xf32>
    %423 = tpu.matmul %363, %4, %cst_108 {dimension_numbers = #tpu.dot_dimension_numbers<[1], [0], [0], [1], [0, 0, 1, 1], [], []>} : vector<8x128xf32>, vector<128x384xf32>, vector<8x384xf32> -> vector<8x384xf32>
    %424 = vector.extract_strided_slice %422 {offsets = [0, 0], sizes = [8, 128], strides = [1, 1]} : vector<8x384xf32> to vector<8x128xf32>
    %425 = vector.extract_strided_slice %423 {offsets = [0, 0], sizes = [8, 128], strides = [1, 1]} : vector<8x384xf32> to vector<8x128xf32>
    %426 = arith.addf %424, %425 : vector<8x128xf32>
    %427 = arith.negf %426 : vector<8x128xf32>
    %428 = math.exp %427 : vector<8x128xf32>
    %cst_109 = arith.constant 1.000000e+00 : f32
    %429 = vector.broadcast %cst_109 : f32 to vector<8x128xf32>
    %430 = arith.addf %429, %428 : vector<8x128xf32>
    %431 = arith.divf %429, %430 : vector<8x128xf32>
    %432 = vector.extract_strided_slice %422 {offsets = [0, 128], sizes = [8, 128], strides = [1, 1]} : vector<8x384xf32> to vector<8x128xf32>
    %433 = vector.extract_strided_slice %423 {offsets = [0, 128], sizes = [8, 128], strides = [1, 1]} : vector<8x384xf32> to vector<8x128xf32>
    %434 = arith.addf %432, %433 : vector<8x128xf32>
    %435 = arith.negf %434 : vector<8x128xf32>
    %436 = math.exp %435 : vector<8x128xf32>
    %cst_110 = arith.constant 1.000000e+00 : f32
    %437 = vector.broadcast %cst_110 : f32 to vector<8x128xf32>
    %438 = arith.addf %437, %436 : vector<8x128xf32>
    %439 = arith.divf %437, %438 : vector<8x128xf32>
    %440 = vector.extract_strided_slice %422 {offsets = [0, 256], sizes = [8, 128], strides = [1, 1]} : vector<8x384xf32> to vector<8x128xf32>
    %441 = vector.extract_strided_slice %423 {offsets = [0, 256], sizes = [8, 128], strides = [1, 1]} : vector<8x384xf32> to vector<8x128xf32>
    %442 = arith.addf %441, %10 : vector<8x128xf32>
    %443 = arith.mulf %431, %442 : vector<8x128xf32>
    %444 = arith.addf %440, %443 : vector<8x128xf32>
    %445 = math.tanh %444 : vector<8x128xf32>
    %cst_111 = arith.constant 1.000000e+00 : f32
    %446 = vector.broadcast %cst_111 : f32 to vector<8x128xf32>
    %447 = arith.subf %446, %439 : vector<8x128xf32>
    %448 = arith.mulf %447, %445 : vector<8x128xf32>
    %449 = arith.mulf %439, %363 : vector<8x128xf32>
    %450 = arith.addf %448, %449 : vector<8x128xf32>
    %451 = arith.addi %16, %c4_i32 : i32
    %452 = vector.broadcast %451 : i32 to vector<8x1xi32>
    %453 = arith.cmpi slt, %452, %15 : vector<8x1xi32>
    %454 = arith.extui %453 : vector<8x1xi1> to vector<8x1xi32>
    %455 = arith.sitofp %454 : vector<8x1xi32> to vector<8x1xf32>
    %456 = vector.broadcast %455 : vector<8x1xf32> to vector<8x128xf32>
    %457 = arith.mulf %456, %450 : vector<8x128xf32>
    %cst_112 = arith.constant 1.000000e+00 : f32
    %458 = vector.broadcast %cst_112 : f32 to vector<8x1xf32>
    %459 = arith.subf %458, %455 : vector<8x1xf32>
    %460 = vector.broadcast %459 : vector<8x1xf32> to vector<8x128xf32>
    %461 = arith.mulf %460, %363 : vector<8x128xf32>
    %462 = arith.addf %457, %461 : vector<8x128xf32>
    %463 = vector.broadcast %455 : vector<8x1xf32> to vector<8x128xf32>
    %464 = arith.mulf %463, %462 : vector<8x128xf32>
    %465 = arith.index_cast %c4_i32 : i32 to index
    %c0_113 = arith.constant 0 : index
    %c0_114 = arith.constant 0 : index
    %466 = vector.load %arg6[%465, %c0_113, %c0_114] : memref<8x8x128xf32, #tpu.memory_space<vmem>>, vector<1x8x128xf32>
    %467 = vector.shape_cast %466 : vector<1x8x128xf32> to vector<8x128xf32>
    %468 = vector.shape_cast %464 : vector<8x128xf32> to vector<1x8x128xf32>
    tpu.vector_store %arg6[%465, %c0_113, %c0_114], %468 {strides = array<i32>} : memref<8x8x128xf32, #tpu.memory_space<vmem>>, vector<1x8x128xf32>,
    %c0_115 = arith.constant 0 : index
    %469 = arith.index_cast %419 : i32 to index
    %c0_116 = arith.constant 0 : index
    %c0_117 = arith.constant 0 : index
    %470 = vector.load %arg2[%c0_115, %469, %c0_116, %c0_117] : memref<1x8x8x384xf32, #tpu.memory_space<vmem>>, vector<1x1x8x384xf32>
    %471 = vector.shape_cast %470 : vector<1x1x8x384xf32> to vector<8x384xf32>
    %cst_118 = arith.constant dense<0.000000e+00> : vector<8x384xf32>
    %472 = tpu.matmul %412, %6, %cst_118 {dimension_numbers = #tpu.dot_dimension_numbers<[1], [0], [0], [1], [0, 0, 1, 1], [], []>} : vector<8x128xf32>, vector<128x384xf32>, vector<8x384xf32> -> vector<8x384xf32>
    %473 = vector.extract_strided_slice %471 {offsets = [0, 0], sizes = [8, 128], strides = [1, 1]} : vector<8x384xf32> to vector<8x128xf32>
    %474 = vector.extract_strided_slice %472 {offsets = [0, 0], sizes = [8, 128], strides = [1, 1]} : vector<8x384xf32> to vector<8x128xf32>
    %475 = arith.addf %473, %474 : vector<8x128xf32>
    %476 = arith.negf %475 : vector<8x128xf32>
    %477 = math.exp %476 : vector<8x128xf32>
    %cst_119 = arith.constant 1.000000e+00 : f32
    %478 = vector.broadcast %cst_119 : f32 to vector<8x128xf32>
    %479 = arith.addf %478, %477 : vector<8x128xf32>
    %480 = arith.divf %478, %479 : vector<8x128xf32>
    %481 = vector.extract_strided_slice %471 {offsets = [0, 128], sizes = [8, 128], strides = [1, 1]} : vector<8x384xf32> to vector<8x128xf32>
    %482 = vector.extract_strided_slice %472 {offsets = [0, 128], sizes = [8, 128], strides = [1, 1]} : vector<8x384xf32> to vector<8x128xf32>
    %483 = arith.addf %481, %482 : vector<8x128xf32>
    %484 = arith.negf %483 : vector<8x128xf32>
    %485 = math.exp %484 : vector<8x128xf32>
    %cst_120 = arith.constant 1.000000e+00 : f32
    %486 = vector.broadcast %cst_120 : f32 to vector<8x128xf32>
    %487 = arith.addf %486, %485 : vector<8x128xf32>
    %488 = arith.divf %486, %487 : vector<8x128xf32>
    %489 = vector.extract_strided_slice %471 {offsets = [0, 256], sizes = [8, 128], strides = [1, 1]} : vector<8x384xf32> to vector<8x128xf32>
    %490 = vector.extract_strided_slice %472 {offsets = [0, 256], sizes = [8, 128], strides = [1, 1]} : vector<8x384xf32> to vector<8x128xf32>
    %491 = arith.addf %490, %14 : vector<8x128xf32>
    %492 = arith.mulf %480, %491 : vector<8x128xf32>
    %493 = arith.addf %489, %492 : vector<8x128xf32>
    %494 = math.tanh %493 : vector<8x128xf32>
    %cst_121 = arith.constant 1.000000e+00 : f32
    %495 = vector.broadcast %cst_121 : f32 to vector<8x128xf32>
    %496 = arith.subf %495, %488 : vector<8x128xf32>
    %497 = arith.mulf %496, %494 : vector<8x128xf32>
    %498 = arith.mulf %488, %412 : vector<8x128xf32>
    %499 = arith.addf %497, %498 : vector<8x128xf32>
    %500 = arith.addi %18, %419 : i32
    %501 = vector.broadcast %500 : i32 to vector<8x1xi32>
    %502 = arith.cmpi slt, %501, %15 : vector<8x1xi32>
    %503 = arith.extui %502 : vector<8x1xi1> to vector<8x1xi32>
    %504 = arith.sitofp %503 : vector<8x1xi32> to vector<8x1xf32>
    %505 = vector.broadcast %504 : vector<8x1xf32> to vector<8x128xf32>
    %506 = arith.mulf %505, %499 : vector<8x128xf32>
    %cst_122 = arith.constant 1.000000e+00 : f32
    %507 = vector.broadcast %cst_122 : f32 to vector<8x1xf32>
    %508 = arith.subf %507, %504 : vector<8x1xf32>
    %509 = vector.broadcast %508 : vector<8x1xf32> to vector<8x128xf32>
    %510 = arith.mulf %509, %412 : vector<8x128xf32>
    %511 = arith.addf %506, %510 : vector<8x128xf32>
    %512 = vector.broadcast %504 : vector<8x1xf32> to vector<8x128xf32>
    %513 = arith.mulf %512, %511 : vector<8x128xf32>
    %514 = arith.index_cast %419 : i32 to index
    %c0_123 = arith.constant 0 : index
    %c0_124 = arith.constant 0 : index
    %515 = vector.load %arg7[%514, %c0_123, %c0_124] : memref<8x8x128xf32, #tpu.memory_space<vmem>>, vector<1x8x128xf32>
    %516 = vector.shape_cast %515 : vector<1x8x128xf32> to vector<8x128xf32>
    %517 = vector.shape_cast %513 : vector<8x128xf32> to vector<1x8x128xf32>
    tpu.vector_store %arg7[%514, %c0_123, %c0_124], %517 {strides = array<i32>} : memref<8x8x128xf32, #tpu.memory_space<vmem>>, vector<1x8x128xf32>,
    %c5_i32 = arith.constant 5 : i32
    %c7_i32_125 = arith.constant 7 : i32
    %518 = arith.subi %c7_i32_125, %c5_i32 : i32
    %c0_126 = arith.constant 0 : index
    %519 = arith.index_cast %c5_i32 : i32 to index
    %c0_127 = arith.constant 0 : index
    %c0_128 = arith.constant 0 : index
    %520 = vector.load %arg1[%c0_126, %519, %c0_127, %c0_128] : memref<1x8x8x384xf32, #tpu.memory_space<vmem>>, vector<1x1x8x384xf32>
    %521 = vector.shape_cast %520 : vector<1x1x8x384xf32> to vector<8x384xf32>
    %cst_129 = arith.constant dense<0.000000e+00> : vector<8x384xf32>
    %522 = tpu.matmul %462, %4, %cst_129 {dimension_numbers = #tpu.dot_dimension_numbers<[1], [0], [0], [1], [0, 0, 1, 1], [], []>} : vector<8x128xf32>, vector<128x384xf32>, vector<8x384xf32> -> vector<8x384xf32>
    %523 = vector.extract_strided_slice %521 {offsets = [0, 0], sizes = [8, 128], strides = [1, 1]} : vector<8x384xf32> to vector<8x128xf32>
    %524 = vector.extract_strided_slice %522 {offsets = [0, 0], sizes = [8, 128], strides = [1, 1]} : vector<8x384xf32> to vector<8x128xf32>
    %525 = arith.addf %523, %524 : vector<8x128xf32>
    %526 = arith.negf %525 : vector<8x128xf32>
    %527 = math.exp %526 : vector<8x128xf32>
    %cst_130 = arith.constant 1.000000e+00 : f32
    %528 = vector.broadcast %cst_130 : f32 to vector<8x128xf32>
    %529 = arith.addf %528, %527 : vector<8x128xf32>
    %530 = arith.divf %528, %529 : vector<8x128xf32>
    %531 = vector.extract_strided_slice %521 {offsets = [0, 128], sizes = [8, 128], strides = [1, 1]} : vector<8x384xf32> to vector<8x128xf32>
    %532 = vector.extract_strided_slice %522 {offsets = [0, 128], sizes = [8, 128], strides = [1, 1]} : vector<8x384xf32> to vector<8x128xf32>
    %533 = arith.addf %531, %532 : vector<8x128xf32>
    %534 = arith.negf %533 : vector<8x128xf32>
    %535 = math.exp %534 : vector<8x128xf32>
    %cst_131 = arith.constant 1.000000e+00 : f32
    %536 = vector.broadcast %cst_131 : f32 to vector<8x128xf32>
    %537 = arith.addf %536, %535 : vector<8x128xf32>
    %538 = arith.divf %536, %537 : vector<8x128xf32>
    %539 = vector.extract_strided_slice %521 {offsets = [0, 256], sizes = [8, 128], strides = [1, 1]} : vector<8x384xf32> to vector<8x128xf32>
    %540 = vector.extract_strided_slice %522 {offsets = [0, 256], sizes = [8, 128], strides = [1, 1]} : vector<8x384xf32> to vector<8x128xf32>
    %541 = arith.addf %540, %10 : vector<8x128xf32>
    %542 = arith.mulf %530, %541 : vector<8x128xf32>
    %543 = arith.addf %539, %542 : vector<8x128xf32>
    %544 = math.tanh %543 : vector<8x128xf32>
    %cst_132 = arith.constant 1.000000e+00 : f32
    %545 = vector.broadcast %cst_132 : f32 to vector<8x128xf32>
    %546 = arith.subf %545, %538 : vector<8x128xf32>
    %547 = arith.mulf %546, %544 : vector<8x128xf32>
    %548 = arith.mulf %538, %462 : vector<8x128xf32>
    %549 = arith.addf %547, %548 : vector<8x128xf32>
    %550 = arith.addi %16, %c5_i32 : i32
    %551 = vector.broadcast %550 : i32 to vector<8x1xi32>
    %552 = arith.cmpi slt, %551, %15 : vector<8x1xi32>
    %553 = arith.extui %552 : vector<8x1xi1> to vector<8x1xi32>
    %554 = arith.sitofp %553 : vector<8x1xi32> to vector<8x1xf32>
    %555 = vector.broadcast %554 : vector<8x1xf32> to vector<8x128xf32>
    %556 = arith.mulf %555, %549 : vector<8x128xf32>
    %cst_133 = arith.constant 1.000000e+00 : f32
    %557 = vector.broadcast %cst_133 : f32 to vector<8x1xf32>
    %558 = arith.subf %557, %554 : vector<8x1xf32>
    %559 = vector.broadcast %558 : vector<8x1xf32> to vector<8x128xf32>
    %560 = arith.mulf %559, %462 : vector<8x128xf32>
    %561 = arith.addf %556, %560 : vector<8x128xf32>
    %562 = vector.broadcast %554 : vector<8x1xf32> to vector<8x128xf32>
    %563 = arith.mulf %562, %561 : vector<8x128xf32>
    %564 = arith.index_cast %c5_i32 : i32 to index
    %c0_134 = arith.constant 0 : index
    %c0_135 = arith.constant 0 : index
    %565 = vector.load %arg6[%564, %c0_134, %c0_135] : memref<8x8x128xf32, #tpu.memory_space<vmem>>, vector<1x8x128xf32>
    %566 = vector.shape_cast %565 : vector<1x8x128xf32> to vector<8x128xf32>
    %567 = vector.shape_cast %563 : vector<8x128xf32> to vector<1x8x128xf32>
    tpu.vector_store %arg6[%564, %c0_134, %c0_135], %567 {strides = array<i32>} : memref<8x8x128xf32, #tpu.memory_space<vmem>>, vector<1x8x128xf32>,
    %c0_136 = arith.constant 0 : index
    %568 = arith.index_cast %518 : i32 to index
    %c0_137 = arith.constant 0 : index
    %c0_138 = arith.constant 0 : index
    %569 = vector.load %arg2[%c0_136, %568, %c0_137, %c0_138] : memref<1x8x8x384xf32, #tpu.memory_space<vmem>>, vector<1x1x8x384xf32>
    %570 = vector.shape_cast %569 : vector<1x1x8x384xf32> to vector<8x384xf32>
    %cst_139 = arith.constant dense<0.000000e+00> : vector<8x384xf32>
    %571 = tpu.matmul %511, %6, %cst_139 {dimension_numbers = #tpu.dot_dimension_numbers<[1], [0], [0], [1], [0, 0, 1, 1], [], []>} : vector<8x128xf32>, vector<128x384xf32>, vector<8x384xf32> -> vector<8x384xf32>
    %572 = vector.extract_strided_slice %570 {offsets = [0, 0], sizes = [8, 128], strides = [1, 1]} : vector<8x384xf32> to vector<8x128xf32>
    %573 = vector.extract_strided_slice %571 {offsets = [0, 0], sizes = [8, 128], strides = [1, 1]} : vector<8x384xf32> to vector<8x128xf32>
    %574 = arith.addf %572, %573 : vector<8x128xf32>
    %575 = arith.negf %574 : vector<8x128xf32>
    %576 = math.exp %575 : vector<8x128xf32>
    %cst_140 = arith.constant 1.000000e+00 : f32
    %577 = vector.broadcast %cst_140 : f32 to vector<8x128xf32>
    %578 = arith.addf %577, %576 : vector<8x128xf32>
    %579 = arith.divf %577, %578 : vector<8x128xf32>
    %580 = vector.extract_strided_slice %570 {offsets = [0, 128], sizes = [8, 128], strides = [1, 1]} : vector<8x384xf32> to vector<8x128xf32>
    %581 = vector.extract_strided_slice %571 {offsets = [0, 128], sizes = [8, 128], strides = [1, 1]} : vector<8x384xf32> to vector<8x128xf32>
    %582 = arith.addf %580, %581 : vector<8x128xf32>
    %583 = arith.negf %582 : vector<8x128xf32>
    %584 = math.exp %583 : vector<8x128xf32>
    %cst_141 = arith.constant 1.000000e+00 : f32
    %585 = vector.broadcast %cst_141 : f32 to vector<8x128xf32>
    %586 = arith.addf %585, %584 : vector<8x128xf32>
    %587 = arith.divf %585, %586 : vector<8x128xf32>
    %588 = vector.extract_strided_slice %570 {offsets = [0, 256], sizes = [8, 128], strides = [1, 1]} : vector<8x384xf32> to vector<8x128xf32>
    %589 = vector.extract_strided_slice %571 {offsets = [0, 256], sizes = [8, 128], strides = [1, 1]} : vector<8x384xf32> to vector<8x128xf32>
    %590 = arith.addf %589, %14 : vector<8x128xf32>
    %591 = arith.mulf %579, %590 : vector<8x128xf32>
    %592 = arith.addf %588, %591 : vector<8x128xf32>
    %593 = math.tanh %592 : vector<8x128xf32>
    %cst_142 = arith.constant 1.000000e+00 : f32
    %594 = vector.broadcast %cst_142 : f32 to vector<8x128xf32>
    %595 = arith.subf %594, %587 : vector<8x128xf32>
    %596 = arith.mulf %595, %593 : vector<8x128xf32>
    %597 = arith.mulf %587, %511 : vector<8x128xf32>
    %598 = arith.addf %596, %597 : vector<8x128xf32>
    %599 = arith.addi %18, %518 : i32
    %600 = vector.broadcast %599 : i32 to vector<8x1xi32>
    %601 = arith.cmpi slt, %600, %15 : vector<8x1xi32>
    %602 = arith.extui %601 : vector<8x1xi1> to vector<8x1xi32>
    %603 = arith.sitofp %602 : vector<8x1xi32> to vector<8x1xf32>
    %604 = vector.broadcast %603 : vector<8x1xf32> to vector<8x128xf32>
    %605 = arith.mulf %604, %598 : vector<8x128xf32>
    %cst_143 = arith.constant 1.000000e+00 : f32
    %606 = vector.broadcast %cst_143 : f32 to vector<8x1xf32>
    %607 = arith.subf %606, %603 : vector<8x1xf32>
    %608 = vector.broadcast %607 : vector<8x1xf32> to vector<8x128xf32>
    %609 = arith.mulf %608, %511 : vector<8x128xf32>
    %610 = arith.addf %605, %609 : vector<8x128xf32>
    %611 = vector.broadcast %603 : vector<8x1xf32> to vector<8x128xf32>
    %612 = arith.mulf %611, %610 : vector<8x128xf32>
    %613 = arith.index_cast %518 : i32 to index
    %c0_144 = arith.constant 0 : index
    %c0_145 = arith.constant 0 : index
    %614 = vector.load %arg7[%613, %c0_144, %c0_145] : memref<8x8x128xf32, #tpu.memory_space<vmem>>, vector<1x8x128xf32>
    %615 = vector.shape_cast %614 : vector<1x8x128xf32> to vector<8x128xf32>
    %616 = vector.shape_cast %612 : vector<8x128xf32> to vector<1x8x128xf32>
    tpu.vector_store %arg7[%613, %c0_144, %c0_145], %616 {strides = array<i32>} : memref<8x8x128xf32, #tpu.memory_space<vmem>>, vector<1x8x128xf32>,
    %c6_i32 = arith.constant 6 : i32
    %c7_i32_146 = arith.constant 7 : i32
    %617 = arith.subi %c7_i32_146, %c6_i32 : i32
    %c0_147 = arith.constant 0 : index
    %618 = arith.index_cast %c6_i32 : i32 to index
    %c0_148 = arith.constant 0 : index
    %c0_149 = arith.constant 0 : index
    %619 = vector.load %arg1[%c0_147, %618, %c0_148, %c0_149] : memref<1x8x8x384xf32, #tpu.memory_space<vmem>>, vector<1x1x8x384xf32>
    %620 = vector.shape_cast %619 : vector<1x1x8x384xf32> to vector<8x384xf32>
    %cst_150 = arith.constant dense<0.000000e+00> : vector<8x384xf32>
    %621 = tpu.matmul %561, %4, %cst_150 {dimension_numbers = #tpu.dot_dimension_numbers<[1], [0], [0], [1], [0, 0, 1, 1], [], []>} : vector<8x128xf32>, vector<128x384xf32>, vector<8x384xf32> -> vector<8x384xf32>
    %622 = vector.extract_strided_slice %620 {offsets = [0, 0], sizes = [8, 128], strides = [1, 1]} : vector<8x384xf32> to vector<8x128xf32>
    %623 = vector.extract_strided_slice %621 {offsets = [0, 0], sizes = [8, 128], strides = [1, 1]} : vector<8x384xf32> to vector<8x128xf32>
    %624 = arith.addf %622, %623 : vector<8x128xf32>
    %625 = arith.negf %624 : vector<8x128xf32>
    %626 = math.exp %625 : vector<8x128xf32>
    %cst_151 = arith.constant 1.000000e+00 : f32
    %627 = vector.broadcast %cst_151 : f32 to vector<8x128xf32>
    %628 = arith.addf %627, %626 : vector<8x128xf32>
    %629 = arith.divf %627, %628 : vector<8x128xf32>
    %630 = vector.extract_strided_slice %620 {offsets = [0, 128], sizes = [8, 128], strides = [1, 1]} : vector<8x384xf32> to vector<8x128xf32>
    %631 = vector.extract_strided_slice %621 {offsets = [0, 128], sizes = [8, 128], strides = [1, 1]} : vector<8x384xf32> to vector<8x128xf32>
    %632 = arith.addf %630, %631 : vector<8x128xf32>
    %633 = arith.negf %632 : vector<8x128xf32>
    %634 = math.exp %633 : vector<8x128xf32>
    %cst_152 = arith.constant 1.000000e+00 : f32
    %635 = vector.broadcast %cst_152 : f32 to vector<8x128xf32>
    %636 = arith.addf %635, %634 : vector<8x128xf32>
    %637 = arith.divf %635, %636 : vector<8x128xf32>
    %638 = vector.extract_strided_slice %620 {offsets = [0, 256], sizes = [8, 128], strides = [1, 1]} : vector<8x384xf32> to vector<8x128xf32>
    %639 = vector.extract_strided_slice %621 {offsets = [0, 256], sizes = [8, 128], strides = [1, 1]} : vector<8x384xf32> to vector<8x128xf32>
    %640 = arith.addf %639, %10 : vector<8x128xf32>
    %641 = arith.mulf %629, %640 : vector<8x128xf32>
    %642 = arith.addf %638, %641 : vector<8x128xf32>
    %643 = math.tanh %642 : vector<8x128xf32>
    %cst_153 = arith.constant 1.000000e+00 : f32
    %644 = vector.broadcast %cst_153 : f32 to vector<8x128xf32>
    %645 = arith.subf %644, %637 : vector<8x128xf32>
    %646 = arith.mulf %645, %643 : vector<8x128xf32>
    %647 = arith.mulf %637, %561 : vector<8x128xf32>
    %648 = arith.addf %646, %647 : vector<8x128xf32>
    %649 = arith.addi %16, %c6_i32 : i32
    %650 = vector.broadcast %649 : i32 to vector<8x1xi32>
    %651 = arith.cmpi slt, %650, %15 : vector<8x1xi32>
    %652 = arith.extui %651 : vector<8x1xi1> to vector<8x1xi32>
    %653 = arith.sitofp %652 : vector<8x1xi32> to vector<8x1xf32>
    %654 = vector.broadcast %653 : vector<8x1xf32> to vector<8x128xf32>
    %655 = arith.mulf %654, %648 : vector<8x128xf32>
    %cst_154 = arith.constant 1.000000e+00 : f32
    %656 = vector.broadcast %cst_154 : f32 to vector<8x1xf32>
    %657 = arith.subf %656, %653 : vector<8x1xf32>
    %658 = vector.broadcast %657 : vector<8x1xf32> to vector<8x128xf32>
    %659 = arith.mulf %658, %561 : vector<8x128xf32>
    %660 = arith.addf %655, %659 : vector<8x128xf32>
    %661 = vector.broadcast %653 : vector<8x1xf32> to vector<8x128xf32>
    %662 = arith.mulf %661, %660 : vector<8x128xf32>
    %663 = arith.index_cast %c6_i32 : i32 to index
    %c0_155 = arith.constant 0 : index
    %c0_156 = arith.constant 0 : index
    %664 = vector.load %arg6[%663, %c0_155, %c0_156] : memref<8x8x128xf32, #tpu.memory_space<vmem>>, vector<1x8x128xf32>
    %665 = vector.shape_cast %664 : vector<1x8x128xf32> to vector<8x128xf32>
    %666 = vector.shape_cast %662 : vector<8x128xf32> to vector<1x8x128xf32>
    tpu.vector_store %arg6[%663, %c0_155, %c0_156], %666 {strides = array<i32>} : memref<8x8x128xf32, #tpu.memory_space<vmem>>, vector<1x8x128xf32>,
    %c0_157 = arith.constant 0 : index
    %667 = arith.index_cast %617 : i32 to index
    %c0_158 = arith.constant 0 : index
    %c0_159 = arith.constant 0 : index
    %668 = vector.load %arg2[%c0_157, %667, %c0_158, %c0_159] : memref<1x8x8x384xf32, #tpu.memory_space<vmem>>, vector<1x1x8x384xf32>
    %669 = vector.shape_cast %668 : vector<1x1x8x384xf32> to vector<8x384xf32>
    %cst_160 = arith.constant dense<0.000000e+00> : vector<8x384xf32>
    %670 = tpu.matmul %610, %6, %cst_160 {dimension_numbers = #tpu.dot_dimension_numbers<[1], [0], [0], [1], [0, 0, 1, 1], [], []>} : vector<8x128xf32>, vector<128x384xf32>, vector<8x384xf32> -> vector<8x384xf32>
    %671 = vector.extract_strided_slice %669 {offsets = [0, 0], sizes = [8, 128], strides = [1, 1]} : vector<8x384xf32> to vector<8x128xf32>
    %672 = vector.extract_strided_slice %670 {offsets = [0, 0], sizes = [8, 128], strides = [1, 1]} : vector<8x384xf32> to vector<8x128xf32>
    %673 = arith.addf %671, %672 : vector<8x128xf32>
    %674 = arith.negf %673 : vector<8x128xf32>
    %675 = math.exp %674 : vector<8x128xf32>
    %cst_161 = arith.constant 1.000000e+00 : f32
    %676 = vector.broadcast %cst_161 : f32 to vector<8x128xf32>
    %677 = arith.addf %676, %675 : vector<8x128xf32>
    %678 = arith.divf %676, %677 : vector<8x128xf32>
    %679 = vector.extract_strided_slice %669 {offsets = [0, 128], sizes = [8, 128], strides = [1, 1]} : vector<8x384xf32> to vector<8x128xf32>
    %680 = vector.extract_strided_slice %670 {offsets = [0, 128], sizes = [8, 128], strides = [1, 1]} : vector<8x384xf32> to vector<8x128xf32>
    %681 = arith.addf %679, %680 : vector<8x128xf32>
    %682 = arith.negf %681 : vector<8x128xf32>
    %683 = math.exp %682 : vector<8x128xf32>
    %cst_162 = arith.constant 1.000000e+00 : f32
    %684 = vector.broadcast %cst_162 : f32 to vector<8x128xf32>
    %685 = arith.addf %684, %683 : vector<8x128xf32>
    %686 = arith.divf %684, %685 : vector<8x128xf32>
    %687 = vector.extract_strided_slice %669 {offsets = [0, 256], sizes = [8, 128], strides = [1, 1]} : vector<8x384xf32> to vector<8x128xf32>
    %688 = vector.extract_strided_slice %670 {offsets = [0, 256], sizes = [8, 128], strides = [1, 1]} : vector<8x384xf32> to vector<8x128xf32>
    %689 = arith.addf %688, %14 : vector<8x128xf32>
    %690 = arith.mulf %678, %689 : vector<8x128xf32>
    %691 = arith.addf %687, %690 : vector<8x128xf32>
    %692 = math.tanh %691 : vector<8x128xf32>
    %cst_163 = arith.constant 1.000000e+00 : f32
    %693 = vector.broadcast %cst_163 : f32 to vector<8x128xf32>
    %694 = arith.subf %693, %686 : vector<8x128xf32>
    %695 = arith.mulf %694, %692 : vector<8x128xf32>
    %696 = arith.mulf %686, %610 : vector<8x128xf32>
    %697 = arith.addf %695, %696 : vector<8x128xf32>
    %698 = arith.addi %18, %617 : i32
    %699 = vector.broadcast %698 : i32 to vector<8x1xi32>
    %700 = arith.cmpi slt, %699, %15 : vector<8x1xi32>
    %701 = arith.extui %700 : vector<8x1xi1> to vector<8x1xi32>
    %702 = arith.sitofp %701 : vector<8x1xi32> to vector<8x1xf32>
    %703 = vector.broadcast %702 : vector<8x1xf32> to vector<8x128xf32>
    %704 = arith.mulf %703, %697 : vector<8x128xf32>
    %cst_164 = arith.constant 1.000000e+00 : f32
    %705 = vector.broadcast %cst_164 : f32 to vector<8x1xf32>
    %706 = arith.subf %705, %702 : vector<8x1xf32>
    %707 = vector.broadcast %706 : vector<8x1xf32> to vector<8x128xf32>
    %708 = arith.mulf %707, %610 : vector<8x128xf32>
    %709 = arith.addf %704, %708 : vector<8x128xf32>
    %710 = vector.broadcast %702 : vector<8x1xf32> to vector<8x128xf32>
    %711 = arith.mulf %710, %709 : vector<8x128xf32>
    %712 = arith.index_cast %617 : i32 to index
    %c0_165 = arith.constant 0 : index
    %c0_166 = arith.constant 0 : index
    %713 = vector.load %arg7[%712, %c0_165, %c0_166] : memref<8x8x128xf32, #tpu.memory_space<vmem>>, vector<1x8x128xf32>
    %714 = vector.shape_cast %713 : vector<1x8x128xf32> to vector<8x128xf32>
    %715 = vector.shape_cast %711 : vector<8x128xf32> to vector<1x8x128xf32>
    tpu.vector_store %arg7[%712, %c0_165, %c0_166], %715 {strides = array<i32>} : memref<8x8x128xf32, #tpu.memory_space<vmem>>, vector<1x8x128xf32>,
    %c7_i32_167 = arith.constant 7 : i32
    %c7_i32_168 = arith.constant 7 : i32
    %716 = arith.subi %c7_i32_168, %c7_i32_167 : i32
    %c0_169 = arith.constant 0 : index
    %717 = arith.index_cast %c7_i32_167 : i32 to index
    %c0_170 = arith.constant 0 : index
    %c0_171 = arith.constant 0 : index
    %718 = vector.load %arg1[%c0_169, %717, %c0_170, %c0_171] : memref<1x8x8x384xf32, #tpu.memory_space<vmem>>, vector<1x1x8x384xf32>
    %719 = vector.shape_cast %718 : vector<1x1x8x384xf32> to vector<8x384xf32>
    %cst_172 = arith.constant dense<0.000000e+00> : vector<8x384xf32>
    %720 = tpu.matmul %660, %4, %cst_172 {dimension_numbers = #tpu.dot_dimension_numbers<[1], [0], [0], [1], [0, 0, 1, 1], [], []>} : vector<8x128xf32>, vector<128x384xf32>, vector<8x384xf32> -> vector<8x384xf32>
    %721 = vector.extract_strided_slice %719 {offsets = [0, 0], sizes = [8, 128], strides = [1, 1]} : vector<8x384xf32> to vector<8x128xf32>
    %722 = vector.extract_strided_slice %720 {offsets = [0, 0], sizes = [8, 128], strides = [1, 1]} : vector<8x384xf32> to vector<8x128xf32>
    %723 = arith.addf %721, %722 : vector<8x128xf32>
    %724 = arith.negf %723 : vector<8x128xf32>
    %725 = math.exp %724 : vector<8x128xf32>
    %cst_173 = arith.constant 1.000000e+00 : f32
    %726 = vector.broadcast %cst_173 : f32 to vector<8x128xf32>
    %727 = arith.addf %726, %725 : vector<8x128xf32>
    %728 = arith.divf %726, %727 : vector<8x128xf32>
    %729 = vector.extract_strided_slice %719 {offsets = [0, 128], sizes = [8, 128], strides = [1, 1]} : vector<8x384xf32> to vector<8x128xf32>
    %730 = vector.extract_strided_slice %720 {offsets = [0, 128], sizes = [8, 128], strides = [1, 1]} : vector<8x384xf32> to vector<8x128xf32>
    %731 = arith.addf %729, %730 : vector<8x128xf32>
    %732 = arith.negf %731 : vector<8x128xf32>
    %733 = math.exp %732 : vector<8x128xf32>
    %cst_174 = arith.constant 1.000000e+00 : f32
    %734 = vector.broadcast %cst_174 : f32 to vector<8x128xf32>
    %735 = arith.addf %734, %733 : vector<8x128xf32>
    %736 = arith.divf %734, %735 : vector<8x128xf32>
    %737 = vector.extract_strided_slice %719 {offsets = [0, 256], sizes = [8, 128], strides = [1, 1]} : vector<8x384xf32> to vector<8x128xf32>
    %738 = vector.extract_strided_slice %720 {offsets = [0, 256], sizes = [8, 128], strides = [1, 1]} : vector<8x384xf32> to vector<8x128xf32>
    %739 = arith.addf %738, %10 : vector<8x128xf32>
    %740 = arith.mulf %728, %739 : vector<8x128xf32>
    %741 = arith.addf %737, %740 : vector<8x128xf32>
    %742 = math.tanh %741 : vector<8x128xf32>
    %cst_175 = arith.constant 1.000000e+00 : f32
    %743 = vector.broadcast %cst_175 : f32 to vector<8x128xf32>
    %744 = arith.subf %743, %736 : vector<8x128xf32>
    %745 = arith.mulf %744, %742 : vector<8x128xf32>
    %746 = arith.mulf %736, %660 : vector<8x128xf32>
    %747 = arith.addf %745, %746 : vector<8x128xf32>
    %748 = arith.addi %16, %c7_i32_167 : i32
    %749 = vector.broadcast %748 : i32 to vector<8x1xi32>
    %750 = arith.cmpi slt, %749, %15 : vector<8x1xi32>
    %751 = arith.extui %750 : vector<8x1xi1> to vector<8x1xi32>
    %752 = arith.sitofp %751 : vector<8x1xi32> to vector<8x1xf32>
    %753 = vector.broadcast %752 : vector<8x1xf32> to vector<8x128xf32>
    %754 = arith.mulf %753, %747 : vector<8x128xf32>
    %cst_176 = arith.constant 1.000000e+00 : f32
    %755 = vector.broadcast %cst_176 : f32 to vector<8x1xf32>
    %756 = arith.subf %755, %752 : vector<8x1xf32>
    %757 = vector.broadcast %756 : vector<8x1xf32> to vector<8x128xf32>
    %758 = arith.mulf %757, %660 : vector<8x128xf32>
    %759 = arith.addf %754, %758 : vector<8x128xf32>
    %760 = vector.broadcast %752 : vector<8x1xf32> to vector<8x128xf32>
    %761 = arith.mulf %760, %759 : vector<8x128xf32>
    %762 = arith.index_cast %c7_i32_167 : i32 to index
    %c0_177 = arith.constant 0 : index
    %c0_178 = arith.constant 0 : index
    %763 = vector.load %arg6[%762, %c0_177, %c0_178] : memref<8x8x128xf32, #tpu.memory_space<vmem>>, vector<1x8x128xf32>
    %764 = vector.shape_cast %763 : vector<1x8x128xf32> to vector<8x128xf32>
    %765 = vector.shape_cast %761 : vector<8x128xf32> to vector<1x8x128xf32>
    tpu.vector_store %arg6[%762, %c0_177, %c0_178], %765 {strides = array<i32>} : memref<8x8x128xf32, #tpu.memory_space<vmem>>, vector<1x8x128xf32>,
    %c0_179 = arith.constant 0 : index
    %766 = arith.index_cast %716 : i32 to index
    %c0_180 = arith.constant 0 : index
    %c0_181 = arith.constant 0 : index
    %767 = vector.load %arg2[%c0_179, %766, %c0_180, %c0_181] : memref<1x8x8x384xf32, #tpu.memory_space<vmem>>, vector<1x1x8x384xf32>
    %768 = vector.shape_cast %767 : vector<1x1x8x384xf32> to vector<8x384xf32>
    %cst_182 = arith.constant dense<0.000000e+00> : vector<8x384xf32>
    %769 = tpu.matmul %709, %6, %cst_182 {dimension_numbers = #tpu.dot_dimension_numbers<[1], [0], [0], [1], [0, 0, 1, 1], [], []>} : vector<8x128xf32>, vector<128x384xf32>, vector<8x384xf32> -> vector<8x384xf32>
    %770 = vector.extract_strided_slice %768 {offsets = [0, 0], sizes = [8, 128], strides = [1, 1]} : vector<8x384xf32> to vector<8x128xf32>
    %771 = vector.extract_strided_slice %769 {offsets = [0, 0], sizes = [8, 128], strides = [1, 1]} : vector<8x384xf32> to vector<8x128xf32>
    %772 = arith.addf %770, %771 : vector<8x128xf32>
    %773 = arith.negf %772 : vector<8x128xf32>
    %774 = math.exp %773 : vector<8x128xf32>
    %cst_183 = arith.constant 1.000000e+00 : f32
    %775 = vector.broadcast %cst_183 : f32 to vector<8x128xf32>
    %776 = arith.addf %775, %774 : vector<8x128xf32>
    %777 = arith.divf %775, %776 : vector<8x128xf32>
    %778 = vector.extract_strided_slice %768 {offsets = [0, 128], sizes = [8, 128], strides = [1, 1]} : vector<8x384xf32> to vector<8x128xf32>
    %779 = vector.extract_strided_slice %769 {offsets = [0, 128], sizes = [8, 128], strides = [1, 1]} : vector<8x384xf32> to vector<8x128xf32>
    %780 = arith.addf %778, %779 : vector<8x128xf32>
    %781 = arith.negf %780 : vector<8x128xf32>
    %782 = math.exp %781 : vector<8x128xf32>
    %cst_184 = arith.constant 1.000000e+00 : f32
    %783 = vector.broadcast %cst_184 : f32 to vector<8x128xf32>
    %784 = arith.addf %783, %782 : vector<8x128xf32>
    %785 = arith.divf %783, %784 : vector<8x128xf32>
    %786 = vector.extract_strided_slice %768 {offsets = [0, 256], sizes = [8, 128], strides = [1, 1]} : vector<8x384xf32> to vector<8x128xf32>
    %787 = vector.extract_strided_slice %769 {offsets = [0, 256], sizes = [8, 128], strides = [1, 1]} : vector<8x384xf32> to vector<8x128xf32>
    %788 = arith.addf %787, %14 : vector<8x128xf32>
    %789 = arith.mulf %777, %788 : vector<8x128xf32>
    %790 = arith.addf %786, %789 : vector<8x128xf32>
    %791 = math.tanh %790 : vector<8x128xf32>
    %cst_185 = arith.constant 1.000000e+00 : f32
    %792 = vector.broadcast %cst_185 : f32 to vector<8x128xf32>
    %793 = arith.subf %792, %785 : vector<8x128xf32>
    %794 = arith.mulf %793, %791 : vector<8x128xf32>
    %795 = arith.mulf %785, %709 : vector<8x128xf32>
    %796 = arith.addf %794, %795 : vector<8x128xf32>
    %797 = arith.addi %18, %716 : i32
    %798 = vector.broadcast %797 : i32 to vector<8x1xi32>
    %799 = arith.cmpi slt, %798, %15 : vector<8x1xi32>
    %800 = arith.extui %799 : vector<8x1xi1> to vector<8x1xi32>
    %801 = arith.sitofp %800 : vector<8x1xi32> to vector<8x1xf32>
    %802 = vector.broadcast %801 : vector<8x1xf32> to vector<8x128xf32>
    %803 = arith.mulf %802, %796 : vector<8x128xf32>
    %cst_186 = arith.constant 1.000000e+00 : f32
    %804 = vector.broadcast %cst_186 : f32 to vector<8x1xf32>
    %805 = arith.subf %804, %801 : vector<8x1xf32>
    %806 = vector.broadcast %805 : vector<8x1xf32> to vector<8x128xf32>
    %807 = arith.mulf %806, %709 : vector<8x128xf32>
    %808 = arith.addf %803, %807 : vector<8x128xf32>
    %809 = vector.broadcast %801 : vector<8x1xf32> to vector<8x128xf32>
    %810 = arith.mulf %809, %808 : vector<8x128xf32>
    %811 = arith.index_cast %716 : i32 to index
    %c0_187 = arith.constant 0 : index
    %c0_188 = arith.constant 0 : index
    %812 = vector.load %arg7[%811, %c0_187, %c0_188] : memref<8x8x128xf32, #tpu.memory_space<vmem>>, vector<1x8x128xf32>
    %813 = vector.shape_cast %812 : vector<1x8x128xf32> to vector<8x128xf32>
    %814 = vector.shape_cast %810 : vector<8x128xf32> to vector<1x8x128xf32>
    tpu.vector_store %arg7[%811, %c0_187, %c0_188], %814 {strides = array<i32>} : memref<8x8x128xf32, #tpu.memory_space<vmem>>, vector<1x8x128xf32>,
    %c8_i32_189 = arith.constant 8 : i32
    %c0_190 = arith.constant 0 : index
    %c0_191 = arith.constant 0 : index
    %c0_192 = arith.constant 0 : index
    %815 = vector.load %arg8[%c0_190, %c0_191, %c0_192] : memref<2x8x128xf32, #tpu.memory_space<vmem>>, vector<1x8x128xf32>
    %816 = vector.shape_cast %815 : vector<1x8x128xf32> to vector<8x128xf32>
    %817 = vector.shape_cast %759 : vector<8x128xf32> to vector<1x8x128xf32>
    tpu.vector_store %arg8[%c0_190, %c0_191, %c0_192], %817 {strides = array<i32>} : memref<2x8x128xf32, #tpu.memory_space<vmem>>, vector<1x8x128xf32>,
    %c1_193 = arith.constant 1 : index
    %c0_194 = arith.constant 0 : index
    %c0_195 = arith.constant 0 : index
    %818 = vector.load %arg8[%c1_193, %c0_194, %c0_195] : memref<2x8x128xf32, #tpu.memory_space<vmem>>, vector<1x8x128xf32>
    %819 = vector.shape_cast %818 : vector<1x8x128xf32> to vector<8x128xf32>
    %820 = vector.shape_cast %808 : vector<8x128xf32> to vector<1x8x128xf32>
    tpu.vector_store %arg8[%c1_193, %c0_194, %c0_195], %820 {strides = array<i32>} : memref<2x8x128xf32, #tpu.memory_space<vmem>>, vector<1x8x128xf32>,
    return
  }
  func.func @transform_0(%arg0: i32) -> (i32, i32, i32, i32) {
    %c0_i32 = arith.constant 0 : i32
    %c0_i32_0 = arith.constant 0 : i32
    %c0_i32_1 = arith.constant 0 : i32
    %c0_i32_2 = arith.constant 0 : i32
    return %c0_i32, %arg0, %c0_i32_0, %c0_i32_1 : i32, i32, i32, i32
  }
  func.func @transform_1(%arg0: i32) -> (i32, i32, i32, i32) {
    %c0_i32 = arith.constant 0 : i32
    %0 = arith.subi %c0_i32, %arg0 : i32
    %c1_i32 = arith.constant 1 : i32
    %c0_i32_0 = arith.constant 0 : i32
    %c0_i32_1 = arith.constant 0 : i32
    %c0_i32_2 = arith.constant 0 : i32
    return %c1_i32, %0, %c0_i32_0, %c0_i32_1 : i32, i32, i32, i32
  }
  func.func @transform_2(%arg0: i32) -> (i32, i32, i32) {
    %c0_i32 = arith.constant 0 : i32
    %c0_i32_0 = arith.constant 0 : i32
    %c0_i32_1 = arith.constant 0 : i32
    %c0_i32_2 = arith.constant 0 : i32
    return %c0_i32, %c0_i32_0, %c0_i32_1 : i32, i32, i32
  }
  func.func @transform_3(%arg0: i32) -> (i32, i32, i32) {
    %c0_i32 = arith.constant 0 : i32
    %c0_i32_0 = arith.constant 0 : i32
    %c0_i32_1 = arith.constant 0 : i32
    %c0_i32_2 = arith.constant 0 : i32
    return %c0_i32, %c0_i32_0, %c0_i32_1 : i32, i32, i32
  }
  func.func @transform_4(%arg0: i32) -> (i32, i32) {
    %c0_i32 = arith.constant 0 : i32
    %c0_i32_0 = arith.constant 0 : i32
    %c0_i32_1 = arith.constant 0 : i32
    return %c0_i32, %c0_i32_0 : i32, i32
  }
  func.func @transform_5(%arg0: i32) -> (i32, i32, i32) {
    %c0_i32 = arith.constant 0 : i32
    %c0_i32_0 = arith.constant 0 : i32
    %c0_i32_1 = arith.constant 0 : i32
    return %arg0, %c0_i32, %c0_i32_0 : i32, i32, i32
  }
  func.func @transform_6(%arg0: i32) -> (i32, i32, i32) {
    %c0_i32 = arith.constant 0 : i32
    %0 = arith.subi %c0_i32, %arg0 : i32
    %c0_i32_0 = arith.constant 0 : i32
    %c0_i32_1 = arith.constant 0 : i32
    %c0_i32_2 = arith.constant 0 : i32
    return %0, %c0_i32_0, %c0_i32_1 : i32, i32, i32
  }
}

</mosaic_0001>

<llo_original>
// kernel: _lambda_.2
$region0: #{_lambda_.2}
  #allocation0 [shape = 'u32[]', space=smem, size = 0x4, offset = 0x4, fixed_abs, tag = 'smem constant byte address 0x4 - core index']
  #allocation1 [shape = 'u32[144,128]{1,0:T(1,128)}', space=vmem, size = 0x12000, scoped, tag = 'internal scratch']
  #allocation2 [shape = 'f32[2,8,128]{2,1,0:T(8,128)}', space=vmem, size = 0x2000, scoped, tag = 'scratch operand']
  %s0 = inlined_call_operand.vmem [shape: f32[2,8,8,384], index: 0, kind: input, shape index: {}, may-alias: {0,1}]
  %s1 = inlined_call_operand.vmem [shape: f32[2,8,8,384], index: 1, kind: input, shape index: {}, may-alias: {0,1}]
  %s2 = inlined_call_operand.hbm [shape: f32[2,128,384], index: 2, kind: input, shape index: {}]
  %s3 = inlined_call_operand.vmem [shape: f32[2,1,128], index: 3, kind: input, shape index: {}]
  %s4 = inlined_call_operand.vmem [shape: s32[8,1], index: 4, kind: input, shape index: {}]
  %s5 = inlined_call_operand.vmem [shape: f32[8,8,128], index: 5, kind: output, shape index: {0}]
  %s6 = inlined_call_operand.vmem [shape: f32[8,8,128], index: 6, kind: output, shape index: {1}]
  %7 = xla_tuple %s5, %s6
  %s8 = sld [smem:[#allocation0]]
  $region46: #{_lambda_.2} parent=0
    _
  %s10 = ssub.s32 1, %s8
  %s11 = scalar_select 0, %s10, %s8
  $region1: #{_lambda_.2} parent=0
    #allocation3 [shape = 'u8[393216]{0}', space=vmem, size = 0x60000, scoped, tag = 'input window, operand 2, single buffered']
    #allocation4 [shape = 's32[1]{0}', space=sflag, size = 0x4, scoped, tag = 'scoped memory for _lambda_.2']
    %12 = vsyncpa [#allocation4], 0
    // Predicated region
    $region2: #{_lambda_.2} parent=1 // pred_check
      _
    $region3: #{_lambda_.2} parent=1 // pred_check_branch
      %14 = sbr.rel (0) target = $region5
    $region4: #{_lambda_.2} parent=1 // pred_region
      _
    $region5: #{_lambda_.2} parent=1 // pred_fallthru
      _
    // Predicated region
    $region6: #{_lambda_.2} parent=1 // pred_check
      _
    $region7: #{_lambda_.2} parent=1 // pred_check_branch
      %16 = sbr.rel (0) target = $region9
    $region8: #{_lambda_.2} parent=1 // pred_region
      %s17 = ssub.s32 0, 0
      %s18 = smul.u32 8, %s17
      %p19 = scmp.lt.s32.totalorder %s18, 7
      %s20 = scalar_select %p19, %s18, 7
      %s21 = smul.addr %s20, 3
      %s22 = sadd.s32 %s21, 24
      %s23 = smul.addr %s22, 8
      %s24 = scalar_lea.vmem %s1, %s23
      %s25 = ssub.s32 0, 0
      %s26 = smul.u32 8, %s25
    $region9: #{_lambda_.2} parent=1 // pred_fallthru
      _
    // Predicated region
    $region10: #{_lambda_.2} parent=1 // pred_check
      _
    $region11: #{_lambda_.2} parent=1 // pred_check_branch
      %28 = sbr.rel (0) target = $region13
    $region12: #{_lambda_.2} parent=1 // pred_region
      %s30 = ssub.s32 12288, 12288
      %31 = vsyncadd [#allocation4], %s30
      %s32 = sshll.u32 [#allocation3], 4
      %s33 = int_to_ptr.vmem [resolvable:$true] %s32
      %38 = dma.hbm_to_vmem [thread:$0]  %s2, 12288, %s33, [#allocation4], 384, 384, 24
    $region13: #{_lambda_.2} parent=1 // pred_fallthru
      _
    // Predicated region
    $region14: #{_lambda_.2} parent=1 // pred_check
      _
    $region15: #{_lambda_.2} parent=1 // pred_check_branch
      %40 = sbr.rel (0) target = $region17
    $region16: #{_lambda_.2} parent=1 // pred_region
      _
    $region17: #{_lambda_.2} parent=1 // pred_fallthru
      _
    // Predicated region
    $region18: #{_lambda_.2} parent=1 // pred_check
      _
    $region19: #{_lambda_.2} parent=1 // pred_check_branch
      %42 = sbr.rel (0) target = $region21
    $region20: #{_lambda_.2} parent=1 // pred_region
      _
    $region21: #{_lambda_.2} parent=1 // pred_fallthru
      _
    // Predicated region
    $region22: #{_lambda_.2} parent=1 // pred_check
      _
    $region23: #{_lambda_.2} parent=1 // pred_check_branch
      %44 = sbr.rel (0) target = $region25
    $region24: #{_lambda_.2} parent=1 // pred_region
      %45 = dma.done [#allocation4], 12288
    $region25: #{_lambda_.2} parent=1 // pred_fallthru
      _
    %s46 = ssub.s32 0, 0
    %s47 = smul.u32 8, %s46
    %p48 = scmp.lt.s32.totalorder %s47, 7
    %s49 = scalar_select %p48, %s47, 7
    %s50 = smul.addr %s49, 3
    %s51 = sadd.s32 %s50, 24
    %s52 = smul.addr %s51, 8
    %s53 = scalar_lea.vmem %s1, %s52
    %s54 = ssub.s32 0, 0
    %s55 = smul.u32 8, %s54
    %p56 = scmp.lt.s32.totalorder %s55, 7
    %s57 = scalar_select %p56, %s55, 7
    %s58 = smul.addr %s57, 8
    %s59 = scalar_lea.vmem %s6, %s58
    %s60 = ssub.s32 0, 0
    %s61 = smul.u32 8, %s60
    %p62 = scmp.lt.s32.totalorder %s61, 7
    %s63 = scalar_select %p62, %s61, 7
    %s64 = smul.addr %s63, 3
    %s65 = sadd.s32 %s64, 24
    %s66 = smul.addr %s65, 8
    %s67 = scalar_lea.vmem %s1, %s66
    %s68 = ssub.s32 0, 0
    %s69 = smul.u32 8, %s68
    %s70 = ssub.s32 0, 0
    %s71 = smul.u32 8, %s70
    %p72 = scmp.lt.s32.totalorder %s71, 7
    %s73 = scalar_select %p72, %s71, 7
    %s74 = smul.addr %s73, 8
    %s75 = scalar_lea.vmem %s6, %s74
    %s76 = ssub.s32 0, 0
    %s77 = smul.u32 8, %s76
    %p78 = scmp.eq.s32.totalorder 0, 0
    // Predicated region
    $region26: #{_lambda_.2} parent=1 // pred_check
      %p79 = pneg %p78
    $region27: #{_lambda_.2} parent=1 // pred_check_branch
      %81 = sbr.rel (%p79) target = $region29
    $region28: #{_lambda_.2} parent=1 // pred_region
      %82 = vst [vmem:[#allocation2] sm:$0xff] 0.0
      %83 = vst [vmem:[#allocation2 + $0x8] sm:$0xff] 0.0
    $region29: #{_lambda_.2} parent=1 // pred_fallthru
      _
    %v84 = vld [vmem:[#allocation3] sm:$0xff]
    %v85 = vld [vmem:[#allocation3 + $0x8] sm:$0xff]
    %v86 = vld [vmem:[#allocation3 + $0x10] sm:$0xff]
    %v87 = vld [vmem:[#allocation3 + $0x18] sm:$0xff]
    %v88 = vld [vmem:[#allocation3 + $0x20] sm:$0xff]
    %v89 = vld [vmem:[#allocation3 + $0x28] sm:$0xff]
    %v90 = vld [vmem:[#allocation3 + $0x30] sm:$0xff]
    %v91 = vld [vmem:[#allocation3 + $0x38] sm:$0xff]
    %v92 = vld [vmem:[#allocation3 + $0x40] sm:$0xff]
    %v93 = vld [vmem:[#allocation3 + $0x48] sm:$0xff]
    %v94 = vld [vmem:[#allocation3 + $0x50] sm:$0xff]
    %v95 = vld [vmem:[#allocation3 + $0x58] sm:$0xff]
    %v96 = vld [vmem:[#allocation3 + $0x60] sm:$0xff]
    %v97 = vld [vmem:[#allocation3 + $0x68] sm:$0xff]
    %v98 = vld [vmem:[#allocation3 + $0x70] sm:$0xff]
    %v99 = vld [vmem:[#allocation3 + $0x78] sm:$0xff]
    %v100 = vld [vmem:[#allocation3 + $0x80] sm:$0xff]
    %v101 = vld [vmem:[#allocation3 + $0x88] sm:$0xff]
    %v102 = vld [vmem:[#allocation3 + $0x90] sm:$0xff]
    %v103 = vld [vmem:[#allocation3 + $0x98] sm:$0xff]
    %v104 = vld [vmem:[#allocation3 + $0xa0] sm:$0xff]
    %v105 = vld [vmem:[#allocation3 + $0xa8] sm:$0xff]
    %v106 = vld [vmem:[#allocation3 + $0xb0] sm:$0xff]
    %v107 = vld [vmem:[#allocation3 + $0xb8] sm:$0xff]
    %v108 = vld [vmem:[#allocation3 + $0xc0] sm:$0xff]
    %v109 = vld [vmem:[#allocation3 + $0xc8] sm:$0xff]
    %v110 = vld [vmem:[#allocation3 + $0xd0] sm:$0xff]
    %v111 = vld [vmem:[#allocation3 + $0xd8] sm:$0xff]
    %v112 = vld [vmem:[#allocation3 + $0xe0] sm:$0xff]
    %v113 = vld [vmem:[#allocation3 + $0xe8] sm:$0xff]
    %v114 = vld [vmem:[#allocation3 + $0xf0] sm:$0xff]
    %v115 = vld [vmem:[#allocation3 + $0xf8] sm:$0xff]
    %v116 = vld [vmem:[#allocation3 + $0x100] sm:$0xff]
    %v117 = vld [vmem:[#allocation3 + $0x108] sm:$0xff]
    %v118 = vld [vmem:[#allocation3 + $0x110] sm:$0xff]
    %v119 = vld [vmem:[#allocation3 + $0x118] sm:$0xff]
    %v120 = vld [vmem:[#allocation3 + $0x120] sm:$0xff]
    %v121 = vld [vmem:[#allocation3 + $0x128] sm:$0xff]
    %v122 = vld [vmem:[#allocation3 + $0x130] sm:$0xff]
    %v123 = vld [vmem:[#allocation3 + $0x138] sm:$0xff]
    %v124 = vld [vmem:[#allocation3 + $0x140] sm:$0xff]
    %v125 = vld [vmem:[#allocation3 + $0x148] sm:$0xff]
    %v126 = vld [vmem:[#allocation3 + $0x150] sm:$0xff]
    %v127 = vld [vmem:[#allocation3 + $0x158] sm:$0xff]
    %v128 = vld [vmem:[#allocation3 + $0x160] sm:$0xff]
    %v129 = vld [vmem:[#allocation3 + $0x168] sm:$0xff]
    %v130 = vld [vmem:[#allocation3 + $0x170] sm:$0xff]
    %v131 = vld [vmem:[#allocation3 + $0x178] sm:$0xff]
    %s132 = scalar_lea.vmem [#allocation3], 384
    %v133 = vld [vmem:[%s132] sm:$0xff]
    %v134 = vld [vmem:[%s132 + $0x8] sm:$0xff]
    %v135 = vld [vmem:[%s132 + $0x10] sm:$0xff]
    %v136 = vld [vmem:[%s132 + $0x18] sm:$0xff]
    %v137 = vld [vmem:[%s132 + $0x20] sm:$0xff]
    %v138 = vld [vmem:[%s132 + $0x28] sm:$0xff]
    %v139 = vld [vmem:[%s132 + $0x30] sm:$0xff]
    %v140 = vld [vmem:[%s132 + $0x38] sm:$0xff]
    %v141 = vld [vmem:[%s132 + $0x40] sm:$0xff]
    %v142 = vld [vmem:[%s132 + $0x48] sm:$0xff]
    %v143 = vld [vmem:[%s132 + $0x50] sm:$0xff]
    %v144 = vld [vmem:[%s132 + $0x58] sm:$0xff]
    %v145 = vld [vmem:[%s132 + $0x60] sm:$0xff]
    %v146 = vld [vmem:[%s132 + $0x68] sm:$0xff]
    %v147 = vld [vmem:[%s132 + $0x70] sm:$0xff]
    %v148 = vld [vmem:[%s132 + $0x78] sm:$0xff]
    %v149 = vld [vmem:[%s132 + $0x80] sm:$0xff]
    %v150 = vld [vmem:[%s132 + $0x88] sm:$0xff]
    %v151 = vld [vmem:[%s132 + $0x90] sm:$0xff]
    %v152 = vld [vmem:[%s132 + $0x98] sm:$0xff]
    %v153 = vld [vmem:[%s132 + $0xa0] sm:$0xff]
    %v154 = vld [vmem:[%s132 + $0xa8] sm:$0xff]
    %v155 = vld [vmem:[%s132 + $0xb0] sm:$0xff]
    %v156 = vld [vmem:[%s132 + $0xb8] sm:$0xff]
    %v157 = vld [vmem:[%s132 + $0xc0] sm:$0xff]
    %v158 = vld [vmem:[%s132 + $0xc8] sm:$0xff]
    %v159 = vld [vmem:[%s132 + $0xd0] sm:$0xff]
    %v160 = vld [vmem:[%s132 + $0xd8] sm:$0xff]
    %v161 = vld [vmem:[%s132 + $0xe0] sm:$0xff]
    %v162 = vld [vmem:[%s132 + $0xe8] sm:$0xff]
    %v163 = vld [vmem:[%s132 + $0xf0] sm:$0xff]
    %v164 = vld [vmem:[%s132 + $0xf8] sm:$0xff]
    %v165 = vld [vmem:[%s132 + $0x100] sm:$0xff]
    %v166 = vld [vmem:[%s132 + $0x108] sm:$0xff]
    %v167 = vld [vmem:[%s132 + $0x110] sm:$0xff]
    %v168 = vld [vmem:[%s132 + $0x118] sm:$0xff]
    %v169 = vld [vmem:[%s132 + $0x120] sm:$0xff]
    %v170 = vld [vmem:[%s132 + $0x128] sm:$0xff]
    %v171 = vld [vmem:[%s132 + $0x130] sm:$0xff]
    %v172 = vld [vmem:[%s132 + $0x138] sm:$0xff]
    %v173 = vld [vmem:[%s132 + $0x140] sm:$0xff]
    %v174 = vld [vmem:[%s132 + $0x148] sm:$0xff]
    %v175 = vld [vmem:[%s132 + $0x150] sm:$0xff]
    %v176 = vld [vmem:[%s132 + $0x158] sm:$0xff]
    %v177 = vld [vmem:[%s132 + $0x160] sm:$0xff]
    %v178 = vld [vmem:[%s132 + $0x168] sm:$0xff]
    %v179 = vld [vmem:[%s132 + $0x170] sm:$0xff]
    %v180 = vld [vmem:[%s132 + $0x178] sm:$0xff]
    %v181 = vld [vmem:[%s3] sm:$0x1]
    %v183 = vlaneseq
    %v184 = vshrl.u32 %v183, 7
    %v185 = vsub.s32 0, %v184
    %v186 = vrot.slane %v181, %v185
    %s188 = scalar_lea.vmem %s3, 1
    %v189 = vld [vmem:[%s188] sm:$0x1]
    %v191 = vlaneseq
    %v192 = vshrl.u32 %v191, 7
    %v193 = vsub.s32 0, %v192
    %v194 = vrot.slane %v189, %v193
    %v196 = vld [vmem:[%s4] sm:$0xff]
    %s197 = smul.u32 0, 8
    %s198 = ssub.s32 0, 0
    %s199 = smul.u32 %s198, 8
    %v200 = vld [vmem:[#allocation2] sm:$0xff]
    %s201 = scalar_lea.vmem [#allocation2], 8
    %v202 = vld [vmem:[%s201] sm:$0xff]
    %v203 = vld [vmem:[%s0] sm:$0xff]
    %v204 = vld [vmem:[%s0 + $0x8] sm:$0xff]
    %v205 = vld [vmem:[%s0 + $0x10] sm:$0xff]
    %206 = vmatprep.subr.mxu0 %v85
    %207 = vmatpush1.msra.mxu0 %v84
    %208 = vmatprep.subr.mxu0 %v88
    %209 = vmatpush1.msra.mxu0 %v87
    %210 = vmatprep.subr.mxu0 %v91
    %211 = vmatpush1.msra.mxu0 %v90
    %212 = vmatprep.subr.mxu0 %v94
    %213 = vmatpush1.msra.mxu0 %v93
    %214 = vmatprep.subr.mxu0 %v97
    %215 = vmatpush1.msra.mxu0 %v96
    %216 = vmatprep.subr.mxu0 %v100
    %217 = vmatpush1.msra.mxu0 %v99
    %218 = vmatprep.subr.mxu0 %v103
    %219 = vmatpush1.msra.mxu0 %v102
    %220 = vmatprep.subr.mxu0 %v106
    %221 = vmatpush1.msra.mxu0 %v105
    %222 = vmatprep.subr.mxu0 %v109
    %223 = vmatpush1.msra.mxu0 %v108
    %224 = vmatprep.subr.mxu0 %v112
    %225 = vmatpush1.msra.mxu0 %v111
    %226 = vmatprep.subr.mxu0 %v115
    %227 = vmatpush1.msra.mxu0 %v114
    %228 = vmatprep.subr.mxu0 %v118
    %229 = vmatpush1.msra.mxu0 %v117
    %230 = vmatprep.subr.mxu0 %v121
    %231 = vmatpush1.msra.mxu0 %v120
    %232 = vmatprep.subr.mxu0 %v124
    %233 = vmatpush1.msra.mxu0 %v123
    %234 = vmatprep.subr.mxu0 %v127
    %235 = vmatpush1.msra.mxu0 %v126
    %236 = vmatprep.subr.mxu0 %v130
    %237 = vmatpush1.msra.mxu0 %v129
    %238 = vmatprep.subr.mxu0 0.0
    %239 = vmatpush1.msra.mxu0 0.0
    %240 = vmatprep.subr.mxu0 0.0
    %241 = vmatpush1.msra.mxu0 0.0
    %242 = vmatprep.subr.mxu0 0.0
    %243 = vmatpush1.msra.mxu0 0.0
    %244 = vmatprep.subr.mxu0 0.0
    %245 = vmatpush1.msra.mxu0 0.0
    %246 = vmatprep.subr.mxu0 0.0
    %247 = vmatpush1.msra.mxu0 0.0
    %248 = vmatprep.subr.mxu0 0.0
    %249 = vmatpush1.msra.mxu0 0.0
    %250 = vmatprep.subr.mxu0 0.0
    %251 = vmatpush1.msra.mxu0 0.0
    %252 = vmatprep.subr.mxu0 0.0
    %253 = vmatpush1.msra.mxu0 0.0
    %254 = vmatprep.subr.mxu0 0.0
    %255 = vmatpush1.msra.mxu0 0.0
    %256 = vmatprep.subr.mxu0 0.0
    %257 = vmatpush1.msra.mxu0 0.0
    %258 = vmatprep.subr.mxu0 0.0
    %259 = vmatpush1.msra.mxu0 0.0
    %260 = vmatprep.subr.mxu0 0.0
    %261 = vmatpush1.msra.mxu0 0.0
    %262 = vmatprep.subr.mxu0 0.0
    %263 = vmatpush1.msra.mxu0 0.0
    %264 = vmatprep.subr.mxu0 0.0
    %265 = vmatpush1.msra.mxu0 0.0
    %266 = vmatprep.subr.mxu0 0.0
    %267 = vmatpush1.msra.mxu0 0.0
    %268 = vmatprep.subr.mxu0 0.0
    %269 = vmatpush1.msra.mxu0 0.0
    %270 = vmatprep.mubr.f32.mxu0 0.0
    %271 = vmatmul.mubr.f32.gmra.mrb[0].mxu0 %v200
    %v272 = vpop.f32.mrb[0].mxu0
    %v273 = vadd.f32 0.0, %v272
    %v274 = vpop.f32.mrb[0].mxu0
    %v275 = vadd.f32 0.0, %v274
    %276 = vdwg.mxu0
    %277 = vmatprep.subr.mxu0 0.0
    %278 = vmatpush1.msra.mxu0 %v86
    %279 = vmatprep.subr.mxu0 0.0
    %280 = vmatpush1.msra.mxu0 %v89
    %281 = vmatprep.subr.mxu0 0.0
    %282 = vmatpush1.msra.mxu0 %v92
    %283 = vmatprep.subr.mxu0 0.0
    %284 = vmatpush1.msra.mxu0 %v95
    %285 = vmatprep.subr.mxu0 0.0
    %286 = vmatpush1.msra.mxu0 %v98
    %287 = vmatprep.subr.mxu0 0.0
    %288 = vmatpush1.msra.mxu0 %v101
    %289 = vmatprep.subr.mxu0 0.0
    %290 = vmatpush1.msra.mxu0 %v104
    %291 = vmatprep.subr.mxu0 0.0
    %292 = vmatpush1.msra.mxu0 %v107
    %293 = vmatprep.subr.mxu0 0.0
    %294 = vmatpush1.msra.mxu0 %v110
    %295 = vmatprep.subr.mxu0 0.0
    %296 = vmatpush1.msra.mxu0 %v113
    %297 = vmatprep.subr.mxu0 0.0
    %298 = vmatpush1.msra.mxu0 %v116
    %299 = vmatprep.subr.mxu0 0.0
    %300 = vmatpush1.msra.mxu0 %v119
    %301 = vmatprep.subr.mxu0 0.0
    %302 = vmatpush1.msra.mxu0 %v122
    %303 = vmatprep.subr.mxu0 0.0
    %304 = vmatpush1.msra.mxu0 %v125
    %305 = vmatprep.subr.mxu0 0.0
    %306 = vmatpush1.msra.mxu0 %v128
    %307 = vmatprep.subr.mxu0 0.0
    %308 = vmatpush1.msra.mxu0 %v131
    %309 = vmatprep.subr.mxu0 0.0
    %310 = vmatpush1.msra.mxu0 0.0
    %311 = vmatprep.subr.mxu0 0.0
    %312 = vmatpush1.msra.mxu0 0.0
    %313 = vmatprep.subr.mxu0 0.0
    %314 = vmatpush1.msra.mxu0 0.0
    %315 = vmatprep.subr.mxu0 0.0
    %316 = vmatpush1.msra.mxu0 0.0
    %317 = vmatprep.subr.mxu0 0.0
    %318 = vmatpush1.msra.mxu0 0.0
    %319 = vmatprep.subr.mxu0 0.0
    %320 = vmatpush1.msra.mxu0 0.0
    %321 = vmatprep.subr.mxu0 0.0
    %322 = vmatpush1.msra.mxu0 0.0
    %323 = vmatprep.subr.mxu0 0.0
    %324 = vmatpush1.msra.mxu0 0.0
    %325 = vmatprep.subr.mxu0 0.0
    %326 = vmatpush1.msra.mxu0 0.0
    %327 = vmatprep.subr.mxu0 0.0
    %328 = vmatpush1.msra.mxu0 0.0
    %329 = vmatprep.subr.mxu0 0.0
    %330 = vmatpush1.msra.mxu0 0.0
    %331 = vmatprep.subr.mxu0 0.0
    %332 = vmatpush1.msra.mxu0 0.0
    %333 = vmatprep.subr.mxu0 0.0
    %334 = vmatpush1.msra.mxu0 0.0
    %335 = vmatprep.subr.mxu0 0.0
    %336 = vmatpush1.msra.mxu0 0.0
    %337 = vmatprep.subr.mxu0 0.0
    %338 = vmatpush1.msra.mxu0 0.0
    %339 = vmatprep.subr.mxu0 0.0
    %340 = vmatpush1.msra.mxu0 0.0
    %341 = vmatprep.mubr.f32.mxu0 0.0
    %342 = vmatmul.mubr.f32.gmra.mrb[0].mxu0 %v200
    %v343 = vpop.f32.mrb[0].mxu0
    %v344 = vadd.f32 0.0, %v343
    %v345 = vpop.f32.mrb[0].mxu0
    %346 = vdwg.mxu0
    %v347 = vadd.f32 %v203, %v273
    %v348 = vxor.u32 %v347, 2147483648
    %v349 = vmul.f32 %v348, 1.442695
    %v350 = vpow.pop %v349
    %v351 = vadd.f32 %v350, 1.0
    %v352 = vrcp.pop %v351
    %v353 = vmul.f32 1.0, %v352
    %v354 = vadd.f32 %v204, %v275
    %v355 = vxor.u32 %v354, 2147483648
    %v356 = vmul.f32 %v355, 1.442695
    %v357 = vpow.pop %v356
    %v358 = vadd.f32 %v357, 1.0
    %v359 = vrcp.pop %v358
    %v360 = vmul.f32 1.0, %v359
    %v361 = vadd.f32 %v344, %v186
    %v362 = vmul.f32 %v353, %v361
    %v363 = vadd.f32 %v205, %v362
    %v364 = vtanh.pop %v363
    %v365 = vsub.f32 1.0, %v360
    %v366 = vmul.f32 %v365, %v364
    %v367 = vmul.f32 %v360, %v200
    %v368 = vadd.f32 %v366, %v367
    %v369 = vstv %s197
    %vm370 = vcmp.lt.s32.totalorder %v369, %v196
    %v371 = vsel %vm370, 1, 0
    %v372 = vcvt.s32.f32 %v371
    %374 = vset.pattern.permute.xlu0 0
    %375 = vperm.xlu0 %374, %v372
    %v376 = vpop.permute.xlu0 %375
    %v378 = vmul.f32 %v376, %v368
    %v379 = vsub.f32 1.0, %v372
    %381 = vset.pattern.permute.xlu0 0
    %382 = vperm.xlu0 %381, %v379
    %v383 = vpop.permute.xlu0 %382
    %v385 = vmul.f32 %v383, %v200
    %v386 = vadd.f32 %v378, %v385
    %v387 = vmul.f32 %v376, %v386
    %388 = vst [vmem:[%s5] sm:$0xff] %v387
    %s389 = scalar_lea.vmem %s67, 168
    %v390 = vld [vmem:[%s389] sm:$0xff]
    %v391 = vld [vmem:[%s389 + $0x8] sm:$0xff]
    %v392 = vld [vmem:[%s389 + $0x10] sm:$0xff]
    %393 = vmatprep.subr.mxu0 %v134
    %394 = vmatpush1.msra.mxu0 %v133
    %395 = vmatprep.subr.mxu0 %v137
    %396 = vmatpush1.msra.mxu0 %v136
    %397 = vmatprep.subr.mxu0 %v140
    %398 = vmatpush1.msra.mxu0 %v139
    %399 = vmatprep.subr.mxu0 %v143
    %400 = vmatpush1.msra.mxu0 %v142
    %401 = vmatprep.subr.mxu0 %v146
    %402 = vmatpush1.msra.mxu0 %v145
    %403 = vmatprep.subr.mxu0 %v149
    %404 = vmatpush1.msra.mxu0 %v148
    %405 = vmatprep.subr.mxu0 %v152
    %406 = vmatpush1.msra.mxu0 %v151
    %407 = vmatprep.subr.mxu0 %v155
    %408 = vmatpush1.msra.mxu0 %v154
    %409 = vmatprep.subr.mxu0 %v158
    %410 = vmatpush1.msra.mxu0 %v157
    %411 = vmatprep.subr.mxu0 %v161
    %412 = vmatpush1.msra.mxu0 %v160
    %413 = vmatprep.subr.mxu0 %v164
    %414 = vmatpush1.msra.mxu0 %v163
    %415 = vmatprep.subr.mxu0 %v167
    %416 = vmatpush1.msra.mxu0 %v166
    %417 = vmatprep.subr.mxu0 %v170
    %418 = vmatpush1.msra.mxu0 %v169
    %419 = vmatprep.subr.mxu0 %v173
    %420 = vmatpush1.msra.mxu0 %v172
    %421 = vmatprep.subr.mxu0 %v176
    %422 = vmatpush1.msra.mxu0 %v175
    %423 = vmatprep.subr.mxu0 %v179
    %424 = vmatpush1.msra.mxu0 %v178
    %425 = vmatprep.subr.mxu0 0.0
    %426 = vmatpush1.msra.mxu0 0.0
    %427 = vmatprep.subr.mxu0 0.0
    %428 = vmatpush1.msra.mxu0 0.0
    %429 = vmatprep.subr.mxu0 0.0
    %430 = vmatpush1.msra.mxu0 0.0
    %431 = vmatprep.subr.mxu0 0.0
    %432 = vmatpush1.msra.mxu0 0.0
    %433 = vmatprep.subr.mxu0 0.0
    %434 = vmatpush1.msra.mxu0 0.0
    %435 = vmatprep.subr.mxu0 0.0
    %436 = vmatpush1.msra.mxu0 0.0
    %437 = vmatprep.subr.mxu0 0.0
    %438 = vmatpush1.msra.mxu0 0.0
    %439 = vmatprep.subr.mxu0 0.0
    %440 = vmatpush1.msra.mxu0 0.0
    %441 = vmatprep.subr.mxu0 0.0
    %442 = vmatpush1.msra.mxu0 0.0
    %443 = vmatprep.subr.mxu0 0.0
    %444 = vmatpush1.msra.mxu0 0.0
    %445 = vmatprep.subr.mxu0 0.0
    %446 = vmatpush1.msra.mxu0 0.0
    %447 = vmatprep.subr.mxu0 0.0
    %448 = vmatpush1.msra.mxu0 0.0
    %449 = vmatprep.subr.mxu0 0.0
    %450 = vmatpush1.msra.mxu0 0.0
    %451 = vmatprep.subr.mxu0 0.0
    %452 = vmatpush1.msra.mxu0 0.0
    %453 = vmatprep.subr.mxu0 0.0
    %454 = vmatpush1.msra.mxu0 0.0
    %455 = vmatprep.subr.mxu0 0.0
    %456 = vmatpush1.msra.mxu0 0.0
    %457 = vmatprep.mubr.f32.mxu0 0.0
    %458 = vmatmul.mubr.f32.gmra.mrb[0].mxu0 %v202
    %v459 = vpop.f32.mrb[0].mxu0
    %v460 = vadd.f32 0.0, %v459
    %v461 = vpop.f32.mrb[0].mxu0
    %v462 = vadd.f32 0.0, %v461
    %463 = vdwg.mxu0
    %464 = vmatprep.subr.mxu0 0.0
    %465 = vmatpush1.msra.mxu0 %v135
    %466 = vmatprep.subr.mxu0 0.0
    %467 = vmatpush1.msra.mxu0 %v138
    %468 = vmatprep.subr.mxu0 0.0
    %469 = vmatpush1.msra.mxu0 %v141
    %470 = vmatprep.subr.mxu0 0.0
    %471 = vmatpush1.msra.mxu0 %v144
    %472 = vmatprep.subr.mxu0 0.0
    %473 = vmatpush1.msra.mxu0 %v147
    %474 = vmatprep.subr.mxu0 0.0
    %475 = vmatpush1.msra.mxu0 %v150
    %476 = vmatprep.subr.mxu0 0.0
    %477 = vmatpush1.msra.mxu0 %v153
    %478 = vmatprep.subr.mxu0 0.0
    %479 = vmatpush1.msra.mxu0 %v156
    %480 = vmatprep.subr.mxu0 0.0
    %481 = vmatpush1.msra.mxu0 %v159
    %482 = vmatprep.subr.mxu0 0.0
    %483 = vmatpush1.msra.mxu0 %v162
    %484 = vmatprep.subr.mxu0 0.0
    %485 = vmatpush1.msra.mxu0 %v165
    %486 = vmatprep.subr.mxu0 0.0
    %487 = vmatpush1.msra.mxu0 %v168
    %488 = vmatprep.subr.mxu0 0.0
    %489 = vmatpush1.msra.mxu0 %v171
    %490 = vmatprep.subr.mxu0 0.0
    %491 = vmatpush1.msra.mxu0 %v174
    %492 = vmatprep.subr.mxu0 0.0
    %493 = vmatpush1.msra.mxu0 %v177
    %494 = vmatprep.subr.mxu0 0.0
    %495 = vmatpush1.msra.mxu0 %v180
    %496 = vmatprep.subr.mxu0 0.0
    %497 = vmatpush1.msra.mxu0 0.0
    %498 = vmatprep.subr.mxu0 0.0
    %499 = vmatpush1.msra.mxu0 0.0
    %500 = vmatprep.subr.mxu0 0.0
    %501 = vmatpush1.msra.mxu0 0.0
    %502 = vmatprep.subr.mxu0 0.0
    %503 = vmatpush1.msra.mxu0 0.0
    %504 = vmatprep.subr.mxu0 0.0
    %505 = vmatpush1.msra.mxu0 0.0
    %506 = vmatprep.subr.mxu0 0.0
    %507 = vmatpush1.msra.mxu0 0.0
    %508 = vmatprep.subr.mxu0 0.0
    %509 = vmatpush1.msra.mxu0 0.0
    %510 = vmatprep.subr.mxu0 0.0
    %511 = vmatpush1.msra.mxu0 0.0
    %512 = vmatprep.subr.mxu0 0.0
    %513 = vmatpush1.msra.mxu0 0.0
    %514 = vmatprep.subr.mxu0 0.0
    %515 = vmatpush1.msra.mxu0 0.0
    %516 = vmatprep.subr.mxu0 0.0
    %517 = vmatpush1.msra.mxu0 0.0
    %518 = vmatprep.subr.mxu0 0.0
    %519 = vmatpush1.msra.mxu0 0.0
    %520 = vmatprep.subr.mxu0 0.0
    %521 = vmatpush1.msra.mxu0 0.0
    %522 = vmatprep.subr.mxu0 0.0
    %523 = vmatpush1.msra.mxu0 0.0
    %524 = vmatprep.subr.mxu0 0.0
    %525 = vmatpush1.msra.mxu0 0.0
    %526 = vmatprep.subr.mxu0 0.0
    %527 = vmatpush1.msra.mxu0 0.0
    %528 = vmatprep.mubr.f32.mxu0 0.0
    %529 = vmatmul.mubr.f32.gmra.mrb[0].mxu0 %v202
    %v530 = vpop.f32.mrb[0].mxu0
    %v531 = vadd.f32 0.0, %v530
    %v532 = vpop.f32.mrb[0].mxu0
    %533 = vdwg.mxu0
    %v534 = vadd.f32 %v390, %v460
    %v535 = vxor.u32 %v534, 2147483648
    %v536 = vmul.f32 %v535, 1.442695
    %v537 = vpow.pop %v536
    %v538 = vadd.f32 %v537, 1.0
    %v539 = vrcp.pop %v538
    %v540 = vmul.f32 1.0, %v539
    %v541 = vadd.f32 %v391, %v462
    %v542 = vxor.u32 %v541, 2147483648
    %v543 = vmul.f32 %v542, 1.442695
    %v544 = vpow.pop %v543
    %v545 = vadd.f32 %v544, 1.0
    %v546 = vrcp.pop %v545
    %v547 = vmul.f32 1.0, %v546
    %v548 = vadd.f32 %v531, %v194
    %v549 = vmul.f32 %v540, %v548
    %v550 = vadd.f32 %v392, %v549
    %v551 = vtanh.pop %v550
    %v552 = vsub.f32 1.0, %v547
    %v553 = vmul.f32 %v552, %v551
    %v554 = vmul.f32 %v547, %v202
    %v555 = vadd.f32 %v553, %v554
    %s556 = sadd.s32 %s199, 7
    %v557 = vstv %s556
    %vm558 = vcmp.lt.s32.totalorder %v557, %v196
    %v559 = vsel %vm558, 1, 0
    %v560 = vcvt.s32.f32 %v559
    %562 = vset.pattern.permute.xlu0 0
    %563 = vperm.xlu0 %562, %v560
    %v564 = vpop.permute.xlu0 %563
    %v566 = vmul.f32 %v564, %v555
    %v567 = vsub.f32 1.0, %v560
    %569 = vset.pattern.permute.xlu0 0
    %570 = vperm.xlu0 %569, %v567
    %v571 = vpop.permute.xlu0 %570
    %v573 = vmul.f32 %v571, %v202
    %v574 = vadd.f32 %v566, %v573
    %v575 = vmul.f32 %v564, %v574
    %s576 = scalar_lea.vmem %s75, 56
    %577 = vst [vmem:[%s576] sm:$0xff] %v575
    %s578 = scalar_lea.vmem %s0, 24
    %v579 = vld [vmem:[%s578] sm:$0xff]
    %v580 = vld [vmem:[%s578 + $0x8] sm:$0xff]
    %v581 = vld [vmem:[%s578 + $0x10] sm:$0xff]
    %582 = vmatprep.subr.mxu0 %v85
    %583 = vmatpush1.msra.mxu0 %v84
    %584 = vmatprep.subr.mxu0 %v88
    %585 = vmatpush1.msra.mxu0 %v87
    %586 = vmatprep.subr.mxu0 %v91
    %587 = vmatpush1.msra.mxu0 %v90
    %588 = vmatprep.subr.mxu0 %v94
    %589 = vmatpush1.msra.mxu0 %v93
    %590 = vmatprep.subr.mxu0 %v97
    %591 = vmatpush1.msra.mxu0 %v96
    %592 = vmatprep.subr.mxu0 %v100
    %593 = vmatpush1.msra.mxu0 %v99
    %594 = vmatprep.subr.mxu0 %v103
    %595 = vmatpush1.msra.mxu0 %v102
    %596 = vmatprep.subr.mxu0 %v106
    %597 = vmatpush1.msra.mxu0 %v105
    %598 = vmatprep.subr.mxu0 %v109
    %599 = vmatpush1.msra.mxu0 %v108
    %600 = vmatprep.subr.mxu0 %v112
    %601 = vmatpush1.msra.mxu0 %v111
    %602 = vmatprep.subr.mxu0 %v115
    %603 = vmatpush1.msra.mxu0 %v114
    %604 = vmatprep.subr.mxu0 %v118
    %605 = vmatpush1.msra.mxu0 %v117
    %606 = vmatprep.subr.mxu0 %v121
    %607 = vmatpush1.msra.mxu0 %v120
    %608 = vmatprep.subr.mxu0 %v124
    %609 = vmatpush1.msra.mxu0 %v123
    %610 = vmatprep.subr.mxu0 %v127
    %611 = vmatpush1.msra.mxu0 %v126
    %612 = vmatprep.subr.mxu0 %v130
    %613 = vmatpush1.msra.mxu0 %v129
    %614 = vmatprep.subr.mxu0 0.0
    %615 = vmatpush1.msra.mxu0 0.0
    %616 = vmatprep.subr.mxu0 0.0
    %617 = vmatpush1.msra.mxu0 0.0
    %618 = vmatprep.subr.mxu0 0.0
    %619 = vmatpush1.msra.mxu0 0.0
    %620 = vmatprep.subr.mxu0 0.0
    %621 = vmatpush1.msra.mxu0 0.0
    %622 = vmatprep.subr.mxu0 0.0
    %623 = vmatpush1.msra.mxu0 0.0
    %624 = vmatprep.subr.mxu0 0.0
    %625 = vmatpush1.msra.mxu0 0.0
    %626 = vmatprep.subr.mxu0 0.0
    %627 = vmatpush1.msra.mxu0 0.0
    %628 = vmatprep.subr.mxu0 0.0
    %629 = vmatpush1.msra.mxu0 0.0
    %630 = vmatprep.subr.mxu0 0.0
    %631 = vmatpush1.msra.mxu0 0.0
    %632 = vmatprep.subr.mxu0 0.0
    %633 = vmatpush1.msra.mxu0 0.0
    %634 = vmatprep.subr.mxu0 0.0
    %635 = vmatpush1.msra.mxu0 0.0
    %636 = vmatprep.subr.mxu0 0.0
    %637 = vmatpush1.msra.mxu0 0.0
    %638 = vmatprep.subr.mxu0 0.0
    %639 = vmatpush1.msra.mxu0 0.0
    %640 = vmatprep.subr.mxu0 0.0
    %641 = vmatpush1.msra.mxu0 0.0
    %642 = vmatprep.subr.mxu0 0.0
    %643 = vmatpush1.msra.mxu0 0.0
    %644 = vmatprep.subr.mxu0 0.0
    %645 = vmatpush1.msra.mxu0 0.0
    %646 = vmatprep.mubr.f32.mxu0 0.0
    %647 = vmatmul.mubr.f32.gmra.mrb[0].mxu0 %v386
    %v648 = vpop.f32.mrb[0].mxu0
    %v649 = vadd.f32 0.0, %v648
    %v650 = vpop.f32.mrb[0].mxu0
    %v651 = vadd.f32 0.0, %v650
    %652 = vdwg.mxu0
    %653 = vmatprep.subr.mxu0 0.0
    %654 = vmatpush1.msra.mxu0 %v86
    %655 = vmatprep.subr.mxu0 0.0
    %656 = vmatpush1.msra.mxu0 %v89
    %657 = vmatprep.subr.mxu0 0.0
    %658 = vmatpush1.msra.mxu0 %v92
    %659 = vmatprep.subr.mxu0 0.0
    %660 = vmatpush1.msra.mxu0 %v95
    %661 = vmatprep.subr.mxu0 0.0
    %662 = vmatpush1.msra.mxu0 %v98
    %663 = vmatprep.subr.mxu0 0.0
    %664 = vmatpush1.msra.mxu0 %v101
    %665 = vmatprep.subr.mxu0 0.0
    %666 = vmatpush1.msra.mxu0 %v104
    %667 = vmatprep.subr.mxu0 0.0
    %668 = vmatpush1.msra.mxu0 %v107
    %669 = vmatprep.subr.mxu0 0.0
    %670 = vmatpush1.msra.mxu0 %v110
    %671 = vmatprep.subr.mxu0 0.0
    %672 = vmatpush1.msra.mxu0 %v113
    %673 = vmatprep.subr.mxu0 0.0
    %674 = vmatpush1.msra.mxu0 %v116
    %675 = vmatprep.subr.mxu0 0.0
    %676 = vmatpush1.msra.mxu0 %v119
    %677 = vmatprep.subr.mxu0 0.0
    %678 = vmatpush1.msra.mxu0 %v122
    %679 = vmatprep.subr.mxu0 0.0
    %680 = vmatpush1.msra.mxu0 %v125
    %681 = vmatprep.subr.mxu0 0.0
    %682 = vmatpush1.msra.mxu0 %v128
    %683 = vmatprep.subr.mxu0 0.0
    %684 = vmatpush1.msra.mxu0 %v131
    %685 = vmatprep.subr.mxu0 0.0
    %686 = vmatpush1.msra.mxu0 0.0
    %687 = vmatprep.subr.mxu0 0.0
    %688 = vmatpush1.msra.mxu0 0.0
    %689 = vmatprep.subr.mxu0 0.0
    %690 = vmatpush1.msra.mxu0 0.0
    %691 = vmatprep.subr.mxu0 0.0
    %692 = vmatpush1.msra.mxu0 0.0
    %693 = vmatprep.subr.mxu0 0.0
    %694 = vmatpush1.msra.mxu0 0.0
    %695 = vmatprep.subr.mxu0 0.0
    %696 = vmatpush1.msra.mxu0 0.0
    %697 = vmatprep.subr.mxu0 0.0
    %698 = vmatpush1.msra.mxu0 0.0
    %699 = vmatprep.subr.mxu0 0.0
    %700 = vmatpush1.msra.mxu0 0.0
    %701 = vmatprep.subr.mxu0 0.0
    %702 = vmatpush1.msra.mxu0 0.0
    %703 = vmatprep.subr.mxu0 0.0
    %704 = vmatpush1.msra.mxu0 0.0
    %705 = vmatprep.subr.mxu0 0.0
    %706 = vmatpush1.msra.mxu0 0.0
    %707 = vmatprep.subr.mxu0 0.0
    %708 = vmatpush1.msra.mxu0 0.0
    %709 = vmatprep.subr.mxu0 0.0
    %710 = vmatpush1.msra.mxu0 0.0
    %711 = vmatprep.subr.mxu0 0.0
    %712 = vmatpush1.msra.mxu0 0.0
    %713 = vmatprep.subr.mxu0 0.0
    %714 = vmatpush1.msra.mxu0 0.0
    %715 = vmatprep.subr.mxu0 0.0
    %716 = vmatpush1.msra.mxu0 0.0
    %717 = vmatprep.mubr.f32.mxu0 0.0
    %718 = vmatmul.mubr.f32.gmra.mrb[0].mxu0 %v386
    %v719 = vpop.f32.mrb[0].mxu0
    %v720 = vadd.f32 0.0, %v719
    %v721 = vpop.f32.mrb[0].mxu0
    %722 = vdwg.mxu0
    %v723 = vadd.f32 %v579, %v649
    %v724 = vxor.u32 %v723, 2147483648
    %v725 = vmul.f32 %v724, 1.442695
    %v726 = vpow.pop %v725
    %v727 = vadd.f32 %v726, 1.0
    %v728 = vrcp.pop %v727
    %v729 = vmul.f32 1.0, %v728
    %v730 = vadd.f32 %v580, %v651
    %v731 = vxor.u32 %v730, 2147483648
    %v732 = vmul.f32 %v731, 1.442695
    %v733 = vpow.pop %v732
    %v734 = vadd.f32 %v733, 1.0
    %v735 = vrcp.pop %v734
    %v736 = vmul.f32 1.0, %v735
    %v737 = vadd.f32 %v720, %v186
    %v738 = vmul.f32 %v729, %v737
    %v739 = vadd.f32 %v581, %v738
    %v740 = vtanh.pop %v739
    %v741 = vsub.f32 1.0, %v736
    %v742 = vmul.f32 %v741, %v740
    %v743 = vmul.f32 %v736, %v386
    %v744 = vadd.f32 %v742, %v743
    %s745 = sadd.s32 %s197, 1
    %v746 = vstv %s745
    %vm747 = vcmp.lt.s32.totalorder %v746, %v196
    %v748 = vsel %vm747, 1, 0
    %v749 = vcvt.s32.f32 %v748
    %751 = vset.pattern.permute.xlu0 0
    %752 = vperm.xlu0 %751, %v749
    %v753 = vpop.permute.xlu0 %752
    %v755 = vmul.f32 %v753, %v744
    %v756 = vsub.f32 1.0, %v749
    %758 = vset.pattern.permute.xlu0 0
    %759 = vperm.xlu0 %758, %v756
    %v760 = vpop.permute.xlu0 %759
    %v762 = vmul.f32 %v760, %v386
    %v763 = vadd.f32 %v755, %v762
    %v764 = vmul.f32 %v753, %v763
    %s765 = scalar_lea.vmem %s5, 8
    %766 = vst [vmem:[%s765] sm:$0xff] %v764
    %s767 = scalar_lea.vmem %s67, 144
    %v768 = vld [vmem:[%s767] sm:$0xff]
    %v769 = vld [vmem:[%s767 + $0x8] sm:$0xff]
    %v770 = vld [vmem:[%s767 + $0x10] sm:$0xff]
    %771 = vmatprep.subr.mxu0 %v134
    %772 = vmatpush1.msra.mxu0 %v133
    %773 = vmatprep.subr.mxu0 %v137
    %774 = vmatpush1.msra.mxu0 %v136
    %775 = vmatprep.subr.mxu0 %v140
    %776 = vmatpush1.msra.mxu0 %v139
    %777 = vmatprep.subr.mxu0 %v143
    %778 = vmatpush1.msra.mxu0 %v142
    %779 = vmatprep.subr.mxu0 %v146
    %780 = vmatpush1.msra.mxu0 %v145
    %781 = vmatprep.subr.mxu0 %v149
    %782 = vmatpush1.msra.mxu0 %v148
    %783 = vmatprep.subr.mxu0 %v152
    %784 = vmatpush1.msra.mxu0 %v151
    %785 = vmatprep.subr.mxu0 %v155
    %786 = vmatpush1.msra.mxu0 %v154
    %787 = vmatprep.subr.mxu0 %v158
    %788 = vmatpush1.msra.mxu0 %v157
    %789 = vmatprep.subr.mxu0 %v161
    %790 = vmatpush1.msra.mxu0 %v160
    %791 = vmatprep.subr.mxu0 %v164
    %792 = vmatpush1.msra.mxu0 %v163
    %793 = vmatprep.subr.mxu0 %v167
    %794 = vmatpush1.msra.mxu0 %v166
    %795 = vmatprep.subr.mxu0 %v170
    %796 = vmatpush1.msra.mxu0 %v169
    %797 = vmatprep.subr.mxu0 %v173
    %798 = vmatpush1.msra.mxu0 %v172
    %799 = vmatprep.subr.mxu0 %v176
    %800 = vmatpush1.msra.mxu0 %v175
    %801 = vmatprep.subr.mxu0 %v179
    %802 = vmatpush1.msra.mxu0 %v178
    %803 = vmatprep.subr.mxu0 0.0
    %804 = vmatpush1.msra.mxu0 0.0
    %805 = vmatprep.subr.mxu0 0.0
    %806 = vmatpush1.msra.mxu0 0.0
    %807 = vmatprep.subr.mxu0 0.0
    %808 = vmatpush1.msra.mxu0 0.0
    %809 = vmatprep.subr.mxu0 0.0
    %810 = vmatpush1.msra.mxu0 0.0
    %811 = vmatprep.subr.mxu0 0.0
    %812 = vmatpush1.msra.mxu0 0.0
    %813 = vmatprep.subr.mxu0 0.0
    %814 = vmatpush1.msra.mxu0 0.0
    %815 = vmatprep.subr.mxu0 0.0
    %816 = vmatpush1.msra.mxu0 0.0
    %817 = vmatprep.subr.mxu0 0.0
    %818 = vmatpush1.msra.mxu0 0.0
    %819 = vmatprep.subr.mxu0 0.0
    %820 = vmatpush1.msra.mxu0 0.0
    %821 = vmatprep.subr.mxu0 0.0
    %822 = vmatpush1.msra.mxu0 0.0
    %823 = vmatprep.subr.mxu0 0.0
    %824 = vmatpush1.msra.mxu0 0.0
    %825 = vmatprep.subr.mxu0 0.0
    %826 = vmatpush1.msra.mxu0 0.0
    %827 = vmatprep.subr.mxu0 0.0
    %828 = vmatpush1.msra.mxu0 0.0
    %829 = vmatprep.subr.mxu0 0.0
    %830 = vmatpush1.msra.mxu0 0.0
    %831 = vmatprep.subr.mxu0 0.0
    %832 = vmatpush1.msra.mxu0 0.0
    %833 = vmatprep.subr.mxu0 0.0
    %834 = vmatpush1.msra.mxu0 0.0
    %835 = vmatprep.mubr.f32.mxu0 0.0
    %836 = vmatmul.mubr.f32.gmra.mrb[0].mxu0 %v574
    %v837 = vpop.f32.mrb[0].mxu0
    %v838 = vadd.f32 0.0, %v837
    %v839 = vpop.f32.mrb[0].mxu0
    %v840 = vadd.f32 0.0, %v839
    %841 = vdwg.mxu0
    %842 = vmatprep.subr.mxu0 0.0
    %843 = vmatpush1.msra.mxu0 %v135
    %844 = vmatprep.subr.mxu0 0.0
    %845 = vmatpush1.msra.mxu0 %v138
    %846 = vmatprep.subr.mxu0 0.0
    %847 = vmatpush1.msra.mxu0 %v141
    %848 = vmatprep.subr.mxu0 0.0
    %849 = vmatpush1.msra.mxu0 %v144
    %850 = vmatprep.subr.mxu0 0.0
    %851 = vmatpush1.msra.mxu0 %v147
    %852 = vmatprep.subr.mxu0 0.0
    %853 = vmatpush1.msra.mxu0 %v150
    %854 = vmatprep.subr.mxu0 0.0
    %855 = vmatpush1.msra.mxu0 %v153
    %856 = vmatprep.subr.mxu0 0.0
    %857 = vmatpush1.msra.mxu0 %v156
    %858 = vmatprep.subr.mxu0 0.0
    %859 = vmatpush1.msra.mxu0 %v159
    %860 = vmatprep.subr.mxu0 0.0
    %861 = vmatpush1.msra.mxu0 %v162
    %862 = vmatprep.subr.mxu0 0.0
    %863 = vmatpush1.msra.mxu0 %v165
    %864 = vmatprep.subr.mxu0 0.0
    %865 = vmatpush1.msra.mxu0 %v168
    %866 = vmatprep.subr.mxu0 0.0
    %867 = vmatpush1.msra.mxu0 %v171
    %868 = vmatprep.subr.mxu0 0.0
    %869 = vmatpush1.msra.mxu0 %v174
    %870 = vmatprep.subr.mxu0 0.0
    %871 = vmatpush1.msra.mxu0 %v177
    %872 = vmatprep.subr.mxu0 0.0
    %873 = vmatpush1.msra.mxu0 %v180
    %874 = vmatprep.subr.mxu0 0.0
    %875 = vmatpush1.msra.mxu0 0.0
    %876 = vmatprep.subr.mxu0 0.0
    %877 = vmatpush1.msra.mxu0 0.0
    %878 = vmatprep.subr.mxu0 0.0
    %879 = vmatpush1.msra.mxu0 0.0
    %880 = vmatprep.subr.mxu0 0.0
    %881 = vmatpush1.msra.mxu0 0.0
    %882 = vmatprep.subr.mxu0 0.0
    %883 = vmatpush1.msra.mxu0 0.0
    %884 = vmatprep.subr.mxu0 0.0
    %885 = vmatpush1.msra.mxu0 0.0
    %886 = vmatprep.subr.mxu0 0.0
    %887 = vmatpush1.msra.mxu0 0.0
    %888 = vmatprep.subr.mxu0 0.0
    %889 = vmatpush1.msra.mxu0 0.0
    %890 = vmatprep.subr.mxu0 0.0
    %891 = vmatpush1.msra.mxu0 0.0
    %892 = vmatprep.subr.mxu0 0.0
    %893 = vmatpush1.msra.mxu0 0.0
    %894 = vmatprep.subr.mxu0 0.0
    %895 = vmatpush1.msra.mxu0 0.0
    %896 = vmatprep.subr.mxu0 0.0
    %897 = vmatpush1.msra.mxu0 0.0
    %898 = vmatprep.subr.mxu0 0.0
    %899 = vmatpush1.msra.mxu0 0.0
    %900 = vmatprep.subr.mxu0 0.0
    %901 = vmatpush1.msra.mxu0 0.0
    %902 = vmatprep.subr.mxu0 0.0
    %903 = vmatpush1.msra.mxu0 0.0
    %904 = vmatprep.subr.mxu0 0.0
    %905 = vmatpush1.msra.mxu0 0.0
    %906 = vmatprep.mubr.f32.mxu0 0.0
    %907 = vmatmul.mubr.f32.gmra.mrb[0].mxu0 %v574
    %v908 = vpop.f32.mrb[0].mxu0
    %v909 = vadd.f32 0.0, %v908
    %v910 = vpop.f32.mrb[0].mxu0
    %911 = vdwg.mxu0
    %v912 = vadd.f32 %v768, %v838
    %v913 = vxor.u32 %v912, 2147483648
    %v914 = vmul.f32 %v913, 1.442695
    %v915 = vpow.pop %v914
    %v916 = vadd.f32 %v915, 1.0
    %v917 = vrcp.pop %v916
    %v918 = vmul.f32 1.0, %v917
    %v919 = vadd.f32 %v769, %v840
    %v920 = vxor.u32 %v919, 2147483648
    %v921 = vmul.f32 %v920, 1.442695
    %v922 = vpow.pop %v921
    %v923 = vadd.f32 %v922, 1.0
    %v924 = vrcp.pop %v923
    %v925 = vmul.f32 1.0, %v924
    %v926 = vadd.f32 %v909, %v194
    %v927 = vmul.f32 %v918, %v926
    %v928 = vadd.f32 %v770, %v927
    %v929 = vtanh.pop %v928
    %v930 = vsub.f32 1.0, %v925
    %v931 = vmul.f32 %v930, %v929
    %v932 = vmul.f32 %v925, %v574
    %v933 = vadd.f32 %v931, %v932
    %s934 = sadd.s32 %s199, 6
    %v935 = vstv %s934
    %vm936 = vcmp.lt.s32.totalorder %v935, %v196
    %v937 = vsel %vm936, 1, 0
    %v938 = vcvt.s32.f32 %v937
    %940 = vset.pattern.permute.xlu0 0
    %941 = vperm.xlu0 %940, %v938
    %v942 = vpop.permute.xlu0 %941
    %v944 = vmul.f32 %v942, %v933
    %v945 = vsub.f32 1.0, %v938
    %947 = vset.pattern.permute.xlu0 0
    %948 = vperm.xlu0 %947, %v945
    %v949 = vpop.permute.xlu0 %948
    %v951 = vmul.f32 %v949, %v574
    %v952 = vadd.f32 %v944, %v951
    %v953 = vmul.f32 %v942, %v952
    %s954 = scalar_lea.vmem %s75, 48
    %955 = vst [vmem:[%s954] sm:$0xff] %v953
    %s956 = scalar_lea.vmem %s0, 48
    %v957 = vld [vmem:[%s956] sm:$0xff]
    %v958 = vld [vmem:[%s956 + $0x8] sm:$0xff]
    %v959 = vld [vmem:[%s956 + $0x10] sm:$0xff]
    %960 = vmatprep.subr.mxu0 %v85
    %961 = vmatpush1.msra.mxu0 %v84
    %962 = vmatprep.subr.mxu0 %v88
    %963 = vmatpush1.msra.mxu0 %v87
    %964 = vmatprep.subr.mxu0 %v91
    %965 = vmatpush1.msra.mxu0 %v90
    %966 = vmatprep.subr.mxu0 %v94
    %967 = vmatpush1.msra.mxu0 %v93
    %968 = vmatprep.subr.mxu0 %v97
    %969 = vmatpush1.msra.mxu0 %v96
    %970 = vmatprep.subr.mxu0 %v100
    %971 = vmatpush1.msra.mxu0 %v99
    %972 = vmatprep.subr.mxu0 %v103
    %973 = vmatpush1.msra.mxu0 %v102
    %974 = vmatprep.subr.mxu0 %v106
    %975 = vmatpush1.msra.mxu0 %v105
    %976 = vmatprep.subr.mxu0 %v109
    %977 = vmatpush1.msra.mxu0 %v108
    %978 = vmatprep.subr.mxu0 %v112
    %979 = vmatpush1.msra.mxu0 %v111
    %980 = vmatprep.subr.mxu0 %v115
    %981 = vmatpush1.msra.mxu0 %v114
    %982 = vmatprep.subr.mxu0 %v118
    %983 = vmatpush1.msra.mxu0 %v117
    %984 = vmatprep.subr.mxu0 %v121
    %985 = vmatpush1.msra.mxu0 %v120
    %986 = vmatprep.subr.mxu0 %v124
    %987 = vmatpush1.msra.mxu0 %v123
    %988 = vmatprep.subr.mxu0 %v127
    %989 = vmatpush1.msra.mxu0 %v126
    %990 = vmatprep.subr.mxu0 %v130
    %991 = vmatpush1.msra.mxu0 %v129
    %992 = vmatprep.subr.mxu0 0.0
    %993 = vmatpush1.msra.mxu0 0.0
    %994 = vmatprep.subr.mxu0 0.0
    %995 = vmatpush1.msra.mxu0 0.0
    %996 = vmatprep.subr.mxu0 0.0
    %997 = vmatpush1.msra.mxu0 0.0
    %998 = vmatprep.subr.mxu0 0.0
    %999 = vmatpush1.msra.mxu0 0.0
    %1000 = vmatprep.subr.mxu0 0.0
    %1001 = vmatpush1.msra.mxu0 0.0
    %1002 = vmatprep.subr.mxu0 0.0
    %1003 = vmatpush1.msra.mxu0 0.0
    %1004 = vmatprep.subr.mxu0 0.0
    %1005 = vmatpush1.msra.mxu0 0.0
    %1006 = vmatprep.subr.mxu0 0.0
    %1007 = vmatpush1.msra.mxu0 0.0
    %1008 = vmatprep.subr.mxu0 0.0
    %1009 = vmatpush1.msra.mxu0 0.0
    %1010 = vmatprep.subr.mxu0 0.0
    %1011 = vmatpush1.msra.mxu0 0.0
    %1012 = vmatprep.subr.mxu0 0.0
    %1013 = vmatpush1.msra.mxu0 0.0
    %1014 = vmatprep.subr.mxu0 0.0
    %1015 = vmatpush1.msra.mxu0 0.0
    %1016 = vmatprep.subr.mxu0 0.0
    %1017 = vmatpush1.msra.mxu0 0.0
    %1018 = vmatprep.subr.mxu0 0.0
    %1019 = vmatpush1.msra.mxu0 0.0
    %1020 = vmatprep.subr.mxu0 0.0
    %1021 = vmatpush1.msra.mxu0 0.0
    %1022 = vmatprep.subr.mxu0 0.0
    %1023 = vmatpush1.msra.mxu0 0.0
    %1024 = vmatprep.mubr.f32.mxu0 0.0
    %1025 = vmatmul.mubr.f32.gmra.mrb[0].mxu0 %v763
    %v1026 = vpop.f32.mrb[0].mxu0
    %v1027 = vadd.f32 0.0, %v1026
    %v1028 = vpop.f32.mrb[0].mxu0
    %v1029 = vadd.f32 0.0, %v1028
    %1030 = vdwg.mxu0
    %1031 = vmatprep.subr.mxu0 0.0
    %1032 = vmatpush1.msra.mxu0 %v86
    %1033 = vmatprep.subr.mxu0 0.0
    %1034 = vmatpush1.msra.mxu0 %v89
    %1035 = vmatprep.subr.mxu0 0.0
    %1036 = vmatpush1.msra.mxu0 %v92
    %1037 = vmatprep.subr.mxu0 0.0
    %1038 = vmatpush1.msra.mxu0 %v95
    %1039 = vmatprep.subr.mxu0 0.0
    %1040 = vmatpush1.msra.mxu0 %v98
    %1041 = vmatprep.subr.mxu0 0.0
    %1042 = vmatpush1.msra.mxu0 %v101
    %1043 = vmatprep.subr.mxu0 0.0
    %1044 = vmatpush1.msra.mxu0 %v104
    %1045 = vmatprep.subr.mxu0 0.0
    %1046 = vmatpush1.msra.mxu0 %v107
    %1047 = vmatprep.subr.mxu0 0.0
    %1048 = vmatpush1.msra.mxu0 %v110
    %1049 = vmatprep.subr.mxu0 0.0
    %1050 = vmatpush1.msra.mxu0 %v113
    %1051 = vmatprep.subr.mxu0 0.0
    %1052 = vmatpush1.msra.mxu0 %v116
    %1053 = vmatprep.subr.mxu0 0.0
    %1054 = vmatpush1.msra.mxu0 %v119
    %1055 = vmatprep.subr.mxu0 0.0
    %1056 = vmatpush1.msra.mxu0 %v122
    %1057 = vmatprep.subr.mxu0 0.0
    %1058 = vmatpush1.msra.mxu0 %v125
    %1059 = vmatprep.subr.mxu0 0.0
    %1060 = vmatpush1.msra.mxu0 %v128
    %1061 = vmatprep.subr.mxu0 0.0
    %1062 = vmatpush1.msra.mxu0 %v131
    %1063 = vmatprep.subr.mxu0 0.0
    %1064 = vmatpush1.msra.mxu0 0.0
    %1065 = vmatprep.subr.mxu0 0.0
    %1066 = vmatpush1.msra.mxu0 0.0
    %1067 = vmatprep.subr.mxu0 0.0
    %1068 = vmatpush1.msra.mxu0 0.0
    %1069 = vmatprep.subr.mxu0 0.0
    %1070 = vmatpush1.msra.mxu0 0.0
    %1071 = vmatprep.subr.mxu0 0.0
    %1072 = vmatpush1.msra.mxu0 0.0
    %1073 = vmatprep.subr.mxu0 0.0
    %1074 = vmatpush1.msra.mxu0 0.0
    %1075 = vmatprep.subr.mxu0 0.0
    %1076 = vmatpush1.msra.mxu0 0.0
    %1077 = vmatprep.subr.mxu0 0.0
    %1078 = vmatpush1.msra.mxu0 0.0
    %1079 = vmatprep.subr.mxu0 0.0
    %1080 = vmatpush1.msra.mxu0 0.0
    %1081 = vmatprep.subr.mxu0 0.0
    %1082 = vmatpush1.msra.mxu0 0.0
    %1083 = vmatprep.subr.mxu0 0.0
    %1084 = vmatpush1.msra.mxu0 0.0
    %1085 = vmatprep.subr.mxu0 0.0
    %1086 = vmatpush1.msra.mxu0 0.0
    %1087 = vmatprep.subr.mxu0 0.0
    %1088 = vmatpush1.msra.mxu0 0.0
    %1089 = vmatprep.subr.mxu0 0.0
    %1090 = vmatpush1.msra.mxu0 0.0
    %1091 = vmatprep.subr.mxu0 0.0
    %1092 = vmatpush1.msra.mxu0 0.0
    %1093 = vmatprep.subr.mxu0 0.0
    %1094 = vmatpush1.msra.mxu0 0.0
    %1095 = vmatprep.mubr.f32.mxu0 0.0
    %1096 = vmatmul.mubr.f32.gmra.mrb[0].mxu0 %v763
    %v1097 = vpop.f32.mrb[0].mxu0
    %v1098 = vadd.f32 0.0, %v1097
    %v1099 = vpop.f32.mrb[0].mxu0
    %1100 = vdwg.mxu0
    %v1101 = vadd.f32 %v957, %v1027
    %v1102 = vxor.u32 %v1101, 2147483648
    %v1103 = vmul.f32 %v1102, 1.442695
    %v1104 = vpow.pop %v1103
    %v1105 = vadd.f32 %v1104, 1.0
    %v1106 = vrcp.pop %v1105
    %v1107 = vmul.f32 1.0, %v1106
    %v1108 = vadd.f32 %v958, %v1029
    %v1109 = vxor.u32 %v1108, 2147483648
    %v1110 = vmul.f32 %v1109, 1.442695
    %v1111 = vpow.pop %v1110
    %v1112 = vadd.f32 %v1111, 1.0
    %v1113 = vrcp.pop %v1112
    %v1114 = vmul.f32 1.0, %v1113
    %v1115 = vadd.f32 %v1098, %v186
    %v1116 = vmul.f32 %v1107, %v1115
    %v1117 = vadd.f32 %v959, %v1116
    %v1118 = vtanh.pop %v1117
    %v1119 = vsub.f32 1.0, %v1114
    %v1120 = vmul.f32 %v1119, %v1118
    %v1121 = vmul.f32 %v1114, %v763
    %v1122 = vadd.f32 %v1120, %v1121
    %s1123 = sadd.s32 %s197, 2
    %v1124 = vstv %s1123
    %vm1125 = vcmp.lt.s32.totalorder %v1124, %v196
    %v1126 = vsel %vm1125, 1, 0
    %v1127 = vcvt.s32.f32 %v1126
    %1129 = vset.pattern.permute.xlu0 0
    %1130 = vperm.xlu0 %1129, %v1127
    %v1131 = vpop.permute.xlu0 %1130
    %v1133 = vmul.f32 %v1131, %v1122
    %v1134 = vsub.f32 1.0, %v1127
    %1136 = vset.pattern.permute.xlu0 0
    %1137 = vperm.xlu0 %1136, %v1134
    %v1138 = vpop.permute.xlu0 %1137
    %v1140 = vmul.f32 %v1138, %v763
    %v1141 = vadd.f32 %v1133, %v1140
    %v1142 = vmul.f32 %v1131, %v1141
    %s1143 = scalar_lea.vmem %s5, 16
    %1144 = vst [vmem:[%s1143] sm:$0xff] %v1142
    %s1145 = scalar_lea.vmem %s67, 120
    %v1146 = vld [vmem:[%s1145] sm:$0xff]
    %v1147 = vld [vmem:[%s1145 + $0x8] sm:$0xff]
    %v1148 = vld [vmem:[%s1145 + $0x10] sm:$0xff]
    %1149 = vmatprep.subr.mxu0 %v134
    %1150 = vmatpush1.msra.mxu0 %v133
    %1151 = vmatprep.subr.mxu0 %v137
    %1152 = vmatpush1.msra.mxu0 %v136
    %1153 = vmatprep.subr.mxu0 %v140
    %1154 = vmatpush1.msra.mxu0 %v139
    %1155 = vmatprep.subr.mxu0 %v143
    %1156 = vmatpush1.msra.mxu0 %v142
    %1157 = vmatprep.subr.mxu0 %v146
    %1158 = vmatpush1.msra.mxu0 %v145
    %1159 = vmatprep.subr.mxu0 %v149
    %1160 = vmatpush1.msra.mxu0 %v148
    %1161 = vmatprep.subr.mxu0 %v152
    %1162 = vmatpush1.msra.mxu0 %v151
    %1163 = vmatprep.subr.mxu0 %v155
    %1164 = vmatpush1.msra.mxu0 %v154
    %1165 = vmatprep.subr.mxu0 %v158
    %1166 = vmatpush1.msra.mxu0 %v157
    %1167 = vmatprep.subr.mxu0 %v161
    %1168 = vmatpush1.msra.mxu0 %v160
    %1169 = vmatprep.subr.mxu0 %v164
    %1170 = vmatpush1.msra.mxu0 %v163
    %1171 = vmatprep.subr.mxu0 %v167
    %1172 = vmatpush1.msra.mxu0 %v166
    %1173 = vmatprep.subr.mxu0 %v170
    %1174 = vmatpush1.msra.mxu0 %v169
    %1175 = vmatprep.subr.mxu0 %v173
    %1176 = vmatpush1.msra.mxu0 %v172
    %1177 = vmatprep.subr.mxu0 %v176
    %1178 = vmatpush1.msra.mxu0 %v175
    %1179 = vmatprep.subr.mxu0 %v179
    %1180 = vmatpush1.msra.mxu0 %v178
    %1181 = vmatprep.subr.mxu0 0.0
    %1182 = vmatpush1.msra.mxu0 0.0
    %1183 = vmatprep.subr.mxu0 0.0
    %1184 = vmatpush1.msra.mxu0 0.0
    %1185 = vmatprep.subr.mxu0 0.0
    %1186 = vmatpush1.msra.mxu0 0.0
    %1187 = vmatprep.subr.mxu0 0.0
    %1188 = vmatpush1.msra.mxu0 0.0
    %1189 = vmatprep.subr.mxu0 0.0
    %1190 = vmatpush1.msra.mxu0 0.0
    %1191 = vmatprep.subr.mxu0 0.0
    %1192 = vmatpush1.msra.mxu0 0.0
    %1193 = vmatprep.subr.mxu0 0.0
    %1194 = vmatpush1.msra.mxu0 0.0
    %1195 = vmatprep.subr.mxu0 0.0
    %1196 = vmatpush1.msra.mxu0 0.0
    %1197 = vmatprep.subr.mxu0 0.0
    %1198 = vmatpush1.msra.mxu0 0.0
    %1199 = vmatprep.subr.mxu0 0.0
    %1200 = vmatpush1.msra.mxu0 0.0
    %1201 = vmatprep.subr.mxu0 0.0
    %1202 = vmatpush1.msra.mxu0 0.0
    %1203 = vmatprep.subr.mxu0 0.0
    %1204 = vmatpush1.msra.mxu0 0.0
    %1205 = vmatprep.subr.mxu0 0.0
    %1206 = vmatpush1.msra.mxu0 0.0
    %1207 = vmatprep.subr.mxu0 0.0
    %1208 = vmatpush1.msra.mxu0 0.0
    %1209 = vmatprep.subr.mxu0 0.0
    %1210 = vmatpush1.msra.mxu0 0.0
    %1211 = vmatprep.subr.mxu0 0.0
    %1212 = vmatpush1.msra.mxu0 0.0
    %1213 = vmatprep.mubr.f32.mxu0 0.0
    %1214 = vmatmul.mubr.f32.gmra.mrb[0].mxu0 %v952
    %v1215 = vpop.f32.mrb[0].mxu0
    %v1216 = vadd.f32 0.0, %v1215
    %v1217 = vpop.f32.mrb[0].mxu0
    %v1218 = vadd.f32 0.0, %v1217
    %1219 = vdwg.mxu0
    %1220 = vmatprep.subr.mxu0 0.0
    %1221 = vmatpush1.msra.mxu0 %v135
    %1222 = vmatprep.subr.mxu0 0.0
    %1223 = vmatpush1.msra.mxu0 %v138
    %1224 = vmatprep.subr.mxu0 0.0
    %1225 = vmatpush1.msra.mxu0 %v141
    %1226 = vmatprep.subr.mxu0 0.0
    %1227 = vmatpush1.msra.mxu0 %v144
    %1228 = vmatprep.subr.mxu0 0.0
    %1229 = vmatpush1.msra.mxu0 %v147
    %1230 = vmatprep.subr.mxu0 0.0
    %1231 = vmatpush1.msra.mxu0 %v150
    %1232 = vmatprep.subr.mxu0 0.0
    %1233 = vmatpush1.msra.mxu0 %v153
    %1234 = vmatprep.subr.mxu0 0.0
    %1235 = vmatpush1.msra.mxu0 %v156
    %1236 = vmatprep.subr.mxu0 0.0
    %1237 = vmatpush1.msra.mxu0 %v159
    %1238 = vmatprep.subr.mxu0 0.0
    %1239 = vmatpush1.msra.mxu0 %v162
    %1240 = vmatprep.subr.mxu0 0.0
    %1241 = vmatpush1.msra.mxu0 %v165
    %1242 = vmatprep.subr.mxu0 0.0
    %1243 = vmatpush1.msra.mxu0 %v168
    %1244 = vmatprep.subr.mxu0 0.0
    %1245 = vmatpush1.msra.mxu0 %v171
    %1246 = vmatprep.subr.mxu0 0.0
    %1247 = vmatpush1.msra.mxu0 %v174
    %1248 = vmatprep.subr.mxu0 0.0
    %1249 = vmatpush1.msra.mxu0 %v177
    %1250 = vmatprep.subr.mxu0 0.0
    %1251 = vmatpush1.msra.mxu0 %v180
    %1252 = vmatprep.subr.mxu0 0.0
    %1253 = vmatpush1.msra.mxu0 0.0
    %1254 = vmatprep.subr.mxu0 0.0
    %1255 = vmatpush1.msra.mxu0 0.0
    %1256 = vmatprep.subr.mxu0 0.0
    %1257 = vmatpush1.msra.mxu0 0.0
    %1258 = vmatprep.subr.mxu0 0.0
    %1259 = vmatpush1.msra.mxu0 0.0
    %1260 = vmatprep.subr.mxu0 0.0
    %1261 = vmatpush1.msra.mxu0 0.0
    %1262 = vmatprep.subr.mxu0 0.0
    %1263 = vmatpush1.msra.mxu0 0.0
    %1264 = vmatprep.subr.mxu0 0.0
    %1265 = vmatpush1.msra.mxu0 0.0
    %1266 = vmatprep.subr.mxu0 0.0
    %1267 = vmatpush1.msra.mxu0 0.0
    %1268 = vmatprep.subr.mxu0 0.0
    %1269 = vmatpush1.msra.mxu0 0.0
    %1270 = vmatprep.subr.mxu0 0.0
    %1271 = vmatpush1.msra.mxu0 0.0
    %1272 = vmatprep.subr.mxu0 0.0
    %1273 = vmatpush1.msra.mxu0 0.0
    %1274 = vmatprep.subr.mxu0 0.0
    %1275 = vmatpush1.msra.mxu0 0.0
    %1276 = vmatprep.subr.mxu0 0.0
    %1277 = vmatpush1.msra.mxu0 0.0
    %1278 = vmatprep.subr.mxu0 0.0
    %1279 = vmatpush1.msra.mxu0 0.0
    %1280 = vmatprep.subr.mxu0 0.0
    %1281 = vmatpush1.msra.mxu0 0.0
    %1282 = vmatprep.subr.mxu0 0.0
    %1283 = vmatpush1.msra.mxu0 0.0
    %1284 = vmatprep.mubr.f32.mxu0 0.0
    %1285 = vmatmul.mubr.f32.gmra.mrb[0].mxu0 %v952
    %v1286 = vpop.f32.mrb[0].mxu0
    %v1287 = vadd.f32 0.0, %v1286
    %v1288 = vpop.f32.mrb[0].mxu0
    %1289 = vdwg.mxu0
    %v1290 = vadd.f32 %v1146, %v1216
    %v1291 = vxor.u32 %v1290, 2147483648
    %v1292 = vmul.f32 %v1291, 1.442695
    %v1293 = vpow.pop %v1292
    %v1294 = vadd.f32 %v1293, 1.0
    %v1295 = vrcp.pop %v1294
    %v1296 = vmul.f32 1.0, %v1295
    %v1297 = vadd.f32 %v1147, %v1218
    %v1298 = vxor.u32 %v1297, 2147483648
    %v1299 = vmul.f32 %v1298, 1.442695
    %v1300 = vpow.pop %v1299
    %v1301 = vadd.f32 %v1300, 1.0
    %v1302 = vrcp.pop %v1301
    %v1303 = vmul.f32 1.0, %v1302
    %v1304 = vadd.f32 %v1287, %v194
    %v1305 = vmul.f32 %v1296, %v1304
    %v1306 = vadd.f32 %v1148, %v1305
    %v1307 = vtanh.pop %v1306
    %v1308 = vsub.f32 1.0, %v1303
    %v1309 = vmul.f32 %v1308, %v1307
    %v1310 = vmul.f32 %v1303, %v952
    %v1311 = vadd.f32 %v1309, %v1310
    %s1312 = sadd.s32 %s199, 5
    %v1313 = vstv %s1312
    %vm1314 = vcmp.lt.s32.totalorder %v1313, %v196
    %v1315 = vsel %vm1314, 1, 0
    %v1316 = vcvt.s32.f32 %v1315
    %1318 = vset.pattern.permute.xlu0 0
    %1319 = vperm.xlu0 %1318, %v1316
    %v1320 = vpop.permute.xlu0 %1319
    %v1322 = vmul.f32 %v1320, %v1311
    %v1323 = vsub.f32 1.0, %v1316
    %1325 = vset.pattern.permute.xlu0 0
    %1326 = vperm.xlu0 %1325, %v1323
    %v1327 = vpop.permute.xlu0 %1326
    %v1329 = vmul.f32 %v1327, %v952
    %v1330 = vadd.f32 %v1322, %v1329
    %v1331 = vmul.f32 %v1320, %v1330
    %s1332 = scalar_lea.vmem %s75, 40
    %1333 = vst [vmem:[%s1332] sm:$0xff] %v1331
    %s1334 = scalar_lea.vmem %s0, 72
    %v1335 = vld [vmem:[%s1334] sm:$0xff]
    %v1336 = vld [vmem:[%s1334 + $0x8] sm:$0xff]
    %v1337 = vld [vmem:[%s1334 + $0x10] sm:$0xff]
    %1338 = vmatprep.subr.mxu0 %v85
    %1339 = vmatpush1.msra.mxu0 %v84
    %1340 = vmatprep.subr.mxu0 %v88
    %1341 = vmatpush1.msra.mxu0 %v87
    %1342 = vmatprep.subr.mxu0 %v91
    %1343 = vmatpush1.msra.mxu0 %v90
    %1344 = vmatprep.subr.mxu0 %v94
    %1345 = vmatpush1.msra.mxu0 %v93
    %1346 = vmatprep.subr.mxu0 %v97
    %1347 = vmatpush1.msra.mxu0 %v96
    %1348 = vmatprep.subr.mxu0 %v100
    %1349 = vmatpush1.msra.mxu0 %v99
    %1350 = vmatprep.subr.mxu0 %v103
    %1351 = vmatpush1.msra.mxu0 %v102
    %1352 = vmatprep.subr.mxu0 %v106
    %1353 = vmatpush1.msra.mxu0 %v105
    %1354 = vmatprep.subr.mxu0 %v109
    %1355 = vmatpush1.msra.mxu0 %v108
    %1356 = vmatprep.subr.mxu0 %v112
    %1357 = vmatpush1.msra.mxu0 %v111
    %1358 = vmatprep.subr.mxu0 %v115
    %1359 = vmatpush1.msra.mxu0 %v114
    %1360 = vmatprep.subr.mxu0 %v118
    %1361 = vmatpush1.msra.mxu0 %v117
    %1362 = vmatprep.subr.mxu0 %v121
    %1363 = vmatpush1.msra.mxu0 %v120
    %1364 = vmatprep.subr.mxu0 %v124
    %1365 = vmatpush1.msra.mxu0 %v123
    %1366 = vmatprep.subr.mxu0 %v127
    %1367 = vmatpush1.msra.mxu0 %v126
    %1368 = vmatprep.subr.mxu0 %v130
    %1369 = vmatpush1.msra.mxu0 %v129
    %1370 = vmatprep.subr.mxu0 0.0
    %1371 = vmatpush1.msra.mxu0 0.0
    %1372 = vmatprep.subr.mxu0 0.0
    %1373 = vmatpush1.msra.mxu0 0.0
    %1374 = vmatprep.subr.mxu0 0.0
    %1375 = vmatpush1.msra.mxu0 0.0
    %1376 = vmatprep.subr.mxu0 0.0
    %1377 = vmatpush1.msra.mxu0 0.0
    %1378 = vmatprep.subr.mxu0 0.0
    %1379 = vmatpush1.msra.mxu0 0.0
    %1380 = vmatprep.subr.mxu0 0.0
    %1381 = vmatpush1.msra.mxu0 0.0
    %1382 = vmatprep.subr.mxu0 0.0
    %1383 = vmatpush1.msra.mxu0 0.0
    %1384 = vmatprep.subr.mxu0 0.0
    %1385 = vmatpush1.msra.mxu0 0.0
    %1386 = vmatprep.subr.mxu0 0.0
    %1387 = vmatpush1.msra.mxu0 0.0
    %1388 = vmatprep.subr.mxu0 0.0
    %1389 = vmatpush1.msra.mxu0 0.0
    %1390 = vmatprep.subr.mxu0 0.0
    %1391 = vmatpush1.msra.mxu0 0.0
    %1392 = vmatprep.subr.mxu0 0.0
    %1393 = vmatpush1.msra.mxu0 0.0
    %1394 = vmatprep.subr.mxu0 0.0
    %1395 = vmatpush1.msra.mxu0 0.0
    %1396 = vmatprep.subr.mxu0 0.0
    %1397 = vmatpush1.msra.mxu0 0.0
    %1398 = vmatprep.subr.mxu0 0.0
    %1399 = vmatpush1.msra.mxu0 0.0
    %1400 = vmatprep.subr.mxu0 0.0
    %1401 = vmatpush1.msra.mxu0 0.0
    %1402 = vmatprep.mubr.f32.mxu0 0.0
    %1403 = vmatmul.mubr.f32.gmra.mrb[0].mxu0 %v1141
    %v1404 = vpop.f32.mrb[0].mxu0
    %v1405 = vadd.f32 0.0, %v1404
    %v1406 = vpop.f32.mrb[0].mxu0
    %v1407 = vadd.f32 0.0, %v1406
    %1408 = vdwg.mxu0
    %1409 = vmatprep.subr.mxu0 0.0
    %1410 = vmatpush1.msra.mxu0 %v86
    %1411 = vmatprep.subr.mxu0 0.0
    %1412 = vmatpush1.msra.mxu0 %v89
    %1413 = vmatprep.subr.mxu0 0.0
    %1414 = vmatpush1.msra.mxu0 %v92
    %1415 = vmatprep.subr.mxu0 0.0
    %1416 = vmatpush1.msra.mxu0 %v95
    %1417 = vmatprep.subr.mxu0 0.0
    %1418 = vmatpush1.msra.mxu0 %v98
    %1419 = vmatprep.subr.mxu0 0.0
    %1420 = vmatpush1.msra.mxu0 %v101
    %1421 = vmatprep.subr.mxu0 0.0
    %1422 = vmatpush1.msra.mxu0 %v104
    %1423 = vmatprep.subr.mxu0 0.0
    %1424 = vmatpush1.msra.mxu0 %v107
    %1425 = vmatprep.subr.mxu0 0.0
    %1426 = vmatpush1.msra.mxu0 %v110
    %1427 = vmatprep.subr.mxu0 0.0
    %1428 = vmatpush1.msra.mxu0 %v113
    %1429 = vmatprep.subr.mxu0 0.0
    %1430 = vmatpush1.msra.mxu0 %v116
    %1431 = vmatprep.subr.mxu0 0.0
    %1432 = vmatpush1.msra.mxu0 %v119
    %1433 = vmatprep.subr.mxu0 0.0
    %1434 = vmatpush1.msra.mxu0 %v122
    %1435 = vmatprep.subr.mxu0 0.0
    %1436 = vmatpush1.msra.mxu0 %v125
    %1437 = vmatprep.subr.mxu0 0.0
    %1438 = vmatpush1.msra.mxu0 %v128
    %1439 = vmatprep.subr.mxu0 0.0
    %1440 = vmatpush1.msra.mxu0 %v131
    %1441 = vmatprep.subr.mxu0 0.0
    %1442 = vmatpush1.msra.mxu0 0.0
    %1443 = vmatprep.subr.mxu0 0.0
    %1444 = vmatpush1.msra.mxu0 0.0
    %1445 = vmatprep.subr.mxu0 0.0
    %1446 = vmatpush1.msra.mxu0 0.0
    %1447 = vmatprep.subr.mxu0 0.0
    %1448 = vmatpush1.msra.mxu0 0.0
    %1449 = vmatprep.subr.mxu0 0.0
    %1450 = vmatpush1.msra.mxu0 0.0
    %1451 = vmatprep.subr.mxu0 0.0
    %1452 = vmatpush1.msra.mxu0 0.0
    %1453 = vmatprep.subr.mxu0 0.0
    %1454 = vmatpush1.msra.mxu0 0.0
    %1455 = vmatprep.subr.mxu0 0.0
    %1456 = vmatpush1.msra.mxu0 0.0
    %1457 = vmatprep.subr.mxu0 0.0
    %1458 = vmatpush1.msra.mxu0 0.0
    %1459 = vmatprep.subr.mxu0 0.0
    %1460 = vmatpush1.msra.mxu0 0.0
    %1461 = vmatprep.subr.mxu0 0.0
    %1462 = vmatpush1.msra.mxu0 0.0
    %1463 = vmatprep.subr.mxu0 0.0
    %1464 = vmatpush1.msra.mxu0 0.0
    %1465 = vmatprep.subr.mxu0 0.0
    %1466 = vmatpush1.msra.mxu0 0.0
    %1467 = vmatprep.subr.mxu0 0.0
    %1468 = vmatpush1.msra.mxu0 0.0
    %1469 = vmatprep.subr.mxu0 0.0
    %1470 = vmatpush1.msra.mxu0 0.0
    %1471 = vmatprep.subr.mxu0 0.0
    %1472 = vmatpush1.msra.mxu0 0.0
    %1473 = vmatprep.mubr.f32.mxu0 0.0
    %1474 = vmatmul.mubr.f32.gmra.mrb[0].mxu0 %v1141
    %v1475 = vpop.f32.mrb[0].mxu0
    %v1476 = vadd.f32 0.0, %v1475
    %v1477 = vpop.f32.mrb[0].mxu0
    %1478 = vdwg.mxu0
    %v1479 = vadd.f32 %v1335, %v1405
    %v1480 = vxor.u32 %v1479, 2147483648
    %v1481 = vmul.f32 %v1480, 1.442695
    %v1482 = vpow.pop %v1481
    %v1483 = vadd.f32 %v1482, 1.0
    %v1484 = vrcp.pop %v1483
    %v1485 = vmul.f32 1.0, %v1484
    %v1486 = vadd.f32 %v1336, %v1407
    %v1487 = vxor.u32 %v1486, 2147483648
    %v1488 = vmul.f32 %v1487, 1.442695
    %v1489 = vpow.pop %v1488
    %v1490 = vadd.f32 %v1489, 1.0
    %v1491 = vrcp.pop %v1490
    %v1492 = vmul.f32 1.0, %v1491
    %v1493 = vadd.f32 %v1476, %v186
    %v1494 = vmul.f32 %v1485, %v1493
    %v1495 = vadd.f32 %v1337, %v1494
    %v1496 = vtanh.pop %v1495
    %v1497 = vsub.f32 1.0, %v1492
    %v1498 = vmul.f32 %v1497, %v1496
    %v1499 = vmul.f32 %v1492, %v1141
    %v1500 = vadd.f32 %v1498, %v1499
    %s1501 = sadd.s32 %s197, 3
    %v1502 = vstv %s1501
    %vm1503 = vcmp.lt.s32.totalorder %v1502, %v196
    %v1504 = vsel %vm1503, 1, 0
    %v1505 = vcvt.s32.f32 %v1504
    %1507 = vset.pattern.permute.xlu0 0
    %1508 = vperm.xlu0 %1507, %v1505
    %v1509 = vpop.permute.xlu0 %1508
    %v1511 = vmul.f32 %v1509, %v1500
    %v1512 = vsub.f32 1.0, %v1505
    %1514 = vset.pattern.permute.xlu0 0
    %1515 = vperm.xlu0 %1514, %v1512
    %v1516 = vpop.permute.xlu0 %1515
    %v1518 = vmul.f32 %v1516, %v1141
    %v1519 = vadd.f32 %v1511, %v1518
    %v1520 = vmul.f32 %v1509, %v1519
    %s1521 = scalar_lea.vmem %s5, 24
    %1522 = vst [vmem:[%s1521] sm:$0xff] %v1520
    %s1523 = scalar_lea.vmem %s67, 96
    %v1524 = vld [vmem:[%s1523] sm:$0xff]
    %v1525 = vld [vmem:[%s1523 + $0x8] sm:$0xff]
    %v1526 = vld [vmem:[%s1523 + $0x10] sm:$0xff]
    %1527 = vmatprep.subr.mxu0 %v134
    %1528 = vmatpush1.msra.mxu0 %v133
    %1529 = vmatprep.subr.mxu0 %v137
    %1530 = vmatpush1.msra.mxu0 %v136
    %1531 = vmatprep.subr.mxu0 %v140
    %1532 = vmatpush1.msra.mxu0 %v139
    %1533 = vmatprep.subr.mxu0 %v143
    %1534 = vmatpush1.msra.mxu0 %v142
    %1535 = vmatprep.subr.mxu0 %v146
    %1536 = vmatpush1.msra.mxu0 %v145
    %1537 = vmatprep.subr.mxu0 %v149
    %1538 = vmatpush1.msra.mxu0 %v148
    %1539 = vmatprep.subr.mxu0 %v152
    %1540 = vmatpush1.msra.mxu0 %v151
    %1541 = vmatprep.subr.mxu0 %v155
    %1542 = vmatpush1.msra.mxu0 %v154
    %1543 = vmatprep.subr.mxu0 %v158
    %1544 = vmatpush1.msra.mxu0 %v157
    %1545 = vmatprep.subr.mxu0 %v161
    %1546 = vmatpush1.msra.mxu0 %v160
    %1547 = vmatprep.subr.mxu0 %v164
    %1548 = vmatpush1.msra.mxu0 %v163
    %1549 = vmatprep.subr.mxu0 %v167
    %1550 = vmatpush1.msra.mxu0 %v166
    %1551 = vmatprep.subr.mxu0 %v170
    %1552 = vmatpush1.msra.mxu0 %v169
    %1553 = vmatprep.subr.mxu0 %v173
    %1554 = vmatpush1.msra.mxu0 %v172
    %1555 = vmatprep.subr.mxu0 %v176
    %1556 = vmatpush1.msra.mxu0 %v175
    %1557 = vmatprep.subr.mxu0 %v179
    %1558 = vmatpush1.msra.mxu0 %v178
    %1559 = vmatprep.subr.mxu0 0.0
    %1560 = vmatpush1.msra.mxu0 0.0
    %1561 = vmatprep.subr.mxu0 0.0
    %1562 = vmatpush1.msra.mxu0 0.0
    %1563 = vmatprep.subr.mxu0 0.0
    %1564 = vmatpush1.msra.mxu0 0.0
    %1565 = vmatprep.subr.mxu0 0.0
    %1566 = vmatpush1.msra.mxu0 0.0
    %1567 = vmatprep.subr.mxu0 0.0
    %1568 = vmatpush1.msra.mxu0 0.0
    %1569 = vmatprep.subr.mxu0 0.0
    %1570 = vmatpush1.msra.mxu0 0.0
    %1571 = vmatprep.subr.mxu0 0.0
    %1572 = vmatpush1.msra.mxu0 0.0
    %1573 = vmatprep.subr.mxu0 0.0
    %1574 = vmatpush1.msra.mxu0 0.0
    %1575 = vmatprep.subr.mxu0 0.0
    %1576 = vmatpush1.msra.mxu0 0.0
    %1577 = vmatprep.subr.mxu0 0.0
    %1578 = vmatpush1.msra.mxu0 0.0
    %1579 = vmatprep.subr.mxu0 0.0
    %1580 = vmatpush1.msra.mxu0 0.0
    %1581 = vmatprep.subr.mxu0 0.0
    %1582 = vmatpush1.msra.mxu0 0.0
    %1583 = vmatprep.subr.mxu0 0.0
    %1584 = vmatpush1.msra.mxu0 0.0
    %1585 = vmatprep.subr.mxu0 0.0
    %1586 = vmatpush1.msra.mxu0 0.0
    %1587 = vmatprep.subr.mxu0 0.0
    %1588 = vmatpush1.msra.mxu0 0.0
    %1589 = vmatprep.subr.mxu0 0.0
    %1590 = vmatpush1.msra.mxu0 0.0
    %1591 = vmatprep.mubr.f32.mxu0 0.0
    %1592 = vmatmul.mubr.f32.gmra.mrb[0].mxu0 %v1330
    %v1593 = vpop.f32.mrb[0].mxu0
    %v1594 = vadd.f32 0.0, %v1593
    %v1595 = vpop.f32.mrb[0].mxu0
    %v1596 = vadd.f32 0.0, %v1595
    %1597 = vdwg.mxu0
    %1598 = vmatprep.subr.mxu0 0.0
    %1599 = vmatpush1.msra.mxu0 %v135
    %1600 = vmatprep.subr.mxu0 0.0
    %1601 = vmatpush1.msra.mxu0 %v138
    %1602 = vmatprep.subr.mxu0 0.0
    %1603 = vmatpush1.msra.mxu0 %v141
    %1604 = vmatprep.subr.mxu0 0.0
    %1605 = vmatpush1.msra.mxu0 %v144
    %1606 = vmatprep.subr.mxu0 0.0
    %1607 = vmatpush1.msra.mxu0 %v147
    %1608 = vmatprep.subr.mxu0 0.0
    %1609 = vmatpush1.msra.mxu0 %v150
    %1610 = vmatprep.subr.mxu0 0.0
    %1611 = vmatpush1.msra.mxu0 %v153
    %1612 = vmatprep.subr.mxu0 0.0
    %1613 = vmatpush1.msra.mxu0 %v156
    %1614 = vmatprep.subr.mxu0 0.0
    %1615 = vmatpush1.msra.mxu0 %v159
    %1616 = vmatprep.subr.mxu0 0.0
    %1617 = vmatpush1.msra.mxu0 %v162
    %1618 = vmatprep.subr.mxu0 0.0
    %1619 = vmatpush1.msra.mxu0 %v165
    %1620 = vmatprep.subr.mxu0 0.0
    %1621 = vmatpush1.msra.mxu0 %v168
    %1622 = vmatprep.subr.mxu0 0.0
    %1623 = vmatpush1.msra.mxu0 %v171
    %1624 = vmatprep.subr.mxu0 0.0
    %1625 = vmatpush1.msra.mxu0 %v174
    %1626 = vmatprep.subr.mxu0 0.0
    %1627 = vmatpush1.msra.mxu0 %v177
    %1628 = vmatprep.subr.mxu0 0.0
    %1629 = vmatpush1.msra.mxu0 %v180
    %1630 = vmatprep.subr.mxu0 0.0
    %1631 = vmatpush1.msra.mxu0 0.0
    %1632 = vmatprep.subr.mxu0 0.0
    %1633 = vmatpush1.msra.mxu0 0.0
    %1634 = vmatprep.subr.mxu0 0.0
    %1635 = vmatpush1.msra.mxu0 0.0
    %1636 = vmatprep.subr.mxu0 0.0
    %1637 = vmatpush1.msra.mxu0 0.0
    %1638 = vmatprep.subr.mxu0 0.0
    %1639 = vmatpush1.msra.mxu0 0.0
    %1640 = vmatprep.subr.mxu0 0.0
    %1641 = vmatpush1.msra.mxu0 0.0
    %1642 = vmatprep.subr.mxu0 0.0
    %1643 = vmatpush1.msra.mxu0 0.0
    %1644 = vmatprep.subr.mxu0 0.0
    %1645 = vmatpush1.msra.mxu0 0.0
    %1646 = vmatprep.subr.mxu0 0.0
    %1647 = vmatpush1.msra.mxu0 0.0
    %1648 = vmatprep.subr.mxu0 0.0
    %1649 = vmatpush1.msra.mxu0 0.0
    %1650 = vmatprep.subr.mxu0 0.0
    %1651 = vmatpush1.msra.mxu0 0.0
    %1652 = vmatprep.subr.mxu0 0.0
    %1653 = vmatpush1.msra.mxu0 0.0
    %1654 = vmatprep.subr.mxu0 0.0
    %1655 = vmatpush1.msra.mxu0 0.0
    %1656 = vmatprep.subr.mxu0 0.0
    %1657 = vmatpush1.msra.mxu0 0.0
    %1658 = vmatprep.subr.mxu0 0.0
    %1659 = vmatpush1.msra.mxu0 0.0
    %1660 = vmatprep.subr.mxu0 0.0
    %1661 = vmatpush1.msra.mxu0 0.0
    %1662 = vmatprep.mubr.f32.mxu0 0.0
    %1663 = vmatmul.mubr.f32.gmra.mrb[0].mxu0 %v1330
    %v1664 = vpop.f32.mrb[0].mxu0
    %v1665 = vadd.f32 0.0, %v1664
    %v1666 = vpop.f32.mrb[0].mxu0
    %1667 = vdwg.mxu0
    %v1668 = vadd.f32 %v1524, %v1594
    %v1669 = vxor.u32 %v1668, 2147483648
    %v1670 = vmul.f32 %v1669, 1.442695
    %v1671 = vpow.pop %v1670
    %v1672 = vadd.f32 %v1671, 1.0
    %v1673 = vrcp.pop %v1672
    %v1674 = vmul.f32 1.0, %v1673
    %v1675 = vadd.f32 %v1525, %v1596
    %v1676 = vxor.u32 %v1675, 2147483648
    %v1677 = vmul.f32 %v1676, 1.442695
    %v1678 = vpow.pop %v1677
    %v1679 = vadd.f32 %v1678, 1.0
    %v1680 = vrcp.pop %v1679
    %v1681 = vmul.f32 1.0, %v1680
    %v1682 = vadd.f32 %v1665, %v194
    %v1683 = vmul.f32 %v1674, %v1682
    %v1684 = vadd.f32 %v1526, %v1683
    %v1685 = vtanh.pop %v1684
    %v1686 = vsub.f32 1.0, %v1681
    %v1687 = vmul.f32 %v1686, %v1685
    %v1688 = vmul.f32 %v1681, %v1330
    %v1689 = vadd.f32 %v1687, %v1688
    %s1690 = sadd.s32 %s199, 4
    %v1691 = vstv %s1690
    %vm1692 = vcmp.lt.s32.totalorder %v1691, %v196
    %v1693 = vsel %vm1692, 1, 0
    %v1694 = vcvt.s32.f32 %v1693
    %1696 = vset.pattern.permute.xlu0 0
    %1697 = vperm.xlu0 %1696, %v1694
    %v1698 = vpop.permute.xlu0 %1697
    %v1700 = vmul.f32 %v1698, %v1689
    %v1701 = vsub.f32 1.0, %v1694
    %1703 = vset.pattern.permute.xlu0 0
    %1704 = vperm.xlu0 %1703, %v1701
    %v1705 = vpop.permute.xlu0 %1704
    %v1707 = vmul.f32 %v1705, %v1330
    %v1708 = vadd.f32 %v1700, %v1707
    %v1709 = vmul.f32 %v1698, %v1708
    %s1710 = scalar_lea.vmem %s75, 32
    %1711 = vst [vmem:[%s1710] sm:$0xff] %v1709
    %s1712 = scalar_lea.vmem %s0, 96
    %v1713 = vld [vmem:[%s1712] sm:$0xff]
    %v1714 = vld [vmem:[%s1712 + $0x8] sm:$0xff]
    %v1715 = vld [vmem:[%s1712 + $0x10] sm:$0xff]
    %1716 = vmatprep.subr.mxu0 %v85
    %1717 = vmatpush1.msra.mxu0 %v84
    %1718 = vmatprep.subr.mxu0 %v88
    %1719 = vmatpush1.msra.mxu0 %v87
    %1720 = vmatprep.subr.mxu0 %v91
    %1721 = vmatpush1.msra.mxu0 %v90
    %1722 = vmatprep.subr.mxu0 %v94
    %1723 = vmatpush1.msra.mxu0 %v93
    %1724 = vmatprep.subr.mxu0 %v97
    %1725 = vmatpush1.msra.mxu0 %v96
    %1726 = vmatprep.subr.mxu0 %v100
    %1727 = vmatpush1.msra.mxu0 %v99
    %1728 = vmatprep.subr.mxu0 %v103
    %1729 = vmatpush1.msra.mxu0 %v102
    %1730 = vmatprep.subr.mxu0 %v106
    %1731 = vmatpush1.msra.mxu0 %v105
    %1732 = vmatprep.subr.mxu0 %v109
    %1733 = vmatpush1.msra.mxu0 %v108
    %1734 = vmatprep.subr.mxu0 %v112
    %1735 = vmatpush1.msra.mxu0 %v111
    %1736 = vmatprep.subr.mxu0 %v115
    %1737 = vmatpush1.msra.mxu0 %v114
    %1738 = vmatprep.subr.mxu0 %v118
    %1739 = vmatpush1.msra.mxu0 %v117
    %1740 = vmatprep.subr.mxu0 %v121
    %1741 = vmatpush1.msra.mxu0 %v120
    %1742 = vmatprep.subr.mxu0 %v124
    %1743 = vmatpush1.msra.mxu0 %v123
    %1744 = vmatprep.subr.mxu0 %v127
    %1745 = vmatpush1.msra.mxu0 %v126
    %1746 = vmatprep.subr.mxu0 %v130
    %1747 = vmatpush1.msra.mxu0 %v129
    %1748 = vmatprep.subr.mxu0 0.0
    %1749 = vmatpush1.msra.mxu0 0.0
    %1750 = vmatprep.subr.mxu0 0.0
    %1751 = vmatpush1.msra.mxu0 0.0
    %1752 = vmatprep.subr.mxu0 0.0
    %1753 = vmatpush1.msra.mxu0 0.0
    %1754 = vmatprep.subr.mxu0 0.0
    %1755 = vmatpush1.msra.mxu0 0.0
    %1756 = vmatprep.subr.mxu0 0.0
    %1757 = vmatpush1.msra.mxu0 0.0
    %1758 = vmatprep.subr.mxu0 0.0
    %1759 = vmatpush1.msra.mxu0 0.0
    %1760 = vmatprep.subr.mxu0 0.0
    %1761 = vmatpush1.msra.mxu0 0.0
    %1762 = vmatprep.subr.mxu0 0.0
    %1763 = vmatpush1.msra.mxu0 0.0
    %1764 = vmatprep.subr.mxu0 0.0
    %1765 = vmatpush1.msra.mxu0 0.0
    %1766 = vmatprep.subr.mxu0 0.0
    %1767 = vmatpush1.msra.mxu0 0.0
    %1768 = vmatprep.subr.mxu0 0.0
    %1769 = vmatpush1.msra.mxu0 0.0
    %1770 = vmatprep.subr.mxu0 0.0
    %1771 = vmatpush1.msra.mxu0 0.0
    %1772 = vmatprep.subr.mxu0 0.0
    %1773 = vmatpush1.msra.mxu0 0.0
    %1774 = vmatprep.subr.mxu0 0.0
    %1775 = vmatpush1.msra.mxu0 0.0
    %1776 = vmatprep.subr.mxu0 0.0
    %1777 = vmatpush1.msra.mxu0 0.0
    %1778 = vmatprep.subr.mxu0 0.0
    %1779 = vmatpush1.msra.mxu0 0.0
    %1780 = vmatprep.mubr.f32.mxu0 0.0
    %1781 = vmatmul.mubr.f32.gmra.mrb[0].mxu0 %v1519
    %v1782 = vpop.f32.mrb[0].mxu0
    %v1783 = vadd.f32 0.0, %v1782
    %v1784 = vpop.f32.mrb[0].mxu0
    %v1785 = vadd.f32 0.0, %v1784
    %1786 = vdwg.mxu0
    %1787 = vmatprep.subr.mxu0 0.0
    %1788 = vmatpush1.msra.mxu0 %v86
    %1789 = vmatprep.subr.mxu0 0.0
    %1790 = vmatpush1.msra.mxu0 %v89
    %1791 = vmatprep.subr.mxu0 0.0
    %1792 = vmatpush1.msra.mxu0 %v92
    %1793 = vmatprep.subr.mxu0 0.0
    %1794 = vmatpush1.msra.mxu0 %v95
    %1795 = vmatprep.subr.mxu0 0.0
    %1796 = vmatpush1.msra.mxu0 %v98
    %1797 = vmatprep.subr.mxu0 0.0
    %1798 = vmatpush1.msra.mxu0 %v101
    %1799 = vmatprep.subr.mxu0 0.0
    %1800 = vmatpush1.msra.mxu0 %v104
    %1801 = vmatprep.subr.mxu0 0.0
    %1802 = vmatpush1.msra.mxu0 %v107
    %1803 = vmatprep.subr.mxu0 0.0
    %1804 = vmatpush1.msra.mxu0 %v110
    %1805 = vmatprep.subr.mxu0 0.0
    %1806 = vmatpush1.msra.mxu0 %v113
    %1807 = vmatprep.subr.mxu0 0.0
    %1808 = vmatpush1.msra.mxu0 %v116
    %1809 = vmatprep.subr.mxu0 0.0
    %1810 = vmatpush1.msra.mxu0 %v119
    %1811 = vmatprep.subr.mxu0 0.0
    %1812 = vmatpush1.msra.mxu0 %v122
    %1813 = vmatprep.subr.mxu0 0.0
    %1814 = vmatpush1.msra.mxu0 %v125
    %1815 = vmatprep.subr.mxu0 0.0
    %1816 = vmatpush1.msra.mxu0 %v128
    %1817 = vmatprep.subr.mxu0 0.0
    %1818 = vmatpush1.msra.mxu0 %v131
    %1819 = vmatprep.subr.mxu0 0.0
    %1820 = vmatpush1.msra.mxu0 0.0
    %1821 = vmatprep.subr.mxu0 0.0
    %1822 = vmatpush1.msra.mxu0 0.0
    %1823 = vmatprep.subr.mxu0 0.0
    %1824 = vmatpush1.msra.mxu0 0.0
    %1825 = vmatprep.subr.mxu0 0.0
    %1826 = vmatpush1.msra.mxu0 0.0
    %1827 = vmatprep.subr.mxu0 0.0
    %1828 = vmatpush1.msra.mxu0 0.0
    %1829 = vmatprep.subr.mxu0 0.0
    %1830 = vmatpush1.msra.mxu0 0.0
    %1831 = vmatprep.subr.mxu0 0.0
    %1832 = vmatpush1.msra.mxu0 0.0
    %1833 = vmatprep.subr.mxu0 0.0
    %1834 = vmatpush1.msra.mxu0 0.0
    %1835 = vmatprep.subr.mxu0 0.0
    %1836 = vmatpush1.msra.mxu0 0.0
    %1837 = vmatprep.subr.mxu0 0.0
    %1838 = vmatpush1.msra.mxu0 0.0
    %1839 = vmatprep.subr.mxu0 0.0
    %1840 = vmatpush1.msra.mxu0 0.0
    %1841 = vmatprep.subr.mxu0 0.0
    %1842 = vmatpush1.msra.mxu0 0.0
    %1843 = vmatprep.subr.mxu0 0.0
    %1844 = vmatpush1.msra.mxu0 0.0
    %1845 = vmatprep.subr.mxu0 0.0
    %1846 = vmatpush1.msra.mxu0 0.0
    %1847 = vmatprep.subr.mxu0 0.0
    %1848 = vmatpush1.msra.mxu0 0.0
    %1849 = vmatprep.subr.mxu0 0.0
    %1850 = vmatpush1.msra.mxu0 0.0
    %1851 = vmatprep.mubr.f32.mxu0 0.0
    %1852 = vmatmul.mubr.f32.gmra.mrb[0].mxu0 %v1519
    %v1853 = vpop.f32.mrb[0].mxu0
    %v1854 = vadd.f32 0.0, %v1853
    %v1855 = vpop.f32.mrb[0].mxu0
    %1856 = vdwg.mxu0
    %v1857 = vadd.f32 %v1713, %v1783
    %v1858 = vxor.u32 %v1857, 2147483648
    %v1859 = vmul.f32 %v1858, 1.442695
    %v1860 = vpow.pop %v1859
    %v1861 = vadd.f32 %v1860, 1.0
    %v1862 = vrcp.pop %v1861
    %v1863 = vmul.f32 1.0, %v1862
    %v1864 = vadd.f32 %v1714, %v1785
    %v1865 = vxor.u32 %v1864, 2147483648
    %v1866 = vmul.f32 %v1865, 1.442695
    %v1867 = vpow.pop %v1866
    %v1868 = vadd.f32 %v1867, 1.0
    %v1869 = vrcp.pop %v1868
    %v1870 = vmul.f32 1.0, %v1869
    %v1871 = vadd.f32 %v1854, %v186
    %v1872 = vmul.f32 %v1863, %v1871
    %v1873 = vadd.f32 %v1715, %v1872
    %v1874 = vtanh.pop %v1873
    %v1875 = vsub.f32 1.0, %v1870
    %v1876 = vmul.f32 %v1875, %v1874
    %v1877 = vmul.f32 %v1870, %v1519
    %v1878 = vadd.f32 %v1876, %v1877
    %s1879 = sadd.s32 %s197, 4
    %v1880 = vstv %s1879
    %vm1881 = vcmp.lt.s32.totalorder %v1880, %v196
    %v1882 = vsel %vm1881, 1, 0
    %v1883 = vcvt.s32.f32 %v1882
    %1885 = vset.pattern.permute.xlu0 0
    %1886 = vperm.xlu0 %1885, %v1883
    %v1887 = vpop.permute.xlu0 %1886
    %v1889 = vmul.f32 %v1887, %v1878
    %v1890 = vsub.f32 1.0, %v1883
    %1892 = vset.pattern.permute.xlu0 0
    %1893 = vperm.xlu0 %1892, %v1890
    %v1894 = vpop.permute.xlu0 %1893
    %v1896 = vmul.f32 %v1894, %v1519
    %v1897 = vadd.f32 %v1889, %v1896
    %v1898 = vmul.f32 %v1887, %v1897
    %s1899 = scalar_lea.vmem %s5, 32
    %1900 = vst [vmem:[%s1899] sm:$0xff] %v1898
    %s1901 = scalar_lea.vmem %s67, 72
    %v1902 = vld [vmem:[%s1901] sm:$0xff]
    %v1903 = vld [vmem:[%s1901 + $0x8] sm:$0xff]
    %v1904 = vld [vmem:[%s1901 + $0x10] sm:$0xff]
    %1905 = vmatprep.subr.mxu0 %v134
    %1906 = vmatpush1.msra.mxu0 %v133
    %1907 = vmatprep.subr.mxu0 %v137
    %1908 = vmatpush1.msra.mxu0 %v136
    %1909 = vmatprep.subr.mxu0 %v140
    %1910 = vmatpush1.msra.mxu0 %v139
    %1911 = vmatprep.subr.mxu0 %v143
    %1912 = vmatpush1.msra.mxu0 %v142
    %1913 = vmatprep.subr.mxu0 %v146
    %1914 = vmatpush1.msra.mxu0 %v145
    %1915 = vmatprep.subr.mxu0 %v149
    %1916 = vmatpush1.msra.mxu0 %v148
    %1917 = vmatprep.subr.mxu0 %v152
    %1918 = vmatpush1.msra.mxu0 %v151
    %1919 = vmatprep.subr.mxu0 %v155
    %1920 = vmatpush1.msra.mxu0 %v154
    %1921 = vmatprep.subr.mxu0 %v158
    %1922 = vmatpush1.msra.mxu0 %v157
    %1923 = vmatprep.subr.mxu0 %v161
    %1924 = vmatpush1.msra.mxu0 %v160
    %1925 = vmatprep.subr.mxu0 %v164
    %1926 = vmatpush1.msra.mxu0 %v163
    %1927 = vmatprep.subr.mxu0 %v167
    %1928 = vmatpush1.msra.mxu0 %v166
    %1929 = vmatprep.subr.mxu0 %v170
    %1930 = vmatpush1.msra.mxu0 %v169
    %1931 = vmatprep.subr.mxu0 %v173
    %1932 = vmatpush1.msra.mxu0 %v172
    %1933 = vmatprep.subr.mxu0 %v176
    %1934 = vmatpush1.msra.mxu0 %v175
    %1935 = vmatprep.subr.mxu0 %v179
    %1936 = vmatpush1.msra.mxu0 %v178
    %1937 = vmatprep.subr.mxu0 0.0
    %1938 = vmatpush1.msra.mxu0 0.0
    %1939 = vmatprep.subr.mxu0 0.0
    %1940 = vmatpush1.msra.mxu0 0.0
    %1941 = vmatprep.subr.mxu0 0.0
    %1942 = vmatpush1.msra.mxu0 0.0
    %1943 = vmatprep.subr.mxu0 0.0
    %1944 = vmatpush1.msra.mxu0 0.0
    %1945 = vmatprep.subr.mxu0 0.0
    %1946 = vmatpush1.msra.mxu0 0.0
    %1947 = vmatprep.subr.mxu0 0.0
    %1948 = vmatpush1.msra.mxu0 0.0
    %1949 = vmatprep.subr.mxu0 0.0
    %1950 = vmatpush1.msra.mxu0 0.0
    %1951 = vmatprep.subr.mxu0 0.0
    %1952 = vmatpush1.msra.mxu0 0.0
    %1953 = vmatprep.subr.mxu0 0.0
    %1954 = vmatpush1.msra.mxu0 0.0
    %1955 = vmatprep.subr.mxu0 0.0
    %1956 = vmatpush1.msra.mxu0 0.0
    %1957 = vmatprep.subr.mxu0 0.0
    %1958 = vmatpush1.msra.mxu0 0.0
    %1959 = vmatprep.subr.mxu0 0.0
    %1960 = vmatpush1.msra.mxu0 0.0
    %1961 = vmatprep.subr.mxu0 0.0
    %1962 = vmatpush1.msra.mxu0 0.0
    %1963 = vmatprep.subr.mxu0 0.0
    %1964 = vmatpush1.msra.mxu0 0.0
    %1965 = vmatprep.subr.mxu0 0.0
    %1966 = vmatpush1.msra.mxu0 0.0
    %1967 = vmatprep.subr.mxu0 0.0
    %1968 = vmatpush1.msra.mxu0 0.0
    %1969 = vmatprep.mubr.f32.mxu0 0.0
    %1970 = vmatmul.mubr.f32.gmra.mrb[0].mxu0 %v1708
    %v1971 = vpop.f32.mrb[0].mxu0
    %v1972 = vadd.f32 0.0, %v1971
    %v1973 = vpop.f32.mrb[0].mxu0
    %v1974 = vadd.f32 0.0, %v1973
    %1975 = vdwg.mxu0
    %1976 = vmatprep.subr.mxu0 0.0
    %1977 = vmatpush1.msra.mxu0 %v135
    %1978 = vmatprep.subr.mxu0 0.0
    %1979 = vmatpush1.msra.mxu0 %v138
    %1980 = vmatprep.subr.mxu0 0.0
    %1981 = vmatpush1.msra.mxu0 %v141
    %1982 = vmatprep.subr.mxu0 0.0
    %1983 = vmatpush1.msra.mxu0 %v144
    %1984 = vmatprep.subr.mxu0 0.0
    %1985 = vmatpush1.msra.mxu0 %v147
    %1986 = vmatprep.subr.mxu0 0.0
    %1987 = vmatpush1.msra.mxu0 %v150
    %1988 = vmatprep.subr.mxu0 0.0
    %1989 = vmatpush1.msra.mxu0 %v153
    %1990 = vmatprep.subr.mxu0 0.0
    %1991 = vmatpush1.msra.mxu0 %v156
    %1992 = vmatprep.subr.mxu0 0.0
    %1993 = vmatpush1.msra.mxu0 %v159
    %1994 = vmatprep.subr.mxu0 0.0
    %1995 = vmatpush1.msra.mxu0 %v162
    %1996 = vmatprep.subr.mxu0 0.0
    %1997 = vmatpush1.msra.mxu0 %v165
    %1998 = vmatprep.subr.mxu0 0.0
    %1999 = vmatpush1.msra.mxu0 %v168
    %2000 = vmatprep.subr.mxu0 0.0
    %2001 = vmatpush1.msra.mxu0 %v171
    %2002 = vmatprep.subr.mxu0 0.0
    %2003 = vmatpush1.msra.mxu0 %v174
    %2004 = vmatprep.subr.mxu0 0.0
    %2005 = vmatpush1.msra.mxu0 %v177
    %2006 = vmatprep.subr.mxu0 0.0
    %2007 = vmatpush1.msra.mxu0 %v180
    %2008 = vmatprep.subr.mxu0 0.0
    %2009 = vmatpush1.msra.mxu0 0.0
    %2010 = vmatprep.subr.mxu0 0.0
    %2011 = vmatpush1.msra.mxu0 0.0
    %2012 = vmatprep.subr.mxu0 0.0
    %2013 = vmatpush1.msra.mxu0 0.0
    %2014 = vmatprep.subr.mxu0 0.0
    %2015 = vmatpush1.msra.mxu0 0.0
    %2016 = vmatprep.subr.mxu0 0.0
    %2017 = vmatpush1.msra.mxu0 0.0
    %2018 = vmatprep.subr.mxu0 0.0
    %2019 = vmatpush1.msra.mxu0 0.0
    %2020 = vmatprep.subr.mxu0 0.0
    %2021 = vmatpush1.msra.mxu0 0.0
    %2022 = vmatprep.subr.mxu0 0.0
    %2023 = vmatpush1.msra.mxu0 0.0
    %2024 = vmatprep.subr.mxu0 0.0
    %2025 = vmatpush1.msra.mxu0 0.0
    %2026 = vmatprep.subr.mxu0 0.0
    %2027 = vmatpush1.msra.mxu0 0.0
    %2028 = vmatprep.subr.mxu0 0.0
    %2029 = vmatpush1.msra.mxu0 0.0
    %2030 = vmatprep.subr.mxu0 0.0
    %2031 = vmatpush1.msra.mxu0 0.0
    %2032 = vmatprep.subr.mxu0 0.0
    %2033 = vmatpush1.msra.mxu0 0.0
    %2034 = vmatprep.subr.mxu0 0.0
    %2035 = vmatpush1.msra.mxu0 0.0
    %2036 = vmatprep.subr.mxu0 0.0
    %2037 = vmatpush1.msra.mxu0 0.0
    %2038 = vmatprep.subr.mxu0 0.0
    %2039 = vmatpush1.msra.mxu0 0.0
    %2040 = vmatprep.mubr.f32.mxu0 0.0
    %2041 = vmatmul.mubr.f32.gmra.mrb[0].mxu0 %v1708
    %v2042 = vpop.f32.mrb[0].mxu0
    %v2043 = vadd.f32 0.0, %v2042
    %v2044 = vpop.f32.mrb[0].mxu0
    %2045 = vdwg.mxu0
    %v2046 = vadd.f32 %v1902, %v1972
    %v2047 = vxor.u32 %v2046, 2147483648
    %v2048 = vmul.f32 %v2047, 1.442695
    %v2049 = vpow.pop %v2048
    %v2050 = vadd.f32 %v2049, 1.0
    %v2051 = vrcp.pop %v2050
    %v2052 = vmul.f32 1.0, %v2051
    %v2053 = vadd.f32 %v1903, %v1974
    %v2054 = vxor.u32 %v2053, 2147483648
    %v2055 = vmul.f32 %v2054, 1.442695
    %v2056 = vpow.pop %v2055
    %v2057 = vadd.f32 %v2056, 1.0
    %v2058 = vrcp.pop %v2057
    %v2059 = vmul.f32 1.0, %v2058
    %v2060 = vadd.f32 %v2043, %v194
    %v2061 = vmul.f32 %v2052, %v2060
    %v2062 = vadd.f32 %v1904, %v2061
    %v2063 = vtanh.pop %v2062
    %v2064 = vsub.f32 1.0, %v2059
    %v2065 = vmul.f32 %v2064, %v2063
    %v2066 = vmul.f32 %v2059, %v1708
    %v2067 = vadd.f32 %v2065, %v2066
    %s2068 = sadd.s32 %s199, 3
    %v2069 = vstv %s2068
    %vm2070 = vcmp.lt.s32.totalorder %v2069, %v196
    %v2071 = vsel %vm2070, 1, 0
    %v2072 = vcvt.s32.f32 %v2071
    %2074 = vset.pattern.permute.xlu0 0
    %2075 = vperm.xlu0 %2074, %v2072
    %v2076 = vpop.permute.xlu0 %2075
    %v2078 = vmul.f32 %v2076, %v2067
    %v2079 = vsub.f32 1.0, %v2072
    %2081 = vset.pattern.permute.xlu0 0
    %2082 = vperm.xlu0 %2081, %v2079
    %v2083 = vpop.permute.xlu0 %2082
    %v2085 = vmul.f32 %v2083, %v1708
    %v2086 = vadd.f32 %v2078, %v2085
    %v2087 = vmul.f32 %v2076, %v2086
    %s2088 = scalar_lea.vmem %s75, 24
    %2089 = vst [vmem:[%s2088] sm:$0xff] %v2087
    %s2090 = scalar_lea.vmem %s0, 120
    %v2091 = vld [vmem:[%s2090] sm:$0xff]
    %v2092 = vld [vmem:[%s2090 + $0x8] sm:$0xff]
    %v2093 = vld [vmem:[%s2090 + $0x10] sm:$0xff]
    %2094 = vmatprep.subr.mxu0 %v85
    %2095 = vmatpush1.msra.mxu0 %v84
    %2096 = vmatprep.subr.mxu0 %v88
    %2097 = vmatpush1.msra.mxu0 %v87
    %2098 = vmatprep.subr.mxu0 %v91
    %2099 = vmatpush1.msra.mxu0 %v90
    %2100 = vmatprep.subr.mxu0 %v94
    %2101 = vmatpush1.msra.mxu0 %v93
    %2102 = vmatprep.subr.mxu0 %v97
    %2103 = vmatpush1.msra.mxu0 %v96
    %2104 = vmatprep.subr.mxu0 %v100
    %2105 = vmatpush1.msra.mxu0 %v99
    %2106 = vmatprep.subr.mxu0 %v103
    %2107 = vmatpush1.msra.mxu0 %v102
    %2108 = vmatprep.subr.mxu0 %v106
    %2109 = vmatpush1.msra.mxu0 %v105
    %2110 = vmatprep.subr.mxu0 %v109
    %2111 = vmatpush1.msra.mxu0 %v108
    %2112 = vmatprep.subr.mxu0 %v112
    %2113 = vmatpush1.msra.mxu0 %v111
    %2114 = vmatprep.subr.mxu0 %v115
    %2115 = vmatpush1.msra.mxu0 %v114
    %2116 = vmatprep.subr.mxu0 %v118
    %2117 = vmatpush1.msra.mxu0 %v117
    %2118 = vmatprep.subr.mxu0 %v121
    %2119 = vmatpush1.msra.mxu0 %v120
    %2120 = vmatprep.subr.mxu0 %v124
    %2121 = vmatpush1.msra.mxu0 %v123
    %2122 = vmatprep.subr.mxu0 %v127
    %2123 = vmatpush1.msra.mxu0 %v126
    %2124 = vmatprep.subr.mxu0 %v130
    %2125 = vmatpush1.msra.mxu0 %v129
    %2126 = vmatprep.subr.mxu0 0.0
    %2127 = vmatpush1.msra.mxu0 0.0
    %2128 = vmatprep.subr.mxu0 0.0
    %2129 = vmatpush1.msra.mxu0 0.0
    %2130 = vmatprep.subr.mxu0 0.0
    %2131 = vmatpush1.msra.mxu0 0.0
    %2132 = vmatprep.subr.mxu0 0.0
    %2133 = vmatpush1.msra.mxu0 0.0
    %2134 = vmatprep.subr.mxu0 0.0
    %2135 = vmatpush1.msra.mxu0 0.0
    %2136 = vmatprep.subr.mxu0 0.0
    %2137 = vmatpush1.msra.mxu0 0.0
    %2138 = vmatprep.subr.mxu0 0.0
    %2139 = vmatpush1.msra.mxu0 0.0
    %2140 = vmatprep.subr.mxu0 0.0
    %2141 = vmatpush1.msra.mxu0 0.0
    %2142 = vmatprep.subr.mxu0 0.0
    %2143 = vmatpush1.msra.mxu0 0.0
    %2144 = vmatprep.subr.mxu0 0.0
    %2145 = vmatpush1.msra.mxu0 0.0
    %2146 = vmatprep.subr.mxu0 0.0
    %2147 = vmatpush1.msra.mxu0 0.0
    %2148 = vmatprep.subr.mxu0 0.0
    %2149 = vmatpush1.msra.mxu0 0.0
    %2150 = vmatprep.subr.mxu0 0.0
    %2151 = vmatpush1.msra.mxu0 0.0
    %2152 = vmatprep.subr.mxu0 0.0
    %2153 = vmatpush1.msra.mxu0 0.0
    %2154 = vmatprep.subr.mxu0 0.0
    %2155 = vmatpush1.msra.mxu0 0.0
    %2156 = vmatprep.subr.mxu0 0.0
    %2157 = vmatpush1.msra.mxu0 0.0
    %2158 = vmatprep.mubr.f32.mxu0 0.0
    %2159 = vmatmul.mubr.f32.gmra.mrb[0].mxu0 %v1897
    %v2160 = vpop.f32.mrb[0].mxu0
    %v2161 = vadd.f32 0.0, %v2160
    %v2162 = vpop.f32.mrb[0].mxu0
    %v2163 = vadd.f32 0.0, %v2162
    %2164 = vdwg.mxu0
    %2165 = vmatprep.subr.mxu0 0.0
    %2166 = vmatpush1.msra.mxu0 %v86
    %2167 = vmatprep.subr.mxu0 0.0
    %2168 = vmatpush1.msra.mxu0 %v89
    %2169 = vmatprep.subr.mxu0 0.0
    %2170 = vmatpush1.msra.mxu0 %v92
    %2171 = vmatprep.subr.mxu0 0.0
    %2172 = vmatpush1.msra.mxu0 %v95
    %2173 = vmatprep.subr.mxu0 0.0
    %2174 = vmatpush1.msra.mxu0 %v98
    %2175 = vmatprep.subr.mxu0 0.0
    %2176 = vmatpush1.msra.mxu0 %v101
    %2177 = vmatprep.subr.mxu0 0.0
    %2178 = vmatpush1.msra.mxu0 %v104
    %2179 = vmatprep.subr.mxu0 0.0
    %2180 = vmatpush1.msra.mxu0 %v107
    %2181 = vmatprep.subr.mxu0 0.0
    %2182 = vmatpush1.msra.mxu0 %v110
    %2183 = vmatprep.subr.mxu0 0.0
    %2184 = vmatpush1.msra.mxu0 %v113
    %2185 = vmatprep.subr.mxu0 0.0
    %2186 = vmatpush1.msra.mxu0 %v116
    %2187 = vmatprep.subr.mxu0 0.0
    %2188 = vmatpush1.msra.mxu0 %v119
    %2189 = vmatprep.subr.mxu0 0.0
    %2190 = vmatpush1.msra.mxu0 %v122
    %2191 = vmatprep.subr.mxu0 0.0
    %2192 = vmatpush1.msra.mxu0 %v125
    %2193 = vmatprep.subr.mxu0 0.0
    %2194 = vmatpush1.msra.mxu0 %v128
    %2195 = vmatprep.subr.mxu0 0.0
    %2196 = vmatpush1.msra.mxu0 %v131
    %2197 = vmatprep.subr.mxu0 0.0
    %2198 = vmatpush1.msra.mxu0 0.0
    %2199 = vmatprep.subr.mxu0 0.0
    %2200 = vmatpush1.msra.mxu0 0.0
    %2201 = vmatprep.subr.mxu0 0.0
    %2202 = vmatpush1.msra.mxu0 0.0
    %2203 = vmatprep.subr.mxu0 0.0
    %2204 = vmatpush1.msra.mxu0 0.0
    %2205 = vmatprep.subr.mxu0 0.0
    %2206 = vmatpush1.msra.mxu0 0.0
    %2207 = vmatprep.subr.mxu0 0.0
    %2208 = vmatpush1.msra.mxu0 0.0
    %2209 = vmatprep.subr.mxu0 0.0
    %2210 = vmatpush1.msra.mxu0 0.0
    %2211 = vmatprep.subr.mxu0 0.0
    %2212 = vmatpush1.msra.mxu0 0.0
    %2213 = vmatprep.subr.mxu0 0.0
    %2214 = vmatpush1.msra.mxu0 0.0
    %2215 = vmatprep.subr.mxu0 0.0
    %2216 = vmatpush1.msra.mxu0 0.0
    %2217 = vmatprep.subr.mxu0 0.0
    %2218 = vmatpush1.msra.mxu0 0.0
    %2219 = vmatprep.subr.mxu0 0.0
    %2220 = vmatpush1.msra.mxu0 0.0
    %2221 = vmatprep.subr.mxu0 0.0
    %2222 = vmatpush1.msra.mxu0 0.0
    %2223 = vmatprep.subr.mxu0 0.0
    %2224 = vmatpush1.msra.mxu0 0.0
    %2225 = vmatprep.subr.mxu0 0.0
    %2226 = vmatpush1.msra.mxu0 0.0
    %2227 = vmatprep.subr.mxu0 0.0
    %2228 = vmatpush1.msra.mxu0 0.0
    %2229 = vmatprep.mubr.f32.mxu0 0.0
    %2230 = vmatmul.mubr.f32.gmra.mrb[0].mxu0 %v1897
    %v2231 = vpop.f32.mrb[0].mxu0
    %v2232 = vadd.f32 0.0, %v2231
    %v2233 = vpop.f32.mrb[0].mxu0
    %2234 = vdwg.mxu0
    %v2235 = vadd.f32 %v2091, %v2161
    %v2236 = vxor.u32 %v2235, 2147483648
    %v2237 = vmul.f32 %v2236, 1.442695
    %v2238 = vpow.pop %v2237
    %v2239 = vadd.f32 %v2238, 1.0
    %v2240 = vrcp.pop %v2239
    %v2241 = vmul.f32 1.0, %v2240
    %v2242 = vadd.f32 %v2092, %v2163
    %v2243 = vxor.u32 %v2242, 2147483648
    %v2244 = vmul.f32 %v2243, 1.442695
    %v2245 = vpow.pop %v2244
    %v2246 = vadd.f32 %v2245, 1.0
    %v2247 = vrcp.pop %v2246
    %v2248 = vmul.f32 1.0, %v2247
    %v2249 = vadd.f32 %v2232, %v186
    %v2250 = vmul.f32 %v2241, %v2249
    %v2251 = vadd.f32 %v2093, %v2250
    %v2252 = vtanh.pop %v2251
    %v2253 = vsub.f32 1.0, %v2248
    %v2254 = vmul.f32 %v2253, %v2252
    %v2255 = vmul.f32 %v2248, %v1897
    %v2256 = vadd.f32 %v2254, %v2255
    %s2257 = sadd.s32 %s197, 5
    %v2258 = vstv %s2257
    %vm2259 = vcmp.lt.s32.totalorder %v2258, %v196
    %v2260 = vsel %vm2259, 1, 0
    %v2261 = vcvt.s32.f32 %v2260
    %2263 = vset.pattern.permute.xlu0 0
    %2264 = vperm.xlu0 %2263, %v2261
    %v2265 = vpop.permute.xlu0 %2264
    %v2267 = vmul.f32 %v2265, %v2256
    %v2268 = vsub.f32 1.0, %v2261
    %2270 = vset.pattern.permute.xlu0 0
    %2271 = vperm.xlu0 %2270, %v2268
    %v2272 = vpop.permute.xlu0 %2271
    %v2274 = vmul.f32 %v2272, %v1897
    %v2275 = vadd.f32 %v2267, %v2274
    %v2276 = vmul.f32 %v2265, %v2275
    %s2277 = scalar_lea.vmem %s5, 40
    %2278 = vst [vmem:[%s2277] sm:$0xff] %v2276
    %s2279 = scalar_lea.vmem %s67, 48
    %v2280 = vld [vmem:[%s2279] sm:$0xff]
    %v2281 = vld [vmem:[%s2279 + $0x8] sm:$0xff]
    %v2282 = vld [vmem:[%s2279 + $0x10] sm:$0xff]
    %2283 = vmatprep.subr.mxu0 %v134
    %2284 = vmatpush1.msra.mxu0 %v133
    %2285 = vmatprep.subr.mxu0 %v137
    %2286 = vmatpush1.msra.mxu0 %v136
    %2287 = vmatprep.subr.mxu0 %v140
    %2288 = vmatpush1.msra.mxu0 %v139
    %2289 = vmatprep.subr.mxu0 %v143
    %2290 = vmatpush1.msra.mxu0 %v142
    %2291 = vmatprep.subr.mxu0 %v146
    %2292 = vmatpush1.msra.mxu0 %v145
    %2293 = vmatprep.subr.mxu0 %v149
    %2294 = vmatpush1.msra.mxu0 %v148
    %2295 = vmatprep.subr.mxu0 %v152
    %2296 = vmatpush1.msra.mxu0 %v151
    %2297 = vmatprep.subr.mxu0 %v155
    %2298 = vmatpush1.msra.mxu0 %v154
    %2299 = vmatprep.subr.mxu0 %v158
    %2300 = vmatpush1.msra.mxu0 %v157
    %2301 = vmatprep.subr.mxu0 %v161
    %2302 = vmatpush1.msra.mxu0 %v160
    %2303 = vmatprep.subr.mxu0 %v164
    %2304 = vmatpush1.msra.mxu0 %v163
    %2305 = vmatprep.subr.mxu0 %v167
    %2306 = vmatpush1.msra.mxu0 %v166
    %2307 = vmatprep.subr.mxu0 %v170
    %2308 = vmatpush1.msra.mxu0 %v169
    %2309 = vmatprep.subr.mxu0 %v173
    %2310 = vmatpush1.msra.mxu0 %v172
    %2311 = vmatprep.subr.mxu0 %v176
    %2312 = vmatpush1.msra.mxu0 %v175
    %2313 = vmatprep.subr.mxu0 %v179
    %2314 = vmatpush1.msra.mxu0 %v178
    %2315 = vmatprep.subr.mxu0 0.0
    %2316 = vmatpush1.msra.mxu0 0.0
    %2317 = vmatprep.subr.mxu0 0.0
    %2318 = vmatpush1.msra.mxu0 0.0
    %2319 = vmatprep.subr.mxu0 0.0
    %2320 = vmatpush1.msra.mxu0 0.0
    %2321 = vmatprep.subr.mxu0 0.0
    %2322 = vmatpush1.msra.mxu0 0.0
    %2323 = vmatprep.subr.mxu0 0.0
    %2324 = vmatpush1.msra.mxu0 0.0
    %2325 = vmatprep.subr.mxu0 0.0
    %2326 = vmatpush1.msra.mxu0 0.0
    %2327 = vmatprep.subr.mxu0 0.0
    %2328 = vmatpush1.msra.mxu0 0.0
    %2329 = vmatprep.subr.mxu0 0.0
    %2330 = vmatpush1.msra.mxu0 0.0
    %2331 = vmatprep.subr.mxu0 0.0
    %2332 = vmatpush1.msra.mxu0 0.0
    %2333 = vmatprep.subr.mxu0 0.0
    %2334 = vmatpush1.msra.mxu0 0.0
    %2335 = vmatprep.subr.mxu0 0.0
    %2336 = vmatpush1.msra.mxu0 0.0
    %2337 = vmatprep.subr.mxu0 0.0
    %2338 = vmatpush1.msra.mxu0 0.0
    %2339 = vmatprep.subr.mxu0 0.0
    %2340 = vmatpush1.msra.mxu0 0.0
    %2341 = vmatprep.subr.mxu0 0.0
    %2342 = vmatpush1.msra.mxu0 0.0
    %2343 = vmatprep.subr.mxu0 0.0
    %2344 = vmatpush1.msra.mxu0 0.0
    %2345 = vmatprep.subr.mxu0 0.0
    %2346 = vmatpush1.msra.mxu0 0.0
    %2347 = vmatprep.mubr.f32.mxu0 0.0
    %2348 = vmatmul.mubr.f32.gmra.mrb[0].mxu0 %v2086
    %v2349 = vpop.f32.mrb[0].mxu0
    %v2350 = vadd.f32 0.0, %v2349
    %v2351 = vpop.f32.mrb[0].mxu0
    %v2352 = vadd.f32 0.0, %v2351
    %2353 = vdwg.mxu0
    %2354 = vmatprep.subr.mxu0 0.0
    %2355 = vmatpush1.msra.mxu0 %v135
    %2356 = vmatprep.subr.mxu0 0.0
    %2357 = vmatpush1.msra.mxu0 %v138
    %2358 = vmatprep.subr.mxu0 0.0
    %2359 = vmatpush1.msra.mxu0 %v141
    %2360 = vmatprep.subr.mxu0 0.0
    %2361 = vmatpush1.msra.mxu0 %v144
    %2362 = vmatprep.subr.mxu0 0.0
    %2363 = vmatpush1.msra.mxu0 %v147
    %2364 = vmatprep.subr.mxu0 0.0
    %2365 = vmatpush1.msra.mxu0 %v150
    %2366 = vmatprep.subr.mxu0 0.0
    %2367 = vmatpush1.msra.mxu0 %v153
    %2368 = vmatprep.subr.mxu0 0.0
    %2369 = vmatpush1.msra.mxu0 %v156
    %2370 = vmatprep.subr.mxu0 0.0
    %2371 = vmatpush1.msra.mxu0 %v159
    %2372 = vmatprep.subr.mxu0 0.0
    %2373 = vmatpush1.msra.mxu0 %v162
    %2374 = vmatprep.subr.mxu0 0.0
    %2375 = vmatpush1.msra.mxu0 %v165
    %2376 = vmatprep.subr.mxu0 0.0
    %2377 = vmatpush1.msra.mxu0 %v168
    %2378 = vmatprep.subr.mxu0 0.0
    %2379 = vmatpush1.msra.mxu0 %v171
    %2380 = vmatprep.subr.mxu0 0.0
    %2381 = vmatpush1.msra.mxu0 %v174
    %2382 = vmatprep.subr.mxu0 0.0
    %2383 = vmatpush1.msra.mxu0 %v177
    %2384 = vmatprep.subr.mxu0 0.0
    %2385 = vmatpush1.msra.mxu0 %v180
    %2386 = vmatprep.subr.mxu0 0.0
    %2387 = vmatpush1.msra.mxu0 0.0
    %2388 = vmatprep.subr.mxu0 0.0
    %2389 = vmatpush1.msra.mxu0 0.0
    %2390 = vmatprep.subr.mxu0 0.0
    %2391 = vmatpush1.msra.mxu0 0.0
    %2392 = vmatprep.subr.mxu0 0.0
    %2393 = vmatpush1.msra.mxu0 0.0
    %2394 = vmatprep.subr.mxu0 0.0
    %2395 = vmatpush1.msra.mxu0 0.0
    %2396 = vmatprep.subr.mxu0 0.0
    %2397 = vmatpush1.msra.mxu0 0.0
    %2398 = vmatprep.subr.mxu0 0.0
    %2399 = vmatpush1.msra.mxu0 0.0
    %2400 = vmatprep.subr.mxu0 0.0
    %2401 = vmatpush1.msra.mxu0 0.0
    %2402 = vmatprep.subr.mxu0 0.0
    %2403 = vmatpush1.msra.mxu0 0.0
    %2404 = vmatprep.subr.mxu0 0.0
    %2405 = vmatpush1.msra.mxu0 0.0
    %2406 = vmatprep.subr.mxu0 0.0
    %2407 = vmatpush1.msra.mxu0 0.0
    %2408 = vmatprep.subr.mxu0 0.0
    %2409 = vmatpush1.msra.mxu0 0.0
    %2410 = vmatprep.subr.mxu0 0.0
    %2411 = vmatpush1.msra.mxu0 0.0
    %2412 = vmatprep.subr.mxu0 0.0
    %2413 = vmatpush1.msra.mxu0 0.0
    %2414 = vmatprep.subr.mxu0 0.0
    %2415 = vmatpush1.msra.mxu0 0.0
    %2416 = vmatprep.subr.mxu0 0.0
    %2417 = vmatpush1.msra.mxu0 0.0
    %2418 = vmatprep.mubr.f32.mxu0 0.0
    %2419 = vmatmul.mubr.f32.gmra.mrb[0].mxu0 %v2086
    %v2420 = vpop.f32.mrb[0].mxu0
    %v2421 = vadd.f32 0.0, %v2420
    %v2422 = vpop.f32.mrb[0].mxu0
    %2423 = vdwg.mxu0
    %v2424 = vadd.f32 %v2280, %v2350
    %v2425 = vxor.u32 %v2424, 2147483648
    %v2426 = vmul.f32 %v2425, 1.442695
    %v2427 = vpow.pop %v2426
    %v2428 = vadd.f32 %v2427, 1.0
    %v2429 = vrcp.pop %v2428
    %v2430 = vmul.f32 1.0, %v2429
    %v2431 = vadd.f32 %v2281, %v2352
    %v2432 = vxor.u32 %v2431, 2147483648
    %v2433 = vmul.f32 %v2432, 1.442695
    %v2434 = vpow.pop %v2433
    %v2435 = vadd.f32 %v2434, 1.0
    %v2436 = vrcp.pop %v2435
    %v2437 = vmul.f32 1.0, %v2436
    %v2438 = vadd.f32 %v2421, %v194
    %v2439 = vmul.f32 %v2430, %v2438
    %v2440 = vadd.f32 %v2282, %v2439
    %v2441 = vtanh.pop %v2440
    %v2442 = vsub.f32 1.0, %v2437
    %v2443 = vmul.f32 %v2442, %v2441
    %v2444 = vmul.f32 %v2437, %v2086
    %v2445 = vadd.f32 %v2443, %v2444
    %s2446 = sadd.s32 %s199, 2
    %v2447 = vstv %s2446
    %vm2448 = vcmp.lt.s32.totalorder %v2447, %v196
    %v2449 = vsel %vm2448, 1, 0
    %v2450 = vcvt.s32.f32 %v2449
    %2452 = vset.pattern.permute.xlu0 0
    %2453 = vperm.xlu0 %2452, %v2450
    %v2454 = vpop.permute.xlu0 %2453
    %v2456 = vmul.f32 %v2454, %v2445
    %v2457 = vsub.f32 1.0, %v2450
    %2459 = vset.pattern.permute.xlu0 0
    %2460 = vperm.xlu0 %2459, %v2457
    %v2461 = vpop.permute.xlu0 %2460
    %v2463 = vmul.f32 %v2461, %v2086
    %v2464 = vadd.f32 %v2456, %v2463
    %v2465 = vmul.f32 %v2454, %v2464
    %s2466 = scalar_lea.vmem %s75, 16
    %2467 = vst [vmem:[%s2466] sm:$0xff] %v2465
    %s2468 = scalar_lea.vmem %s0, 144
    %v2469 = vld [vmem:[%s2468] sm:$0xff]
    %v2470 = vld [vmem:[%s2468 + $0x8] sm:$0xff]
    %v2471 = vld [vmem:[%s2468 + $0x10] sm:$0xff]
    %2472 = vmatprep.subr.mxu0 %v85
    %2473 = vmatpush1.msra.mxu0 %v84
    %2474 = vmatprep.subr.mxu0 %v88
    %2475 = vmatpush1.msra.mxu0 %v87
    %2476 = vmatprep.subr.mxu0 %v91
    %2477 = vmatpush1.msra.mxu0 %v90
    %2478 = vmatprep.subr.mxu0 %v94
    %2479 = vmatpush1.msra.mxu0 %v93
    %2480 = vmatprep.subr.mxu0 %v97
    %2481 = vmatpush1.msra.mxu0 %v96
    %2482 = vmatprep.subr.mxu0 %v100
    %2483 = vmatpush1.msra.mxu0 %v99
    %2484 = vmatprep.subr.mxu0 %v103
    %2485 = vmatpush1.msra.mxu0 %v102
    %2486 = vmatprep.subr.mxu0 %v106
    %2487 = vmatpush1.msra.mxu0 %v105
    %2488 = vmatprep.subr.mxu0 %v109
    %2489 = vmatpush1.msra.mxu0 %v108
    %2490 = vmatprep.subr.mxu0 %v112
    %2491 = vmatpush1.msra.mxu0 %v111
    %2492 = vmatprep.subr.mxu0 %v115
    %2493 = vmatpush1.msra.mxu0 %v114
    %2494 = vmatprep.subr.mxu0 %v118
    %2495 = vmatpush1.msra.mxu0 %v117
    %2496 = vmatprep.subr.mxu0 %v121
    %2497 = vmatpush1.msra.mxu0 %v120
    %2498 = vmatprep.subr.mxu0 %v124
    %2499 = vmatpush1.msra.mxu0 %v123
    %2500 = vmatprep.subr.mxu0 %v127
    %2501 = vmatpush1.msra.mxu0 %v126
    %2502 = vmatprep.subr.mxu0 %v130
    %2503 = vmatpush1.msra.mxu0 %v129
    %2504 = vmatprep.subr.mxu0 0.0
    %2505 = vmatpush1.msra.mxu0 0.0
    %2506 = vmatprep.subr.mxu0 0.0
    %2507 = vmatpush1.msra.mxu0 0.0
    %2508 = vmatprep.subr.mxu0 0.0
    %2509 = vmatpush1.msra.mxu0 0.0
    %2510 = vmatprep.subr.mxu0 0.0
    %2511 = vmatpush1.msra.mxu0 0.0
    %2512 = vmatprep.subr.mxu0 0.0
    %2513 = vmatpush1.msra.mxu0 0.0
    %2514 = vmatprep.subr.mxu0 0.0
    %2515 = vmatpush1.msra.mxu0 0.0
    %2516 = vmatprep.subr.mxu0 0.0
    %2517 = vmatpush1.msra.mxu0 0.0
    %2518 = vmatprep.subr.mxu0 0.0
    %2519 = vmatpush1.msra.mxu0 0.0
    %2520 = vmatprep.subr.mxu0 0.0
    %2521 = vmatpush1.msra.mxu0 0.0
    %2522 = vmatprep.subr.mxu0 0.0
    %2523 = vmatpush1.msra.mxu0 0.0
    %2524 = vmatprep.subr.mxu0 0.0
    %2525 = vmatpush1.msra.mxu0 0.0
    %2526 = vmatprep.subr.mxu0 0.0
    %2527 = vmatpush1.msra.mxu0 0.0
    %2528 = vmatprep.subr.mxu0 0.0
    %2529 = vmatpush1.msra.mxu0 0.0
    %2530 = vmatprep.subr.mxu0 0.0
    %2531 = vmatpush1.msra.mxu0 0.0
    %2532 = vmatprep.subr.mxu0 0.0
    %2533 = vmatpush1.msra.mxu0 0.0
    %2534 = vmatprep.subr.mxu0 0.0
    %2535 = vmatpush1.msra.mxu0 0.0
    %2536 = vmatprep.mubr.f32.mxu0 0.0
    %2537 = vmatmul.mubr.f32.gmra.mrb[0].mxu0 %v2275
    %v2538 = vpop.f32.mrb[0].mxu0
    %v2539 = vadd.f32 0.0, %v2538
    %v2540 = vpop.f32.mrb[0].mxu0
    %v2541 = vadd.f32 0.0, %v2540
    %2542 = vdwg.mxu0
    %2543 = vmatprep.subr.mxu0 0.0
    %2544 = vmatpush1.msra.mxu0 %v86
    %2545 = vmatprep.subr.mxu0 0.0
    %2546 = vmatpush1.msra.mxu0 %v89
    %2547 = vmatprep.subr.mxu0 0.0
    %2548 = vmatpush1.msra.mxu0 %v92
    %2549 = vmatprep.subr.mxu0 0.0
    %2550 = vmatpush1.msra.mxu0 %v95
    %2551 = vmatprep.subr.mxu0 0.0
    %2552 = vmatpush1.msra.mxu0 %v98
    %2553 = vmatprep.subr.mxu0 0.0
    %2554 = vmatpush1.msra.mxu0 %v101
    %2555 = vmatprep.subr.mxu0 0.0
    %2556 = vmatpush1.msra.mxu0 %v104
    %2557 = vmatprep.subr.mxu0 0.0
    %2558 = vmatpush1.msra.mxu0 %v107
    %2559 = vmatprep.subr.mxu0 0.0
    %2560 = vmatpush1.msra.mxu0 %v110
    %2561 = vmatprep.subr.mxu0 0.0
    %2562 = vmatpush1.msra.mxu0 %v113
    %2563 = vmatprep.subr.mxu0 0.0
    %2564 = vmatpush1.msra.mxu0 %v116
    %2565 = vmatprep.subr.mxu0 0.0
    %2566 = vmatpush1.msra.mxu0 %v119
    %2567 = vmatprep.subr.mxu0 0.0
    %2568 = vmatpush1.msra.mxu0 %v122
    %2569 = vmatprep.subr.mxu0 0.0
    %2570 = vmatpush1.msra.mxu0 %v125
    %2571 = vmatprep.subr.mxu0 0.0
    %2572 = vmatpush1.msra.mxu0 %v128
    %2573 = vmatprep.subr.mxu0 0.0
    %2574 = vmatpush1.msra.mxu0 %v131
    %2575 = vmatprep.subr.mxu0 0.0
    %2576 = vmatpush1.msra.mxu0 0.0
    %2577 = vmatprep.subr.mxu0 0.0
    %2578 = vmatpush1.msra.mxu0 0.0
    %2579 = vmatprep.subr.mxu0 0.0
    %2580 = vmatpush1.msra.mxu0 0.0
    %2581 = vmatprep.subr.mxu0 0.0
    %2582 = vmatpush1.msra.mxu0 0.0
    %2583 = vmatprep.subr.mxu0 0.0
    %2584 = vmatpush1.msra.mxu0 0.0
    %2585 = vmatprep.subr.mxu0 0.0
    %2586 = vmatpush1.msra.mxu0 0.0
    %2587 = vmatprep.subr.mxu0 0.0
    %2588 = vmatpush1.msra.mxu0 0.0
    %2589 = vmatprep.subr.mxu0 0.0
    %2590 = vmatpush1.msra.mxu0 0.0
    %2591 = vmatprep.subr.mxu0 0.0
    %2592 = vmatpush1.msra.mxu0 0.0
    %2593 = vmatprep.subr.mxu0 0.0
    %2594 = vmatpush1.msra.mxu0 0.0
    %2595 = vmatprep.subr.mxu0 0.0
    %2596 = vmatpush1.msra.mxu0 0.0
    %2597 = vmatprep.subr.mxu0 0.0
    %2598 = vmatpush1.msra.mxu0 0.0
    %2599 = vmatprep.subr.mxu0 0.0
    %2600 = vmatpush1.msra.mxu0 0.0
    %2601 = vmatprep.subr.mxu0 0.0
    %2602 = vmatpush1.msra.mxu0 0.0
    %2603 = vmatprep.subr.mxu0 0.0
    %2604 = vmatpush1.msra.mxu0 0.0
    %2605 = vmatprep.subr.mxu0 0.0
    %2606 = vmatpush1.msra.mxu0 0.0
    %2607 = vmatprep.mubr.f32.mxu0 0.0
    %2608 = vmatmul.mubr.f32.gmra.mrb[0].mxu0 %v2275
    %v2609 = vpop.f32.mrb[0].mxu0
    %v2610 = vadd.f32 0.0, %v2609
    %v2611 = vpop.f32.mrb[0].mxu0
    %2612 = vdwg.mxu0
    %v2613 = vadd.f32 %v2469, %v2539
    %v2614 = vxor.u32 %v2613, 2147483648
    %v2615 = vmul.f32 %v2614, 1.442695
    %v2616 = vpow.pop %v2615
    %v2617 = vadd.f32 %v2616, 1.0
    %v2618 = vrcp.pop %v2617
    %v2619 = vmul.f32 1.0, %v2618
    %v2620 = vadd.f32 %v2470, %v2541
    %v2621 = vxor.u32 %v2620, 2147483648
    %v2622 = vmul.f32 %v2621, 1.442695
    %v2623 = vpow.pop %v2622
    %v2624 = vadd.f32 %v2623, 1.0
    %v2625 = vrcp.pop %v2624
    %v2626 = vmul.f32 1.0, %v2625
    %v2627 = vadd.f32 %v2610, %v186
    %v2628 = vmul.f32 %v2619, %v2627
    %v2629 = vadd.f32 %v2471, %v2628
    %v2630 = vtanh.pop %v2629
    %v2631 = vsub.f32 1.0, %v2626
    %v2632 = vmul.f32 %v2631, %v2630
    %v2633 = vmul.f32 %v2626, %v2275
    %v2634 = vadd.f32 %v2632, %v2633
    %s2635 = sadd.s32 %s197, 6
    %v2636 = vstv %s2635
    %vm2637 = vcmp.lt.s32.totalorder %v2636, %v196
    %v2638 = vsel %vm2637, 1, 0
    %v2639 = vcvt.s32.f32 %v2638
    %2641 = vset.pattern.permute.xlu0 0
    %2642 = vperm.xlu0 %2641, %v2639
    %v2643 = vpop.permute.xlu0 %2642
    %v2645 = vmul.f32 %v2643, %v2634
    %v2646 = vsub.f32 1.0, %v2639
    %2648 = vset.pattern.permute.xlu0 0
    %2649 = vperm.xlu0 %2648, %v2646
    %v2650 = vpop.permute.xlu0 %2649
    %v2652 = vmul.f32 %v2650, %v2275
    %v2653 = vadd.f32 %v2645, %v2652
    %v2654 = vmul.f32 %v2643, %v2653
    %s2655 = scalar_lea.vmem %s5, 48
    %2656 = vst [vmem:[%s2655] sm:$0xff] %v2654
    %s2657 = scalar_lea.vmem %s67, 24
    %v2658 = vld [vmem:[%s2657] sm:$0xff]
    %v2659 = vld [vmem:[%s2657 + $0x8] sm:$0xff]
    %v2660 = vld [vmem:[%s2657 + $0x10] sm:$0xff]
    %2661 = vmatprep.subr.mxu0 %v134
    %2662 = vmatpush1.msra.mxu0 %v133
    %2663 = vmatprep.subr.mxu0 %v137
    %2664 = vmatpush1.msra.mxu0 %v136
    %2665 = vmatprep.subr.mxu0 %v140
    %2666 = vmatpush1.msra.mxu0 %v139
    %2667 = vmatprep.subr.mxu0 %v143
    %2668 = vmatpush1.msra.mxu0 %v142
    %2669 = vmatprep.subr.mxu0 %v146
    %2670 = vmatpush1.msra.mxu0 %v145
    %2671 = vmatprep.subr.mxu0 %v149
    %2672 = vmatpush1.msra.mxu0 %v148
    %2673 = vmatprep.subr.mxu0 %v152
    %2674 = vmatpush1.msra.mxu0 %v151
    %2675 = vmatprep.subr.mxu0 %v155
    %2676 = vmatpush1.msra.mxu0 %v154
    %2677 = vmatprep.subr.mxu0 %v158
    %2678 = vmatpush1.msra.mxu0 %v157
    %2679 = vmatprep.subr.mxu0 %v161
    %2680 = vmatpush1.msra.mxu0 %v160
    %2681 = vmatprep.subr.mxu0 %v164
    %2682 = vmatpush1.msra.mxu0 %v163
    %2683 = vmatprep.subr.mxu0 %v167
    %2684 = vmatpush1.msra.mxu0 %v166
    %2685 = vmatprep.subr.mxu0 %v170
    %2686 = vmatpush1.msra.mxu0 %v169
    %2687 = vmatprep.subr.mxu0 %v173
    %2688 = vmatpush1.msra.mxu0 %v172
    %2689 = vmatprep.subr.mxu0 %v176
    %2690 = vmatpush1.msra.mxu0 %v175
    %2691 = vmatprep.subr.mxu0 %v179
    %2692 = vmatpush1.msra.mxu0 %v178
    %2693 = vmatprep.subr.mxu0 0.0
    %2694 = vmatpush1.msra.mxu0 0.0
    %2695 = vmatprep.subr.mxu0 0.0
    %2696 = vmatpush1.msra.mxu0 0.0
    %2697 = vmatprep.subr.mxu0 0.0
    %2698 = vmatpush1.msra.mxu0 0.0
    %2699 = vmatprep.subr.mxu0 0.0
    %2700 = vmatpush1.msra.mxu0 0.0
    %2701 = vmatprep.subr.mxu0 0.0
    %2702 = vmatpush1.msra.mxu0 0.0
    %2703 = vmatprep.subr.mxu0 0.0
    %2704 = vmatpush1.msra.mxu0 0.0
    %2705 = vmatprep.subr.mxu0 0.0
    %2706 = vmatpush1.msra.mxu0 0.0
    %2707 = vmatprep.subr.mxu0 0.0
    %2708 = vmatpush1.msra.mxu0 0.0
    %2709 = vmatprep.subr.mxu0 0.0
    %2710 = vmatpush1.msra.mxu0 0.0
    %2711 = vmatprep.subr.mxu0 0.0
    %2712 = vmatpush1.msra.mxu0 0.0
    %2713 = vmatprep.subr.mxu0 0.0
    %2714 = vmatpush1.msra.mxu0 0.0
    %2715 = vmatprep.subr.mxu0 0.0
    %2716 = vmatpush1.msra.mxu0 0.0
    %2717 = vmatprep.subr.mxu0 0.0
    %2718 = vmatpush1.msra.mxu0 0.0
    %2719 = vmatprep.subr.mxu0 0.0
    %2720 = vmatpush1.msra.mxu0 0.0
    %2721 = vmatprep.subr.mxu0 0.0
    %2722 = vmatpush1.msra.mxu0 0.0
    %2723 = vmatprep.subr.mxu0 0.0
    %2724 = vmatpush1.msra.mxu0 0.0
    %2725 = vmatprep.mubr.f32.mxu0 0.0
    %2726 = vmatmul.mubr.f32.gmra.mrb[0].mxu0 %v2464
    %v2727 = vpop.f32.mrb[0].mxu0
    %v2728 = vadd.f32 0.0, %v2727
    %v2729 = vpop.f32.mrb[0].mxu0
    %v2730 = vadd.f32 0.0, %v2729
    %2731 = vdwg.mxu0
    %2732 = vmatprep.subr.mxu0 0.0
    %2733 = vmatpush1.msra.mxu0 %v135
    %2734 = vmatprep.subr.mxu0 0.0
    %2735 = vmatpush1.msra.mxu0 %v138
    %2736 = vmatprep.subr.mxu0 0.0
    %2737 = vmatpush1.msra.mxu0 %v141
    %2738 = vmatprep.subr.mxu0 0.0
    %2739 = vmatpush1.msra.mxu0 %v144
    %2740 = vmatprep.subr.mxu0 0.0
    %2741 = vmatpush1.msra.mxu0 %v147
    %2742 = vmatprep.subr.mxu0 0.0
    %2743 = vmatpush1.msra.mxu0 %v150
    %2744 = vmatprep.subr.mxu0 0.0
    %2745 = vmatpush1.msra.mxu0 %v153
    %2746 = vmatprep.subr.mxu0 0.0
    %2747 = vmatpush1.msra.mxu0 %v156
    %2748 = vmatprep.subr.mxu0 0.0
    %2749 = vmatpush1.msra.mxu0 %v159
    %2750 = vmatprep.subr.mxu0 0.0
    %2751 = vmatpush1.msra.mxu0 %v162
    %2752 = vmatprep.subr.mxu0 0.0
    %2753 = vmatpush1.msra.mxu0 %v165
    %2754 = vmatprep.subr.mxu0 0.0
    %2755 = vmatpush1.msra.mxu0 %v168
    %2756 = vmatprep.subr.mxu0 0.0
    %2757 = vmatpush1.msra.mxu0 %v171
    %2758 = vmatprep.subr.mxu0 0.0
    %2759 = vmatpush1.msra.mxu0 %v174
    %2760 = vmatprep.subr.mxu0 0.0
    %2761 = vmatpush1.msra.mxu0 %v177
    %2762 = vmatprep.subr.mxu0 0.0
    %2763 = vmatpush1.msra.mxu0 %v180
    %2764 = vmatprep.subr.mxu0 0.0
    %2765 = vmatpush1.msra.mxu0 0.0
    %2766 = vmatprep.subr.mxu0 0.0
    %2767 = vmatpush1.msra.mxu0 0.0
    %2768 = vmatprep.subr.mxu0 0.0
    %2769 = vmatpush1.msra.mxu0 0.0
    %2770 = vmatprep.subr.mxu0 0.0
    %2771 = vmatpush1.msra.mxu0 0.0
    %2772 = vmatprep.subr.mxu0 0.0
    %2773 = vmatpush1.msra.mxu0 0.0
    %2774 = vmatprep.subr.mxu0 0.0
    %2775 = vmatpush1.msra.mxu0 0.0
    %2776 = vmatprep.subr.mxu0 0.0
    %2777 = vmatpush1.msra.mxu0 0.0
    %2778 = vmatprep.subr.mxu0 0.0
    %2779 = vmatpush1.msra.mxu0 0.0
    %2780 = vmatprep.subr.mxu0 0.0
    %2781 = vmatpush1.msra.mxu0 0.0
    %2782 = vmatprep.subr.mxu0 0.0
    %2783 = vmatpush1.msra.mxu0 0.0
    %2784 = vmatprep.subr.mxu0 0.0
    %2785 = vmatpush1.msra.mxu0 0.0
    %2786 = vmatprep.subr.mxu0 0.0
    %2787 = vmatpush1.msra.mxu0 0.0
    %2788 = vmatprep.subr.mxu0 0.0
    %2789 = vmatpush1.msra.mxu0 0.0
    %2790 = vmatprep.subr.mxu0 0.0
    %2791 = vmatpush1.msra.mxu0 0.0
    %2792 = vmatprep.subr.mxu0 0.0
    %2793 = vmatpush1.msra.mxu0 0.0
    %2794 = vmatprep.subr.mxu0 0.0
    %2795 = vmatpush1.msra.mxu0 0.0
    %2796 = vmatprep.mubr.f32.mxu0 0.0
    %2797 = vmatmul.mubr.f32.gmra.mrb[0].mxu0 %v2464
    %v2798 = vpop.f32.mrb[0].mxu0
    %v2799 = vadd.f32 0.0, %v2798
    %v2800 = vpop.f32.mrb[0].mxu0
    %2801 = vdwg.mxu0
    %v2802 = vadd.f32 %v2658, %v2728
    %v2803 = vxor.u32 %v2802, 2147483648
    %v2804 = vmul.f32 %v2803, 1.442695
    %v2805 = vpow.pop %v2804
    %v2806 = vadd.f32 %v2805, 1.0
    %v2807 = vrcp.pop %v2806
    %v2808 = vmul.f32 1.0, %v2807
    %v2809 = vadd.f32 %v2659, %v2730
    %v2810 = vxor.u32 %v2809, 2147483648
    %v2811 = vmul.f32 %v2810, 1.442695
    %v2812 = vpow.pop %v2811
    %v2813 = vadd.f32 %v2812, 1.0
    %v2814 = vrcp.pop %v2813
    %v2815 = vmul.f32 1.0, %v2814
    %v2816 = vadd.f32 %v2799, %v194
    %v2817 = vmul.f32 %v2808, %v2816
    %v2818 = vadd.f32 %v2660, %v2817
    %v2819 = vtanh.pop %v2818
    %v2820 = vsub.f32 1.0, %v2815
    %v2821 = vmul.f32 %v2820, %v2819
    %v2822 = vmul.f32 %v2815, %v2464
    %v2823 = vadd.f32 %v2821, %v2822
    %s2824 = sadd.s32 %s199, 1
    %v2825 = vstv %s2824
    %vm2826 = vcmp.lt.s32.totalorder %v2825, %v196
    %v2827 = vsel %vm2826, 1, 0
    %v2828 = vcvt.s32.f32 %v2827
    %2830 = vset.pattern.permute.xlu0 0
    %2831 = vperm.xlu0 %2830, %v2828
    %v2832 = vpop.permute.xlu0 %2831
    %v2834 = vmul.f32 %v2832, %v2823
    %v2835 = vsub.f32 1.0, %v2828
    %2837 = vset.pattern.permute.xlu0 0
    %2838 = vperm.xlu0 %2837, %v2835
    %v2839 = vpop.permute.xlu0 %2838
    %v2841 = vmul.f32 %v2839, %v2464
    %v2842 = vadd.f32 %v2834, %v2841
    %v2843 = vmul.f32 %v2832, %v2842
    %s2844 = scalar_lea.vmem %s75, 8
    %2845 = vst [vmem:[%s2844] sm:$0xff] %v2843
    %s2846 = scalar_lea.vmem %s0, 168
    %v2847 = vld [vmem:[%s2846] sm:$0xff]
    %v2848 = vld [vmem:[%s2846 + $0x8] sm:$0xff]
    %v2849 = vld [vmem:[%s2846 + $0x10] sm:$0xff]
    %2850 = vmatprep.subr.mxu0 %v85
    %2851 = vmatpush1.msra.mxu0 %v84
    %2852 = vmatprep.subr.mxu0 %v88
    %2853 = vmatpush1.msra.mxu0 %v87
    %2854 = vmatprep.subr.mxu0 %v91
    %2855 = vmatpush1.msra.mxu0 %v90
    %2856 = vmatprep.subr.mxu0 %v94
    %2857 = vmatpush1.msra.mxu0 %v93
    %2858 = vmatprep.subr.mxu0 %v97
    %2859 = vmatpush1.msra.mxu0 %v96
    %2860 = vmatprep.subr.mxu0 %v100
    %2861 = vmatpush1.msra.mxu0 %v99
    %2862 = vmatprep.subr.mxu0 %v103
    %2863 = vmatpush1.msra.mxu0 %v102
    %2864 = vmatprep.subr.mxu0 %v106
    %2865 = vmatpush1.msra.mxu0 %v105
    %2866 = vmatprep.subr.mxu0 %v109
    %2867 = vmatpush1.msra.mxu0 %v108
    %2868 = vmatprep.subr.mxu0 %v112
    %2869 = vmatpush1.msra.mxu0 %v111
    %2870 = vmatprep.subr.mxu0 %v115
    %2871 = vmatpush1.msra.mxu0 %v114
    %2872 = vmatprep.subr.mxu0 %v118
    %2873 = vmatpush1.msra.mxu0 %v117
    %2874 = vmatprep.subr.mxu0 %v121
    %2875 = vmatpush1.msra.mxu0 %v120
    %2876 = vmatprep.subr.mxu0 %v124
    %2877 = vmatpush1.msra.mxu0 %v123
    %2878 = vmatprep.subr.mxu0 %v127
    %2879 = vmatpush1.msra.mxu0 %v126
    %2880 = vmatprep.subr.mxu0 %v130
    %2881 = vmatpush1.msra.mxu0 %v129
    %2882 = vmatprep.subr.mxu0 0.0
    %2883 = vmatpush1.msra.mxu0 0.0
    %2884 = vmatprep.subr.mxu0 0.0
    %2885 = vmatpush1.msra.mxu0 0.0
    %2886 = vmatprep.subr.mxu0 0.0
    %2887 = vmatpush1.msra.mxu0 0.0
    %2888 = vmatprep.subr.mxu0 0.0
    %2889 = vmatpush1.msra.mxu0 0.0
    %2890 = vmatprep.subr.mxu0 0.0
    %2891 = vmatpush1.msra.mxu0 0.0
    %2892 = vmatprep.subr.mxu0 0.0
    %2893 = vmatpush1.msra.mxu0 0.0
    %2894 = vmatprep.subr.mxu0 0.0
    %2895 = vmatpush1.msra.mxu0 0.0
    %2896 = vmatprep.subr.mxu0 0.0
    %2897 = vmatpush1.msra.mxu0 0.0
    %2898 = vmatprep.subr.mxu0 0.0
    %2899 = vmatpush1.msra.mxu0 0.0
    %2900 = vmatprep.subr.mxu0 0.0
    %2901 = vmatpush1.msra.mxu0 0.0
    %2902 = vmatprep.subr.mxu0 0.0
    %2903 = vmatpush1.msra.mxu0 0.0
    %2904 = vmatprep.subr.mxu0 0.0
    %2905 = vmatpush1.msra.mxu0 0.0
    %2906 = vmatprep.subr.mxu0 0.0
    %2907 = vmatpush1.msra.mxu0 0.0
    %2908 = vmatprep.subr.mxu0 0.0
    %2909 = vmatpush1.msra.mxu0 0.0
    %2910 = vmatprep.subr.mxu0 0.0
    %2911 = vmatpush1.msra.mxu0 0.0
    %2912 = vmatprep.subr.mxu0 0.0
    %2913 = vmatpush1.msra.mxu0 0.0
    %2914 = vmatprep.mubr.f32.mxu0 0.0
    %2915 = vmatmul.mubr.f32.gmra.mrb[0].mxu0 %v2653
    %v2916 = vpop.f32.mrb[0].mxu0
    %v2917 = vadd.f32 0.0, %v2916
    %v2918 = vpop.f32.mrb[0].mxu0
    %v2919 = vadd.f32 0.0, %v2918
    %2920 = vdwg.mxu0
    %2921 = vmatprep.subr.mxu0 0.0
    %2922 = vmatpush1.msra.mxu0 %v86
    %2923 = vmatprep.subr.mxu0 0.0
    %2924 = vmatpush1.msra.mxu0 %v89
    %2925 = vmatprep.subr.mxu0 0.0
    %2926 = vmatpush1.msra.mxu0 %v92
    %2927 = vmatprep.subr.mxu0 0.0
    %2928 = vmatpush1.msra.mxu0 %v95
    %2929 = vmatprep.subr.mxu0 0.0
    %2930 = vmatpush1.msra.mxu0 %v98
    %2931 = vmatprep.subr.mxu0 0.0
    %2932 = vmatpush1.msra.mxu0 %v101
    %2933 = vmatprep.subr.mxu0 0.0
    %2934 = vmatpush1.msra.mxu0 %v104
    %2935 = vmatprep.subr.mxu0 0.0
    %2936 = vmatpush1.msra.mxu0 %v107
    %2937 = vmatprep.subr.mxu0 0.0
    %2938 = vmatpush1.msra.mxu0 %v110
    %2939 = vmatprep.subr.mxu0 0.0
    %2940 = vmatpush1.msra.mxu0 %v113
    %2941 = vmatprep.subr.mxu0 0.0
    %2942 = vmatpush1.msra.mxu0 %v116
    %2943 = vmatprep.subr.mxu0 0.0
    %2944 = vmatpush1.msra.mxu0 %v119
    %2945 = vmatprep.subr.mxu0 0.0
    %2946 = vmatpush1.msra.mxu0 %v122
    %2947 = vmatprep.subr.mxu0 0.0
    %2948 = vmatpush1.msra.mxu0 %v125
    %2949 = vmatprep.subr.mxu0 0.0
    %2950 = vmatpush1.msra.mxu0 %v128
    %2951 = vmatprep.subr.mxu0 0.0
    %2952 = vmatpush1.msra.mxu0 %v131
    %2953 = vmatprep.subr.mxu0 0.0
    %2954 = vmatpush1.msra.mxu0 0.0
    %2955 = vmatprep.subr.mxu0 0.0
    %2956 = vmatpush1.msra.mxu0 0.0
    %2957 = vmatprep.subr.mxu0 0.0
    %2958 = vmatpush1.msra.mxu0 0.0
    %2959 = vmatprep.subr.mxu0 0.0
    %2960 = vmatpush1.msra.mxu0 0.0
    %2961 = vmatprep.subr.mxu0 0.0
    %2962 = vmatpush1.msra.mxu0 0.0
    %2963 = vmatprep.subr.mxu0 0.0
    %2964 = vmatpush1.msra.mxu0 0.0
    %2965 = vmatprep.subr.mxu0 0.0
    %2966 = vmatpush1.msra.mxu0 0.0
    %2967 = vmatprep.subr.mxu0 0.0
    %2968 = vmatpush1.msra.mxu0 0.0
    %2969 = vmatprep.subr.mxu0 0.0
    %2970 = vmatpush1.msra.mxu0 0.0
    %2971 = vmatprep.subr.mxu0 0.0
    %2972 = vmatpush1.msra.mxu0 0.0
    %2973 = vmatprep.subr.mxu0 0.0
    %2974 = vmatpush1.msra.mxu0 0.0
    %2975 = vmatprep.subr.mxu0 0.0
    %2976 = vmatpush1.msra.mxu0 0.0
    %2977 = vmatprep.subr.mxu0 0.0
    %2978 = vmatpush1.msra.mxu0 0.0
    %2979 = vmatprep.subr.mxu0 0.0
    %2980 = vmatpush1.msra.mxu0 0.0
    %2981 = vmatprep.subr.mxu0 0.0
    %2982 = vmatpush1.msra.mxu0 0.0
    %2983 = vmatprep.subr.mxu0 0.0
    %2984 = vmatpush1.msra.mxu0 0.0
    %2985 = vmatprep.mubr.f32.mxu0 0.0
    %2986 = vmatmul.mubr.f32.gmra.mrb[0].mxu0 %v2653
    %v2987 = vpop.f32.mrb[0].mxu0
    %v2988 = vadd.f32 0.0, %v2987
    %v2989 = vpop.f32.mrb[0].mxu0
    %2990 = vdwg.mxu0
    %v2991 = vadd.f32 %v2847, %v2917
    %v2992 = vxor.u32 %v2991, 2147483648
    %v2993 = vmul.f32 %v2992, 1.442695
    %v2994 = vpow.pop %v2993
    %v2995 = vadd.f32 %v2994, 1.0
    %v2996 = vrcp.pop %v2995
    %v2997 = vmul.f32 1.0, %v2996
    %v2998 = vadd.f32 %v2848, %v2919
    %v2999 = vxor.u32 %v2998, 2147483648
    %v3000 = vmul.f32 %v2999, 1.442695
    %v3001 = vpow.pop %v3000
    %v3002 = vadd.f32 %v3001, 1.0
    %v3003 = vrcp.pop %v3002
    %v3004 = vmul.f32 1.0, %v3003
    %v3005 = vadd.f32 %v2988, %v186
    %v3006 = vmul.f32 %v2997, %v3005
    %v3007 = vadd.f32 %v2849, %v3006
    %v3008 = vtanh.pop %v3007
    %v3009 = vsub.f32 1.0, %v3004
    %v3010 = vmul.f32 %v3009, %v3008
    %v3011 = vmul.f32 %v3004, %v2653
    %v3012 = vadd.f32 %v3010, %v3011
    %s3013 = sadd.s32 %s197, 7
    %v3014 = vstv %s3013
    %vm3015 = vcmp.lt.s32.totalorder %v3014, %v196
    %v3016 = vsel %vm3015, 1, 0
    %v3017 = vcvt.s32.f32 %v3016
    %3019 = vset.pattern.permute.xlu0 0
    %3020 = vperm.xlu0 %3019, %v3017
    %v3021 = vpop.permute.xlu0 %3020
    %v3023 = vmul.f32 %v3021, %v3012
    %v3024 = vsub.f32 1.0, %v3017
    %3026 = vset.pattern.permute.xlu0 0
    %3027 = vperm.xlu0 %3026, %v3024
    %v3028 = vpop.permute.xlu0 %3027
    %v3030 = vmul.f32 %v3028, %v2653
    %v3031 = vadd.f32 %v3023, %v3030
    %v3032 = vmul.f32 %v3021, %v3031
    %s3033 = scalar_lea.vmem %s5, 56
    %3034 = vst [vmem:[%s3033] sm:$0xff] %v3032
    %v3035 = vld [vmem:[%s67] sm:$0xff]
    %v3036 = vld [vmem:[%s67 + $0x8] sm:$0xff]
    %v3037 = vld [vmem:[%s67 + $0x10] sm:$0xff]
    %3038 = vmatprep.subr.mxu0 %v134
    %3039 = vmatpush1.msra.mxu0 %v133
    %3040 = vmatprep.subr.mxu0 %v137
    %3041 = vmatpush1.msra.mxu0 %v136
    %3042 = vmatprep.subr.mxu0 %v140
    %3043 = vmatpush1.msra.mxu0 %v139
    %3044 = vmatprep.subr.mxu0 %v143
    %3045 = vmatpush1.msra.mxu0 %v142
    %3046 = vmatprep.subr.mxu0 %v146
    %3047 = vmatpush1.msra.mxu0 %v145
    %3048 = vmatprep.subr.mxu0 %v149
    %3049 = vmatpush1.msra.mxu0 %v148
    %3050 = vmatprep.subr.mxu0 %v152
    %3051 = vmatpush1.msra.mxu0 %v151
    %3052 = vmatprep.subr.mxu0 %v155
    %3053 = vmatpush1.msra.mxu0 %v154
    %3054 = vmatprep.subr.mxu0 %v158
    %3055 = vmatpush1.msra.mxu0 %v157
    %3056 = vmatprep.subr.mxu0 %v161
    %3057 = vmatpush1.msra.mxu0 %v160
    %3058 = vmatprep.subr.mxu0 %v164
    %3059 = vmatpush1.msra.mxu0 %v163
    %3060 = vmatprep.subr.mxu0 %v167
    %3061 = vmatpush1.msra.mxu0 %v166
    %3062 = vmatprep.subr.mxu0 %v170
    %3063 = vmatpush1.msra.mxu0 %v169
    %3064 = vmatprep.subr.mxu0 %v173
    %3065 = vmatpush1.msra.mxu0 %v172
    %3066 = vmatprep.subr.mxu0 %v176
    %3067 = vmatpush1.msra.mxu0 %v175
    %3068 = vmatprep.subr.mxu0 %v179
    %3069 = vmatpush1.msra.mxu0 %v178
    %3070 = vmatprep.subr.mxu0 0.0
    %3071 = vmatpush1.msra.mxu0 0.0
    %3072 = vmatprep.subr.mxu0 0.0
    %3073 = vmatpush1.msra.mxu0 0.0
    %3074 = vmatprep.subr.mxu0 0.0
    %3075 = vmatpush1.msra.mxu0 0.0
    %3076 = vmatprep.subr.mxu0 0.0
    %3077 = vmatpush1.msra.mxu0 0.0
    %3078 = vmatprep.subr.mxu0 0.0
    %3079 = vmatpush1.msra.mxu0 0.0
    %3080 = vmatprep.subr.mxu0 0.0
    %3081 = vmatpush1.msra.mxu0 0.0
    %3082 = vmatprep.subr.mxu0 0.0
    %3083 = vmatpush1.msra.mxu0 0.0
    %3084 = vmatprep.subr.mxu0 0.0
    %3085 = vmatpush1.msra.mxu0 0.0
    %3086 = vmatprep.subr.mxu0 0.0
    %3087 = vmatpush1.msra.mxu0 0.0
    %3088 = vmatprep.subr.mxu0 0.0
    %3089 = vmatpush1.msra.mxu0 0.0
    %3090 = vmatprep.subr.mxu0 0.0
    %3091 = vmatpush1.msra.mxu0 0.0
    %3092 = vmatprep.subr.mxu0 0.0
    %3093 = vmatpush1.msra.mxu0 0.0
    %3094 = vmatprep.subr.mxu0 0.0
    %3095 = vmatpush1.msra.mxu0 0.0
    %3096 = vmatprep.subr.mxu0 0.0
    %3097 = vmatpush1.msra.mxu0 0.0
    %3098 = vmatprep.subr.mxu0 0.0
    %3099 = vmatpush1.msra.mxu0 0.0
    %3100 = vmatprep.subr.mxu0 0.0
    %3101 = vmatpush1.msra.mxu0 0.0
    %3102 = vmatprep.mubr.f32.mxu0 0.0
    %3103 = vmatmul.mubr.f32.gmra.mrb[0].mxu0 %v2842
    %v3104 = vpop.f32.mrb[0].mxu0
    %v3105 = vadd.f32 0.0, %v3104
    %v3106 = vpop.f32.mrb[0].mxu0
    %v3107 = vadd.f32 0.0, %v3106
    %3108 = vdwg.mxu0
    %3109 = vmatprep.subr.mxu0 0.0
    %3110 = vmatpush1.msra.mxu0 %v135
    %3111 = vmatprep.subr.mxu0 0.0
    %3112 = vmatpush1.msra.mxu0 %v138
    %3113 = vmatprep.subr.mxu0 0.0
    %3114 = vmatpush1.msra.mxu0 %v141
    %3115 = vmatprep.subr.mxu0 0.0
    %3116 = vmatpush1.msra.mxu0 %v144
    %3117 = vmatprep.subr.mxu0 0.0
    %3118 = vmatpush1.msra.mxu0 %v147
    %3119 = vmatprep.subr.mxu0 0.0
    %3120 = vmatpush1.msra.mxu0 %v150
    %3121 = vmatprep.subr.mxu0 0.0
    %3122 = vmatpush1.msra.mxu0 %v153
    %3123 = vmatprep.subr.mxu0 0.0
    %3124 = vmatpush1.msra.mxu0 %v156
    %3125 = vmatprep.subr.mxu0 0.0
    %3126 = vmatpush1.msra.mxu0 %v159
    %3127 = vmatprep.subr.mxu0 0.0
    %3128 = vmatpush1.msra.mxu0 %v162
    %3129 = vmatprep.subr.mxu0 0.0
    %3130 = vmatpush1.msra.mxu0 %v165
    %3131 = vmatprep.subr.mxu0 0.0
    %3132 = vmatpush1.msra.mxu0 %v168
    %3133 = vmatprep.subr.mxu0 0.0
    %3134 = vmatpush1.msra.mxu0 %v171
    %3135 = vmatprep.subr.mxu0 0.0
    %3136 = vmatpush1.msra.mxu0 %v174
    %3137 = vmatprep.subr.mxu0 0.0
    %3138 = vmatpush1.msra.mxu0 %v177
    %3139 = vmatprep.subr.mxu0 0.0
    %3140 = vmatpush1.msra.mxu0 %v180
    %3141 = vmatprep.subr.mxu0 0.0
    %3142 = vmatpush1.msra.mxu0 0.0
    %3143 = vmatprep.subr.mxu0 0.0
    %3144 = vmatpush1.msra.mxu0 0.0
    %3145 = vmatprep.subr.mxu0 0.0
    %3146 = vmatpush1.msra.mxu0 0.0
    %3147 = vmatprep.subr.mxu0 0.0
    %3148 = vmatpush1.msra.mxu0 0.0
    %3149 = vmatprep.subr.mxu0 0.0
    %3150 = vmatpush1.msra.mxu0 0.0
    %3151 = vmatprep.subr.mxu0 0.0
    %3152 = vmatpush1.msra.mxu0 0.0
    %3153 = vmatprep.subr.mxu0 0.0
    %3154 = vmatpush1.msra.mxu0 0.0
    %3155 = vmatprep.subr.mxu0 0.0
    %3156 = vmatpush1.msra.mxu0 0.0
    %3157 = vmatprep.subr.mxu0 0.0
    %3158 = vmatpush1.msra.mxu0 0.0
    %3159 = vmatprep.subr.mxu0 0.0
    %3160 = vmatpush1.msra.mxu0 0.0
    %3161 = vmatprep.subr.mxu0 0.0
    %3162 = vmatpush1.msra.mxu0 0.0
    %3163 = vmatprep.subr.mxu0 0.0
    %3164 = vmatpush1.msra.mxu0 0.0
    %3165 = vmatprep.subr.mxu0 0.0
    %3166 = vmatpush1.msra.mxu0 0.0
    %3167 = vmatprep.subr.mxu0 0.0
    %3168 = vmatpush1.msra.mxu0 0.0
    %3169 = vmatprep.subr.mxu0 0.0
    %3170 = vmatpush1.msra.mxu0 0.0
    %3171 = vmatprep.subr.mxu0 0.0
    %3172 = vmatpush1.msra.mxu0 0.0
    %3173 = vmatprep.mubr.f32.mxu0 0.0
    %3174 = vmatmul.mubr.f32.gmra.mrb[0].mxu0 %v2842
    %v3175 = vpop.f32.mrb[0].mxu0
    %v3176 = vadd.f32 0.0, %v3175
    %v3177 = vpop.f32.mrb[0].mxu0
    %3178 = vdwg.mxu0
    %v3179 = vadd.f32 %v3035, %v3105
    %v3180 = vxor.u32 %v3179, 2147483648
    %v3181 = vmul.f32 %v3180, 1.442695
    %v3182 = vpow.pop %v3181
    %v3183 = vadd.f32 %v3182, 1.0
    %v3184 = vrcp.pop %v3183
    %v3185 = vmul.f32 1.0, %v3184
    %v3186 = vadd.f32 %v3036, %v3107
    %v3187 = vxor.u32 %v3186, 2147483648
    %v3188 = vmul.f32 %v3187, 1.442695
    %v3189 = vpow.pop %v3188
    %v3190 = vadd.f32 %v3189, 1.0
    %v3191 = vrcp.pop %v3190
    %v3192 = vmul.f32 1.0, %v3191
    %v3193 = vadd.f32 %v3176, %v194
    %v3194 = vmul.f32 %v3185, %v3193
    %v3195 = vadd.f32 %v3037, %v3194
    %v3196 = vtanh.pop %v3195
    %v3197 = vsub.f32 1.0, %v3192
    %v3198 = vmul.f32 %v3197, %v3196
    %v3199 = vmul.f32 %v3192, %v2842
    %v3200 = vadd.f32 %v3198, %v3199
    %v3201 = vstv %s199
    %vm3202 = vcmp.lt.s32.totalorder %v3201, %v196
    %v3203 = vsel %vm3202, 1, 0
    %v3204 = vcvt.s32.f32 %v3203
    %3206 = vset.pattern.permute.xlu0 0
    %3207 = vperm.xlu0 %3206, %v3204
    %v3208 = vpop.permute.xlu0 %3207
    %v3210 = vmul.f32 %v3208, %v3200
    %v3211 = vsub.f32 1.0, %v3204
    %3213 = vset.pattern.permute.xlu0 0
    %3214 = vperm.xlu0 %3213, %v3211
    %v3215 = vpop.permute.xlu0 %3214
    %v3217 = vmul.f32 %v3215, %v2842
    %v3218 = vadd.f32 %v3210, %v3217
    %v3219 = vmul.f32 %v3208, %v3218
    %3220 = vst [vmem:[%s75] sm:$0xff] %v3219
    %3221 = vst [vmem:[#allocation2] sm:$0xff] %v3031
    %3222 = vst [vmem:[%s201] sm:$0xff] %v3218
    %s3223 = ssub.s32 0, 0
    %s3224 = smul.u32 8, %s3223
    %p3225 = scmp.lt.s32.totalorder %s3224, 7
    %s3226 = scalar_select %p3225, %s3224, 7
    %s3227 = smul.addr %s3226, 8
    %s3228 = scalar_lea.vmem %s6, %s3227
    // Predicated region
    $region30: #{_lambda_.2} parent=1 // pred_check
      _
    $region31: #{_lambda_.2} parent=1 // pred_check_branch
      %3230 = sbr.rel (0) target = $region33
    $region32: #{_lambda_.2} parent=1 // pred_region
      _
    $region33: #{_lambda_.2} parent=1 // pred_fallthru
      _
    // Predicated region
    $region34: #{_lambda_.2} parent=1 // pred_check
      _
    $region35: #{_lambda_.2} parent=1 // pred_check_branch
      %3232 = sbr.rel (0) target = $region37
    $region36: #{_lambda_.2} parent=1 // pred_region
      %s3233 = ssub.s32 0, 0
      %s3234 = smul.u32 8, %s3233
    $region37: #{_lambda_.2} parent=1 // pred_fallthru
      _
    // Predicated region
    $region38: #{_lambda_.2} parent=1 // pred_check
      _
    $region39: #{_lambda_.2} parent=1 // pred_check_branch
      %3236 = sbr.rel (0) target = $region41
    $region40: #{_lambda_.2} parent=1 // pred_region
      _
    $region41: #{_lambda_.2} parent=1 // pred_fallthru
      _
    // Predicated region
    $region42: #{_lambda_.2} parent=1 // pred_check
      _
    $region43: #{_lambda_.2} parent=1 // pred_check_branch
      %3238 = sbr.rel (0) target = $region45
    $region44: #{_lambda_.2} parent=1 // pred_region
      %s3239 = ssub.s32 0, 0
      %s3240 = smul.u32 8, %s3239
      %p3241 = scmp.lt.s32.totalorder %s3240, 7
      %s3242 = scalar_select %p3241, %s3240, 7
      %s3243 = smul.addr %s3242, 8
      %s3244 = scalar_lea.vmem %s6, %s3243
    $region45: #{_lambda_.2} parent=1 // pred_fallthru
      _
    %3245 = vsyncpa [#allocation4], 1

// kernel: _lambda_.3
$region0: #{_lambda_.3}
  #allocation0 [shape = 'u32[]', space=smem, size = 0x4, offset = 0x4, fixed_abs, tag = 'smem constant byte address 0x4 - core index']
  #allocation1 [shape = 'u32[144,128]{1,0:T(1,128)}', space=vmem, size = 0x12000, scoped, tag = 'internal scratch']
  #allocation2 [shape = 'f32[2,8,128]{2,1,0:T(8,128)}', space=vmem, size = 0x2000, scoped, tag = 'scratch operand']
  %s0 = inlined_call_operand.vmem [shape: f32[2,8,8,384], index: 0, kind: input, shape index: {}, may-alias: {0,1}]
  %s1 = inlined_call_operand.vmem [shape: f32[2,8,8,384], index: 1, kind: input, shape index: {}, may-alias: {0,1}]
  %s2 = inlined_call_operand.vmem [shape: f32[2,128,384], index: 2, kind: input, shape index: {}]
  %s3 = inlined_call_operand.vmem [shape: f32[2,1,128], index: 3, kind: input, shape index: {}]
  %s4 = inlined_call_operand.vmem [shape: s32[8,1], index: 4, kind: input, shape index: {}]
  %s5 = inlined_call_operand.vmem [shape: f32[8,8,128], index: 5, kind: output, shape index: {0}]
  %s6 = inlined_call_operand.vmem [shape: f32[8,8,128], index: 6, kind: output, shape index: {1}]
  %7 = xla_tuple %s5, %s6
  %s8 = sld [smem:[#allocation0]]
  $region42: #{_lambda_.3} parent=0
    _
  %s10 = ssub.s32 1, %s8
  %s11 = scalar_select 0, %s10, %s8
  // Predicated region
  $region2: #{_lambda_.3} parent=0 // pred_check
    _
  $region3: #{_lambda_.3} parent=0 // pred_check_branch
    %13 = sbr.rel (0) target = $region5
  $region4: #{_lambda_.3} parent=0 // pred_region
    _
  $region5: #{_lambda_.3} parent=0 // pred_fallthru
    _
  // Predicated region
  $region6: #{_lambda_.3} parent=0 // pred_check
    _
  $region7: #{_lambda_.3} parent=0 // pred_check_branch
    %15 = sbr.rel (0) target = $region9
  $region8: #{_lambda_.3} parent=0 // pred_region
    %s16 = ssub.s32 0, 0
    %s17 = smul.u32 8, %s16
    %p18 = scmp.lt.s32.totalorder %s17, 7
    %s19 = scalar_select %p18, %s17, 7
    %s20 = smul.addr %s19, 3
    %s21 = sadd.s32 %s20, 24
    %s22 = smul.addr %s21, 8
    %s23 = scalar_lea.vmem %s1, %s22
    %s24 = ssub.s32 0, 0
    %s25 = smul.u32 8, %s24
  $region9: #{_lambda_.3} parent=0 // pred_fallthru
    _
  // Predicated region
  $region10: #{_lambda_.3} parent=0 // pred_check
    _
  $region11: #{_lambda_.3} parent=0 // pred_check_branch
    %27 = sbr.rel (0) target = $region13
  $region12: #{_lambda_.3} parent=0 // pred_region
    _
  $region13: #{_lambda_.3} parent=0 // pred_fallthru
    _
  // Predicated region
  $region14: #{_lambda_.3} parent=0 // pred_check
    _
  $region15: #{_lambda_.3} parent=0 // pred_check_branch
    %29 = sbr.rel (0) target = $region17
  $region16: #{_lambda_.3} parent=0 // pred_region
    _
  $region17: #{_lambda_.3} parent=0 // pred_fallthru
    _
  // Predicated region
  $region18: #{_lambda_.3} parent=0 // pred_check
    _
  $region19: #{_lambda_.3} parent=0 // pred_check_branch
    %31 = sbr.rel (0) target = $region21
  $region20: #{_lambda_.3} parent=0 // pred_region
    _
  $region21: #{_lambda_.3} parent=0 // pred_fallthru
    _
  %s32 = ssub.s32 0, 0
  %s33 = smul.u32 8, %s32
  %p34 = scmp.lt.s32.totalorder %s33, 7
  %s35 = scalar_select %p34, %s33, 7
  %s36 = smul.addr %s35, 3
  %s37 = sadd.s32 %s36, 24
  %s38 = smul.addr %s37, 8
  %s39 = scalar_lea.vmem %s1, %s38
  %s40 = ssub.s32 0, 0
  %s41 = smul.u32 8, %s40
  %p42 = scmp.lt.s32.totalorder %s41, 7
  %s43 = scalar_select %p42, %s41, 7
  %s44 = smul.addr %s43, 8
  %s45 = scalar_lea.vmem %s6, %s44
  %s46 = ssub.s32 0, 0
  %s47 = smul.u32 8, %s46
  %p48 = scmp.lt.s32.totalorder %s47, 7
  %s49 = scalar_select %p48, %s47, 7
  %s50 = smul.addr %s49, 3
  %s51 = sadd.s32 %s50, 24
  %s52 = smul.addr %s51, 8
  %s53 = scalar_lea.vmem %s1, %s52
  %s54 = ssub.s32 0, 0
  %s55 = smul.u32 8, %s54
  %s56 = ssub.s32 0, 0
  %s57 = smul.u32 8, %s56
  %p58 = scmp.lt.s32.totalorder %s57, 7
  %s59 = scalar_select %p58, %s57, 7
  %s60 = smul.addr %s59, 8
  %s61 = scalar_lea.vmem %s6, %s60
  %s62 = ssub.s32 0, 0
  %s63 = smul.u32 8, %s62
  %p64 = scmp.eq.s32.totalorder 0, 0
  // Predicated region
  $region22: #{_lambda_.3} parent=0 // pred_check
    %p65 = pneg %p64
  $region23: #{_lambda_.3} parent=0 // pred_check_branch
    %67 = sbr.rel (%p65) target = $region25
  $region24: #{_lambda_.3} parent=0 // pred_region
    %68 = vst [vmem:[#allocation2] sm:$0xff] 0.0
    %69 = vst [vmem:[#allocation2 + $0x8] sm:$0xff] 0.0
  $region25: #{_lambda_.3} parent=0 // pred_fallthru
    _
  %v70 = vld [vmem:[%s2] sm:$0xff]
  %v71 = vld [vmem:[%s2 + $0x8] sm:$0xff]
  %v72 = vld [vmem:[%s2 + $0x10] sm:$0xff]
  %v73 = vld [vmem:[%s2 + $0x18] sm:$0xff]
  %v74 = vld [vmem:[%s2 + $0x20] sm:$0xff]
  %v75 = vld [vmem:[%s2 + $0x28] sm:$0xff]
  %v76 = vld [vmem:[%s2 + $0x30] sm:$0xff]
  %v77 = vld [vmem:[%s2 + $0x38] sm:$0xff]
  %v78 = vld [vmem:[%s2 + $0x40] sm:$0xff]
  %v79 = vld [vmem:[%s2 + $0x48] sm:$0xff]
  %v80 = vld [vmem:[%s2 + $0x50] sm:$0xff]
  %v81 = vld [vmem:[%s2 + $0x58] sm:$0xff]
  %v82 = vld [vmem:[%s2 + $0x60] sm:$0xff]
  %v83 = vld [vmem:[%s2 + $0x68] sm:$0xff]
  %v84 = vld [vmem:[%s2 + $0x70] sm:$0xff]
  %v85 = vld [vmem:[%s2 + $0x78] sm:$0xff]
  %v86 = vld [vmem:[%s2 + $0x80] sm:$0xff]
  %v87 = vld [vmem:[%s2 + $0x88] sm:$0xff]
  %v88 = vld [vmem:[%s2 + $0x90] sm:$0xff]
  %v89 = vld [vmem:[%s2 + $0x98] sm:$0xff]
  %v90 = vld [vmem:[%s2 + $0xa0] sm:$0xff]
  %v91 = vld [vmem:[%s2 + $0xa8] sm:$0xff]
  %v92 = vld [vmem:[%s2 + $0xb0] sm:$0xff]
  %v93 = vld [vmem:[%s2 + $0xb8] sm:$0xff]
  %v94 = vld [vmem:[%s2 + $0xc0] sm:$0xff]
  %v95 = vld [vmem:[%s2 + $0xc8] sm:$0xff]
  %v96 = vld [vmem:[%s2 + $0xd0] sm:$0xff]
  %v97 = vld [vmem:[%s2 + $0xd8] sm:$0xff]
  %v98 = vld [vmem:[%s2 + $0xe0] sm:$0xff]
  %v99 = vld [vmem:[%s2 + $0xe8] sm:$0xff]
  %v100 = vld [vmem:[%s2 + $0xf0] sm:$0xff]
  %v101 = vld [vmem:[%s2 + $0xf8] sm:$0xff]
  %v102 = vld [vmem:[%s2 + $0x100] sm:$0xff]
  %v103 = vld [vmem:[%s2 + $0x108] sm:$0xff]
  %v104 = vld [vmem:[%s2 + $0x110] sm:$0xff]
  %v105 = vld [vmem:[%s2 + $0x118] sm:$0xff]
  %v106 = vld [vmem:[%s2 + $0x120] sm:$0xff]
  %v107 = vld [vmem:[%s2 + $0x128] sm:$0xff]
  %v108 = vld [vmem:[%s2 + $0x130] sm:$0xff]
  %v109 = vld [vmem:[%s2 + $0x138] sm:$0xff]
  %v110 = vld [vmem:[%s2 + $0x140] sm:$0xff]
  %v111 = vld [vmem:[%s2 + $0x148] sm:$0xff]
  %v112 = vld [vmem:[%s2 + $0x150] sm:$0xff]
  %v113 = vld [vmem:[%s2 + $0x158] sm:$0xff]
  %v114 = vld [vmem:[%s2 + $0x160] sm:$0xff]
  %v115 = vld [vmem:[%s2 + $0x168] sm:$0xff]
  %v116 = vld [vmem:[%s2 + $0x170] sm:$0xff]
  %v117 = vld [vmem:[%s2 + $0x178] sm:$0xff]
  %s118 = scalar_lea.vmem %s2, 384
  %v119 = vld [vmem:[%s118] sm:$0xff]
  %v120 = vld [vmem:[%s118 + $0x8] sm:$0xff]
  %v121 = vld [vmem:[%s118 + $0x10] sm:$0xff]
  %v122 = vld [vmem:[%s118 + $0x18] sm:$0xff]
  %v123 = vld [vmem:[%s118 + $0x20] sm:$0xff]
  %v124 = vld [vmem:[%s118 + $0x28] sm:$0xff]
  %v125 = vld [vmem:[%s118 + $0x30] sm:$0xff]
  %v126 = vld [vmem:[%s118 + $0x38] sm:$0xff]
  %v127 = vld [vmem:[%s118 + $0x40] sm:$0xff]
  %v128 = vld [vmem:[%s118 + $0x48] sm:$0xff]
  %v129 = vld [vmem:[%s118 + $0x50] sm:$0xff]
  %v130 = vld [vmem:[%s118 + $0x58] sm:$0xff]
  %v131 = vld [vmem:[%s118 + $0x60] sm:$0xff]
  %v132 = vld [vmem:[%s118 + $0x68] sm:$0xff]
  %v133 = vld [vmem:[%s118 + $0x70] sm:$0xff]
  %v134 = vld [vmem:[%s118 + $0x78] sm:$0xff]
  %v135 = vld [vmem:[%s118 + $0x80] sm:$0xff]
  %v136 = vld [vmem:[%s118 + $0x88] sm:$0xff]
  %v137 = vld [vmem:[%s118 + $0x90] sm:$0xff]
  %v138 = vld [vmem:[%s118 + $0x98] sm:$0xff]
  %v139 = vld [vmem:[%s118 + $0xa0] sm:$0xff]
  %v140 = vld [vmem:[%s118 + $0xa8] sm:$0xff]
  %v141 = vld [vmem:[%s118 + $0xb0] sm:$0xff]
  %v142 = vld [vmem:[%s118 + $0xb8] sm:$0xff]
  %v143 = vld [vmem:[%s118 + $0xc0] sm:$0xff]
  %v144 = vld [vmem:[%s118 + $0xc8] sm:$0xff]
  %v145 = vld [vmem:[%s118 + $0xd0] sm:$0xff]
  %v146 = vld [vmem:[%s118 + $0xd8] sm:$0xff]
  %v147 = vld [vmem:[%s118 + $0xe0] sm:$0xff]
  %v148 = vld [vmem:[%s118 + $0xe8] sm:$0xff]
  %v149 = vld [vmem:[%s118 + $0xf0] sm:$0xff]
  %v150 = vld [vmem:[%s118 + $0xf8] sm:$0xff]
  %v151 = vld [vmem:[%s118 + $0x100] sm:$0xff]
  %v152 = vld [vmem:[%s118 + $0x108] sm:$0xff]
  %v153 = vld [vmem:[%s118 + $0x110] sm:$0xff]
  %v154 = vld [vmem:[%s118 + $0x118] sm:$0xff]
  %v155 = vld [vmem:[%s118 + $0x120] sm:$0xff]
  %v156 = vld [vmem:[%s118 + $0x128] sm:$0xff]
  %v157 = vld [vmem:[%s118 + $0x130] sm:$0xff]
  %v158 = vld [vmem:[%s118 + $0x138] sm:$0xff]
  %v159 = vld [vmem:[%s118 + $0x140] sm:$0xff]
  %v160 = vld [vmem:[%s118 + $0x148] sm:$0xff]
  %v161 = vld [vmem:[%s118 + $0x150] sm:$0xff]
  %v162 = vld [vmem:[%s118 + $0x158] sm:$0xff]
  %v163 = vld [vmem:[%s118 + $0x160] sm:$0xff]
  %v164 = vld [vmem:[%s118 + $0x168] sm:$0xff]
  %v165 = vld [vmem:[%s118 + $0x170] sm:$0xff]
  %v166 = vld [vmem:[%s118 + $0x178] sm:$0xff]
  %v167 = vld [vmem:[%s3] sm:$0x1]
  %v169 = vlaneseq
  %v170 = vshrl.u32 %v169, 7
  %v171 = vsub.s32 0, %v170
  %v172 = vrot.slane %v167, %v171
  %s174 = scalar_lea.vmem %s3, 1
  %v175 = vld [vmem:[%s174] sm:$0x1]
  %v177 = vlaneseq
  %v178 = vshrl.u32 %v177, 7
  %v179 = vsub.s32 0, %v178
  %v180 = vrot.slane %v175, %v179
  %v182 = vld [vmem:[%s4] sm:$0xff]
  %s183 = smul.u32 0, 8
  %s184 = ssub.s32 0, 0
  %s185 = smul.u32 %s184, 8
  %v186 = vld [vmem:[#allocation2] sm:$0xff]
  %s187 = scalar_lea.vmem [#allocation2], 8
  %v188 = vld [vmem:[%s187] sm:$0xff]
  %v189 = vld [vmem:[%s0] sm:$0xff]
  %v190 = vld [vmem:[%s0 + $0x8] sm:$0xff]
  %v191 = vld [vmem:[%s0 + $0x10] sm:$0xff]
  %192 = vmatprep.subr.mxu0 %v71
  %193 = vmatpush1.msra.mxu0 %v70
  %194 = vmatprep.subr.mxu0 %v74
  %195 = vmatpush1.msra.mxu0 %v73
  %196 = vmatprep.subr.mxu0 %v77
  %197 = vmatpush1.msra.mxu0 %v76
  %198 = vmatprep.subr.mxu0 %v80
  %199 = vmatpush1.msra.mxu0 %v79
  %200 = vmatprep.subr.mxu0 %v83
  %201 = vmatpush1.msra.mxu0 %v82
  %202 = vmatprep.subr.mxu0 %v86
  %203 = vmatpush1.msra.mxu0 %v85
  %204 = vmatprep.subr.mxu0 %v89
  %205 = vmatpush1.msra.mxu0 %v88
  %206 = vmatprep.subr.mxu0 %v92
  %207 = vmatpush1.msra.mxu0 %v91
  %208 = vmatprep.subr.mxu0 %v95
  %209 = vmatpush1.msra.mxu0 %v94
  %210 = vmatprep.subr.mxu0 %v98
  %211 = vmatpush1.msra.mxu0 %v97
  %212 = vmatprep.subr.mxu0 %v101
  %213 = vmatpush1.msra.mxu0 %v100
  %214 = vmatprep.subr.mxu0 %v104
  %215 = vmatpush1.msra.mxu0 %v103
  %216 = vmatprep.subr.mxu0 %v107
  %217 = vmatpush1.msra.mxu0 %v106
  %218 = vmatprep.subr.mxu0 %v110
  %219 = vmatpush1.msra.mxu0 %v109
  %220 = vmatprep.subr.mxu0 %v113
  %221 = vmatpush1.msra.mxu0 %v112
  %222 = vmatprep.subr.mxu0 %v116
  %223 = vmatpush1.msra.mxu0 %v115
  %224 = vmatprep.subr.mxu0 0.0
  %225 = vmatpush1.msra.mxu0 0.0
  %226 = vmatprep.subr.mxu0 0.0
  %227 = vmatpush1.msra.mxu0 0.0
  %228 = vmatprep.subr.mxu0 0.0
  %229 = vmatpush1.msra.mxu0 0.0
  %230 = vmatprep.subr.mxu0 0.0
  %231 = vmatpush1.msra.mxu0 0.0
  %232 = vmatprep.subr.mxu0 0.0
  %233 = vmatpush1.msra.mxu0 0.0
  %234 = vmatprep.subr.mxu0 0.0
  %235 = vmatpush1.msra.mxu0 0.0
  %236 = vmatprep.subr.mxu0 0.0
  %237 = vmatpush1.msra.mxu0 0.0
  %238 = vmatprep.subr.mxu0 0.0
  %239 = vmatpush1.msra.mxu0 0.0
  %240 = vmatprep.subr.mxu0 0.0
  %241 = vmatpush1.msra.mxu0 0.0
  %242 = vmatprep.subr.mxu0 0.0
  %243 = vmatpush1.msra.mxu0 0.0
  %244 = vmatprep.subr.mxu0 0.0
  %245 = vmatpush1.msra.mxu0 0.0
  %246 = vmatprep.subr.mxu0 0.0
  %247 = vmatpush1.msra.mxu0 0.0
  %248 = vmatprep.subr.mxu0 0.0
  %249 = vmatpush1.msra.mxu0 0.0
  %250 = vmatprep.subr.mxu0 0.0
  %251 = vmatpush1.msra.mxu0 0.0
  %252 = vmatprep.subr.mxu0 0.0
  %253 = vmatpush1.msra.mxu0 0.0
  %254 = vmatprep.subr.mxu0 0.0
  %255 = vmatpush1.msra.mxu0 0.0
  %256 = vmatprep.mubr.f32.mxu0 0.0
  %257 = vmatmul.mubr.f32.gmra.mrb[0].mxu0 %v186
  %v258 = vpop.f32.mrb[0].mxu0
  %v259 = vadd.f32 0.0, %v258
  %v260 = vpop.f32.mrb[0].mxu0
  %v261 = vadd.f32 0.0, %v260
  %262 = vdwg.mxu0
  %263 = vmatprep.subr.mxu0 0.0
  %264 = vmatpush1.msra.mxu0 %v72
  %265 = vmatprep.subr.mxu0 0.0
  %266 = vmatpush1.msra.mxu0 %v75
  %267 = vmatprep.subr.mxu0 0.0
  %268 = vmatpush1.msra.mxu0 %v78
  %269 = vmatprep.subr.mxu0 0.0
  %270 = vmatpush1.msra.mxu0 %v81
  %271 = vmatprep.subr.mxu0 0.0
  %272 = vmatpush1.msra.mxu0 %v84
  %273 = vmatprep.subr.mxu0 0.0
  %274 = vmatpush1.msra.mxu0 %v87
  %275 = vmatprep.subr.mxu0 0.0
  %276 = vmatpush1.msra.mxu0 %v90
  %277 = vmatprep.subr.mxu0 0.0
  %278 = vmatpush1.msra.mxu0 %v93
  %279 = vmatprep.subr.mxu0 0.0
  %280 = vmatpush1.msra.mxu0 %v96
  %281 = vmatprep.subr.mxu0 0.0
  %282 = vmatpush1.msra.mxu0 %v99
  %283 = vmatprep.subr.mxu0 0.0
  %284 = vmatpush1.msra.mxu0 %v102
  %285 = vmatprep.subr.mxu0 0.0
  %286 = vmatpush1.msra.mxu0 %v105
  %287 = vmatprep.subr.mxu0 0.0
  %288 = vmatpush1.msra.mxu0 %v108
  %289 = vmatprep.subr.mxu0 0.0
  %290 = vmatpush1.msra.mxu0 %v111
  %291 = vmatprep.subr.mxu0 0.0
  %292 = vmatpush1.msra.mxu0 %v114
  %293 = vmatprep.subr.mxu0 0.0
  %294 = vmatpush1.msra.mxu0 %v117
  %295 = vmatprep.subr.mxu0 0.0
  %296 = vmatpush1.msra.mxu0 0.0
  %297 = vmatprep.subr.mxu0 0.0
  %298 = vmatpush1.msra.mxu0 0.0
  %299 = vmatprep.subr.mxu0 0.0
  %300 = vmatpush1.msra.mxu0 0.0
  %301 = vmatprep.subr.mxu0 0.0
  %302 = vmatpush1.msra.mxu0 0.0
  %303 = vmatprep.subr.mxu0 0.0
  %304 = vmatpush1.msra.mxu0 0.0
  %305 = vmatprep.subr.mxu0 0.0
  %306 = vmatpush1.msra.mxu0 0.0
  %307 = vmatprep.subr.mxu0 0.0
  %308 = vmatpush1.msra.mxu0 0.0
  %309 = vmatprep.subr.mxu0 0.0
  %310 = vmatpush1.msra.mxu0 0.0
  %311 = vmatprep.subr.mxu0 0.0
  %312 = vmatpush1.msra.mxu0 0.0
  %313 = vmatprep.subr.mxu0 0.0
  %314 = vmatpush1.msra.mxu0 0.0
  %315 = vmatprep.subr.mxu0 0.0
  %316 = vmatpush1.msra.mxu0 0.0
  %317 = vmatprep.subr.mxu0 0.0
  %318 = vmatpush1.msra.mxu0 0.0
  %319 = vmatprep.subr.mxu0 0.0
  %320 = vmatpush1.msra.mxu0 0.0
  %321 = vmatprep.subr.mxu0 0.0
  %322 = vmatpush1.msra.mxu0 0.0
  %323 = vmatprep.subr.mxu0 0.0
  %324 = vmatpush1.msra.mxu0 0.0
  %325 = vmatprep.subr.mxu0 0.0
  %326 = vmatpush1.msra.mxu0 0.0
  %327 = vmatprep.mubr.f32.mxu0 0.0
  %328 = vmatmul.mubr.f32.gmra.mrb[0].mxu0 %v186
  %v329 = vpop.f32.mrb[0].mxu0
  %v330 = vadd.f32 0.0, %v329
  %v331 = vpop.f32.mrb[0].mxu0
  %332 = vdwg.mxu0
  %v333 = vadd.f32 %v189, %v259
  %v334 = vxor.u32 %v333, 2147483648
  %v335 = vmul.f32 %v334, 1.442695
  %v336 = vpow.pop %v335
  %v337 = vadd.f32 %v336, 1.0
  %v338 = vrcp.pop %v337
  %v339 = vmul.f32 1.0, %v338
  %v340 = vadd.f32 %v190, %v261
  %v341 = vxor.u32 %v340, 2147483648
  %v342 = vmul.f32 %v341, 1.442695
  %v343 = vpow.pop %v342
  %v344 = vadd.f32 %v343, 1.0
  %v345 = vrcp.pop %v344
  %v346 = vmul.f32 1.0, %v345
  %v347 = vadd.f32 %v330, %v172
  %v348 = vmul.f32 %v339, %v347
  %v349 = vadd.f32 %v191, %v348
  %v350 = vtanh.pop %v349
  %v351 = vsub.f32 1.0, %v346
  %v352 = vmul.f32 %v351, %v350
  %v353 = vmul.f32 %v346, %v186
  %v354 = vadd.f32 %v352, %v353
  %v355 = vstv %s183
  %vm356 = vcmp.lt.s32.totalorder %v355, %v182
  %v357 = vsel %vm356, 1, 0
  %v358 = vcvt.s32.f32 %v357
  %360 = vset.pattern.permute.xlu0 0
  %361 = vperm.xlu0 %360, %v358
  %v362 = vpop.permute.xlu0 %361
  %v364 = vmul.f32 %v362, %v354
  %v365 = vsub.f32 1.0, %v358
  %367 = vset.pattern.permute.xlu0 0
  %368 = vperm.xlu0 %367, %v365
  %v369 = vpop.permute.xlu0 %368
  %v371 = vmul.f32 %v369, %v186
  %v372 = vadd.f32 %v364, %v371
  %v373 = vmul.f32 %v362, %v372
  %374 = vst [vmem:[%s5] sm:$0xff] %v373
  %s375 = scalar_lea.vmem %s53, 168
  %v376 = vld [vmem:[%s375] sm:$0xff]
  %v377 = vld [vmem:[%s375 + $0x8] sm:$0xff]
  %v378 = vld [vmem:[%s375 + $0x10] sm:$0xff]
  %379 = vmatprep.subr.mxu0 %v120
  %380 = vmatpush1.msra.mxu0 %v119
  %381 = vmatprep.subr.mxu0 %v123
  %382 = vmatpush1.msra.mxu0 %v122
  %383 = vmatprep.subr.mxu0 %v126
  %384 = vmatpush1.msra.mxu0 %v125
  %385 = vmatprep.subr.mxu0 %v129
  %386 = vmatpush1.msra.mxu0 %v128
  %387 = vmatprep.subr.mxu0 %v132
  %388 = vmatpush1.msra.mxu0 %v131
  %389 = vmatprep.subr.mxu0 %v135
  %390 = vmatpush1.msra.mxu0 %v134
  %391 = vmatprep.subr.mxu0 %v138
  %392 = vmatpush1.msra.mxu0 %v137
  %393 = vmatprep.subr.mxu0 %v141
  %394 = vmatpush1.msra.mxu0 %v140
  %395 = vmatprep.subr.mxu0 %v144
  %396 = vmatpush1.msra.mxu0 %v143
  %397 = vmatprep.subr.mxu0 %v147
  %398 = vmatpush1.msra.mxu0 %v146
  %399 = vmatprep.subr.mxu0 %v150
  %400 = vmatpush1.msra.mxu0 %v149
  %401 = vmatprep.subr.mxu0 %v153
  %402 = vmatpush1.msra.mxu0 %v152
  %403 = vmatprep.subr.mxu0 %v156
  %404 = vmatpush1.msra.mxu0 %v155
  %405 = vmatprep.subr.mxu0 %v159
  %406 = vmatpush1.msra.mxu0 %v158
  %407 = vmatprep.subr.mxu0 %v162
  %408 = vmatpush1.msra.mxu0 %v161
  %409 = vmatprep.subr.mxu0 %v165
  %410 = vmatpush1.msra.mxu0 %v164
  %411 = vmatprep.subr.mxu0 0.0
  %412 = vmatpush1.msra.mxu0 0.0
  %413 = vmatprep.subr.mxu0 0.0
  %414 = vmatpush1.msra.mxu0 0.0
  %415 = vmatprep.subr.mxu0 0.0
  %416 = vmatpush1.msra.mxu0 0.0
  %417 = vmatprep.subr.mxu0 0.0
  %418 = vmatpush1.msra.mxu0 0.0
  %419 = vmatprep.subr.mxu0 0.0
  %420 = vmatpush1.msra.mxu0 0.0
  %421 = vmatprep.subr.mxu0 0.0
  %422 = vmatpush1.msra.mxu0 0.0
  %423 = vmatprep.subr.mxu0 0.0
  %424 = vmatpush1.msra.mxu0 0.0
  %425 = vmatprep.subr.mxu0 0.0
  %426 = vmatpush1.msra.mxu0 0.0
  %427 = vmatprep.subr.mxu0 0.0
  %428 = vmatpush1.msra.mxu0 0.0
  %429 = vmatprep.subr.mxu0 0.0
  %430 = vmatpush1.msra.mxu0 0.0
  %431 = vmatprep.subr.mxu0 0.0
  %432 = vmatpush1.msra.mxu0 0.0
  %433 = vmatprep.subr.mxu0 0.0
  %434 = vmatpush1.msra.mxu0 0.0
  %435 = vmatprep.subr.mxu0 0.0
  %436 = vmatpush1.msra.mxu0 0.0
  %437 = vmatprep.subr.mxu0 0.0
  %438 = vmatpush1.msra.mxu0 0.0
  %439 = vmatprep.subr.mxu0 0.0
  %440 = vmatpush1.msra.mxu0 0.0
  %441 = vmatprep.subr.mxu0 0.0
  %442 = vmatpush1.msra.mxu0 0.0
  %443 = vmatprep.mubr.f32.mxu0 0.0
  %444 = vmatmul.mubr.f32.gmra.mrb[0].mxu0 %v188
  %v445 = vpop.f32.mrb[0].mxu0
  %v446 = vadd.f32 0.0, %v445
  %v447 = vpop.f32.mrb[0].mxu0
  %v448 = vadd.f32 0.0, %v447
  %449 = vdwg.mxu0
  %450 = vmatprep.subr.mxu0 0.0
  %451 = vmatpush1.msra.mxu0 %v121
  %452 = vmatprep.subr.mxu0 0.0
  %453 = vmatpush1.msra.mxu0 %v124
  %454 = vmatprep.subr.mxu0 0.0
  %455 = vmatpush1.msra.mxu0 %v127
  %456 = vmatprep.subr.mxu0 0.0
  %457 = vmatpush1.msra.mxu0 %v130
  %458 = vmatprep.subr.mxu0 0.0
  %459 = vmatpush1.msra.mxu0 %v133
  %460 = vmatprep.subr.mxu0 0.0
  %461 = vmatpush1.msra.mxu0 %v136
  %462 = vmatprep.subr.mxu0 0.0
  %463 = vmatpush1.msra.mxu0 %v139
  %464 = vmatprep.subr.mxu0 0.0
  %465 = vmatpush1.msra.mxu0 %v142
  %466 = vmatprep.subr.mxu0 0.0
  %467 = vmatpush1.msra.mxu0 %v145
  %468 = vmatprep.subr.mxu0 0.0
  %469 = vmatpush1.msra.mxu0 %v148
  %470 = vmatprep.subr.mxu0 0.0
  %471 = vmatpush1.msra.mxu0 %v151
  %472 = vmatprep.subr.mxu0 0.0
  %473 = vmatpush1.msra.mxu0 %v154
  %474 = vmatprep.subr.mxu0 0.0
  %475 = vmatpush1.msra.mxu0 %v157
  %476 = vmatprep.subr.mxu0 0.0
  %477 = vmatpush1.msra.mxu0 %v160
  %478 = vmatprep.subr.mxu0 0.0
  %479 = vmatpush1.msra.mxu0 %v163
  %480 = vmatprep.subr.mxu0 0.0
  %481 = vmatpush1.msra.mxu0 %v166
  %482 = vmatprep.subr.mxu0 0.0
  %483 = vmatpush1.msra.mxu0 0.0
  %484 = vmatprep.subr.mxu0 0.0
  %485 = vmatpush1.msra.mxu0 0.0
  %486 = vmatprep.subr.mxu0 0.0
  %487 = vmatpush1.msra.mxu0 0.0
  %488 = vmatprep.subr.mxu0 0.0
  %489 = vmatpush1.msra.mxu0 0.0
  %490 = vmatprep.subr.mxu0 0.0
  %491 = vmatpush1.msra.mxu0 0.0
  %492 = vmatprep.subr.mxu0 0.0
  %493 = vmatpush1.msra.mxu0 0.0
  %494 = vmatprep.subr.mxu0 0.0
  %495 = vmatpush1.msra.mxu0 0.0
  %496 = vmatprep.subr.mxu0 0.0
  %497 = vmatpush1.msra.mxu0 0.0
  %498 = vmatprep.subr.mxu0 0.0
  %499 = vmatpush1.msra.mxu0 0.0
  %500 = vmatprep.subr.mxu0 0.0
  %501 = vmatpush1.msra.mxu0 0.0
  %502 = vmatprep.subr.mxu0 0.0
  %503 = vmatpush1.msra.mxu0 0.0
  %504 = vmatprep.subr.mxu0 0.0
  %505 = vmatpush1.msra.mxu0 0.0
  %506 = vmatprep.subr.mxu0 0.0
  %507 = vmatpush1.msra.mxu0 0.0
  %508 = vmatprep.subr.mxu0 0.0
  %509 = vmatpush1.msra.mxu0 0.0
  %510 = vmatprep.subr.mxu0 0.0
  %511 = vmatpush1.msra.mxu0 0.0
  %512 = vmatprep.subr.mxu0 0.0
  %513 = vmatpush1.msra.mxu0 0.0
  %514 = vmatprep.mubr.f32.mxu0 0.0
  %515 = vmatmul.mubr.f32.gmra.mrb[0].mxu0 %v188
  %v516 = vpop.f32.mrb[0].mxu0
  %v517 = vadd.f32 0.0, %v516
  %v518 = vpop.f32.mrb[0].mxu0
  %519 = vdwg.mxu0
  %v520 = vadd.f32 %v376, %v446
  %v521 = vxor.u32 %v520, 2147483648
  %v522 = vmul.f32 %v521, 1.442695
  %v523 = vpow.pop %v522
  %v524 = vadd.f32 %v523, 1.0
  %v525 = vrcp.pop %v524
  %v526 = vmul.f32 1.0, %v525
  %v527 = vadd.f32 %v377, %v448
  %v528 = vxor.u32 %v527, 2147483648
  %v529 = vmul.f32 %v528, 1.442695
  %v530 = vpow.pop %v529
  %v531 = vadd.f32 %v530, 1.0
  %v532 = vrcp.pop %v531
  %v533 = vmul.f32 1.0, %v532
  %v534 = vadd.f32 %v517, %v180
  %v535 = vmul.f32 %v526, %v534
  %v536 = vadd.f32 %v378, %v535
  %v537 = vtanh.pop %v536
  %v538 = vsub.f32 1.0, %v533
  %v539 = vmul.f32 %v538, %v537
  %v540 = vmul.f32 %v533, %v188
  %v541 = vadd.f32 %v539, %v540
  %s542 = sadd.s32 %s185, 7
  %v543 = vstv %s542
  %vm544 = vcmp.lt.s32.totalorder %v543, %v182
  %v545 = vsel %vm544, 1, 0
  %v546 = vcvt.s32.f32 %v545
  %548 = vset.pattern.permute.xlu0 0
  %549 = vperm.xlu0 %548, %v546
  %v550 = vpop.permute.xlu0 %549
  %v552 = vmul.f32 %v550, %v541
  %v553 = vsub.f32 1.0, %v546
  %555 = vset.pattern.permute.xlu0 0
  %556 = vperm.xlu0 %555, %v553
  %v557 = vpop.permute.xlu0 %556
  %v559 = vmul.f32 %v557, %v188
  %v560 = vadd.f32 %v552, %v559
  %v561 = vmul.f32 %v550, %v560
  %s562 = scalar_lea.vmem %s61, 56
  %563 = vst [vmem:[%s562] sm:$0xff] %v561
  %s564 = scalar_lea.vmem %s0, 24
  %v565 = vld [vmem:[%s564] sm:$0xff]
  %v566 = vld [vmem:[%s564 + $0x8] sm:$0xff]
  %v567 = vld [vmem:[%s564 + $0x10] sm:$0xff]
  %568 = vmatprep.subr.mxu0 %v71
  %569 = vmatpush1.msra.mxu0 %v70
  %570 = vmatprep.subr.mxu0 %v74
  %571 = vmatpush1.msra.mxu0 %v73
  %572 = vmatprep.subr.mxu0 %v77
  %573 = vmatpush1.msra.mxu0 %v76
  %574 = vmatprep.subr.mxu0 %v80
  %575 = vmatpush1.msra.mxu0 %v79
  %576 = vmatprep.subr.mxu0 %v83
  %577 = vmatpush1.msra.mxu0 %v82
  %578 = vmatprep.subr.mxu0 %v86
  %579 = vmatpush1.msra.mxu0 %v85
  %580 = vmatprep.subr.mxu0 %v89
  %581 = vmatpush1.msra.mxu0 %v88
  %582 = vmatprep.subr.mxu0 %v92
  %583 = vmatpush1.msra.mxu0 %v91
  %584 = vmatprep.subr.mxu0 %v95
  %585 = vmatpush1.msra.mxu0 %v94
  %586 = vmatprep.subr.mxu0 %v98
  %587 = vmatpush1.msra.mxu0 %v97
  %588 = vmatprep.subr.mxu0 %v101
  %589 = vmatpush1.msra.mxu0 %v100
  %590 = vmatprep.subr.mxu0 %v104
  %591 = vmatpush1.msra.mxu0 %v103
  %592 = vmatprep.subr.mxu0 %v107
  %593 = vmatpush1.msra.mxu0 %v106
  %594 = vmatprep.subr.mxu0 %v110
  %595 = vmatpush1.msra.mxu0 %v109
  %596 = vmatprep.subr.mxu0 %v113
  %597 = vmatpush1.msra.mxu0 %v112
  %598 = vmatprep.subr.mxu0 %v116
  %599 = vmatpush1.msra.mxu0 %v115
  %600 = vmatprep.subr.mxu0 0.0
  %601 = vmatpush1.msra.mxu0 0.0
  %602 = vmatprep.subr.mxu0 0.0
  %603 = vmatpush1.msra.mxu0 0.0
  %604 = vmatprep.subr.mxu0 0.0
  %605 = vmatpush1.msra.mxu0 0.0
  %606 = vmatprep.subr.mxu0 0.0
  %607 = vmatpush1.msra.mxu0 0.0
  %608 = vmatprep.subr.mxu0 0.0
  %609 = vmatpush1.msra.mxu0 0.0
  %610 = vmatprep.subr.mxu0 0.0
  %611 = vmatpush1.msra.mxu0 0.0
  %612 = vmatprep.subr.mxu0 0.0
  %613 = vmatpush1.msra.mxu0 0.0
  %614 = vmatprep.subr.mxu0 0.0
  %615 = vmatpush1.msra.mxu0 0.0
  %616 = vmatprep.subr.mxu0 0.0
  %617 = vmatpush1.msra.mxu0 0.0
  %618 = vmatprep.subr.mxu0 0.0
  %619 = vmatpush1.msra.mxu0 0.0
  %620 = vmatprep.subr.mxu0 0.0
  %621 = vmatpush1.msra.mxu0 0.0
  %622 = vmatprep.subr.mxu0 0.0
  %623 = vmatpush1.msra.mxu0 0.0
  %624 = vmatprep.subr.mxu0 0.0
  %625 = vmatpush1.msra.mxu0 0.0
  %626 = vmatprep.subr.mxu0 0.0
  %627 = vmatpush1.msra.mxu0 0.0
  %628 = vmatprep.subr.mxu0 0.0
  %629 = vmatpush1.msra.mxu0 0.0
  %630 = vmatprep.subr.mxu0 0.0
  %631 = vmatpush1.msra.mxu0 0.0
  %632 = vmatprep.mubr.f32.mxu0 0.0
  %633 = vmatmul.mubr.f32.gmra.mrb[0].mxu0 %v372
  %v634 = vpop.f32.mrb[0].mxu0
  %v635 = vadd.f32 0.0, %v634
  %v636 = vpop.f32.mrb[0].mxu0
  %v637 = vadd.f32 0.0, %v636
  %638 = vdwg.mxu0
  %639 = vmatprep.subr.mxu0 0.0
  %640 = vmatpush1.msra.mxu0 %v72
  %641 = vmatprep.subr.mxu0 0.0
  %642 = vmatpush1.msra.mxu0 %v75
  %643 = vmatprep.subr.mxu0 0.0
  %644 = vmatpush1.msra.mxu0 %v78
  %645 = vmatprep.subr.mxu0 0.0
  %646 = vmatpush1.msra.mxu0 %v81
  %647 = vmatprep.subr.mxu0 0.0
  %648 = vmatpush1.msra.mxu0 %v84
  %649 = vmatprep.subr.mxu0 0.0
  %650 = vmatpush1.msra.mxu0 %v87
  %651 = vmatprep.subr.mxu0 0.0
  %652 = vmatpush1.msra.mxu0 %v90
  %653 = vmatprep.subr.mxu0 0.0
  %654 = vmatpush1.msra.mxu0 %v93
  %655 = vmatprep.subr.mxu0 0.0
  %656 = vmatpush1.msra.mxu0 %v96
  %657 = vmatprep.subr.mxu0 0.0
  %658 = vmatpush1.msra.mxu0 %v99
  %659 = vmatprep.subr.mxu0 0.0
  %660 = vmatpush1.msra.mxu0 %v102
  %661 = vmatprep.subr.mxu0 0.0
  %662 = vmatpush1.msra.mxu0 %v105
  %663 = vmatprep.subr.mxu0 0.0
  %664 = vmatpush1.msra.mxu0 %v108
  %665 = vmatprep.subr.mxu0 0.0
  %666 = vmatpush1.msra.mxu0 %v111
  %667 = vmatprep.subr.mxu0 0.0
  %668 = vmatpush1.msra.mxu0 %v114
  %669 = vmatprep.subr.mxu0 0.0
  %670 = vmatpush1.msra.mxu0 %v117
  %671 = vmatprep.subr.mxu0 0.0
  %672 = vmatpush1.msra.mxu0 0.0
  %673 = vmatprep.subr.mxu0 0.0
  %674 = vmatpush1.msra.mxu0 0.0
  %675 = vmatprep.subr.mxu0 0.0
  %676 = vmatpush1.msra.mxu0 0.0
  %677 = vmatprep.subr.mxu0 0.0
  %678 = vmatpush1.msra.mxu0 0.0
  %679 = vmatprep.subr.mxu0 0.0
  %680 = vmatpush1.msra.mxu0 0.0
  %681 = vmatprep.subr.mxu0 0.0
  %682 = vmatpush1.msra.mxu0 0.0
  %683 = vmatprep.subr.mxu0 0.0
  %684 = vmatpush1.msra.mxu0 0.0
  %685 = vmatprep.subr.mxu0 0.0
  %686 = vmatpush1.msra.mxu0 0.0
  %687 = vmatprep.subr.mxu0 0.0
  %688 = vmatpush1.msra.mxu0 0.0
  %689 = vmatprep.subr.mxu0 0.0
  %690 = vmatpush1.msra.mxu0 0.0
  %691 = vmatprep.subr.mxu0 0.0
  %692 = vmatpush1.msra.mxu0 0.0
  %693 = vmatprep.subr.mxu0 0.0
  %694 = vmatpush1.msra.mxu0 0.0
  %695 = vmatprep.subr.mxu0 0.0
  %696 = vmatpush1.msra.mxu0 0.0
  %697 = vmatprep.subr.mxu0 0.0
  %698 = vmatpush1.msra.mxu0 0.0
  %699 = vmatprep.subr.mxu0 0.0
  %700 = vmatpush1.msra.mxu0 0.0
  %701 = vmatprep.subr.mxu0 0.0
  %702 = vmatpush1.msra.mxu0 0.0
  %703 = vmatprep.mubr.f32.mxu0 0.0
  %704 = vmatmul.mubr.f32.gmra.mrb[0].mxu0 %v372
  %v705 = vpop.f32.mrb[0].mxu0
  %v706 = vadd.f32 0.0, %v705
  %v707 = vpop.f32.mrb[0].mxu0
  %708 = vdwg.mxu0
  %v709 = vadd.f32 %v565, %v635
  %v710 = vxor.u32 %v709, 2147483648
  %v711 = vmul.f32 %v710, 1.442695
  %v712 = vpow.pop %v711
  %v713 = vadd.f32 %v712, 1.0
  %v714 = vrcp.pop %v713
  %v715 = vmul.f32 1.0, %v714
  %v716 = vadd.f32 %v566, %v637
  %v717 = vxor.u32 %v716, 2147483648
  %v718 = vmul.f32 %v717, 1.442695
  %v719 = vpow.pop %v718
  %v720 = vadd.f32 %v719, 1.0
  %v721 = vrcp.pop %v720
  %v722 = vmul.f32 1.0, %v721
  %v723 = vadd.f32 %v706, %v172
  %v724 = vmul.f32 %v715, %v723
  %v725 = vadd.f32 %v567, %v724
  %v726 = vtanh.pop %v725
  %v727 = vsub.f32 1.0, %v722
  %v728 = vmul.f32 %v727, %v726
  %v729 = vmul.f32 %v722, %v372
  %v730 = vadd.f32 %v728, %v729
  %s731 = sadd.s32 %s183, 1
  %v732 = vstv %s731
  %vm733 = vcmp.lt.s32.totalorder %v732, %v182
  %v734 = vsel %vm733, 1, 0
  %v735 = vcvt.s32.f32 %v734
  %737 = vset.pattern.permute.xlu0 0
  %738 = vperm.xlu0 %737, %v735
  %v739 = vpop.permute.xlu0 %738
  %v741 = vmul.f32 %v739, %v730
  %v742 = vsub.f32 1.0, %v735
  %744 = vset.pattern.permute.xlu0 0
  %745 = vperm.xlu0 %744, %v742
  %v746 = vpop.permute.xlu0 %745
  %v748 = vmul.f32 %v746, %v372
  %v749 = vadd.f32 %v741, %v748
  %v750 = vmul.f32 %v739, %v749
  %s751 = scalar_lea.vmem %s5, 8
  %752 = vst [vmem:[%s751] sm:$0xff] %v750
  %s753 = scalar_lea.vmem %s53, 144
  %v754 = vld [vmem:[%s753] sm:$0xff]
  %v755 = vld [vmem:[%s753 + $0x8] sm:$0xff]
  %v756 = vld [vmem:[%s753 + $0x10] sm:$0xff]
  %757 = vmatprep.subr.mxu0 %v120
  %758 = vmatpush1.msra.mxu0 %v119
  %759 = vmatprep.subr.mxu0 %v123
  %760 = vmatpush1.msra.mxu0 %v122
  %761 = vmatprep.subr.mxu0 %v126
  %762 = vmatpush1.msra.mxu0 %v125
  %763 = vmatprep.subr.mxu0 %v129
  %764 = vmatpush1.msra.mxu0 %v128
  %765 = vmatprep.subr.mxu0 %v132
  %766 = vmatpush1.msra.mxu0 %v131
  %767 = vmatprep.subr.mxu0 %v135
  %768 = vmatpush1.msra.mxu0 %v134
  %769 = vmatprep.subr.mxu0 %v138
  %770 = vmatpush1.msra.mxu0 %v137
  %771 = vmatprep.subr.mxu0 %v141
  %772 = vmatpush1.msra.mxu0 %v140
  %773 = vmatprep.subr.mxu0 %v144
  %774 = vmatpush1.msra.mxu0 %v143
  %775 = vmatprep.subr.mxu0 %v147
  %776 = vmatpush1.msra.mxu0 %v146
  %777 = vmatprep.subr.mxu0 %v150
  %778 = vmatpush1.msra.mxu0 %v149
  %779 = vmatprep.subr.mxu0 %v153
  %780 = vmatpush1.msra.mxu0 %v152
  %781 = vmatprep.subr.mxu0 %v156
  %782 = vmatpush1.msra.mxu0 %v155
  %783 = vmatprep.subr.mxu0 %v159
  %784 = vmatpush1.msra.mxu0 %v158
  %785 = vmatprep.subr.mxu0 %v162
  %786 = vmatpush1.msra.mxu0 %v161
  %787 = vmatprep.subr.mxu0 %v165
  %788 = vmatpush1.msra.mxu0 %v164
  %789 = vmatprep.subr.mxu0 0.0
  %790 = vmatpush1.msra.mxu0 0.0
  %791 = vmatprep.subr.mxu0 0.0
  %792 = vmatpush1.msra.mxu0 0.0
  %793 = vmatprep.subr.mxu0 0.0
  %794 = vmatpush1.msra.mxu0 0.0
  %795 = vmatprep.subr.mxu0 0.0
  %796 = vmatpush1.msra.mxu0 0.0
  %797 = vmatprep.subr.mxu0 0.0
  %798 = vmatpush1.msra.mxu0 0.0
  %799 = vmatprep.subr.mxu0 0.0
  %800 = vmatpush1.msra.mxu0 0.0
  %801 = vmatprep.subr.mxu0 0.0
  %802 = vmatpush1.msra.mxu0 0.0
  %803 = vmatprep.subr.mxu0 0.0
  %804 = vmatpush1.msra.mxu0 0.0
  %805 = vmatprep.subr.mxu0 0.0
  %806 = vmatpush1.msra.mxu0 0.0
  %807 = vmatprep.subr.mxu0 0.0
  %808 = vmatpush1.msra.mxu0 0.0
  %809 = vmatprep.subr.mxu0 0.0
  %810 = vmatpush1.msra.mxu0 0.0
  %811 = vmatprep.subr.mxu0 0.0
  %812 = vmatpush1.msra.mxu0 0.0
  %813 = vmatprep.subr.mxu0 0.0
  %814 = vmatpush1.msra.mxu0 0.0
  %815 = vmatprep.subr.mxu0 0.0
  %816 = vmatpush1.msra.mxu0 0.0
  %817 = vmatprep.subr.mxu0 0.0
  %818 = vmatpush1.msra.mxu0 0.0
  %819 = vmatprep.subr.mxu0 0.0
  %820 = vmatpush1.msra.mxu0 0.0
  %821 = vmatprep.mubr.f32.mxu0 0.0
  %822 = vmatmul.mubr.f32.gmra.mrb[0].mxu0 %v560
  %v823 = vpop.f32.mrb[0].mxu0
  %v824 = vadd.f32 0.0, %v823
  %v825 = vpop.f32.mrb[0].mxu0
  %v826 = vadd.f32 0.0, %v825
  %827 = vdwg.mxu0
  %828 = vmatprep.subr.mxu0 0.0
  %829 = vmatpush1.msra.mxu0 %v121
  %830 = vmatprep.subr.mxu0 0.0
  %831 = vmatpush1.msra.mxu0 %v124
  %832 = vmatprep.subr.mxu0 0.0
  %833 = vmatpush1.msra.mxu0 %v127
  %834 = vmatprep.subr.mxu0 0.0
  %835 = vmatpush1.msra.mxu0 %v130
  %836 = vmatprep.subr.mxu0 0.0
  %837 = vmatpush1.msra.mxu0 %v133
  %838 = vmatprep.subr.mxu0 0.0
  %839 = vmatpush1.msra.mxu0 %v136
  %840 = vmatprep.subr.mxu0 0.0
  %841 = vmatpush1.msra.mxu0 %v139
  %842 = vmatprep.subr.mxu0 0.0
  %843 = vmatpush1.msra.mxu0 %v142
  %844 = vmatprep.subr.mxu0 0.0
  %845 = vmatpush1.msra.mxu0 %v145
  %846 = vmatprep.subr.mxu0 0.0
  %847 = vmatpush1.msra.mxu0 %v148
  %848 = vmatprep.subr.mxu0 0.0
  %849 = vmatpush1.msra.mxu0 %v151
  %850 = vmatprep.subr.mxu0 0.0
  %851 = vmatpush1.msra.mxu0 %v154
  %852 = vmatprep.subr.mxu0 0.0
  %853 = vmatpush1.msra.mxu0 %v157
  %854 = vmatprep.subr.mxu0 0.0
  %855 = vmatpush1.msra.mxu0 %v160
  %856 = vmatprep.subr.mxu0 0.0
  %857 = vmatpush1.msra.mxu0 %v163
  %858 = vmatprep.subr.mxu0 0.0
  %859 = vmatpush1.msra.mxu0 %v166
  %860 = vmatprep.subr.mxu0 0.0
  %861 = vmatpush1.msra.mxu0 0.0
  %862 = vmatprep.subr.mxu0 0.0
  %863 = vmatpush1.msra.mxu0 0.0
  %864 = vmatprep.subr.mxu0 0.0
  %865 = vmatpush1.msra.mxu0 0.0
  %866 = vmatprep.subr.mxu0 0.0
  %867 = vmatpush1.msra.mxu0 0.0
  %868 = vmatprep.subr.mxu0 0.0
  %869 = vmatpush1.msra.mxu0 0.0
  %870 = vmatprep.subr.mxu0 0.0
  %871 = vmatpush1.msra.mxu0 0.0
  %872 = vmatprep.subr.mxu0 0.0
  %873 = vmatpush1.msra.mxu0 0.0
  %874 = vmatprep.subr.mxu0 0.0
  %875 = vmatpush1.msra.mxu0 0.0
  %876 = vmatprep.subr.mxu0 0.0
  %877 = vmatpush1.msra.mxu0 0.0
  %878 = vmatprep.subr.mxu0 0.0
  %879 = vmatpush1.msra.mxu0 0.0
  %880 = vmatprep.subr.mxu0 0.0
  %881 = vmatpush1.msra.mxu0 0.0
  %882 = vmatprep.subr.mxu0 0.0
  %883 = vmatpush1.msra.mxu0 0.0
  %884 = vmatprep.subr.mxu0 0.0
  %885 = vmatpush1.msra.mxu0 0.0
  %886 = vmatprep.subr.mxu0 0.0
  %887 = vmatpush1.msra.mxu0 0.0
  %888 = vmatprep.subr.mxu0 0.0
  %889 = vmatpush1.msra.mxu0 0.0
  %890 = vmatprep.subr.mxu0 0.0
  %891 = vmatpush1.msra.mxu0 0.0
  %892 = vmatprep.mubr.f32.mxu0 0.0
  %893 = vmatmul.mubr.f32.gmra.mrb[0].mxu0 %v560
  %v894 = vpop.f32.mrb[0].mxu0
  %v895 = vadd.f32 0.0, %v894
  %v896 = vpop.f32.mrb[0].mxu0
  %897 = vdwg.mxu0
  %v898 = vadd.f32 %v754, %v824
  %v899 = vxor.u32 %v898, 2147483648
  %v900 = vmul.f32 %v899, 1.442695
  %v901 = vpow.pop %v900
  %v902 = vadd.f32 %v901, 1.0
  %v903 = vrcp.pop %v902
  %v904 = vmul.f32 1.0, %v903
  %v905 = vadd.f32 %v755, %v826
  %v906 = vxor.u32 %v905, 2147483648
  %v907 = vmul.f32 %v906, 1.442695
  %v908 = vpow.pop %v907
  %v909 = vadd.f32 %v908, 1.0
  %v910 = vrcp.pop %v909
  %v911 = vmul.f32 1.0, %v910
  %v912 = vadd.f32 %v895, %v180
  %v913 = vmul.f32 %v904, %v912
  %v914 = vadd.f32 %v756, %v913
  %v915 = vtanh.pop %v914
  %v916 = vsub.f32 1.0, %v911
  %v917 = vmul.f32 %v916, %v915
  %v918 = vmul.f32 %v911, %v560
  %v919 = vadd.f32 %v917, %v918
  %s920 = sadd.s32 %s185, 6
  %v921 = vstv %s920
  %vm922 = vcmp.lt.s32.totalorder %v921, %v182
  %v923 = vsel %vm922, 1, 0
  %v924 = vcvt.s32.f32 %v923
  %926 = vset.pattern.permute.xlu0 0
  %927 = vperm.xlu0 %926, %v924
  %v928 = vpop.permute.xlu0 %927
  %v930 = vmul.f32 %v928, %v919
  %v931 = vsub.f32 1.0, %v924
  %933 = vset.pattern.permute.xlu0 0
  %934 = vperm.xlu0 %933, %v931
  %v935 = vpop.permute.xlu0 %934
  %v937 = vmul.f32 %v935, %v560
  %v938 = vadd.f32 %v930, %v937
  %v939 = vmul.f32 %v928, %v938
  %s940 = scalar_lea.vmem %s61, 48
  %941 = vst [vmem:[%s940] sm:$0xff] %v939
  %s942 = scalar_lea.vmem %s0, 48
  %v943 = vld [vmem:[%s942] sm:$0xff]
  %v944 = vld [vmem:[%s942 + $0x8] sm:$0xff]
  %v945 = vld [vmem:[%s942 + $0x10] sm:$0xff]
  %946 = vmatprep.subr.mxu0 %v71
  %947 = vmatpush1.msra.mxu0 %v70
  %948 = vmatprep.subr.mxu0 %v74
  %949 = vmatpush1.msra.mxu0 %v73
  %950 = vmatprep.subr.mxu0 %v77
  %951 = vmatpush1.msra.mxu0 %v76
  %952 = vmatprep.subr.mxu0 %v80
  %953 = vmatpush1.msra.mxu0 %v79
  %954 = vmatprep.subr.mxu0 %v83
  %955 = vmatpush1.msra.mxu0 %v82
  %956 = vmatprep.subr.mxu0 %v86
  %957 = vmatpush1.msra.mxu0 %v85
  %958 = vmatprep.subr.mxu0 %v89
  %959 = vmatpush1.msra.mxu0 %v88
  %960 = vmatprep.subr.mxu0 %v92
  %961 = vmatpush1.msra.mxu0 %v91
  %962 = vmatprep.subr.mxu0 %v95
  %963 = vmatpush1.msra.mxu0 %v94
  %964 = vmatprep.subr.mxu0 %v98
  %965 = vmatpush1.msra.mxu0 %v97
  %966 = vmatprep.subr.mxu0 %v101
  %967 = vmatpush1.msra.mxu0 %v100
  %968 = vmatprep.subr.mxu0 %v104
  %969 = vmatpush1.msra.mxu0 %v103
  %970 = vmatprep.subr.mxu0 %v107
  %971 = vmatpush1.msra.mxu0 %v106
  %972 = vmatprep.subr.mxu0 %v110
  %973 = vmatpush1.msra.mxu0 %v109
  %974 = vmatprep.subr.mxu0 %v113
  %975 = vmatpush1.msra.mxu0 %v112
  %976 = vmatprep.subr.mxu0 %v116
  %977 = vmatpush1.msra.mxu0 %v115
  %978 = vmatprep.subr.mxu0 0.0
  %979 = vmatpush1.msra.mxu0 0.0
  %980 = vmatprep.subr.mxu0 0.0
  %981 = vmatpush1.msra.mxu0 0.0
  %982 = vmatprep.subr.mxu0 0.0
  %983 = vmatpush1.msra.mxu0 0.0
  %984 = vmatprep.subr.mxu0 0.0
  %985 = vmatpush1.msra.mxu0 0.0
  %986 = vmatprep.subr.mxu0 0.0
  %987 = vmatpush1.msra.mxu0 0.0
  %988 = vmatprep.subr.mxu0 0.0
  %989 = vmatpush1.msra.mxu0 0.0
  %990 = vmatprep.subr.mxu0 0.0
  %991 = vmatpush1.msra.mxu0 0.0
  %992 = vmatprep.subr.mxu0 0.0
  %993 = vmatpush1.msra.mxu0 0.0
  %994 = vmatprep.subr.mxu0 0.0
  %995 = vmatpush1.msra.mxu0 0.0
  %996 = vmatprep.subr.mxu0 0.0
  %997 = vmatpush1.msra.mxu0 0.0
  %998 = vmatprep.subr.mxu0 0.0
  %999 = vmatpush1.msra.mxu0 0.0
  %1000 = vmatprep.subr.mxu0 0.0
  %1001 = vmatpush1.msra.mxu0 0.0
  %1002 = vmatprep.subr.mxu0 0.0
  %1003 = vmatpush1.msra.mxu0 0.0
  %1004 = vmatprep.subr.mxu0 0.0
  %1005 = vmatpush1.msra.mxu0 0.0
  %1006 = vmatprep.subr.mxu0 0.0
  %1007 = vmatpush1.msra.mxu0 0.0
  %1008 = vmatprep.subr.mxu0 0.0
  %1009 = vmatpush1.msra.mxu0 0.0
  %1010 = vmatprep.mubr.f32.mxu0 0.0
  %1011 = vmatmul.mubr.f32.gmra.mrb[0].mxu0 %v749
  %v1012 = vpop.f32.mrb[0].mxu0
  %v1013 = vadd.f32 0.0, %v1012
  %v1014 = vpop.f32.mrb[0].mxu0
  %v1015 = vadd.f32 0.0, %v1014
  %1016 = vdwg.mxu0
  %1017 = vmatprep.subr.mxu0 0.0
  %1018 = vmatpush1.msra.mxu0 %v72
  %1019 = vmatprep.subr.mxu0 0.0
  %1020 = vmatpush1.msra.mxu0 %v75
  %1021 = vmatprep.subr.mxu0 0.0
  %1022 = vmatpush1.msra.mxu0 %v78
  %1023 = vmatprep.subr.mxu0 0.0
  %1024 = vmatpush1.msra.mxu0 %v81
  %1025 = vmatprep.subr.mxu0 0.0
  %1026 = vmatpush1.msra.mxu0 %v84
  %1027 = vmatprep.subr.mxu0 0.0
  %1028 = vmatpush1.msra.mxu0 %v87
  %1029 = vmatprep.subr.mxu0 0.0
  %1030 = vmatpush1.msra.mxu0 %v90
  %1031 = vmatprep.subr.mxu0 0.0
  %1032 = vmatpush1.msra.mxu0 %v93
  %1033 = vmatprep.subr.mxu0 0.0
  %1034 = vmatpush1.msra.mxu0 %v96
  %1035 = vmatprep.subr.mxu0 0.0
  %1036 = vmatpush1.msra.mxu0 %v99
  %1037 = vmatprep.subr.mxu0 0.0
  %1038 = vmatpush1.msra.mxu0 %v102
  %1039 = vmatprep.subr.mxu0 0.0
  %1040 = vmatpush1.msra.mxu0 %v105
  %1041 = vmatprep.subr.mxu0 0.0
  %1042 = vmatpush1.msra.mxu0 %v108
  %1043 = vmatprep.subr.mxu0 0.0
  %1044 = vmatpush1.msra.mxu0 %v111
  %1045 = vmatprep.subr.mxu0 0.0
  %1046 = vmatpush1.msra.mxu0 %v114
  %1047 = vmatprep.subr.mxu0 0.0
  %1048 = vmatpush1.msra.mxu0 %v117
  %1049 = vmatprep.subr.mxu0 0.0
  %1050 = vmatpush1.msra.mxu0 0.0
  %1051 = vmatprep.subr.mxu0 0.0
  %1052 = vmatpush1.msra.mxu0 0.0
  %1053 = vmatprep.subr.mxu0 0.0
  %1054 = vmatpush1.msra.mxu0 0.0
  %1055 = vmatprep.subr.mxu0 0.0
  %1056 = vmatpush1.msra.mxu0 0.0
  %1057 = vmatprep.subr.mxu0 0.0
  %1058 = vmatpush1.msra.mxu0 0.0
  %1059 = vmatprep.subr.mxu0 0.0
  %1060 = vmatpush1.msra.mxu0 0.0
  %1061 = vmatprep.subr.mxu0 0.0
  %1062 = vmatpush1.msra.mxu0 0.0
  %1063 = vmatprep.subr.mxu0 0.0
  %1064 = vmatpush1.msra.mxu0 0.0
  %1065 = vmatprep.subr.mxu0 0.0
  %1066 = vmatpush1.msra.mxu0 0.0
  %1067 = vmatprep.subr.mxu0 0.0
  %1068 = vmatpush1.msra.mxu0 0.0
  %1069 = vmatprep.subr.mxu0 0.0
  %1070 = vmatpush1.msra.mxu0 0.0
  %1071 = vmatprep.subr.mxu0 0.0
  %1072 = vmatpush1.msra.mxu0 0.0
  %1073 = vmatprep.subr.mxu0 0.0
  %1074 = vmatpush1.msra.mxu0 0.0
  %1075 = vmatprep.subr.mxu0 0.0
  %1076 = vmatpush1.msra.mxu0 0.0
  %1077 = vmatprep.subr.mxu0 0.0
  %1078 = vmatpush1.msra.mxu0 0.0
  %1079 = vmatprep.subr.mxu0 0.0
  %1080 = vmatpush1.msra.mxu0 0.0
  %1081 = vmatprep.mubr.f32.mxu0 0.0
  %1082 = vmatmul.mubr.f32.gmra.mrb[0].mxu0 %v749
  %v1083 = vpop.f32.mrb[0].mxu0
  %v1084 = vadd.f32 0.0, %v1083
  %v1085 = vpop.f32.mrb[0].mxu0
  %1086 = vdwg.mxu0
  %v1087 = vadd.f32 %v943, %v1013
  %v1088 = vxor.u32 %v1087, 2147483648
  %v1089 = vmul.f32 %v1088, 1.442695
  %v1090 = vpow.pop %v1089
  %v1091 = vadd.f32 %v1090, 1.0
  %v1092 = vrcp.pop %v1091
  %v1093 = vmul.f32 1.0, %v1092
  %v1094 = vadd.f32 %v944, %v1015
  %v1095 = vxor.u32 %v1094, 2147483648
  %v1096 = vmul.f32 %v1095, 1.442695
  %v1097 = vpow.pop %v1096
  %v1098 = vadd.f32 %v1097, 1.0
  %v1099 = vrcp.pop %v1098
  %v1100 = vmul.f32 1.0, %v1099
  %v1101 = vadd.f32 %v1084, %v172
  %v1102 = vmul.f32 %v1093, %v1101
  %v1103 = vadd.f32 %v945, %v1102
  %v1104 = vtanh.pop %v1103
  %v1105 = vsub.f32 1.0, %v1100
  %v1106 = vmul.f32 %v1105, %v1104
  %v1107 = vmul.f32 %v1100, %v749
  %v1108 = vadd.f32 %v1106, %v1107
  %s1109 = sadd.s32 %s183, 2
  %v1110 = vstv %s1109
  %vm1111 = vcmp.lt.s32.totalorder %v1110, %v182
  %v1112 = vsel %vm1111, 1, 0
  %v1113 = vcvt.s32.f32 %v1112
  %1115 = vset.pattern.permute.xlu0 0
  %1116 = vperm.xlu0 %1115, %v1113
  %v1117 = vpop.permute.xlu0 %1116
  %v1119 = vmul.f32 %v1117, %v1108
  %v1120 = vsub.f32 1.0, %v1113
  %1122 = vset.pattern.permute.xlu0 0
  %1123 = vperm.xlu0 %1122, %v1120
  %v1124 = vpop.permute.xlu0 %1123
  %v1126 = vmul.f32 %v1124, %v749
  %v1127 = vadd.f32 %v1119, %v1126
  %v1128 = vmul.f32 %v1117, %v1127
  %s1129 = scalar_lea.vmem %s5, 16
  %1130 = vst [vmem:[%s1129] sm:$0xff] %v1128
  %s1131 = scalar_lea.vmem %s53, 120
  %v1132 = vld [vmem:[%s1131] sm:$0xff]
  %v1133 = vld [vmem:[%s1131 + $0x8] sm:$0xff]
  %v1134 = vld [vmem:[%s1131 + $0x10] sm:$0xff]
  %1135 = vmatprep.subr.mxu0 %v120
  %1136 = vmatpush1.msra.mxu0 %v119
  %1137 = vmatprep.subr.mxu0 %v123
  %1138 = vmatpush1.msra.mxu0 %v122
  %1139 = vmatprep.subr.mxu0 %v126
  %1140 = vmatpush1.msra.mxu0 %v125
  %1141 = vmatprep.subr.mxu0 %v129
  %1142 = vmatpush1.msra.mxu0 %v128
  %1143 = vmatprep.subr.mxu0 %v132
  %1144 = vmatpush1.msra.mxu0 %v131
  %1145 = vmatprep.subr.mxu0 %v135
  %1146 = vmatpush1.msra.mxu0 %v134
  %1147 = vmatprep.subr.mxu0 %v138
  %1148 = vmatpush1.msra.mxu0 %v137
  %1149 = vmatprep.subr.mxu0 %v141
  %1150 = vmatpush1.msra.mxu0 %v140
  %1151 = vmatprep.subr.mxu0 %v144
  %1152 = vmatpush1.msra.mxu0 %v143
  %1153 = vmatprep.subr.mxu0 %v147
  %1154 = vmatpush1.msra.mxu0 %v146
  %1155 = vmatprep.subr.mxu0 %v150
  %1156 = vmatpush1.msra.mxu0 %v149
  %1157 = vmatprep.subr.mxu0 %v153
  %1158 = vmatpush1.msra.mxu0 %v152
  %1159 = vmatprep.subr.mxu0 %v156
  %1160 = vmatpush1.msra.mxu0 %v155
  %1161 = vmatprep.subr.mxu0 %v159
  %1162 = vmatpush1.msra.mxu0 %v158
  %1163 = vmatprep.subr.mxu0 %v162
  %1164 = vmatpush1.msra.mxu0 %v161
  %1165 = vmatprep.subr.mxu0 %v165
  %1166 = vmatpush1.msra.mxu0 %v164
  %1167 = vmatprep.subr.mxu0 0.0
  %1168 = vmatpush1.msra.mxu0 0.0
  %1169 = vmatprep.subr.mxu0 0.0
  %1170 = vmatpush1.msra.mxu0 0.0
  %1171 = vmatprep.subr.mxu0 0.0
  %1172 = vmatpush1.msra.mxu0 0.0
  %1173 = vmatprep.subr.mxu0 0.0
  %1174 = vmatpush1.msra.mxu0 0.0
  %1175 = vmatprep.subr.mxu0 0.0
  %1176 = vmatpush1.msra.mxu0 0.0
  %1177 = vmatprep.subr.mxu0 0.0
  %1178 = vmatpush1.msra.mxu0 0.0
  %1179 = vmatprep.subr.mxu0 0.0
  %1180 = vmatpush1.msra.mxu0 0.0
  %1181 = vmatprep.subr.mxu0 0.0
  %1182 = vmatpush1.msra.mxu0 0.0
  %1183 = vmatprep.subr.mxu0 0.0
  %1184 = vmatpush1.msra.mxu0 0.0
  %1185 = vmatprep.subr.mxu0 0.0
  %1186 = vmatpush1.msra.mxu0 0.0
  %1187 = vmatprep.subr.mxu0 0.0
  %1188 = vmatpush1.msra.mxu0 0.0
  %1189 = vmatprep.subr.mxu0 0.0
  %1190 = vmatpush1.msra.mxu0 0.0
  %1191 = vmatprep.subr.mxu0 0.0
  %1192 = vmatpush1.msra.mxu0 0.0
  %1193 = vmatprep.subr.mxu0 0.0
  %1194 = vmatpush1.msra.mxu0 0.0
  %1195 = vmatprep.subr.mxu0 0.0
  %1196 = vmatpush1.msra.mxu0 0.0
  %1197 = vmatprep.subr.mxu0 0.0
  %1198 = vmatpush1.msra.mxu0 0.0
  %1199 = vmatprep.mubr.f32.mxu0 0.0
  %1200 = vmatmul.mubr.f32.gmra.mrb[0].mxu0 %v938
  %v1201 = vpop.f32.mrb[0].mxu0
  %v1202 = vadd.f32 0.0, %v1201
  %v1203 = vpop.f32.mrb[0].mxu0
  %v1204 = vadd.f32 0.0, %v1203
  %1205 = vdwg.mxu0
  %1206 = vmatprep.subr.mxu0 0.0
  %1207 = vmatpush1.msra.mxu0 %v121
  %1208 = vmatprep.subr.mxu0 0.0
  %1209 = vmatpush1.msra.mxu0 %v124
  %1210 = vmatprep.subr.mxu0 0.0
  %1211 = vmatpush1.msra.mxu0 %v127
  %1212 = vmatprep.subr.mxu0 0.0
  %1213 = vmatpush1.msra.mxu0 %v130
  %1214 = vmatprep.subr.mxu0 0.0
  %1215 = vmatpush1.msra.mxu0 %v133
  %1216 = vmatprep.subr.mxu0 0.0
  %1217 = vmatpush1.msra.mxu0 %v136
  %1218 = vmatprep.subr.mxu0 0.0
  %1219 = vmatpush1.msra.mxu0 %v139
  %1220 = vmatprep.subr.mxu0 0.0
  %1221 = vmatpush1.msra.mxu0 %v142
  %1222 = vmatprep.subr.mxu0 0.0
  %1223 = vmatpush1.msra.mxu0 %v145
  %1224 = vmatprep.subr.mxu0 0.0
  %1225 = vmatpush1.msra.mxu0 %v148
  %1226 = vmatprep.subr.mxu0 0.0
  %1227 = vmatpush1.msra.mxu0 %v151
  %1228 = vmatprep.subr.mxu0 0.0
  %1229 = vmatpush1.msra.mxu0 %v154
  %1230 = vmatprep.subr.mxu0 0.0
  %1231 = vmatpush1.msra.mxu0 %v157
  %1232 = vmatprep.subr.mxu0 0.0
  %1233 = vmatpush1.msra.mxu0 %v160
  %1234 = vmatprep.subr.mxu0 0.0
  %1235 = vmatpush1.msra.mxu0 %v163
  %1236 = vmatprep.subr.mxu0 0.0
  %1237 = vmatpush1.msra.mxu0 %v166
  %1238 = vmatprep.subr.mxu0 0.0
  %1239 = vmatpush1.msra.mxu0 0.0
  %1240 = vmatprep.subr.mxu0 0.0
  %1241 = vmatpush1.msra.mxu0 0.0
  %1242 = vmatprep.subr.mxu0 0.0
  %1243 = vmatpush1.msra.mxu0 0.0
  %1244 = vmatprep.subr.mxu0 0.0
  %1245 = vmatpush1.msra.mxu0 0.0
  %1246 = vmatprep.subr.mxu0 0.0
  %1247 = vmatpush1.msra.mxu0 0.0
  %1248 = vmatprep.subr.mxu0 0.0
  %1249 = vmatpush1.msra.mxu0 0.0
  %1250 = vmatprep.subr.mxu0 0.0
  %1251 = vmatpush1.msra.mxu0 0.0
  %1252 = vmatprep.subr.mxu0 0.0
  %1253 = vmatpush1.msra.mxu0 0.0
  %1254 = vmatprep.subr.mxu0 0.0
  %1255 = vmatpush1.msra.mxu0 0.0
  %1256 = vmatprep.subr.mxu0 0.0
  %1257 = vmatpush1.msra.mxu0 0.0
  %1258 = vmatprep.subr.mxu0 0.0
  %1259 = vmatpush1.msra.mxu0 0.0
  %1260 = vmatprep.subr.mxu0 0.0
  %1261 = vmatpush1.msra.mxu0 0.0
  %1262 = vmatprep.subr.mxu0 0.0
  %1263 = vmatpush1.msra.mxu0 0.0
  %1264 = vmatprep.subr.mxu0 0.0
  %1265 = vmatpush1.msra.mxu0 0.0
  %1266 = vmatprep.subr.mxu0 0.0
  %1267 = vmatpush1.msra.mxu0 0.0
  %1268 = vmatprep.subr.mxu0 0.0
  %1269 = vmatpush1.msra.mxu0 0.0
  %1270 = vmatprep.mubr.f32.mxu0 0.0
  %1271 = vmatmul.mubr.f32.gmra.mrb[0].mxu0 %v938
  %v1272 = vpop.f32.mrb[0].mxu0
  %v1273 = vadd.f32 0.0, %v1272
  %v1274 = vpop.f32.mrb[0].mxu0
  %1275 = vdwg.mxu0
  %v1276 = vadd.f32 %v1132, %v1202
  %v1277 = vxor.u32 %v1276, 2147483648
  %v1278 = vmul.f32 %v1277, 1.442695
  %v1279 = vpow.pop %v1278
  %v1280 = vadd.f32 %v1279, 1.0
  %v1281 = vrcp.pop %v1280
  %v1282 = vmul.f32 1.0, %v1281
  %v1283 = vadd.f32 %v1133, %v1204
  %v1284 = vxor.u32 %v1283, 2147483648
  %v1285 = vmul.f32 %v1284, 1.442695
  %v1286 = vpow.pop %v1285
  %v1287 = vadd.f32 %v1286, 1.0
  %v1288 = vrcp.pop %v1287
  %v1289 = vmul.f32 1.0, %v1288
  %v1290 = vadd.f32 %v1273, %v180
  %v1291 = vmul.f32 %v1282, %v1290
  %v1292 = vadd.f32 %v1134, %v1291
  %v1293 = vtanh.pop %v1292
  %v1294 = vsub.f32 1.0, %v1289
  %v1295 = vmul.f32 %v1294, %v1293
  %v1296 = vmul.f32 %v1289, %v938
  %v1297 = vadd.f32 %v1295, %v1296
  %s1298 = sadd.s32 %s185, 5
  %v1299 = vstv %s1298
  %vm1300 = vcmp.lt.s32.totalorder %v1299, %v182
  %v1301 = vsel %vm1300, 1, 0
  %v1302 = vcvt.s32.f32 %v1301
  %1304 = vset.pattern.permute.xlu0 0
  %1305 = vperm.xlu0 %1304, %v1302
  %v1306 = vpop.permute.xlu0 %1305
  %v1308 = vmul.f32 %v1306, %v1297
  %v1309 = vsub.f32 1.0, %v1302
  %1311 = vset.pattern.permute.xlu0 0
  %1312 = vperm.xlu0 %1311, %v1309
  %v1313 = vpop.permute.xlu0 %1312
  %v1315 = vmul.f32 %v1313, %v938
  %v1316 = vadd.f32 %v1308, %v1315
  %v1317 = vmul.f32 %v1306, %v1316
  %s1318 = scalar_lea.vmem %s61, 40
  %1319 = vst [vmem:[%s1318] sm:$0xff] %v1317
  %s1320 = scalar_lea.vmem %s0, 72
  %v1321 = vld [vmem:[%s1320] sm:$0xff]
  %v1322 = vld [vmem:[%s1320 + $0x8] sm:$0xff]
  %v1323 = vld [vmem:[%s1320 + $0x10] sm:$0xff]
  %1324 = vmatprep.subr.mxu0 %v71
  %1325 = vmatpush1.msra.mxu0 %v70
  %1326 = vmatprep.subr.mxu0 %v74
  %1327 = vmatpush1.msra.mxu0 %v73
  %1328 = vmatprep.subr.mxu0 %v77
  %1329 = vmatpush1.msra.mxu0 %v76
  %1330 = vmatprep.subr.mxu0 %v80
  %1331 = vmatpush1.msra.mxu0 %v79
  %1332 = vmatprep.subr.mxu0 %v83
  %1333 = vmatpush1.msra.mxu0 %v82
  %1334 = vmatprep.subr.mxu0 %v86
  %1335 = vmatpush1.msra.mxu0 %v85
  %1336 = vmatprep.subr.mxu0 %v89
  %1337 = vmatpush1.msra.mxu0 %v88
  %1338 = vmatprep.subr.mxu0 %v92
  %1339 = vmatpush1.msra.mxu0 %v91
  %1340 = vmatprep.subr.mxu0 %v95
  %1341 = vmatpush1.msra.mxu0 %v94
  %1342 = vmatprep.subr.mxu0 %v98
  %1343 = vmatpush1.msra.mxu0 %v97
  %1344 = vmatprep.subr.mxu0 %v101
  %1345 = vmatpush1.msra.mxu0 %v100
  %1346 = vmatprep.subr.mxu0 %v104
  %1347 = vmatpush1.msra.mxu0 %v103
  %1348 = vmatprep.subr.mxu0 %v107
  %1349 = vmatpush1.msra.mxu0 %v106
  %1350 = vmatprep.subr.mxu0 %v110
  %1351 = vmatpush1.msra.mxu0 %v109
  %1352 = vmatprep.subr.mxu0 %v113
  %1353 = vmatpush1.msra.mxu0 %v112
  %1354 = vmatprep.subr.mxu0 %v116
  %1355 = vmatpush1.msra.mxu0 %v115
  %1356 = vmatprep.subr.mxu0 0.0
  %1357 = vmatpush1.msra.mxu0 0.0
  %1358 = vmatprep.subr.mxu0 0.0
  %1359 = vmatpush1.msra.mxu0 0.0
  %1360 = vmatprep.subr.mxu0 0.0
  %1361 = vmatpush1.msra.mxu0 0.0
  %1362 = vmatprep.subr.mxu0 0.0
  %1363 = vmatpush1.msra.mxu0 0.0
  %1364 = vmatprep.subr.mxu0 0.0
  %1365 = vmatpush1.msra.mxu0 0.0
  %1366 = vmatprep.subr.mxu0 0.0
  %1367 = vmatpush1.msra.mxu0 0.0
  %1368 = vmatprep.subr.mxu0 0.0
  %1369 = vmatpush1.msra.mxu0 0.0
  %1370 = vmatprep.subr.mxu0 0.0
  %1371 = vmatpush1.msra.mxu0 0.0
  %1372 = vmatprep.subr.mxu0 0.0
  %1373 = vmatpush1.msra.mxu0 0.0
  %1374 = vmatprep.subr.mxu0 0.0
  %1375 = vmatpush1.msra.mxu0 0.0
  %1376 = vmatprep.subr.mxu0 0.0
  %1377 = vmatpush1.msra.mxu0 0.0
  %1378 = vmatprep.subr.mxu0 0.0
  %1379 = vmatpush1.msra.mxu0 0.0
  %1380 = vmatprep.subr.mxu0 0.0
  %1381 = vmatpush1.msra.mxu0 0.0
  %1382 = vmatprep.subr.mxu0 0.0
  %1383 = vmatpush1.msra.mxu0 0.0
  %1384 = vmatprep.subr.mxu0 0.0
  %1385 = vmatpush1.msra.mxu0 0.0
  %1386 = vmatprep.subr.mxu0 0.0
  %1387 = vmatpush1.msra.mxu0 0.0
  %1388 = vmatprep.mubr.f32.mxu0 0.0
  %1389 = vmatmul.mubr.f32.gmra.mrb[0].mxu0 %v1127
  %v1390 = vpop.f32.mrb[0].mxu0
  %v1391 = vadd.f32 0.0, %v1390
  %v1392 = vpop.f32.mrb[0].mxu0
  %v1393 = vadd.f32 0.0, %v1392
  %1394 = vdwg.mxu0
  %1395 = vmatprep.subr.mxu0 0.0
  %1396 = vmatpush1.msra.mxu0 %v72
  %1397 = vmatprep.subr.mxu0 0.0
  %1398 = vmatpush1.msra.mxu0 %v75
  %1399 = vmatprep.subr.mxu0 0.0
  %1400 = vmatpush1.msra.mxu0 %v78
  %1401 = vmatprep.subr.mxu0 0.0
  %1402 = vmatpush1.msra.mxu0 %v81
  %1403 = vmatprep.subr.mxu0 0.0
  %1404 = vmatpush1.msra.mxu0 %v84
  %1405 = vmatprep.subr.mxu0 0.0
  %1406 = vmatpush1.msra.mxu0 %v87
  %1407 = vmatprep.subr.mxu0 0.0
  %1408 = vmatpush1.msra.mxu0 %v90
  %1409 = vmatprep.subr.mxu0 0.0
  %1410 = vmatpush1.msra.mxu0 %v93
  %1411 = vmatprep.subr.mxu0 0.0
  %1412 = vmatpush1.msra.mxu0 %v96
  %1413 = vmatprep.subr.mxu0 0.0
  %1414 = vmatpush1.msra.mxu0 %v99
  %1415 = vmatprep.subr.mxu0 0.0
  %1416 = vmatpush1.msra.mxu0 %v102
  %1417 = vmatprep.subr.mxu0 0.0
  %1418 = vmatpush1.msra.mxu0 %v105
  %1419 = vmatprep.subr.mxu0 0.0
  %1420 = vmatpush1.msra.mxu0 %v108
  %1421 = vmatprep.subr.mxu0 0.0
  %1422 = vmatpush1.msra.mxu0 %v111
  %1423 = vmatprep.subr.mxu0 0.0
  %1424 = vmatpush1.msra.mxu0 %v114
  %1425 = vmatprep.subr.mxu0 0.0
  %1426 = vmatpush1.msra.mxu0 %v117
  %1427 = vmatprep.subr.mxu0 0.0
  %1428 = vmatpush1.msra.mxu0 0.0
  %1429 = vmatprep.subr.mxu0 0.0
  %1430 = vmatpush1.msra.mxu0 0.0
  %1431 = vmatprep.subr.mxu0 0.0
  %1432 = vmatpush1.msra.mxu0 0.0
  %1433 = vmatprep.subr.mxu0 0.0
  %1434 = vmatpush1.msra.mxu0 0.0
  %1435 = vmatprep.subr.mxu0 0.0
  %1436 = vmatpush1.msra.mxu0 0.0
  %1437 = vmatprep.subr.mxu0 0.0
  %1438 = vmatpush1.msra.mxu0 0.0
  %1439 = vmatprep.subr.mxu0 0.0
  %1440 = vmatpush1.msra.mxu0 0.0
  %1441 = vmatprep.subr.mxu0 0.0
  %1442 = vmatpush1.msra.mxu0 0.0
  %1443 = vmatprep.subr.mxu0 0.0
  %1444 = vmatpush1.msra.mxu0 0.0
  %1445 = vmatprep.subr.mxu0 0.0
  %1446 = vmatpush1.msra.mxu0 0.0
  %1447 = vmatprep.subr.mxu0 0.0
  %1448 = vmatpush1.msra.mxu0 0.0
  %1449 = vmatprep.subr.mxu0 0.0
  %1450 = vmatpush1.msra.mxu0 0.0
  %1451 = vmatprep.subr.mxu0 0.0
  %1452 = vmatpush1.msra.mxu0 0.0
  %1453 = vmatprep.subr.mxu0 0.0
  %1454 = vmatpush1.msra.mxu0 0.0
  %1455 = vmatprep.subr.mxu0 0.0
  %1456 = vmatpush1.msra.mxu0 0.0
  %1457 = vmatprep.subr.mxu0 0.0
  %1458 = vmatpush1.msra.mxu0 0.0
  %1459 = vmatprep.mubr.f32.mxu0 0.0
  %1460 = vmatmul.mubr.f32.gmra.mrb[0].mxu0 %v1127
  %v1461 = vpop.f32.mrb[0].mxu0
  %v1462 = vadd.f32 0.0, %v1461
  %v1463 = vpop.f32.mrb[0].mxu0
  %1464 = vdwg.mxu0
  %v1465 = vadd.f32 %v1321, %v1391
  %v1466 = vxor.u32 %v1465, 2147483648
  %v1467 = vmul.f32 %v1466, 1.442695
  %v1468 = vpow.pop %v1467
  %v1469 = vadd.f32 %v1468, 1.0
  %v1470 = vrcp.pop %v1469
  %v1471 = vmul.f32 1.0, %v1470
  %v1472 = vadd.f32 %v1322, %v1393
  %v1473 = vxor.u32 %v1472, 2147483648
  %v1474 = vmul.f32 %v1473, 1.442695
  %v1475 = vpow.pop %v1474
  %v1476 = vadd.f32 %v1475, 1.0
  %v1477 = vrcp.pop %v1476
  %v1478 = vmul.f32 1.0, %v1477
  %v1479 = vadd.f32 %v1462, %v172
  %v1480 = vmul.f32 %v1471, %v1479
  %v1481 = vadd.f32 %v1323, %v1480
  %v1482 = vtanh.pop %v1481
  %v1483 = vsub.f32 1.0, %v1478
  %v1484 = vmul.f32 %v1483, %v1482
  %v1485 = vmul.f32 %v1478, %v1127
  %v1486 = vadd.f32 %v1484, %v1485
  %s1487 = sadd.s32 %s183, 3
  %v1488 = vstv %s1487
  %vm1489 = vcmp.lt.s32.totalorder %v1488, %v182
  %v1490 = vsel %vm1489, 1, 0
  %v1491 = vcvt.s32.f32 %v1490
  %1493 = vset.pattern.permute.xlu0 0
  %1494 = vperm.xlu0 %1493, %v1491
  %v1495 = vpop.permute.xlu0 %1494
  %v1497 = vmul.f32 %v1495, %v1486
  %v1498 = vsub.f32 1.0, %v1491
  %1500 = vset.pattern.permute.xlu0 0
  %1501 = vperm.xlu0 %1500, %v1498
  %v1502 = vpop.permute.xlu0 %1501
  %v1504 = vmul.f32 %v1502, %v1127
  %v1505 = vadd.f32 %v1497, %v1504
  %v1506 = vmul.f32 %v1495, %v1505
  %s1507 = scalar_lea.vmem %s5, 24
  %1508 = vst [vmem:[%s1507] sm:$0xff] %v1506
  %s1509 = scalar_lea.vmem %s53, 96
  %v1510 = vld [vmem:[%s1509] sm:$0xff]
  %v1511 = vld [vmem:[%s1509 + $0x8] sm:$0xff]
  %v1512 = vld [vmem:[%s1509 + $0x10] sm:$0xff]
  %1513 = vmatprep.subr.mxu0 %v120
  %1514 = vmatpush1.msra.mxu0 %v119
  %1515 = vmatprep.subr.mxu0 %v123
  %1516 = vmatpush1.msra.mxu0 %v122
  %1517 = vmatprep.subr.mxu0 %v126
  %1518 = vmatpush1.msra.mxu0 %v125
  %1519 = vmatprep.subr.mxu0 %v129
  %1520 = vmatpush1.msra.mxu0 %v128
  %1521 = vmatprep.subr.mxu0 %v132
  %1522 = vmatpush1.msra.mxu0 %v131
  %1523 = vmatprep.subr.mxu0 %v135
  %1524 = vmatpush1.msra.mxu0 %v134
  %1525 = vmatprep.subr.mxu0 %v138
  %1526 = vmatpush1.msra.mxu0 %v137
  %1527 = vmatprep.subr.mxu0 %v141
  %1528 = vmatpush1.msra.mxu0 %v140
  %1529 = vmatprep.subr.mxu0 %v144
  %1530 = vmatpush1.msra.mxu0 %v143
  %1531 = vmatprep.subr.mxu0 %v147
  %1532 = vmatpush1.msra.mxu0 %v146
  %1533 = vmatprep.subr.mxu0 %v150
  %1534 = vmatpush1.msra.mxu0 %v149
  %1535 = vmatprep.subr.mxu0 %v153
  %1536 = vmatpush1.msra.mxu0 %v152
  %1537 = vmatprep.subr.mxu0 %v156
  %1538 = vmatpush1.msra.mxu0 %v155
  %1539 = vmatprep.subr.mxu0 %v159
  %1540 = vmatpush1.msra.mxu0 %v158
  %1541 = vmatprep.subr.mxu0 %v162
  %1542 = vmatpush1.msra.mxu0 %v161
  %1543 = vmatprep.subr.mxu0 %v165
  %1544 = vmatpush1.msra.mxu0 %v164
  %1545 = vmatprep.subr.mxu0 0.0
  %1546 = vmatpush1.msra.mxu0 0.0
  %1547 = vmatprep.subr.mxu0 0.0
  %1548 = vmatpush1.msra.mxu0 0.0
  %1549 = vmatprep.subr.mxu0 0.0
  %1550 = vmatpush1.msra.mxu0 0.0
  %1551 = vmatprep.subr.mxu0 0.0
  %1552 = vmatpush1.msra.mxu0 0.0
  %1553 = vmatprep.subr.mxu0 0.0
  %1554 = vmatpush1.msra.mxu0 0.0
  %1555 = vmatprep.subr.mxu0 0.0
  %1556 = vmatpush1.msra.mxu0 0.0
  %1557 = vmatprep.subr.mxu0 0.0
  %1558 = vmatpush1.msra.mxu0 0.0
  %1559 = vmatprep.subr.mxu0 0.0
  %1560 = vmatpush1.msra.mxu0 0.0
  %1561 = vmatprep.subr.mxu0 0.0
  %1562 = vmatpush1.msra.mxu0 0.0
  %1563 = vmatprep.subr.mxu0 0.0
  %1564 = vmatpush1.msra.mxu0 0.0
  %1565 = vmatprep.subr.mxu0 0.0
  %1566 = vmatpush1.msra.mxu0 0.0
  %1567 = vmatprep.subr.mxu0 0.0
  %1568 = vmatpush1.msra.mxu0 0.0
  %1569 = vmatprep.subr.mxu0 0.0
  %1570 = vmatpush1.msra.mxu0 0.0
  %1571 = vmatprep.subr.mxu0 0.0
  %1572 = vmatpush1.msra.mxu0 0.0
  %1573 = vmatprep.subr.mxu0 0.0
  %1574 = vmatpush1.msra.mxu0 0.0
  %1575 = vmatprep.subr.mxu0 0.0
  %1576 = vmatpush1.msra.mxu0 0.0
  %1577 = vmatprep.mubr.f32.mxu0 0.0
  %1578 = vmatmul.mubr.f32.gmra.mrb[0].mxu0 %v1316
  %v1579 = vpop.f32.mrb[0].mxu0
  %v1580 = vadd.f32 0.0, %v1579
  %v1581 = vpop.f32.mrb[0].mxu0
  %v1582 = vadd.f32 0.0, %v1581
  %1583 = vdwg.mxu0
  %1584 = vmatprep.subr.mxu0 0.0
  %1585 = vmatpush1.msra.mxu0 %v121
  %1586 = vmatprep.subr.mxu0 0.0
  %1587 = vmatpush1.msra.mxu0 %v124
  %1588 = vmatprep.subr.mxu0 0.0
  %1589 = vmatpush1.msra.mxu0 %v127
  %1590 = vmatprep.subr.mxu0 0.0
  %1591 = vmatpush1.msra.mxu0 %v130
  %1592 = vmatprep.subr.mxu0 0.0
  %1593 = vmatpush1.msra.mxu0 %v133
  %1594 = vmatprep.subr.mxu0 0.0
  %1595 = vmatpush1.msra.mxu0 %v136
  %1596 = vmatprep.subr.mxu0 0.0
  %1597 = vmatpush1.msra.mxu0 %v139
  %1598 = vmatprep.subr.mxu0 0.0
  %1599 = vmatpush1.msra.mxu0 %v142
  %1600 = vmatprep.subr.mxu0 0.0
  %1601 = vmatpush1.msra.mxu0 %v145
  %1602 = vmatprep.subr.mxu0 0.0
  %1603 = vmatpush1.msra.mxu0 %v148
  %1604 = vmatprep.subr.mxu0 0.0
  %1605 = vmatpush1.msra.mxu0 %v151
  %1606 = vmatprep.subr.mxu0 0.0
  %1607 = vmatpush1.msra.mxu0 %v154
  %1608 = vmatprep.subr.mxu0 0.0
  %1609 = vmatpush1.msra.mxu0 %v157
  %1610 = vmatprep.subr.mxu0 0.0
  %1611 = vmatpush1.msra.mxu0 %v160
  %1612 = vmatprep.subr.mxu0 0.0
  %1613 = vmatpush1.msra.mxu0 %v163
  %1614 = vmatprep.subr.mxu0 0.0
  %1615 = vmatpush1.msra.mxu0 %v166
  %1616 = vmatprep.subr.mxu0 0.0
  %1617 = vmatpush1.msra.mxu0 0.0
  %1618 = vmatprep.subr.mxu0 0.0
  %1619 = vmatpush1.msra.mxu0 0.0
  %1620 = vmatprep.subr.mxu0 0.0
  %1621 = vmatpush1.msra.mxu0 0.0
  %1622 = vmatprep.subr.mxu0 0.0
  %1623 = vmatpush1.msra.mxu0 0.0
  %1624 = vmatprep.subr.mxu0 0.0
  %1625 = vmatpush1.msra.mxu0 0.0
  %1626 = vmatprep.subr.mxu0 0.0
  %1627 = vmatpush1.msra.mxu0 0.0
  %1628 = vmatprep.subr.mxu0 0.0
  %1629 = vmatpush1.msra.mxu0 0.0
  %1630 = vmatprep.subr.mxu0 0.0
  %1631 = vmatpush1.msra.mxu0 0.0
  %1632 = vmatprep.subr.mxu0 0.0
  %1633 = vmatpush1.msra.mxu0 0.0
  %1634 = vmatprep.subr.mxu0 0.0
  %1635 = vmatpush1.msra.mxu0 0.0
  %1636 = vmatprep.subr.mxu0 0.0
  %1637 = vmatpush1.msra.mxu0 0.0
  %1638 = vmatprep.subr.mxu0 0.0
  %1639 = vmatpush1.msra.mxu0 0.0
  %1640 = vmatprep.subr.mxu0 0.0
  %1641 = vmatpush1.msra.mxu0 0.0
  %1642 = vmatprep.subr.mxu0 0.0
  %1643 = vmatpush1.msra.mxu0 0.0
  %1644 = vmatprep.subr.mxu0 0.0
  %1645 = vmatpush1.msra.mxu0 0.0
  %1646 = vmatprep.subr.mxu0 0.0
  %1647 = vmatpush1.msra.mxu0 0.0
  %1648 = vmatprep.mubr.f32.mxu0 0.0
  %1649 = vmatmul.mubr.f32.gmra.mrb[0].mxu0 %v1316
  %v1650 = vpop.f32.mrb[0].mxu0
  %v1651 = vadd.f32 0.0, %v1650
  %v1652 = vpop.f32.mrb[0].mxu0
  %1653 = vdwg.mxu0
  %v1654 = vadd.f32 %v1510, %v1580
  %v1655 = vxor.u32 %v1654, 2147483648
  %v1656 = vmul.f32 %v1655, 1.442695
  %v1657 = vpow.pop %v1656
  %v1658 = vadd.f32 %v1657, 1.0
  %v1659 = vrcp.pop %v1658
  %v1660 = vmul.f32 1.0, %v1659
  %v1661 = vadd.f32 %v1511, %v1582
  %v1662 = vxor.u32 %v1661, 2147483648
  %v1663 = vmul.f32 %v1662, 1.442695
  %v1664 = vpow.pop %v1663
  %v1665 = vadd.f32 %v1664, 1.0
  %v1666 = vrcp.pop %v1665
  %v1667 = vmul.f32 1.0, %v1666
  %v1668 = vadd.f32 %v1651, %v180
  %v1669 = vmul.f32 %v1660, %v1668
  %v1670 = vadd.f32 %v1512, %v1669
  %v1671 = vtanh.pop %v1670
  %v1672 = vsub.f32 1.0, %v1667
  %v1673 = vmul.f32 %v1672, %v1671
  %v1674 = vmul.f32 %v1667, %v1316
  %v1675 = vadd.f32 %v1673, %v1674
  %s1676 = sadd.s32 %s185, 4
  %v1677 = vstv %s1676
  %vm1678 = vcmp.lt.s32.totalorder %v1677, %v182
  %v1679 = vsel %vm1678, 1, 0
  %v1680 = vcvt.s32.f32 %v1679
  %1682 = vset.pattern.permute.xlu0 0
  %1683 = vperm.xlu0 %1682, %v1680
  %v1684 = vpop.permute.xlu0 %1683
  %v1686 = vmul.f32 %v1684, %v1675
  %v1687 = vsub.f32 1.0, %v1680
  %1689 = vset.pattern.permute.xlu0 0
  %1690 = vperm.xlu0 %1689, %v1687
  %v1691 = vpop.permute.xlu0 %1690
  %v1693 = vmul.f32 %v1691, %v1316
  %v1694 = vadd.f32 %v1686, %v1693
  %v1695 = vmul.f32 %v1684, %v1694
  %s1696 = scalar_lea.vmem %s61, 32
  %1697 = vst [vmem:[%s1696] sm:$0xff] %v1695
  %s1698 = scalar_lea.vmem %s0, 96
  %v1699 = vld [vmem:[%s1698] sm:$0xff]
  %v1700 = vld [vmem:[%s1698 + $0x8] sm:$0xff]
  %v1701 = vld [vmem:[%s1698 + $0x10] sm:$0xff]
  %1702 = vmatprep.subr.mxu0 %v71
  %1703 = vmatpush1.msra.mxu0 %v70
  %1704 = vmatprep.subr.mxu0 %v74
  %1705 = vmatpush1.msra.mxu0 %v73
  %1706 = vmatprep.subr.mxu0 %v77
  %1707 = vmatpush1.msra.mxu0 %v76
  %1708 = vmatprep.subr.mxu0 %v80
  %1709 = vmatpush1.msra.mxu0 %v79
  %1710 = vmatprep.subr.mxu0 %v83
  %1711 = vmatpush1.msra.mxu0 %v82
  %1712 = vmatprep.subr.mxu0 %v86
  %1713 = vmatpush1.msra.mxu0 %v85
  %1714 = vmatprep.subr.mxu0 %v89
  %1715 = vmatpush1.msra.mxu0 %v88
  %1716 = vmatprep.subr.mxu0 %v92
  %1717 = vmatpush1.msra.mxu0 %v91
  %1718 = vmatprep.subr.mxu0 %v95
  %1719 = vmatpush1.msra.mxu0 %v94
  %1720 = vmatprep.subr.mxu0 %v98
  %1721 = vmatpush1.msra.mxu0 %v97
  %1722 = vmatprep.subr.mxu0 %v101
  %1723 = vmatpush1.msra.mxu0 %v100
  %1724 = vmatprep.subr.mxu0 %v104
  %1725 = vmatpush1.msra.mxu0 %v103
  %1726 = vmatprep.subr.mxu0 %v107
  %1727 = vmatpush1.msra.mxu0 %v106
  %1728 = vmatprep.subr.mxu0 %v110
  %1729 = vmatpush1.msra.mxu0 %v109
  %1730 = vmatprep.subr.mxu0 %v113
  %1731 = vmatpush1.msra.mxu0 %v112
  %1732 = vmatprep.subr.mxu0 %v116
  %1733 = vmatpush1.msra.mxu0 %v115
  %1734 = vmatprep.subr.mxu0 0.0
  %1735 = vmatpush1.msra.mxu0 0.0
  %1736 = vmatprep.subr.mxu0 0.0
  %1737 = vmatpush1.msra.mxu0 0.0
  %1738 = vmatprep.subr.mxu0 0.0
  %1739 = vmatpush1.msra.mxu0 0.0
  %1740 = vmatprep.subr.mxu0 0.0
  %1741 = vmatpush1.msra.mxu0 0.0
  %1742 = vmatprep.subr.mxu0 0.0
  %1743 = vmatpush1.msra.mxu0 0.0
  %1744 = vmatprep.subr.mxu0 0.0
  %1745 = vmatpush1.msra.mxu0 0.0
  %1746 = vmatprep.subr.mxu0 0.0
  %1747 = vmatpush1.msra.mxu0 0.0
  %1748 = vmatprep.subr.mxu0 0.0
  %1749 = vmatpush1.msra.mxu0 0.0
  %1750 = vmatprep.subr.mxu0 0.0
  %1751 = vmatpush1.msra.mxu0 0.0
  %1752 = vmatprep.subr.mxu0 0.0
  %1753 = vmatpush1.msra.mxu0 0.0
  %1754 = vmatprep.subr.mxu0 0.0
  %1755 = vmatpush1.msra.mxu0 0.0
  %1756 = vmatprep.subr.mxu0 0.0
  %1757 = vmatpush1.msra.mxu0 0.0
  %1758 = vmatprep.subr.mxu0 0.0
  %1759 = vmatpush1.msra.mxu0 0.0
  %1760 = vmatprep.subr.mxu0 0.0
  %1761 = vmatpush1.msra.mxu0 0.0
  %1762 = vmatprep.subr.mxu0 0.0
  %1763 = vmatpush1.msra.mxu0 0.0
  %1764 = vmatprep.subr.mxu0 0.0
  %1765 = vmatpush1.msra.mxu0 0.0
  %1766 = vmatprep.mubr.f32.mxu0 0.0
  %1767 = vmatmul.mubr.f32.gmra.mrb[0].mxu0 %v1505
  %v1768 = vpop.f32.mrb[0].mxu0
  %v1769 = vadd.f32 0.0, %v1768
  %v1770 = vpop.f32.mrb[0].mxu0
  %v1771 = vadd.f32 0.0, %v1770
  %1772 = vdwg.mxu0
  %1773 = vmatprep.subr.mxu0 0.0
  %1774 = vmatpush1.msra.mxu0 %v72
  %1775 = vmatprep.subr.mxu0 0.0
  %1776 = vmatpush1.msra.mxu0 %v75
  %1777 = vmatprep.subr.mxu0 0.0
  %1778 = vmatpush1.msra.mxu0 %v78
  %1779 = vmatprep.subr.mxu0 0.0
  %1780 = vmatpush1.msra.mxu0 %v81
  %1781 = vmatprep.subr.mxu0 0.0
  %1782 = vmatpush1.msra.mxu0 %v84
  %1783 = vmatprep.subr.mxu0 0.0
  %1784 = vmatpush1.msra.mxu0 %v87
  %1785 = vmatprep.subr.mxu0 0.0
  %1786 = vmatpush1.msra.mxu0 %v90
  %1787 = vmatprep.subr.mxu0 0.0
  %1788 = vmatpush1.msra.mxu0 %v93
  %1789 = vmatprep.subr.mxu0 0.0
  %1790 = vmatpush1.msra.mxu0 %v96
  %1791 = vmatprep.subr.mxu0 0.0
  %1792 = vmatpush1.msra.mxu0 %v99
  %1793 = vmatprep.subr.mxu0 0.0
  %1794 = vmatpush1.msra.mxu0 %v102
  %1795 = vmatprep.subr.mxu0 0.0
  %1796 = vmatpush1.msra.mxu0 %v105
  %1797 = vmatprep.subr.mxu0 0.0
  %1798 = vmatpush1.msra.mxu0 %v108
  %1799 = vmatprep.subr.mxu0 0.0
  %1800 = vmatpush1.msra.mxu0 %v111
  %1801 = vmatprep.subr.mxu0 0.0
  %1802 = vmatpush1.msra.mxu0 %v114
  %1803 = vmatprep.subr.mxu0 0.0
  %1804 = vmatpush1.msra.mxu0 %v117
  %1805 = vmatprep.subr.mxu0 0.0
  %1806 = vmatpush1.msra.mxu0 0.0
  %1807 = vmatprep.subr.mxu0 0.0
  %1808 = vmatpush1.msra.mxu0 0.0
  %1809 = vmatprep.subr.mxu0 0.0
  %1810 = vmatpush1.msra.mxu0 0.0
  %1811 = vmatprep.subr.mxu0 0.0
  %1812 = vmatpush1.msra.mxu0 0.0
  %1813 = vmatprep.subr.mxu0 0.0
  %1814 = vmatpush1.msra.mxu0 0.0
  %1815 = vmatprep.subr.mxu0 0.0
  %1816 = vmatpush1.msra.mxu0 0.0
  %1817 = vmatprep.subr.mxu0 0.0
  %1818 = vmatpush1.msra.mxu0 0.0
  %1819 = vmatprep.subr.mxu0 0.0
  %1820 = vmatpush1.msra.mxu0 0.0
  %1821 = vmatprep.subr.mxu0 0.0
  %1822 = vmatpush1.msra.mxu0 0.0
  %1823 = vmatprep.subr.mxu0 0.0
  %1824 = vmatpush1.msra.mxu0 0.0
  %1825 = vmatprep.subr.mxu0 0.0
  %1826 = vmatpush1.msra.mxu0 0.0
  %1827 = vmatprep.subr.mxu0 0.0
  %1828 = vmatpush1.msra.mxu0 0.0
  %1829 = vmatprep.subr.mxu0 0.0
  %1830 = vmatpush1.msra.mxu0 0.0
  %1831 = vmatprep.subr.mxu0 0.0
  %1832 = vmatpush1.msra.mxu0 0.0
  %1833 = vmatprep.subr.mxu0 0.0
  %1834 = vmatpush1.msra.mxu0 0.0
  %1835 = vmatprep.subr.mxu0 0.0
  %1836 = vmatpush1.msra.mxu0 0.0
  %1837 = vmatprep.mubr.f32.mxu0 0.0
  %1838 = vmatmul.mubr.f32.gmra.mrb[0].mxu0 %v1505
  %v1839 = vpop.f32.mrb[0].mxu0
  %v1840 = vadd.f32 0.0, %v1839
  %v1841 = vpop.f32.mrb[0].mxu0
  %1842 = vdwg.mxu0
  %v1843 = vadd.f32 %v1699, %v1769
  %v1844 = vxor.u32 %v1843, 2147483648
  %v1845 = vmul.f32 %v1844, 1.442695
  %v1846 = vpow.pop %v1845
  %v1847 = vadd.f32 %v1846, 1.0
  %v1848 = vrcp.pop %v1847
  %v1849 = vmul.f32 1.0, %v1848
  %v1850 = vadd.f32 %v1700, %v1771
  %v1851 = vxor.u32 %v1850, 2147483648
  %v1852 = vmul.f32 %v1851, 1.442695
  %v1853 = vpow.pop %v1852
  %v1854 = vadd.f32 %v1853, 1.0
  %v1855 = vrcp.pop %v1854
  %v1856 = vmul.f32 1.0, %v1855
  %v1857 = vadd.f32 %v1840, %v172
  %v1858 = vmul.f32 %v1849, %v1857
  %v1859 = vadd.f32 %v1701, %v1858
  %v1860 = vtanh.pop %v1859
  %v1861 = vsub.f32 1.0, %v1856
  %v1862 = vmul.f32 %v1861, %v1860
  %v1863 = vmul.f32 %v1856, %v1505
  %v1864 = vadd.f32 %v1862, %v1863
  %s1865 = sadd.s32 %s183, 4
  %v1866 = vstv %s1865
  %vm1867 = vcmp.lt.s32.totalorder %v1866, %v182
  %v1868 = vsel %vm1867, 1, 0
  %v1869 = vcvt.s32.f32 %v1868
  %1871 = vset.pattern.permute.xlu0 0
  %1872 = vperm.xlu0 %1871, %v1869
  %v1873 = vpop.permute.xlu0 %1872
  %v1875 = vmul.f32 %v1873, %v1864
  %v1876 = vsub.f32 1.0, %v1869
  %1878 = vset.pattern.permute.xlu0 0
  %1879 = vperm.xlu0 %1878, %v1876
  %v1880 = vpop.permute.xlu0 %1879
  %v1882 = vmul.f32 %v1880, %v1505
  %v1883 = vadd.f32 %v1875, %v1882
  %v1884 = vmul.f32 %v1873, %v1883
  %s1885 = scalar_lea.vmem %s5, 32
  %1886 = vst [vmem:[%s1885] sm:$0xff] %v1884
  %s1887 = scalar_lea.vmem %s53, 72
  %v1888 = vld [vmem:[%s1887] sm:$0xff]
  %v1889 = vld [vmem:[%s1887 + $0x8] sm:$0xff]
  %v1890 = vld [vmem:[%s1887 + $0x10] sm:$0xff]
  %1891 = vmatprep.subr.mxu0 %v120
  %1892 = vmatpush1.msra.mxu0 %v119
  %1893 = vmatprep.subr.mxu0 %v123
  %1894 = vmatpush1.msra.mxu0 %v122
  %1895 = vmatprep.subr.mxu0 %v126
  %1896 = vmatpush1.msra.mxu0 %v125
  %1897 = vmatprep.subr.mxu0 %v129
  %1898 = vmatpush1.msra.mxu0 %v128
  %1899 = vmatprep.subr.mxu0 %v132
  %1900 = vmatpush1.msra.mxu0 %v131
  %1901 = vmatprep.subr.mxu0 %v135
  %1902 = vmatpush1.msra.mxu0 %v134
  %1903 = vmatprep.subr.mxu0 %v138
  %1904 = vmatpush1.msra.mxu0 %v137
  %1905 = vmatprep.subr.mxu0 %v141
  %1906 = vmatpush1.msra.mxu0 %v140
  %1907 = vmatprep.subr.mxu0 %v144
  %1908 = vmatpush1.msra.mxu0 %v143
  %1909 = vmatprep.subr.mxu0 %v147
  %1910 = vmatpush1.msra.mxu0 %v146
  %1911 = vmatprep.subr.mxu0 %v150
  %1912 = vmatpush1.msra.mxu0 %v149
  %1913 = vmatprep.subr.mxu0 %v153
  %1914 = vmatpush1.msra.mxu0 %v152
  %1915 = vmatprep.subr.mxu0 %v156
  %1916 = vmatpush1.msra.mxu0 %v155
  %1917 = vmatprep.subr.mxu0 %v159
  %1918 = vmatpush1.msra.mxu0 %v158
  %1919 = vmatprep.subr.mxu0 %v162
  %1920 = vmatpush1.msra.mxu0 %v161
  %1921 = vmatprep.subr.mxu0 %v165
  %1922 = vmatpush1.msra.mxu0 %v164
  %1923 = vmatprep.subr.mxu0 0.0
  %1924 = vmatpush1.msra.mxu0 0.0
  %1925 = vmatprep.subr.mxu0 0.0
  %1926 = vmatpush1.msra.mxu0 0.0
  %1927 = vmatprep.subr.mxu0 0.0
  %1928 = vmatpush1.msra.mxu0 0.0
  %1929 = vmatprep.subr.mxu0 0.0
  %1930 = vmatpush1.msra.mxu0 0.0
  %1931 = vmatprep.subr.mxu0 0.0
  %1932 = vmatpush1.msra.mxu0 0.0
  %1933 = vmatprep.subr.mxu0 0.0
  %1934 = vmatpush1.msra.mxu0 0.0
  %1935 = vmatprep.subr.mxu0 0.0
  %1936 = vmatpush1.msra.mxu0 0.0
  %1937 = vmatprep.subr.mxu0 0.0
  %1938 = vmatpush1.msra.mxu0 0.0
  %1939 = vmatprep.subr.mxu0 0.0
  %1940 = vmatpush1.msra.mxu0 0.0
  %1941 = vmatprep.subr.mxu0 0.0
  %1942 = vmatpush1.msra.mxu0 0.0
  %1943 = vmatprep.subr.mxu0 0.0
  %1944 = vmatpush1.msra.mxu0 0.0
  %1945 = vmatprep.subr.mxu0 0.0
  %1946 = vmatpush1.msra.mxu0 0.0
  %1947 = vmatprep.subr.mxu0 0.0
  %1948 = vmatpush1.msra.mxu0 0.0
  %1949 = vmatprep.subr.mxu0 0.0
  %1950 = vmatpush1.msra.mxu0 0.0
  %1951 = vmatprep.subr.mxu0 0.0
  %1952 = vmatpush1.msra.mxu0 0.0
  %1953 = vmatprep.subr.mxu0 0.0
  %1954 = vmatpush1.msra.mxu0 0.0
  %1955 = vmatprep.mubr.f32.mxu0 0.0
  %1956 = vmatmul.mubr.f32.gmra.mrb[0].mxu0 %v1694
  %v1957 = vpop.f32.mrb[0].mxu0
  %v1958 = vadd.f32 0.0, %v1957
  %v1959 = vpop.f32.mrb[0].mxu0
  %v1960 = vadd.f32 0.0, %v1959
  %1961 = vdwg.mxu0
  %1962 = vmatprep.subr.mxu0 0.0
  %1963 = vmatpush1.msra.mxu0 %v121
  %1964 = vmatprep.subr.mxu0 0.0
  %1965 = vmatpush1.msra.mxu0 %v124
  %1966 = vmatprep.subr.mxu0 0.0
  %1967 = vmatpush1.msra.mxu0 %v127
  %1968 = vmatprep.subr.mxu0 0.0
  %1969 = vmatpush1.msra.mxu0 %v130
  %1970 = vmatprep.subr.mxu0 0.0
  %1971 = vmatpush1.msra.mxu0 %v133
  %1972 = vmatprep.subr.mxu0 0.0
  %1973 = vmatpush1.msra.mxu0 %v136
  %1974 = vmatprep.subr.mxu0 0.0
  %1975 = vmatpush1.msra.mxu0 %v139
  %1976 = vmatprep.subr.mxu0 0.0
  %1977 = vmatpush1.msra.mxu0 %v142
  %1978 = vmatprep.subr.mxu0 0.0
  %1979 = vmatpush1.msra.mxu0 %v145
  %1980 = vmatprep.subr.mxu0 0.0
  %1981 = vmatpush1.msra.mxu0 %v148
  %1982 = vmatprep.subr.mxu0 0.0
  %1983 = vmatpush1.msra.mxu0 %v151
  %1984 = vmatprep.subr.mxu0 0.0
  %1985 = vmatpush1.msra.mxu0 %v154
  %1986 = vmatprep.subr.mxu0 0.0
  %1987 = vmatpush1.msra.mxu0 %v157
  %1988 = vmatprep.subr.mxu0 0.0
  %1989 = vmatpush1.msra.mxu0 %v160
  %1990 = vmatprep.subr.mxu0 0.0
  %1991 = vmatpush1.msra.mxu0 %v163
  %1992 = vmatprep.subr.mxu0 0.0
  %1993 = vmatpush1.msra.mxu0 %v166
  %1994 = vmatprep.subr.mxu0 0.0
  %1995 = vmatpush1.msra.mxu0 0.0
  %1996 = vmatprep.subr.mxu0 0.0
  %1997 = vmatpush1.msra.mxu0 0.0
  %1998 = vmatprep.subr.mxu0 0.0
  %1999 = vmatpush1.msra.mxu0 0.0
  %2000 = vmatprep.subr.mxu0 0.0
  %2001 = vmatpush1.msra.mxu0 0.0
  %2002 = vmatprep.subr.mxu0 0.0
  %2003 = vmatpush1.msra.mxu0 0.0
  %2004 = vmatprep.subr.mxu0 0.0
  %2005 = vmatpush1.msra.mxu0 0.0
  %2006 = vmatprep.subr.mxu0 0.0
  %2007 = vmatpush1.msra.mxu0 0.0
  %2008 = vmatprep.subr.mxu0 0.0
  %2009 = vmatpush1.msra.mxu0 0.0
  %2010 = vmatprep.subr.mxu0 0.0
  %2011 = vmatpush1.msra.mxu0 0.0
  %2012 = vmatprep.subr.mxu0 0.0
  %2013 = vmatpush1.msra.mxu0 0.0
  %2014 = vmatprep.subr.mxu0 0.0
  %2015 = vmatpush1.msra.mxu0 0.0
  %2016 = vmatprep.subr.mxu0 0.0
  %2017 = vmatpush1.msra.mxu0 0.0
  %2018 = vmatprep.subr.mxu0 0.0
  %2019 = vmatpush1.msra.mxu0 0.0
  %2020 = vmatprep.subr.mxu0 0.0
  %2021 = vmatpush1.msra.mxu0 0.0
  %2022 = vmatprep.subr.mxu0 0.0
  %2023 = vmatpush1.msra.mxu0 0.0
  %2024 = vmatprep.subr.mxu0 0.0
  %2025 = vmatpush1.msra.mxu0 0.0
  %2026 = vmatprep.mubr.f32.mxu0 0.0
  %2027 = vmatmul.mubr.f32.gmra.mrb[0].mxu0 %v1694
  %v2028 = vpop.f32.mrb[0].mxu0
  %v2029 = vadd.f32 0.0, %v2028
  %v2030 = vpop.f32.mrb[0].mxu0
  %2031 = vdwg.mxu0
  %v2032 = vadd.f32 %v1888, %v1958
  %v2033 = vxor.u32 %v2032, 2147483648
  %v2034 = vmul.f32 %v2033, 1.442695
  %v2035 = vpow.pop %v2034
  %v2036 = vadd.f32 %v2035, 1.0
  %v2037 = vrcp.pop %v2036
  %v2038 = vmul.f32 1.0, %v2037
  %v2039 = vadd.f32 %v1889, %v1960
  %v2040 = vxor.u32 %v2039, 2147483648
  %v2041 = vmul.f32 %v2040, 1.442695
  %v2042 = vpow.pop %v2041
  %v2043 = vadd.f32 %v2042, 1.0
  %v2044 = vrcp.pop %v2043
  %v2045 = vmul.f32 1.0, %v2044
  %v2046 = vadd.f32 %v2029, %v180
  %v2047 = vmul.f32 %v2038, %v2046
  %v2048 = vadd.f32 %v1890, %v2047
  %v2049 = vtanh.pop %v2048
  %v2050 = vsub.f32 1.0, %v2045
  %v2051 = vmul.f32 %v2050, %v2049
  %v2052 = vmul.f32 %v2045, %v1694
  %v2053 = vadd.f32 %v2051, %v2052
  %s2054 = sadd.s32 %s185, 3
  %v2055 = vstv %s2054
  %vm2056 = vcmp.lt.s32.totalorder %v2055, %v182
  %v2057 = vsel %vm2056, 1, 0
  %v2058 = vcvt.s32.f32 %v2057
  %2060 = vset.pattern.permute.xlu0 0
  %2061 = vperm.xlu0 %2060, %v2058
  %v2062 = vpop.permute.xlu0 %2061
  %v2064 = vmul.f32 %v2062, %v2053
  %v2065 = vsub.f32 1.0, %v2058
  %2067 = vset.pattern.permute.xlu0 0
  %2068 = vperm.xlu0 %2067, %v2065
  %v2069 = vpop.permute.xlu0 %2068
  %v2071 = vmul.f32 %v2069, %v1694
  %v2072 = vadd.f32 %v2064, %v2071
  %v2073 = vmul.f32 %v2062, %v2072
  %s2074 = scalar_lea.vmem %s61, 24
  %2075 = vst [vmem:[%s2074] sm:$0xff] %v2073
  %s2076 = scalar_lea.vmem %s0, 120
  %v2077 = vld [vmem:[%s2076] sm:$0xff]
  %v2078 = vld [vmem:[%s2076 + $0x8] sm:$0xff]
  %v2079 = vld [vmem:[%s2076 + $0x10] sm:$0xff]
  %2080 = vmatprep.subr.mxu0 %v71
  %2081 = vmatpush1.msra.mxu0 %v70
  %2082 = vmatprep.subr.mxu0 %v74
  %2083 = vmatpush1.msra.mxu0 %v73
  %2084 = vmatprep.subr.mxu0 %v77
  %2085 = vmatpush1.msra.mxu0 %v76
  %2086 = vmatprep.subr.mxu0 %v80
  %2087 = vmatpush1.msra.mxu0 %v79
  %2088 = vmatprep.subr.mxu0 %v83
  %2089 = vmatpush1.msra.mxu0 %v82
  %2090 = vmatprep.subr.mxu0 %v86
  %2091 = vmatpush1.msra.mxu0 %v85
  %2092 = vmatprep.subr.mxu0 %v89
  %2093 = vmatpush1.msra.mxu0 %v88
  %2094 = vmatprep.subr.mxu0 %v92
  %2095 = vmatpush1.msra.mxu0 %v91
  %2096 = vmatprep.subr.mxu0 %v95
  %2097 = vmatpush1.msra.mxu0 %v94
  %2098 = vmatprep.subr.mxu0 %v98
  %2099 = vmatpush1.msra.mxu0 %v97
  %2100 = vmatprep.subr.mxu0 %v101
  %2101 = vmatpush1.msra.mxu0 %v100
  %2102 = vmatprep.subr.mxu0 %v104
  %2103 = vmatpush1.msra.mxu0 %v103
  %2104 = vmatprep.subr.mxu0 %v107
  %2105 = vmatpush1.msra.mxu0 %v106
  %2106 = vmatprep.subr.mxu0 %v110
  %2107 = vmatpush1.msra.mxu0 %v109
  %2108 = vmatprep.subr.mxu0 %v113
  %2109 = vmatpush1.msra.mxu0 %v112
  %2110 = vmatprep.subr.mxu0 %v116
  %2111 = vmatpush1.msra.mxu0 %v115
  %2112 = vmatprep.subr.mxu0 0.0
  %2113 = vmatpush1.msra.mxu0 0.0
  %2114 = vmatprep.subr.mxu0 0.0
  %2115 = vmatpush1.msra.mxu0 0.0
  %2116 = vmatprep.subr.mxu0 0.0
  %2117 = vmatpush1.msra.mxu0 0.0
  %2118 = vmatprep.subr.mxu0 0.0
  %2119 = vmatpush1.msra.mxu0 0.0
  %2120 = vmatprep.subr.mxu0 0.0
  %2121 = vmatpush1.msra.mxu0 0.0
  %2122 = vmatprep.subr.mxu0 0.0
  %2123 = vmatpush1.msra.mxu0 0.0
  %2124 = vmatprep.subr.mxu0 0.0
  %2125 = vmatpush1.msra.mxu0 0.0
  %2126 = vmatprep.subr.mxu0 0.0
  %2127 = vmatpush1.msra.mxu0 0.0
  %2128 = vmatprep.subr.mxu0 0.0
  %2129 = vmatpush1.msra.mxu0 0.0
  %2130 = vmatprep.subr.mxu0 0.0
  %2131 = vmatpush1.msra.mxu0 0.0
  %2132 = vmatprep.subr.mxu0 0.0
  %2133 = vmatpush1.msra.mxu0 0.0
  %2134 = vmatprep.subr.mxu0 0.0
  %2135 = vmatpush1.msra.mxu0 0.0
  %2136 = vmatprep.subr.mxu0 0.0
  %2137 = vmatpush1.msra.mxu0 0.0
  %2138 = vmatprep.subr.mxu0 0.0
  %2139 = vmatpush1.msra.mxu0 0.0
  %2140 = vmatprep.subr.mxu0 0.0
  %2141 = vmatpush1.msra.mxu0 0.0
  %2142 = vmatprep.subr.mxu0 0.0
  %2143 = vmatpush1.msra.mxu0 0.0
  %2144 = vmatprep.mubr.f32.mxu0 0.0
  %2145 = vmatmul.mubr.f32.gmra.mrb[0].mxu0 %v1883
  %v2146 = vpop.f32.mrb[0].mxu0
  %v2147 = vadd.f32 0.0, %v2146
  %v2148 = vpop.f32.mrb[0].mxu0
  %v2149 = vadd.f32 0.0, %v2148
  %2150 = vdwg.mxu0
  %2151 = vmatprep.subr.mxu0 0.0
  %2152 = vmatpush1.msra.mxu0 %v72
  %2153 = vmatprep.subr.mxu0 0.0
  %2154 = vmatpush1.msra.mxu0 %v75
  %2155 = vmatprep.subr.mxu0 0.0
  %2156 = vmatpush1.msra.mxu0 %v78
  %2157 = vmatprep.subr.mxu0 0.0
  %2158 = vmatpush1.msra.mxu0 %v81
  %2159 = vmatprep.subr.mxu0 0.0
  %2160 = vmatpush1.msra.mxu0 %v84
  %2161 = vmatprep.subr.mxu0 0.0
  %2162 = vmatpush1.msra.mxu0 %v87
  %2163 = vmatprep.subr.mxu0 0.0
  %2164 = vmatpush1.msra.mxu0 %v90
  %2165 = vmatprep.subr.mxu0 0.0
  %2166 = vmatpush1.msra.mxu0 %v93
  %2167 = vmatprep.subr.mxu0 0.0
  %2168 = vmatpush1.msra.mxu0 %v96
  %2169 = vmatprep.subr.mxu0 0.0
  %2170 = vmatpush1.msra.mxu0 %v99
  %2171 = vmatprep.subr.mxu0 0.0
  %2172 = vmatpush1.msra.mxu0 %v102
  %2173 = vmatprep.subr.mxu0 0.0
  %2174 = vmatpush1.msra.mxu0 %v105
  %2175 = vmatprep.subr.mxu0 0.0
  %2176 = vmatpush1.msra.mxu0 %v108
  %2177 = vmatprep.subr.mxu0 0.0
  %2178 = vmatpush1.msra.mxu0 %v111
  %2179 = vmatprep.subr.mxu0 0.0
  %2180 = vmatpush1.msra.mxu0 %v114
  %2181 = vmatprep.subr.mxu0 0.0
  %2182 = vmatpush1.msra.mxu0 %v117
  %2183 = vmatprep.subr.mxu0 0.0
  %2184 = vmatpush1.msra.mxu0 0.0
  %2185 = vmatprep.subr.mxu0 0.0
  %2186 = vmatpush1.msra.mxu0 0.0
  %2187 = vmatprep.subr.mxu0 0.0
  %2188 = vmatpush1.msra.mxu0 0.0
  %2189 = vmatprep.subr.mxu0 0.0
  %2190 = vmatpush1.msra.mxu0 0.0
  %2191 = vmatprep.subr.mxu0 0.0
  %2192 = vmatpush1.msra.mxu0 0.0
  %2193 = vmatprep.subr.mxu0 0.0
  %2194 = vmatpush1.msra.mxu0 0.0
  %2195 = vmatprep.subr.mxu0 0.0
  %2196 = vmatpush1.msra.mxu0 0.0
  %2197 = vmatprep.subr.mxu0 0.0
  %2198 = vmatpush1.msra.mxu0 0.0
  %2199 = vmatprep.subr.mxu0 0.0
  %2200 = vmatpush1.msra.mxu0 0.0
  %2201 = vmatprep.subr.mxu0 0.0
  %2202 = vmatpush1.msra.mxu0 0.0
  %2203 = vmatprep.subr.mxu0 0.0
  %2204 = vmatpush1.msra.mxu0 0.0
  %2205 = vmatprep.subr.mxu0 0.0
  %2206 = vmatpush1.msra.mxu0 0.0
  %2207 = vmatprep.subr.mxu0 0.0
  %2208 = vmatpush1.msra.mxu0 0.0
  %2209 = vmatprep.subr.mxu0 0.0
  %2210 = vmatpush1.msra.mxu0 0.0
  %2211 = vmatprep.subr.mxu0 0.0
  %2212 = vmatpush1.msra.mxu0 0.0
  %2213 = vmatprep.subr.mxu0 0.0
  %2214 = vmatpush1.msra.mxu0 0.0
  %2215 = vmatprep.mubr.f32.mxu0 0.0
  %2216 = vmatmul.mubr.f32.gmra.mrb[0].mxu0 %v1883
  %v2217 = vpop.f32.mrb[0].mxu0
  %v2218 = vadd.f32 0.0, %v2217
  %v2219 = vpop.f32.mrb[0].mxu0
  %2220 = vdwg.mxu0
  %v2221 = vadd.f32 %v2077, %v2147
  %v2222 = vxor.u32 %v2221, 2147483648
  %v2223 = vmul.f32 %v2222, 1.442695
  %v2224 = vpow.pop %v2223
  %v2225 = vadd.f32 %v2224, 1.0
  %v2226 = vrcp.pop %v2225
  %v2227 = vmul.f32 1.0, %v2226
  %v2228 = vadd.f32 %v2078, %v2149
  %v2229 = vxor.u32 %v2228, 2147483648
  %v2230 = vmul.f32 %v2229, 1.442695
  %v2231 = vpow.pop %v2230
  %v2232 = vadd.f32 %v2231, 1.0
  %v2233 = vrcp.pop %v2232
  %v2234 = vmul.f32 1.0, %v2233
  %v2235 = vadd.f32 %v2218, %v172
  %v2236 = vmul.f32 %v2227, %v2235
  %v2237 = vadd.f32 %v2079, %v2236
  %v2238 = vtanh.pop %v2237
  %v2239 = vsub.f32 1.0, %v2234
  %v2240 = vmul.f32 %v2239, %v2238
  %v2241 = vmul.f32 %v2234, %v1883
  %v2242 = vadd.f32 %v2240, %v2241
  %s2243 = sadd.s32 %s183, 5
  %v2244 = vstv %s2243
  %vm2245 = vcmp.lt.s32.totalorder %v2244, %v182
  %v2246 = vsel %vm2245, 1, 0
  %v2247 = vcvt.s32.f32 %v2246
  %2249 = vset.pattern.permute.xlu0 0
  %2250 = vperm.xlu0 %2249, %v2247
  %v2251 = vpop.permute.xlu0 %2250
  %v2253 = vmul.f32 %v2251, %v2242
  %v2254 = vsub.f32 1.0, %v2247
  %2256 = vset.pattern.permute.xlu0 0
  %2257 = vperm.xlu0 %2256, %v2254
  %v2258 = vpop.permute.xlu0 %2257
  %v2260 = vmul.f32 %v2258, %v1883
  %v2261 = vadd.f32 %v2253, %v2260
  %v2262 = vmul.f32 %v2251, %v2261
  %s2263 = scalar_lea.vmem %s5, 40
  %2264 = vst [vmem:[%s2263] sm:$0xff] %v2262
  %s2265 = scalar_lea.vmem %s53, 48
  %v2266 = vld [vmem:[%s2265] sm:$0xff]
  %v2267 = vld [vmem:[%s2265 + $0x8] sm:$0xff]
  %v2268 = vld [vmem:[%s2265 + $0x10] sm:$0xff]
  %2269 = vmatprep.subr.mxu0 %v120
  %2270 = vmatpush1.msra.mxu0 %v119
  %2271 = vmatprep.subr.mxu0 %v123
  %2272 = vmatpush1.msra.mxu0 %v122
  %2273 = vmatprep.subr.mxu0 %v126
  %2274 = vmatpush1.msra.mxu0 %v125
  %2275 = vmatprep.subr.mxu0 %v129
  %2276 = vmatpush1.msra.mxu0 %v128
  %2277 = vmatprep.subr.mxu0 %v132
  %2278 = vmatpush1.msra.mxu0 %v131
  %2279 = vmatprep.subr.mxu0 %v135
  %2280 = vmatpush1.msra.mxu0 %v134
  %2281 = vmatprep.subr.mxu0 %v138
  %2282 = vmatpush1.msra.mxu0 %v137
  %2283 = vmatprep.subr.mxu0 %v141
  %2284 = vmatpush1.msra.mxu0 %v140
  %2285 = vmatprep.subr.mxu0 %v144
  %2286 = vmatpush1.msra.mxu0 %v143
  %2287 = vmatprep.subr.mxu0 %v147
  %2288 = vmatpush1.msra.mxu0 %v146
  %2289 = vmatprep.subr.mxu0 %v150
  %2290 = vmatpush1.msra.mxu0 %v149
  %2291 = vmatprep.subr.mxu0 %v153
  %2292 = vmatpush1.msra.mxu0 %v152
  %2293 = vmatprep.subr.mxu0 %v156
  %2294 = vmatpush1.msra.mxu0 %v155
  %2295 = vmatprep.subr.mxu0 %v159
  %2296 = vmatpush1.msra.mxu0 %v158
  %2297 = vmatprep.subr.mxu0 %v162
  %2298 = vmatpush1.msra.mxu0 %v161
  %2299 = vmatprep.subr.mxu0 %v165
  %2300 = vmatpush1.msra.mxu0 %v164
  %2301 = vmatprep.subr.mxu0 0.0
  %2302 = vmatpush1.msra.mxu0 0.0
  %2303 = vmatprep.subr.mxu0 0.0
  %2304 = vmatpush1.msra.mxu0 0.0
  %2305 = vmatprep.subr.mxu0 0.0
  %2306 = vmatpush1.msra.mxu0 0.0
  %2307 = vmatprep.subr.mxu0 0.0
  %2308 = vmatpush1.msra.mxu0 0.0
  %2309 = vmatprep.subr.mxu0 0.0
  %2310 = vmatpush1.msra.mxu0 0.0
  %2311 = vmatprep.subr.mxu0 0.0
  %2312 = vmatpush1.msra.mxu0 0.0
  %2313 = vmatprep.subr.mxu0 0.0
  %2314 = vmatpush1.msra.mxu0 0.0
  %2315 = vmatprep.subr.mxu0 0.0
  %2316 = vmatpush1.msra.mxu0 0.0
  %2317 = vmatprep.subr.mxu0 0.0
  %2318 = vmatpush1.msra.mxu0 0.0
  %2319 = vmatprep.subr.mxu0 0.0
  %2320 = vmatpush1.msra.mxu0 0.0
  %2321 = vmatprep.subr.mxu0 0.0
  %2322 = vmatpush1.msra.mxu0 0.0
  %2323 = vmatprep.subr.mxu0 0.0
  %2324 = vmatpush1.msra.mxu0 0.0
  %2325 = vmatprep.subr.mxu0 0.0
  %2326 = vmatpush1.msra.mxu0 0.0
  %2327 = vmatprep.subr.mxu0 0.0
  %2328 = vmatpush1.msra.mxu0 0.0
  %2329 = vmatprep.subr.mxu0 0.0
  %2330 = vmatpush1.msra.mxu0 0.0
  %2331 = vmatprep.subr.mxu0 0.0
  %2332 = vmatpush1.msra.mxu0 0.0
  %2333 = vmatprep.mubr.f32.mxu0 0.0
  %2334 = vmatmul.mubr.f32.gmra.mrb[0].mxu0 %v2072
  %v2335 = vpop.f32.mrb[0].mxu0
  %v2336 = vadd.f32 0.0, %v2335
  %v2337 = vpop.f32.mrb[0].mxu0
  %v2338 = vadd.f32 0.0, %v2337
  %2339 = vdwg.mxu0
  %2340 = vmatprep.subr.mxu0 0.0
  %2341 = vmatpush1.msra.mxu0 %v121
  %2342 = vmatprep.subr.mxu0 0.0
  %2343 = vmatpush1.msra.mxu0 %v124
  %2344 = vmatprep.subr.mxu0 0.0
  %2345 = vmatpush1.msra.mxu0 %v127
  %2346 = vmatprep.subr.mxu0 0.0
  %2347 = vmatpush1.msra.mxu0 %v130
  %2348 = vmatprep.subr.mxu0 0.0
  %2349 = vmatpush1.msra.mxu0 %v133
  %2350 = vmatprep.subr.mxu0 0.0
  %2351 = vmatpush1.msra.mxu0 %v136
  %2352 = vmatprep.subr.mxu0 0.0
  %2353 = vmatpush1.msra.mxu0 %v139
  %2354 = vmatprep.subr.mxu0 0.0
  %2355 = vmatpush1.msra.mxu0 %v142
  %2356 = vmatprep.subr.mxu0 0.0
  %2357 = vmatpush1.msra.mxu0 %v145
  %2358 = vmatprep.subr.mxu0 0.0
  %2359 = vmatpush1.msra.mxu0 %v148
  %2360 = vmatprep.subr.mxu0 0.0
  %2361 = vmatpush1.msra.mxu0 %v151
  %2362 = vmatprep.subr.mxu0 0.0
  %2363 = vmatpush1.msra.mxu0 %v154
  %2364 = vmatprep.subr.mxu0 0.0
  %2365 = vmatpush1.msra.mxu0 %v157
  %2366 = vmatprep.subr.mxu0 0.0
  %2367 = vmatpush1.msra.mxu0 %v160
  %2368 = vmatprep.subr.mxu0 0.0
  %2369 = vmatpush1.msra.mxu0 %v163
  %2370 = vmatprep.subr.mxu0 0.0
  %2371 = vmatpush1.msra.mxu0 %v166
  %2372 = vmatprep.subr.mxu0 0.0
  %2373 = vmatpush1.msra.mxu0 0.0
  %2374 = vmatprep.subr.mxu0 0.0
  %2375 = vmatpush1.msra.mxu0 0.0
  %2376 = vmatprep.subr.mxu0 0.0
  %2377 = vmatpush1.msra.mxu0 0.0
  %2378 = vmatprep.subr.mxu0 0.0
  %2379 = vmatpush1.msra.mxu0 0.0
  %2380 = vmatprep.subr.mxu0 0.0
  %2381 = vmatpush1.msra.mxu0 0.0
  %2382 = vmatprep.subr.mxu0 0.0
  %2383 = vmatpush1.msra.mxu0 0.0
  %2384 = vmatprep.subr.mxu0 0.0
  %2385 = vmatpush1.msra.mxu0 0.0
  %2386 = vmatprep.subr.mxu0 0.0
  %2387 = vmatpush1.msra.mxu0 0.0
  %2388 = vmatprep.subr.mxu0 0.0
  %2389 = vmatpush1.msra.mxu0 0.0
  %2390 = vmatprep.subr.mxu0 0.0
  %2391 = vmatpush1.msra.mxu0 0.0
  %2392 = vmatprep.subr.mxu0 0.0
  %2393 = vmatpush1.msra.mxu0 0.0
  %2394 = vmatprep.subr.mxu0 0.0
  %2395 = vmatpush1.msra.mxu0 0.0
  %2396 = vmatprep.subr.mxu0 0.0
  %2397 = vmatpush1.msra.mxu0 0.0
  %2398 = vmatprep.subr.mxu0 0.0
  %2399 = vmatpush1.msra.mxu0 0.0
  %2400 = vmatprep.subr.mxu0 0.0
  %2401 = vmatpush1.msra.mxu0 0.0
  %2402 = vmatprep.subr.mxu0 0.0
  %2403 = vmatpush1.msra.mxu0 0.0
  %2404 = vmatprep.mubr.f32.mxu0 0.0
  %2405 = vmatmul.mubr.f32.gmra.mrb[0].mxu0 %v2072
  %v2406 = vpop.f32.mrb[0].mxu0
  %v2407 = vadd.f32 0.0, %v2406
  %v2408 = vpop.f32.mrb[0].mxu0
  %2409 = vdwg.mxu0
  %v2410 = vadd.f32 %v2266, %v2336
  %v2411 = vxor.u32 %v2410, 2147483648
  %v2412 = vmul.f32 %v2411, 1.442695
  %v2413 = vpow.pop %v2412
  %v2414 = vadd.f32 %v2413, 1.0
  %v2415 = vrcp.pop %v2414
  %v2416 = vmul.f32 1.0, %v2415
  %v2417 = vadd.f32 %v2267, %v2338
  %v2418 = vxor.u32 %v2417, 2147483648
  %v2419 = vmul.f32 %v2418, 1.442695
  %v2420 = vpow.pop %v2419
  %v2421 = vadd.f32 %v2420, 1.0
  %v2422 = vrcp.pop %v2421
  %v2423 = vmul.f32 1.0, %v2422
  %v2424 = vadd.f32 %v2407, %v180
  %v2425 = vmul.f32 %v2416, %v2424
  %v2426 = vadd.f32 %v2268, %v2425
  %v2427 = vtanh.pop %v2426
  %v2428 = vsub.f32 1.0, %v2423
  %v2429 = vmul.f32 %v2428, %v2427
  %v2430 = vmul.f32 %v2423, %v2072
  %v2431 = vadd.f32 %v2429, %v2430
  %s2432 = sadd.s32 %s185, 2
  %v2433 = vstv %s2432
  %vm2434 = vcmp.lt.s32.totalorder %v2433, %v182
  %v2435 = vsel %vm2434, 1, 0
  %v2436 = vcvt.s32.f32 %v2435
  %2438 = vset.pattern.permute.xlu0 0
  %2439 = vperm.xlu0 %2438, %v2436
  %v2440 = vpop.permute.xlu0 %2439
  %v2442 = vmul.f32 %v2440, %v2431
  %v2443 = vsub.f32 1.0, %v2436
  %2445 = vset.pattern.permute.xlu0 0
  %2446 = vperm.xlu0 %2445, %v2443
  %v2447 = vpop.permute.xlu0 %2446
  %v2449 = vmul.f32 %v2447, %v2072
  %v2450 = vadd.f32 %v2442, %v2449
  %v2451 = vmul.f32 %v2440, %v2450
  %s2452 = scalar_lea.vmem %s61, 16
  %2453 = vst [vmem:[%s2452] sm:$0xff] %v2451
  %s2454 = scalar_lea.vmem %s0, 144
  %v2455 = vld [vmem:[%s2454] sm:$0xff]
  %v2456 = vld [vmem:[%s2454 + $0x8] sm:$0xff]
  %v2457 = vld [vmem:[%s2454 + $0x10] sm:$0xff]
  %2458 = vmatprep.subr.mxu0 %v71
  %2459 = vmatpush1.msra.mxu0 %v70
  %2460 = vmatprep.subr.mxu0 %v74
  %2461 = vmatpush1.msra.mxu0 %v73
  %2462 = vmatprep.subr.mxu0 %v77
  %2463 = vmatpush1.msra.mxu0 %v76
  %2464 = vmatprep.subr.mxu0 %v80
  %2465 = vmatpush1.msra.mxu0 %v79
  %2466 = vmatprep.subr.mxu0 %v83
  %2467 = vmatpush1.msra.mxu0 %v82
  %2468 = vmatprep.subr.mxu0 %v86
  %2469 = vmatpush1.msra.mxu0 %v85
  %2470 = vmatprep.subr.mxu0 %v89
  %2471 = vmatpush1.msra.mxu0 %v88
  %2472 = vmatprep.subr.mxu0 %v92
  %2473 = vmatpush1.msra.mxu0 %v91
  %2474 = vmatprep.subr.mxu0 %v95
  %2475 = vmatpush1.msra.mxu0 %v94
  %2476 = vmatprep.subr.mxu0 %v98
  %2477 = vmatpush1.msra.mxu0 %v97
  %2478 = vmatprep.subr.mxu0 %v101
  %2479 = vmatpush1.msra.mxu0 %v100
  %2480 = vmatprep.subr.mxu0 %v104
  %2481 = vmatpush1.msra.mxu0 %v103
  %2482 = vmatprep.subr.mxu0 %v107
  %2483 = vmatpush1.msra.mxu0 %v106
  %2484 = vmatprep.subr.mxu0 %v110
  %2485 = vmatpush1.msra.mxu0 %v109
  %2486 = vmatprep.subr.mxu0 %v113
  %2487 = vmatpush1.msra.mxu0 %v112
  %2488 = vmatprep.subr.mxu0 %v116
  %2489 = vmatpush1.msra.mxu0 %v115
  %2490 = vmatprep.subr.mxu0 0.0
  %2491 = vmatpush1.msra.mxu0 0.0
  %2492 = vmatprep.subr.mxu0 0.0
  %2493 = vmatpush1.msra.mxu0 0.0
  %2494 = vmatprep.subr.mxu0 0.0
  %2495 = vmatpush1.msra.mxu0 0.0
  %2496 = vmatprep.subr.mxu0 0.0
  %2497 = vmatpush1.msra.mxu0 0.0
  %2498 = vmatprep.subr.mxu0 0.0
  %2499 = vmatpush1.msra.mxu0 0.0
  %2500 = vmatprep.subr.mxu0 0.0
  %2501 = vmatpush1.msra.mxu0 0.0
  %2502 = vmatprep.subr.mxu0 0.0
  %2503 = vmatpush1.msra.mxu0 0.0
  %2504 = vmatprep.subr.mxu0 0.0
  %2505 = vmatpush1.msra.mxu0 0.0
  %2506 = vmatprep.subr.mxu0 0.0
  %2507 = vmatpush1.msra.mxu0 0.0
  %2508 = vmatprep.subr.mxu0 0.0
  %2509 = vmatpush1.msra.mxu0 0.0
  %2510 = vmatprep.subr.mxu0 0.0
  %2511 = vmatpush1.msra.mxu0 0.0
  %2512 = vmatprep.subr.mxu0 0.0
  %2513 = vmatpush1.msra.mxu0 0.0
  %2514 = vmatprep.subr.mxu0 0.0
  %2515 = vmatpush1.msra.mxu0 0.0
  %2516 = vmatprep.subr.mxu0 0.0
  %2517 = vmatpush1.msra.mxu0 0.0
  %2518 = vmatprep.subr.mxu0 0.0
  %2519 = vmatpush1.msra.mxu0 0.0
  %2520 = vmatprep.subr.mxu0 0.0
  %2521 = vmatpush1.msra.mxu0 0.0
  %2522 = vmatprep.mubr.f32.mxu0 0.0
  %2523 = vmatmul.mubr.f32.gmra.mrb[0].mxu0 %v2261
  %v2524 = vpop.f32.mrb[0].mxu0
  %v2525 = vadd.f32 0.0, %v2524
  %v2526 = vpop.f32.mrb[0].mxu0
  %v2527 = vadd.f32 0.0, %v2526
  %2528 = vdwg.mxu0
  %2529 = vmatprep.subr.mxu0 0.0
  %2530 = vmatpush1.msra.mxu0 %v72
  %2531 = vmatprep.subr.mxu0 0.0
  %2532 = vmatpush1.msra.mxu0 %v75
  %2533 = vmatprep.subr.mxu0 0.0
  %2534 = vmatpush1.msra.mxu0 %v78
  %2535 = vmatprep.subr.mxu0 0.0
  %2536 = vmatpush1.msra.mxu0 %v81
  %2537 = vmatprep.subr.mxu0 0.0
  %2538 = vmatpush1.msra.mxu0 %v84
  %2539 = vmatprep.subr.mxu0 0.0
  %2540 = vmatpush1.msra.mxu0 %v87
  %2541 = vmatprep.subr.mxu0 0.0
  %2542 = vmatpush1.msra.mxu0 %v90
  %2543 = vmatprep.subr.mxu0 0.0
  %2544 = vmatpush1.msra.mxu0 %v93
  %2545 = vmatprep.subr.mxu0 0.0
  %2546 = vmatpush1.msra.mxu0 %v96
  %2547 = vmatprep.subr.mxu0 0.0
  %2548 = vmatpush1.msra.mxu0 %v99
  %2549 = vmatprep.subr.mxu0 0.0
  %2550 = vmatpush1.msra.mxu0 %v102
  %2551 = vmatprep.subr.mxu0 0.0
  %2552 = vmatpush1.msra.mxu0 %v105
  %2553 = vmatprep.subr.mxu0 0.0
  %2554 = vmatpush1.msra.mxu0 %v108
  %2555 = vmatprep.subr.mxu0 0.0
  %2556 = vmatpush1.msra.mxu0 %v111
  %2557 = vmatprep.subr.mxu0 0.0
  %2558 = vmatpush1.msra.mxu0 %v114
  %2559 = vmatprep.subr.mxu0 0.0
  %2560 = vmatpush1.msra.mxu0 %v117
  %2561 = vmatprep.subr.mxu0 0.0
  %2562 = vmatpush1.msra.mxu0 0.0
  %2563 = vmatprep.subr.mxu0 0.0
  %2564 = vmatpush1.msra.mxu0 0.0
  %2565 = vmatprep.subr.mxu0 0.0
  %2566 = vmatpush1.msra.mxu0 0.0
  %2567 = vmatprep.subr.mxu0 0.0
  %2568 = vmatpush1.msra.mxu0 0.0
  %2569 = vmatprep.subr.mxu0 0.0
  %2570 = vmatpush1.msra.mxu0 0.0
  %2571 = vmatprep.subr.mxu0 0.0
  %2572 = vmatpush1.msra.mxu0 0.0
  %2573 = vmatprep.subr.mxu0 0.0
  %2574 = vmatpush1.msra.mxu0 0.0
  %2575 = vmatprep.subr.mxu0 0.0
  %2576 = vmatpush1.msra.mxu0 0.0
  %2577 = vmatprep.subr.mxu0 0.0
  %2578 = vmatpush1.msra.mxu0 0.0
  %2579 = vmatprep.subr.mxu0 0.0
  %2580 = vmatpush1.msra.mxu0 0.0
  %2581 = vmatprep.subr.mxu0 0.0
  %2582 = vmatpush1.msra.mxu0 0.0
  %2583 = vmatprep.subr.mxu0 0.0
  %2584 = vmatpush1.msra.mxu0 0.0
  %2585 = vmatprep.subr.mxu0 0.0
  %2586 = vmatpush1.msra.mxu0 0.0
  %2587 = vmatprep.subr.mxu0 0.0
  %2588 = vmatpush1.msra.mxu0 0.0
  %2589 = vmatprep.subr.mxu0 0.0
  %2590 = vmatpush1.msra.mxu0 0.0
  %2591 = vmatprep.subr.mxu0 0.0
  %2592 = vmatpush1.msra.mxu0 0.0
  %2593 = vmatprep.mubr.f32.mxu0 0.0
  %2594 = vmatmul.mubr.f32.gmra.mrb[0].mxu0 %v2261
  %v2595 = vpop.f32.mrb[0].mxu0
  %v2596 = vadd.f32 0.0, %v2595
  %v2597 = vpop.f32.mrb[0].mxu0
  %2598 = vdwg.mxu0
  %v2599 = vadd.f32 %v2455, %v2525
  %v2600 = vxor.u32 %v2599, 2147483648
  %v2601 = vmul.f32 %v2600, 1.442695
  %v2602 = vpow.pop %v2601
  %v2603 = vadd.f32 %v2602, 1.0
  %v2604 = vrcp.pop %v2603
  %v2605 = vmul.f32 1.0, %v2604
  %v2606 = vadd.f32 %v2456, %v2527
  %v2607 = vxor.u32 %v2606, 2147483648
  %v2608 = vmul.f32 %v2607, 1.442695
  %v2609 = vpow.pop %v2608
  %v2610 = vadd.f32 %v2609, 1.0
  %v2611 = vrcp.pop %v2610
  %v2612 = vmul.f32 1.0, %v2611
  %v2613 = vadd.f32 %v2596, %v172
  %v2614 = vmul.f32 %v2605, %v2613
  %v2615 = vadd.f32 %v2457, %v2614
  %v2616 = vtanh.pop %v2615
  %v2617 = vsub.f32 1.0, %v2612
  %v2618 = vmul.f32 %v2617, %v2616
  %v2619 = vmul.f32 %v2612, %v2261
  %v2620 = vadd.f32 %v2618, %v2619
  %s2621 = sadd.s32 %s183, 6
  %v2622 = vstv %s2621
  %vm2623 = vcmp.lt.s32.totalorder %v2622, %v182
  %v2624 = vsel %vm2623, 1, 0
  %v2625 = vcvt.s32.f32 %v2624
  %2627 = vset.pattern.permute.xlu0 0
  %2628 = vperm.xlu0 %2627, %v2625
  %v2629 = vpop.permute.xlu0 %2628
  %v2631 = vmul.f32 %v2629, %v2620
  %v2632 = vsub.f32 1.0, %v2625
  %2634 = vset.pattern.permute.xlu0 0
  %2635 = vperm.xlu0 %2634, %v2632
  %v2636 = vpop.permute.xlu0 %2635
  %v2638 = vmul.f32 %v2636, %v2261
  %v2639 = vadd.f32 %v2631, %v2638
  %v2640 = vmul.f32 %v2629, %v2639
  %s2641 = scalar_lea.vmem %s5, 48
  %2642 = vst [vmem:[%s2641] sm:$0xff] %v2640
  %s2643 = scalar_lea.vmem %s53, 24
  %v2644 = vld [vmem:[%s2643] sm:$0xff]
  %v2645 = vld [vmem:[%s2643 + $0x8] sm:$0xff]
  %v2646 = vld [vmem:[%s2643 + $0x10] sm:$0xff]
  %2647 = vmatprep.subr.mxu0 %v120
  %2648 = vmatpush1.msra.mxu0 %v119
  %2649 = vmatprep.subr.mxu0 %v123
  %2650 = vmatpush1.msra.mxu0 %v122
  %2651 = vmatprep.subr.mxu0 %v126
  %2652 = vmatpush1.msra.mxu0 %v125
  %2653 = vmatprep.subr.mxu0 %v129
  %2654 = vmatpush1.msra.mxu0 %v128
  %2655 = vmatprep.subr.mxu0 %v132
  %2656 = vmatpush1.msra.mxu0 %v131
  %2657 = vmatprep.subr.mxu0 %v135
  %2658 = vmatpush1.msra.mxu0 %v134
  %2659 = vmatprep.subr.mxu0 %v138
  %2660 = vmatpush1.msra.mxu0 %v137
  %2661 = vmatprep.subr.mxu0 %v141
  %2662 = vmatpush1.msra.mxu0 %v140
  %2663 = vmatprep.subr.mxu0 %v144
  %2664 = vmatpush1.msra.mxu0 %v143
  %2665 = vmatprep.subr.mxu0 %v147
  %2666 = vmatpush1.msra.mxu0 %v146
  %2667 = vmatprep.subr.mxu0 %v150
  %2668 = vmatpush1.msra.mxu0 %v149
  %2669 = vmatprep.subr.mxu0 %v153
  %2670 = vmatpush1.msra.mxu0 %v152
  %2671 = vmatprep.subr.mxu0 %v156
  %2672 = vmatpush1.msra.mxu0 %v155
  %2673 = vmatprep.subr.mxu0 %v159
  %2674 = vmatpush1.msra.mxu0 %v158
  %2675 = vmatprep.subr.mxu0 %v162
  %2676 = vmatpush1.msra.mxu0 %v161
  %2677 = vmatprep.subr.mxu0 %v165
  %2678 = vmatpush1.msra.mxu0 %v164
  %2679 = vmatprep.subr.mxu0 0.0
  %2680 = vmatpush1.msra.mxu0 0.0
  %2681 = vmatprep.subr.mxu0 0.0
  %2682 = vmatpush1.msra.mxu0 0.0
  %2683 = vmatprep.subr.mxu0 0.0
  %2684 = vmatpush1.msra.mxu0 0.0
  %2685 = vmatprep.subr.mxu0 0.0
  %2686 = vmatpush1.msra.mxu0 0.0
  %2687 = vmatprep.subr.mxu0 0.0
  %2688 = vmatpush1.msra.mxu0 0.0
  %2689 = vmatprep.subr.mxu0 0.0
  %2690 = vmatpush1.msra.mxu0 0.0
  %2691 = vmatprep.subr.mxu0 0.0
  %2692 = vmatpush1.msra.mxu0 0.0
  %2693 = vmatprep.subr.mxu0 0.0
  %2694 = vmatpush1.msra.mxu0 0.0
  %2695 = vmatprep.subr.mxu0 0.0
  %2696 = vmatpush1.msra.mxu0 0.0
  %2697 = vmatprep.subr.mxu0 0.0
  %2698 = vmatpush1.msra.mxu0 0.0
  %2699 = vmatprep.subr.mxu0 0.0
  %2700 = vmatpush1.msra.mxu0 0.0
  %2701 = vmatprep.subr.mxu0 0.0
  %2702 = vmatpush1.msra.mxu0 0.0
  %2703 = vmatprep.subr.mxu0 0.0
  %2704 = vmatpush1.msra.mxu0 0.0
  %2705 = vmatprep.subr.mxu0 0.0
  %2706 = vmatpush1.msra.mxu0 0.0
  %2707 = vmatprep.subr.mxu0 0.0
  %2708 = vmatpush1.msra.mxu0 0.0
  %2709 = vmatprep.subr.mxu0 0.0
  %2710 = vmatpush1.msra.mxu0 0.0
  %2711 = vmatprep.mubr.f32.mxu0 0.0
  %2712 = vmatmul.mubr.f32.gmra.mrb[0].mxu0 %v2450
  %v2713 = vpop.f32.mrb[0].mxu0
  %v2714 = vadd.f32 0.0, %v2713
  %v2715 = vpop.f32.mrb[0].mxu0
  %v2716 = vadd.f32 0.0, %v2715
  %2717 = vdwg.mxu0
  %2718 = vmatprep.subr.mxu0 0.0
  %2719 = vmatpush1.msra.mxu0 %v121
  %2720 = vmatprep.subr.mxu0 0.0
  %2721 = vmatpush1.msra.mxu0 %v124
  %2722 = vmatprep.subr.mxu0 0.0
  %2723 = vmatpush1.msra.mxu0 %v127
  %2724 = vmatprep.subr.mxu0 0.0
  %2725 = vmatpush1.msra.mxu0 %v130
  %2726 = vmatprep.subr.mxu0 0.0
  %2727 = vmatpush1.msra.mxu0 %v133
  %2728 = vmatprep.subr.mxu0 0.0
  %2729 = vmatpush1.msra.mxu0 %v136
  %2730 = vmatprep.subr.mxu0 0.0
  %2731 = vmatpush1.msra.mxu0 %v139
  %2732 = vmatprep.subr.mxu0 0.0
  %2733 = vmatpush1.msra.mxu0 %v142
  %2734 = vmatprep.subr.mxu0 0.0
  %2735 = vmatpush1.msra.mxu0 %v145
  %2736 = vmatprep.subr.mxu0 0.0
  %2737 = vmatpush1.msra.mxu0 %v148
  %2738 = vmatprep.subr.mxu0 0.0
  %2739 = vmatpush1.msra.mxu0 %v151
  %2740 = vmatprep.subr.mxu0 0.0
  %2741 = vmatpush1.msra.mxu0 %v154
  %2742 = vmatprep.subr.mxu0 0.0
  %2743 = vmatpush1.msra.mxu0 %v157
  %2744 = vmatprep.subr.mxu0 0.0
  %2745 = vmatpush1.msra.mxu0 %v160
  %2746 = vmatprep.subr.mxu0 0.0
  %2747 = vmatpush1.msra.mxu0 %v163
  %2748 = vmatprep.subr.mxu0 0.0
  %2749 = vmatpush1.msra.mxu0 %v166
  %2750 = vmatprep.subr.mxu0 0.0
  %2751 = vmatpush1.msra.mxu0 0.0
  %2752 = vmatprep.subr.mxu0 0.0
  %2753 = vmatpush1.msra.mxu0 0.0
  %2754 = vmatprep.subr.mxu0 0.0
  %2755 = vmatpush1.msra.mxu0 0.0
  %2756 = vmatprep.subr.mxu0 0.0
  %2757 = vmatpush1.msra.mxu0 0.0
  %2758 = vmatprep.subr.mxu0 0.0
  %2759 = vmatpush1.msra.mxu0 0.0
  %2760 = vmatprep.subr.mxu0 0.0
  %2761 = vmatpush1.msra.mxu0 0.0
  %2762 = vmatprep.subr.mxu0 0.0
  %2763 = vmatpush1.msra.mxu0 0.0
  %2764 = vmatprep.subr.mxu0 0.0
  %2765 = vmatpush1.msra.mxu0 0.0
  %2766 = vmatprep.subr.mxu0 0.0
  %2767 = vmatpush1.msra.mxu0 0.0
  %2768 = vmatprep.subr.mxu0 0.0
  %2769 = vmatpush1.msra.mxu0 0.0
  %2770 = vmatprep.subr.mxu0 0.0
  %2771 = vmatpush1.msra.mxu0 0.0
  %2772 = vmatprep.subr.mxu0 0.0
  %2773 = vmatpush1.msra.mxu0 0.0
  %2774 = vmatprep.subr.mxu0 0.0
  %2775 = vmatpush1.msra.mxu0 0.0
  %2776 = vmatprep.subr.mxu0 0.0
  %2777 = vmatpush1.msra.mxu0 0.0
  %2778 = vmatprep.subr.mxu0 0.0
  %2779 = vmatpush1.msra.mxu0 0.0
  %2780 = vmatprep.subr.mxu0 0.0
  %2781 = vmatpush1.msra.mxu0 0.0
  %2782 = vmatprep.mubr.f32.mxu0 0.0
  %2783 = vmatmul.mubr.f32.gmra.mrb[0].mxu0 %v2450
  %v2784 = vpop.f32.mrb[0].mxu0
  %v2785 = vadd.f32 0.0, %v2784
  %v2786 = vpop.f32.mrb[0].mxu0
  %2787 = vdwg.mxu0
  %v2788 = vadd.f32 %v2644, %v2714
  %v2789 = vxor.u32 %v2788, 2147483648
  %v2790 = vmul.f32 %v2789, 1.442695
  %v2791 = vpow.pop %v2790
  %v2792 = vadd.f32 %v2791, 1.0
  %v2793 = vrcp.pop %v2792
  %v2794 = vmul.f32 1.0, %v2793
  %v2795 = vadd.f32 %v2645, %v2716
  %v2796 = vxor.u32 %v2795, 2147483648
  %v2797 = vmul.f32 %v2796, 1.442695
  %v2798 = vpow.pop %v2797
  %v2799 = vadd.f32 %v2798, 1.0
  %v2800 = vrcp.pop %v2799
  %v2801 = vmul.f32 1.0, %v2800
  %v2802 = vadd.f32 %v2785, %v180
  %v2803 = vmul.f32 %v2794, %v2802
  %v2804 = vadd.f32 %v2646, %v2803
  %v2805 = vtanh.pop %v2804
  %v2806 = vsub.f32 1.0, %v2801
  %v2807 = vmul.f32 %v2806, %v2805
  %v2808 = vmul.f32 %v2801, %v2450
  %v2809 = vadd.f32 %v2807, %v2808
  %s2810 = sadd.s32 %s185, 1
  %v2811 = vstv %s2810
  %vm2812 = vcmp.lt.s32.totalorder %v2811, %v182
  %v2813 = vsel %vm2812, 1, 0
  %v2814 = vcvt.s32.f32 %v2813
  %2816 = vset.pattern.permute.xlu0 0
  %2817 = vperm.xlu0 %2816, %v2814
  %v2818 = vpop.permute.xlu0 %2817
  %v2820 = vmul.f32 %v2818, %v2809
  %v2821 = vsub.f32 1.0, %v2814
  %2823 = vset.pattern.permute.xlu0 0
  %2824 = vperm.xlu0 %2823, %v2821
  %v2825 = vpop.permute.xlu0 %2824
  %v2827 = vmul.f32 %v2825, %v2450
  %v2828 = vadd.f32 %v2820, %v2827
  %v2829 = vmul.f32 %v2818, %v2828
  %s2830 = scalar_lea.vmem %s61, 8
  %2831 = vst [vmem:[%s2830] sm:$0xff] %v2829
  %s2832 = scalar_lea.vmem %s0, 168
  %v2833 = vld [vmem:[%s2832] sm:$0xff]
  %v2834 = vld [vmem:[%s2832 + $0x8] sm:$0xff]
  %v2835 = vld [vmem:[%s2832 + $0x10] sm:$0xff]
  %2836 = vmatprep.subr.mxu0 %v71
  %2837 = vmatpush1.msra.mxu0 %v70
  %2838 = vmatprep.subr.mxu0 %v74
  %2839 = vmatpush1.msra.mxu0 %v73
  %2840 = vmatprep.subr.mxu0 %v77
  %2841 = vmatpush1.msra.mxu0 %v76
  %2842 = vmatprep.subr.mxu0 %v80
  %2843 = vmatpush1.msra.mxu0 %v79
  %2844 = vmatprep.subr.mxu0 %v83
  %2845 = vmatpush1.msra.mxu0 %v82
  %2846 = vmatprep.subr.mxu0 %v86
  %2847 = vmatpush1.msra.mxu0 %v85
  %2848 = vmatprep.subr.mxu0 %v89
  %2849 = vmatpush1.msra.mxu0 %v88
  %2850 = vmatprep.subr.mxu0 %v92
  %2851 = vmatpush1.msra.mxu0 %v91
  %2852 = vmatprep.subr.mxu0 %v95
  %2853 = vmatpush1.msra.mxu0 %v94
  %2854 = vmatprep.subr.mxu0 %v98
  %2855 = vmatpush1.msra.mxu0 %v97
  %2856 = vmatprep.subr.mxu0 %v101
  %2857 = vmatpush1.msra.mxu0 %v100
  %2858 = vmatprep.subr.mxu0 %v104
  %2859 = vmatpush1.msra.mxu0 %v103
  %2860 = vmatprep.subr.mxu0 %v107
  %2861 = vmatpush1.msra.mxu0 %v106
  %2862 = vmatprep.subr.mxu0 %v110
  %2863 = vmatpush1.msra.mxu0 %v109
  %2864 = vmatprep.subr.mxu0 %v113
  %2865 = vmatpush1.msra.mxu0 %v112
  %2866 = vmatprep.subr.mxu0 %v116
  %2867 = vmatpush1.msra.mxu0 %v115
  %2868 = vmatprep.subr.mxu0 0.0
  %2869 = vmatpush1.msra.mxu0 0.0
  %2870 = vmatprep.subr.mxu0 0.0
  %2871 = vmatpush1.msra.mxu0 0.0
  %2872 = vmatprep.subr.mxu0 0.0
  %2873 = vmatpush1.msra.mxu0 0.0
  %2874 = vmatprep.subr.mxu0 0.0
  %2875 = vmatpush1.msra.mxu0 0.0
  %2876 = vmatprep.subr.mxu0 0.0
  %2877 = vmatpush1.msra.mxu0 0.0
  %2878 = vmatprep.subr.mxu0 0.0
  %2879 = vmatpush1.msra.mxu0 0.0
  %2880 = vmatprep.subr.mxu0 0.0
  %2881 = vmatpush1.msra.mxu0 0.0
  %2882 = vmatprep.subr.mxu0 0.0
  %2883 = vmatpush1.msra.mxu0 0.0
  %2884 = vmatprep.subr.mxu0 0.0
  %2885 = vmatpush1.msra.mxu0 0.0
  %2886 = vmatprep.subr.mxu0 0.0
  %2887 = vmatpush1.msra.mxu0 0.0
  %2888 = vmatprep.subr.mxu0 0.0
  %2889 = vmatpush1.msra.mxu0 0.0
  %2890 = vmatprep.subr.mxu0 0.0
  %2891 = vmatpush1.msra.mxu0 0.0
  %2892 = vmatprep.subr.mxu0 0.0
  %2893 = vmatpush1.msra.mxu0 0.0
  %2894 = vmatprep.subr.mxu0 0.0
  %2895 = vmatpush1.msra.mxu0 0.0
  %2896 = vmatprep.subr.mxu0 0.0
  %2897 = vmatpush1.msra.mxu0 0.0
  %2898 = vmatprep.subr.mxu0 0.0
  %2899 = vmatpush1.msra.mxu0 0.0
  %2900 = vmatprep.mubr.f32.mxu0 0.0
  %2901 = vmatmul.mubr.f32.gmra.mrb[0].mxu0 %v2639
  %v2902 = vpop.f32.mrb[0].mxu0
  %v2903 = vadd.f32 0.0, %v2902
  %v2904 = vpop.f32.mrb[0].mxu0
  %v2905 = vadd.f32 0.0, %v2904
  %2906 = vdwg.mxu0
  %2907 = vmatprep.subr.mxu0 0.0
  %2908 = vmatpush1.msra.mxu0 %v72
  %2909 = vmatprep.subr.mxu0 0.0
  %2910 = vmatpush1.msra.mxu0 %v75
  %2911 = vmatprep.subr.mxu0 0.0
  %2912 = vmatpush1.msra.mxu0 %v78
  %2913 = vmatprep.subr.mxu0 0.0
  %2914 = vmatpush1.msra.mxu0 %v81
  %2915 = vmatprep.subr.mxu0 0.0
  %2916 = vmatpush1.msra.mxu0 %v84
  %2917 = vmatprep.subr.mxu0 0.0
  %2918 = vmatpush1.msra.mxu0 %v87
  %2919 = vmatprep.subr.mxu0 0.0
  %2920 = vmatpush1.msra.mxu0 %v90
  %2921 = vmatprep.subr.mxu0 0.0
  %2922 = vmatpush1.msra.mxu0 %v93
  %2923 = vmatprep.subr.mxu0 0.0
  %2924 = vmatpush1.msra.mxu0 %v96
  %2925 = vmatprep.subr.mxu0 0.0
  %2926 = vmatpush1.msra.mxu0 %v99
  %2927 = vmatprep.subr.mxu0 0.0
  %2928 = vmatpush1.msra.mxu0 %v102
  %2929 = vmatprep.subr.mxu0 0.0
  %2930 = vmatpush1.msra.mxu0 %v105
  %2931 = vmatprep.subr.mxu0 0.0
  %2932 = vmatpush1.msra.mxu0 %v108
  %2933 = vmatprep.subr.mxu0 0.0
  %2934 = vmatpush1.msra.mxu0 %v111
  %2935 = vmatprep.subr.mxu0 0.0
  %2936 = vmatpush1.msra.mxu0 %v114
  %2937 = vmatprep.subr.mxu0 0.0
  %2938 = vmatpush1.msra.mxu0 %v117
  %2939 = vmatprep.subr.mxu0 0.0
  %2940 = vmatpush1.msra.mxu0 0.0
  %2941 = vmatprep.subr.mxu0 0.0
  %2942 = vmatpush1.msra.mxu0 0.0
  %2943 = vmatprep.subr.mxu0 0.0
  %2944 = vmatpush1.msra.mxu0 0.0
  %2945 = vmatprep.subr.mxu0 0.0
  %2946 = vmatpush1.msra.mxu0 0.0
  %2947 = vmatprep.subr.mxu0 0.0
  %2948 = vmatpush1.msra.mxu0 0.0
  %2949 = vmatprep.subr.mxu0 0.0
  %2950 = vmatpush1.msra.mxu0 0.0
  %2951 = vmatprep.subr.mxu0 0.0
  %2952 = vmatpush1.msra.mxu0 0.0
  %2953 = vmatprep.subr.mxu0 0.0
  %2954 = vmatpush1.msra.mxu0 0.0
  %2955 = vmatprep.subr.mxu0 0.0
  %2956 = vmatpush1.msra.mxu0 0.0
  %2957 = vmatprep.subr.mxu0 0.0
  %2958 = vmatpush1.msra.mxu0 0.0
  %2959 = vmatprep.subr.mxu0 0.0
  %2960 = vmatpush1.msra.mxu0 0.0
  %2961 = vmatprep.subr.mxu0 0.0
  %2962 = vmatpush1.msra.mxu0 0.0
  %2963 = vmatprep.subr.mxu0 0.0
  %2964 = vmatpush1.msra.mxu0 0.0
  %2965 = vmatprep.subr.mxu0 0.0
  %2966 = vmatpush1.msra.mxu0 0.0
  %2967 = vmatprep.subr.mxu0 0.0
  %2968 = vmatpush1.msra.mxu0 0.0
  %2969 = vmatprep.subr.mxu0 0.0
  %2970 = vmatpush1.msra.mxu0 0.0
  %2971 = vmatprep.mubr.f32.mxu0 0.0
  %2972 = vmatmul.mubr.f32.gmra.mrb[0].mxu0 %v2639
  %v2973 = vpop.f32.mrb[0].mxu0
  %v2974 = vadd.f32 0.0, %v2973
  %v2975 = vpop.f32.mrb[0].mxu0
  %2976 = vdwg.mxu0
  %v2977 = vadd.f32 %v2833, %v2903
  %v2978 = vxor.u32 %v2977, 2147483648
  %v2979 = vmul.f32 %v2978, 1.442695
  %v2980 = vpow.pop %v2979
  %v2981 = vadd.f32 %v2980, 1.0
  %v2982 = vrcp.pop %v2981
  %v2983 = vmul.f32 1.0, %v2982
  %v2984 = vadd.f32 %v2834, %v2905
  %v2985 = vxor.u32 %v2984, 2147483648
  %v2986 = vmul.f32 %v2985, 1.442695
  %v2987 = vpow.pop %v2986
  %v2988 = vadd.f32 %v2987, 1.0
  %v2989 = vrcp.pop %v2988
  %v2990 = vmul.f32 1.0, %v2989
  %v2991 = vadd.f32 %v2974, %v172
  %v2992 = vmul.f32 %v2983, %v2991
  %v2993 = vadd.f32 %v2835, %v2992
  %v2994 = vtanh.pop %v2993
  %v2995 = vsub.f32 1.0, %v2990
  %v2996 = vmul.f32 %v2995, %v2994
  %v2997 = vmul.f32 %v2990, %v2639
  %v2998 = vadd.f32 %v2996, %v2997
  %s2999 = sadd.s32 %s183, 7
  %v3000 = vstv %s2999
  %vm3001 = vcmp.lt.s32.totalorder %v3000, %v182
  %v3002 = vsel %vm3001, 1, 0
  %v3003 = vcvt.s32.f32 %v3002
  %3005 = vset.pattern.permute.xlu0 0
  %3006 = vperm.xlu0 %3005, %v3003
  %v3007 = vpop.permute.xlu0 %3006
  %v3009 = vmul.f32 %v3007, %v2998
  %v3010 = vsub.f32 1.0, %v3003
  %3012 = vset.pattern.permute.xlu0 0
  %3013 = vperm.xlu0 %3012, %v3010
  %v3014 = vpop.permute.xlu0 %3013
  %v3016 = vmul.f32 %v3014, %v2639
  %v3017 = vadd.f32 %v3009, %v3016
  %v3018 = vmul.f32 %v3007, %v3017
  %s3019 = scalar_lea.vmem %s5, 56
  %3020 = vst [vmem:[%s3019] sm:$0xff] %v3018
  %v3021 = vld [vmem:[%s53] sm:$0xff]
  %v3022 = vld [vmem:[%s53 + $0x8] sm:$0xff]
  %v3023 = vld [vmem:[%s53 + $0x10] sm:$0xff]
  %3024 = vmatprep.subr.mxu0 %v120
  %3025 = vmatpush1.msra.mxu0 %v119
  %3026 = vmatprep.subr.mxu0 %v123
  %3027 = vmatpush1.msra.mxu0 %v122
  %3028 = vmatprep.subr.mxu0 %v126
  %3029 = vmatpush1.msra.mxu0 %v125
  %3030 = vmatprep.subr.mxu0 %v129
  %3031 = vmatpush1.msra.mxu0 %v128
  %3032 = vmatprep.subr.mxu0 %v132
  %3033 = vmatpush1.msra.mxu0 %v131
  %3034 = vmatprep.subr.mxu0 %v135
  %3035 = vmatpush1.msra.mxu0 %v134
  %3036 = vmatprep.subr.mxu0 %v138
  %3037 = vmatpush1.msra.mxu0 %v137
  %3038 = vmatprep.subr.mxu0 %v141
  %3039 = vmatpush1.msra.mxu0 %v140
  %3040 = vmatprep.subr.mxu0 %v144
  %3041 = vmatpush1.msra.mxu0 %v143
  %3042 = vmatprep.subr.mxu0 %v147
  %3043 = vmatpush1.msra.mxu0 %v146
  %3044 = vmatprep.subr.mxu0 %v150
  %3045 = vmatpush1.msra.mxu0 %v149
  %3046 = vmatprep.subr.mxu0 %v153
  %3047 = vmatpush1.msra.mxu0 %v152
  %3048 = vmatprep.subr.mxu0 %v156
  %3049 = vmatpush1.msra.mxu0 %v155
  %3050 = vmatprep.subr.mxu0 %v159
  %3051 = vmatpush1.msra.mxu0 %v158
  %3052 = vmatprep.subr.mxu0 %v162
  %3053 = vmatpush1.msra.mxu0 %v161
  %3054 = vmatprep.subr.mxu0 %v165
  %3055 = vmatpush1.msra.mxu0 %v164
  %3056 = vmatprep.subr.mxu0 0.0
  %3057 = vmatpush1.msra.mxu0 0.0
  %3058 = vmatprep.subr.mxu0 0.0
  %3059 = vmatpush1.msra.mxu0 0.0
  %3060 = vmatprep.subr.mxu0 0.0
  %3061 = vmatpush1.msra.mxu0 0.0
  %3062 = vmatprep.subr.mxu0 0.0
  %3063 = vmatpush1.msra.mxu0 0.0
  %3064 = vmatprep.subr.mxu0 0.0
  %3065 = vmatpush1.msra.mxu0 0.0
  %3066 = vmatprep.subr.mxu0 0.0
  %3067 = vmatpush1.msra.mxu0 0.0
  %3068 = vmatprep.subr.mxu0 0.0
  %3069 = vmatpush1.msra.mxu0 0.0
  %3070 = vmatprep.subr.mxu0 0.0
  %3071 = vmatpush1.msra.mxu0 0.0
  %3072 = vmatprep.subr.mxu0 0.0
  %3073 = vmatpush1.msra.mxu0 0.0
  %3074 = vmatprep.subr.mxu0 0.0
  %3075 = vmatpush1.msra.mxu0 0.0
  %3076 = vmatprep.subr.mxu0 0.0
  %3077 = vmatpush1.msra.mxu0 0.0
  %3078 = vmatprep.subr.mxu0 0.0
  %3079 = vmatpush1.msra.mxu0 0.0
  %3080 = vmatprep.subr.mxu0 0.0
  %3081 = vmatpush1.msra.mxu0 0.0
  %3082 = vmatprep.subr.mxu0 0.0
  %3083 = vmatpush1.msra.mxu0 0.0
  %3084 = vmatprep.subr.mxu0 0.0
  %3085 = vmatpush1.msra.mxu0 0.0
  %3086 = vmatprep.subr.mxu0 0.0
  %3087 = vmatpush1.msra.mxu0 0.0
  %3088 = vmatprep.mubr.f32.mxu0 0.0
  %3089 = vmatmul.mubr.f32.gmra.mrb[0].mxu0 %v2828
  %v3090 = vpop.f32.mrb[0].mxu0
  %v3091 = vadd.f32 0.0, %v3090
  %v3092 = vpop.f32.mrb[0].mxu0
  %v3093 = vadd.f32 0.0, %v3092
  %3094 = vdwg.mxu0
  %3095 = vmatprep.subr.mxu0 0.0
  %3096 = vmatpush1.msra.mxu0 %v121
  %3097 = vmatprep.subr.mxu0 0.0
  %3098 = vmatpush1.msra.mxu0 %v124
  %3099 = vmatprep.subr.mxu0 0.0
  %3100 = vmatpush1.msra.mxu0 %v127
  %3101 = vmatprep.subr.mxu0 0.0
  %3102 = vmatpush1.msra.mxu0 %v130
  %3103 = vmatprep.subr.mxu0 0.0
  %3104 = vmatpush1.msra.mxu0 %v133
  %3105 = vmatprep.subr.mxu0 0.0
  %3106 = vmatpush1.msra.mxu0 %v136
  %3107 = vmatprep.subr.mxu0 0.0
  %3108 = vmatpush1.msra.mxu0 %v139
  %3109 = vmatprep.subr.mxu0 0.0
  %3110 = vmatpush1.msra.mxu0 %v142
  %3111 = vmatprep.subr.mxu0 0.0
  %3112 = vmatpush1.msra.mxu0 %v145
  %3113 = vmatprep.subr.mxu0 0.0
  %3114 = vmatpush1.msra.mxu0 %v148
  %3115 = vmatprep.subr.mxu0 0.0
  %3116 = vmatpush1.msra.mxu0 %v151
  %3117 = vmatprep.subr.mxu0 0.0
  %3118 = vmatpush1.msra.mxu0 %v154
  %3119 = vmatprep.subr.mxu0 0.0
  %3120 = vmatpush1.msra.mxu0 %v157
  %3121 = vmatprep.subr.mxu0 0.0
  %3122 = vmatpush1.msra.mxu0 %v160
  %3123 = vmatprep.subr.mxu0 0.0
  %3124 = vmatpush1.msra.mxu0 %v163
  %3125 = vmatprep.subr.mxu0 0.0
  %3126 = vmatpush1.msra.mxu0 %v166
  %3127 = vmatprep.subr.mxu0 0.0
  %3128 = vmatpush1.msra.mxu0 0.0
  %3129 = vmatprep.subr.mxu0 0.0
  %3130 = vmatpush1.msra.mxu0 0.0
  %3131 = vmatprep.subr.mxu0 0.0
  %3132 = vmatpush1.msra.mxu0 0.0
  %3133 = vmatprep.subr.mxu0 0.0
  %3134 = vmatpush1.msra.mxu0 0.0
  %3135 = vmatprep.subr.mxu0 0.0
  %3136 = vmatpush1.msra.mxu0 0.0
  %3137 = vmatprep.subr.mxu0 0.0
  %3138 = vmatpush1.msra.mxu0 0.0
  %3139 = vmatprep.subr.mxu0 0.0
  %3140 = vmatpush1.msra.mxu0 0.0
  %3141 = vmatprep.subr.mxu0 0.0
  %3142 = vmatpush1.msra.mxu0 0.0
  %3143 = vmatprep.subr.mxu0 0.0
  %3144 = vmatpush1.msra.mxu0 0.0
  %3145 = vmatprep.subr.mxu0 0.0
  %3146 = vmatpush1.msra.mxu0 0.0
  %3147 = vmatprep.subr.mxu0 0.0
  %3148 = vmatpush1.msra.mxu0 0.0
  %3149 = vmatprep.subr.mxu0 0.0
  %3150 = vmatpush1.msra.mxu0 0.0
  %3151 = vmatprep.subr.mxu0 0.0
  %3152 = vmatpush1.msra.mxu0 0.0
  %3153 = vmatprep.subr.mxu0 0.0
  %3154 = vmatpush1.msra.mxu0 0.0
  %3155 = vmatprep.subr.mxu0 0.0
  %3156 = vmatpush1.msra.mxu0 0.0
  %3157 = vmatprep.subr.mxu0 0.0
  %3158 = vmatpush1.msra.mxu0 0.0
  %3159 = vmatprep.mubr.f32.mxu0 0.0
  %3160 = vmatmul.mubr.f32.gmra.mrb[0].mxu0 %v2828
  %v3161 = vpop.f32.mrb[0].mxu0
  %v3162 = vadd.f32 0.0, %v3161
  %v3163 = vpop.f32.mrb[0].mxu0
  %3164 = vdwg.mxu0
  %v3165 = vadd.f32 %v3021, %v3091
  %v3166 = vxor.u32 %v3165, 2147483648
  %v3167 = vmul.f32 %v3166, 1.442695
  %v3168 = vpow.pop %v3167
  %v3169 = vadd.f32 %v3168, 1.0
  %v3170 = vrcp.pop %v3169
  %v3171 = vmul.f32 1.0, %v3170
  %v3172 = vadd.f32 %v3022, %v3093
  %v3173 = vxor.u32 %v3172, 2147483648
  %v3174 = vmul.f32 %v3173, 1.442695
  %v3175 = vpow.pop %v3174
  %v3176 = vadd.f32 %v3175, 1.0
  %v3177 = vrcp.pop %v3176
  %v3178 = vmul.f32 1.0, %v3177
  %v3179 = vadd.f32 %v3162, %v180
  %v3180 = vmul.f32 %v3171, %v3179
  %v3181 = vadd.f32 %v3023, %v3180
  %v3182 = vtanh.pop %v3181
  %v3183 = vsub.f32 1.0, %v3178
  %v3184 = vmul.f32 %v3183, %v3182
  %v3185 = vmul.f32 %v3178, %v2828
  %v3186 = vadd.f32 %v3184, %v3185
  %v3187 = vstv %s185
  %vm3188 = vcmp.lt.s32.totalorder %v3187, %v182
  %v3189 = vsel %vm3188, 1, 0
  %v3190 = vcvt.s32.f32 %v3189
  %3192 = vset.pattern.permute.xlu0 0
  %3193 = vperm.xlu0 %3192, %v3190
  %v3194 = vpop.permute.xlu0 %3193
  %v3196 = vmul.f32 %v3194, %v3186
  %v3197 = vsub.f32 1.0, %v3190
  %3199 = vset.pattern.permute.xlu0 0
  %3200 = vperm.xlu0 %3199, %v3197
  %v3201 = vpop.permute.xlu0 %3200
  %v3203 = vmul.f32 %v3201, %v2828
  %v3204 = vadd.f32 %v3196, %v3203
  %v3205 = vmul.f32 %v3194, %v3204
  %3206 = vst [vmem:[%s61] sm:$0xff] %v3205
  %3207 = vst [vmem:[#allocation2] sm:$0xff] %v3017
  %3208 = vst [vmem:[%s187] sm:$0xff] %v3204
  %s3209 = ssub.s32 0, 0
  %s3210 = smul.u32 8, %s3209
  %p3211 = scmp.lt.s32.totalorder %s3210, 7
  %s3212 = scalar_select %p3211, %s3210, 7
  %s3213 = smul.addr %s3212, 8
  %s3214 = scalar_lea.vmem %s6, %s3213
  // Predicated region
  $region26: #{_lambda_.3} parent=0 // pred_check
    _
  $region27: #{_lambda_.3} parent=0 // pred_check_branch
    %3216 = sbr.rel (0) target = $region29
  $region28: #{_lambda_.3} parent=0 // pred_region
    _
  $region29: #{_lambda_.3} parent=0 // pred_fallthru
    _
  // Predicated region
  $region30: #{_lambda_.3} parent=0 // pred_check
    _
  $region31: #{_lambda_.3} parent=0 // pred_check_branch
    %3218 = sbr.rel (0) target = $region33
  $region32: #{_lambda_.3} parent=0 // pred_region
    %s3219 = ssub.s32 0, 0
    %s3220 = smul.u32 8, %s3219
  $region33: #{_lambda_.3} parent=0 // pred_fallthru
    _
  // Predicated region
  $region34: #{_lambda_.3} parent=0 // pred_check
    _
  $region35: #{_lambda_.3} parent=0 // pred_check_branch
    %3222 = sbr.rel (0) target = $region37
  $region36: #{_lambda_.3} parent=0 // pred_region
    _
  $region37: #{_lambda_.3} parent=0 // pred_fallthru
    _
  // Predicated region
  $region38: #{_lambda_.3} parent=0 // pred_check
    _
  $region39: #{_lambda_.3} parent=0 // pred_check_branch
    %3224 = sbr.rel (0) target = $region41
  $region40: #{_lambda_.3} parent=0 // pred_region
    %s3225 = ssub.s32 0, 0
    %s3226 = smul.u32 8, %s3225
    %p3227 = scmp.lt.s32.totalorder %s3226, 7
    %s3228 = scalar_select %p3227, %s3226, 7
    %s3229 = smul.addr %s3228, 8
    %s3230 = scalar_lea.vmem %s6, %s3229
  $region41: #{_lambda_.3} parent=0 // pred_fallthru
    _

</llo_original>
